<compile_context>
chip_gen: v6e
topology: v6e:2x2x1
jax: 0.10.0
libtpu: 0.0.40
codegen_flags: <defaults>
</compile_context>

<pallas_src>
import math

import jax
import jax.numpy as jnp
from jax.experimental import pallas as pl
from jax.experimental.pallas import tpu as pltpu

# ----------------------------- configuration -------------------------------
INPUT_DIM = 512                       # module default 1024; scaled down
HIDDEN_DIMS = [512, 256]              # module default [2048,1536,1024,512]; scaled down
BATCH = 8
ENC_OUT = INPUT_DIM // 4              # 128
LN_EPS = 1e-5
_INV_SQRT2 = 1.0 / math.sqrt(2.0)

HEAD_HALF = HIDDEN_DIMS[-1] // 2      # 128
HEAD_OUT_DIMS = [("comprehension_score", 1),
                 ("retention_probabilities", 3),
                 ("mastery_likelihood", 1),
                 ("engagement_sustainability", 1),
                 ("success_probability", 1)]
N_HEADS = len(HEAD_OUT_DIMS)
HEAD_PACK_WIDTH = 128                 # lane-dense padded head output (cols 0..6 used)
N_PRED_BLOCKS = 2 * len(HIDDEN_DIMS)  # 4

# bf16 weight storage, bf16 x bf16 MXU matmuls, f32 accumulation.
MATMUL_DTYPE = jnp.bfloat16

N_LGL_BLOCKS = 5 + N_PRED_BLOCKS      # 4 encoders + fusion + prediction blocks = 9
N_MAT = N_LGL_BLOCKS + 2              # + packed head w1, w2 = 11
N_VEC = 3 * N_LGL_BLOCKS + 2          # (bias,gamma,beta) per block + head b1,b2 = 29

_VMEM = pl.BlockSpec(memory_space=pltpu.MemorySpace.VMEM)
_ANY = pl.BlockSpec(memory_space=pl.ANY)


def _head_slices():
    slices, col = [], 0
    for _, od in HEAD_OUT_DIMS:
        slices.append((col, od))
        col += od
    return tuple(slices)


HEAD_SLICES = _head_slices()


def _matmul_dims():
    dims = [(256, ENC_OUT), (512, ENC_OUT), (128, ENC_OUT), (128, ENC_OUT),
            (INPUT_DIM, INPUT_DIM)]
    prev = INPUT_DIM
    for hd in HIDDEN_DIMS:
        dims += [(prev, hd), (hd, hd)]
        prev = hd
    dims += [(HIDDEN_DIMS[-1], N_HEADS * HEAD_HALF),
             (N_HEADS * HEAD_HALF, HEAD_PACK_WIDTH)]
    return tuple(dims)


_MATMUL_DIMS = _matmul_dims()


# ------------------------------- kernel math --------------------------------
def _gelu_exact(x):
    # PyTorch nn.GELU (approximate='none'): 0.5*x*(1+erf(x/sqrt(2)))
    return 0.5 * x * (1.0 + jax.lax.erf(x * _INV_SQRT2))


def _layernorm_affine(h, gamma, beta):
    # centered two-pass variance (matches nn.LayerNorm, avoids cancellation)
    mean = jnp.mean(h, axis=-1, keepdims=True)
    c = h - mean
    var = jnp.mean(c * c, axis=-1, keepdims=True)
    return (c * jax.lax.rsqrt(var + LN_EPS)) * gamma + beta


def _fused_forward_kernel(*refs):
    """Entire forward pass.

    refs layout:
      [0:4]                     activation inputs (VMEM)
      [4:4+N_MAT]               weight matrices (HBM, memory_space=ANY)
      [4+N_MAT:4+N_MAT+N_VEC]   bias/gamma/beta vectors (VMEM, f32)
      next 2                    outputs: hidden_features, packed heads
      next N_MAT                VMEM scratch buffers for the weight matrices
      last                      DMA semaphore array, shape (N_MAT,)
    """
    acts = refs[0:4]
    mats_hbm = refs[4:4 + N_MAT]
    vecs = refs[4 + N_MAT:4 + N_MAT + N_VEC]
    hidden_out = refs[4 + N_MAT + N_VEC]
    heads_out = refs[4 + N_MAT + N_VEC + 1]
    mats_vmem = refs[4 + N_MAT + N_VEC + 2:4 + N_MAT + N_VEC + 2 + N_MAT]
    sem = refs[-1]

    # Kick off ALL weight DMAs up front; wait lazily right before each use so
    # later layers' weight fetch overlaps earlier layers' compute.
    copies = []
    for i in range(N_MAT):
        cp = pltpu.make_async_copy(mats_hbm[i], mats_vmem[i], sem.at[i])
        cp.start()
        copies.append(cp)

    def weight(i):
        copies[i].wait()
        return mats_vmem[i]

    def vec(j):
        return vecs[j][...].astype(jnp.float32)

    def lgl(x, mi, vj):
        # Linear -> GELU -> LayerNorm (Dropout = identity at inference)
        w = weight(mi)[...]
        h = jnp.dot(x.astype(MATMUL_DTYPE), w,
                    preferred_element_type=jnp.float32) + vec(vj)
        return _layernorm_affine(_gelu_exact(h), vec(vj + 1), vec(vj + 2))

    # four modality encoders
    b_enc = lgl(acts[0][...].astype(jnp.float32), 0, 0)
    c_enc = lgl(acts[1][...].astype(jnp.float32), 1, 3)
    t_enc = lgl(acts[2][...].astype(jnp.float32), 2, 6)
    x_enc = lgl(acts[3][...].astype(jnp.float32), 3, 9)

    # fusion layer, concat-free: four accumulated partial matmuls against
    # 128-row (tile-aligned) slices of the (512,512) fusion weight.
    wf = weight(4)
    acc = jnp.dot(b_enc.astype(MATMUL_DTYPE), wf[0 * ENC_OUT:1 * ENC_OUT, :],
                  preferred_element_type=jnp.float32)
    acc = acc + jnp.dot(c_enc.astype(MATMUL_DTYPE), wf[1 * ENC_OUT:2 * ENC_OUT, :],
                        preferred_element_type=jnp.float32)
    acc = acc + jnp.dot(t_enc.astype(MATMUL_DTYPE), wf[2 * ENC_OUT:3 * ENC_OUT, :],
                        preferred_element_type=jnp.float32)
    acc = acc + jnp.dot(x_enc.astype(MATMUL_DTYPE), wf[3 * ENC_OUT:4 * ENC_OUT, :],
                        preferred_element_type=jnp.float32)
    fused = _layernorm_affine(_gelu_exact(acc + vec(12)), vec(13), vec(14))

    # prediction network: 2 blocks per hidden_dim
    hidden = fused
    for blk in range(N_PRED_BLOCKS):
        hidden = lgl(hidden, 5 + blk, 15 + 3 * blk)

    # packed heads:
    #   l1: five (256,128) weights concatenated -> one (256,640) matmul + GELU
    #   l2: five tiny projections packed block-diagonally -> one (640,128) matmul
    w1 = weight(5 + N_PRED_BLOCKS)[...]
    h1 = _gelu_exact(jnp.dot(hidden.astype(MATMUL_DTYPE), w1,
                             preferred_element_type=jnp.float32)
                     + vec(15 + 3 * N_PRED_BLOCKS))
    w2 = weight(6 + N_PRED_BLOCKS)[...]
    heads = jax.nn.sigmoid(jnp.dot(h1.astype(MATMUL_DTYPE), w2,
                                   preferred_element_type=jnp.float32)
                           + vec(16 + 3 * N_PRED_BLOCKS))

    hidden_out[...] = hidden.astype(hidden_out.dtype)
    heads_out[...] = heads.astype(heads_out.dtype)   # lane-dense (batch, 128) store


# --------------------------- parameter init ----------------------------------
def _xavier_uniform(key, fan_in, fan_out):
    bound = math.sqrt(6.0 / (fan_in + fan_out))
    # stored (in, out) so the kernel computes x @ W directly
    return jax.random.uniform(key, (fan_in, fan_out), jnp.float32, -bound, bound)


def _lgl_params(key, fan_in, fan_out):
    # bias / gamma / beta stored (1, out) once -> no per-forward reshape
    return {
        "w": _xavier_uniform(key, fan_in, fan_out).astype(MATMUL_DTYPE),
        "b": jnp.zeros((1, fan_out), jnp.float32),
        "gamma": jnp.ones((1, fan_out), jnp.float32),
        "beta": jnp.zeros((1, fan_out), jnp.float32),
    }


def _head_params(key, fan_in, half, out_dim):
    k1, k2 = jax.random.split(key)
    return {
        "w1": _xavier_uniform(k1, fan_in, half),
        "b1": jnp.zeros((half,), jnp.float32),
        "w2": _xavier_uniform(k2, half, out_dim),
        "b2": jnp.zeros((out_dim,), jnp.float32),
    }


def _pack_heads(head_list):
    """Merge 5 heads: concat l1 weights; block-diagonal-pack l2 into (640, 128)."""
    w1 = jnp.concatenate([h["w1"] for h in head_list], axis=1)          # (hd, 640)
    b1 = jnp.concatenate([h["b1"] for h in head_list])[None, :]         # (1, 640)
    w2 = jnp.zeros((N_HEADS * HEAD_HALF, HEAD_PACK_WIDTH), jnp.float32)
    b2 = jnp.zeros((1, HEAD_PACK_WIDTH), jnp.float32)
    for i, (h, (col, od)) in enumerate(zip(head_list, HEAD_SLICES)):
        w2 = w2.at[i * HEAD_HALF:(i + 1) * HEAD_HALF, col:col + od].set(h["w2"])
        b2 = b2.at[0, col:col + od].set(h["b2"])
    return {"w1": w1.astype(MATMUL_DTYPE), "b1": b1,
            "w2": w2.astype(MATMUL_DTYPE), "b2": b2}


def init_params(key):
    keys = iter(jax.random.split(key, 32))
    params = {}

    params["behavioral"] = _lgl_params(next(keys), 256, ENC_OUT)
    params["cognitive"] = _lgl_params(next(keys), 512, ENC_OUT)
    params["temporal"] = _lgl_params(next(keys), 128, ENC_OUT)
    params["contextual"] = _lgl_params(next(keys), 128, ENC_OUT)
    params["fusion"] = _lgl_params(next(keys), INPUT_DIM, INPUT_DIM)

    pred = []
    prev = INPUT_DIM
    for hd in HIDDEN_DIMS:
        pred.append(_lgl_params(next(keys), prev, hd))
        pred.append(_lgl_params(next(keys), hd, hd))
        prev = hd
    params["prediction"] = pred

    head_list = [_head_params(next(keys), HIDDEN_DIMS[-1], HEAD_HALF, od)
                 for _, od in HEAD_OUT_DIMS]
    params["heads"] = _pack_heads(head_list)
    return params


def _flatten_params(params):
    """Return (matrices, vectors) in the order the kernel expects."""
    mats, vecs = [], []
    block_params = [params[n] for n in
                    ("behavioral", "cognitive", "temporal", "contextual", "fusion")]
    block_params += list(params["prediction"])
    for p in block_params:
        mats.append(p["w"])
        vecs += [p["b"], p["gamma"], p["beta"]]
    h = params["heads"]
    mats += [h["w1"], h["w2"]]
    vecs += [h["b1"], h["b2"]]
    assert len(mats) == N_MAT and len(vecs) == N_VEC
    return mats, vecs


# ------------------------------ forward --------------------------------------
def forward(params, behavioral, cognitive, temporal, contextual):
    batch = behavioral.shape[0]
    mats, vecs = _flatten_params(params)
    acts = [behavioral, cognitive, temporal, contextual]
    flat = acts + mats + vecs

    out_shapes = (
        jax.ShapeDtypeStruct((batch, HIDDEN_DIMS[-1]), jnp.float32),    # hidden_features
        jax.ShapeDtypeStruct((batch, HEAD_PACK_WIDTH), jnp.float32),    # packed heads
    )

    in_specs = [_VMEM] * 4 + [_ANY] * N_MAT + [_VMEM] * N_VEC
    scratch_shapes = ([pltpu.VMEM(m.shape, MATMUL_DTYPE) for m in mats]
                      + [pltpu.SemaphoreType.DMA((N_MAT,))])

    flops = 2 * batch * sum(k * n for k, n in _MATMUL_DIMS)
    transcendentals = batch * sum(n for _, n in _MATMUL_DIMS)
    bytes_accessed = (sum(int(x.size) * x.dtype.itemsize for x in flat)
                      + sum(math.prod(s.shape) * s.dtype.itemsize for s in out_shapes))

    hidden, heads = pl.pallas_call(
        _fused_forward_kernel,
        out_shape=out_shapes,
        in_specs=in_specs,
        out_specs=(_VMEM, _VMEM),
        scratch_shapes=scratch_shapes,
        compiler_params=pltpu.CompilerParams(vmem_limit_bytes=12 * 1024 * 1024),
        cost_estimate=pl.CostEstimate(flops=flops,
                                      transcendentals=transcendentals,
                                      bytes_accessed=bytes_accessed),
    )(*flat)

    results = {"hidden_features": hidden}
    for (name, _), (col, od) in zip(HEAD_OUT_DIMS, HEAD_SLICES):
        results[name] = heads[:, col:col + od]
    return results


# ------------------------- pure-JAX reference --------------------------------
def _reference_forward(params, behavioral, cognitive, temporal, contextual):
    def lgl(x, p):
        h = jnp.dot(x.astype(MATMUL_DTYPE), p["w"],
                    preferred_element_type=jnp.float32) + p["b"]
        return _layernorm_affine(_gelu_exact(h), p["gamma"], p["beta"])

    b_enc = lgl(behavioral, params["behavioral"])
    c_enc = lgl(cognitive, params["cognitive"])
    t_enc = lgl(temporal, params["temporal"])
    x_enc = lgl(contextual, params["contextual"])
    fused = lgl(jnp.concatenate([b_enc, c_enc, t_enc, x_enc], axis=-1),
                params["fusion"])
    hidden = fused
    for blk in params["prediction"]:
        hidden = lgl(hidden, blk)
    hd = params["heads"]
    h1 = _gelu_exact(jnp.dot(hidden.astype(MATMUL_DTYPE), hd["w1"],
                             preferred_element_type=jnp.float32) + hd["b1"])
    heads = jax.nn.sigmoid(jnp.dot(h1.astype(MATMUL_DTYPE), hd["w2"],
                                   preferred_element_type=jnp.float32) + hd["b2"])
    out = {"hidden_features": hidden}
    for (name, _), (col, od) in zip(HEAD_OUT_DIMS, HEAD_SLICES):
        out[name] = heads[:, col:col + od]
    return out


# -------------------------------- main ----------------------------------------
if __name__ == "__main__":
    key = jax.random.PRNGKey(0)
    k_param, k_b, k_c, k_t, k_x = jax.random.split(key, 5)

    params = init_params(k_param)

    behavioral = jax.random.normal(k_b, (BATCH, 256), jnp.float32)
    cognitive = jax.random.normal(k_c, (BATCH, 512), jnp.float32)
    temporal = jax.random.normal(k_t, (BATCH, 128), jnp.float32)
    contextual = jax.random.normal(k_x, (BATCH, 128), jnp.float32)

    out = jax.jit(forward)(params, behavioral, cognitive, temporal, contextual)
    jax.block_until_ready(out)

    assert out["comprehension_score"].shape == (BATCH, 1)
    assert out["retention_probabilities"].shape == (BATCH, 3)
    assert out["mastery_likelihood"].shape == (BATCH, 1)
    assert out["engagement_sustainability"].shape == (BATCH, 1)
    assert out["success_probability"].shape == (BATCH, 1)
    assert out["hidden_features"].shape == (BATCH, HIDDEN_DIMS[-1])

    # numerical check against a plain-JAX reference with identical numerics
    ref = jax.jit(_reference_forward)(params, behavioral, cognitive,
                                      temporal, contextual)
    for name in ref:
        assert jnp.allclose(out[name], ref[name], atol=2e-3, rtol=2e-3), name

    print("KERNEL_OK")
</pallas_src>

<mosaic_0001>
module attributes {stable_mosaic.version = 11 : i64} {
  func.func @_fused_forward_kernel(%arg0: memref<8x256xf32, #tpu.memory_space<vmem>>, %arg1: memref<8x512xf32, #tpu.memory_space<vmem>>, %arg2: memref<8x128xf32, #tpu.memory_space<vmem>>, %arg3: memref<8x128xf32, #tpu.memory_space<vmem>>, %arg4: memref<256x128xbf16, #tpu.memory_space<any>>, %arg5: memref<512x128xbf16, #tpu.memory_space<any>>, %arg6: memref<128x128xbf16, #tpu.memory_space<any>>, %arg7: memref<128x128xbf16, #tpu.memory_space<any>>, %arg8: memref<512x512xbf16, #tpu.memory_space<any>>, %arg9: memref<512x512xbf16, #tpu.memory_space<any>>, %arg10: memref<512x512xbf16, #tpu.memory_space<any>>, %arg11: memref<512x256xbf16, #tpu.memory_space<any>>, %arg12: memref<256x256xbf16, #tpu.memory_space<any>>, %arg13: memref<256x640xbf16, #tpu.memory_space<any>>, %arg14: memref<640x128xbf16, #tpu.memory_space<any>>, %arg15: memref<1x128xf32, #tpu.memory_space<vmem>>, %arg16: memref<1x128xf32, #tpu.memory_space<vmem>>, %arg17: memref<1x128xf32, #tpu.memory_space<vmem>>, %arg18: memref<1x128xf32, #tpu.memory_space<vmem>>, %arg19: memref<1x128xf32, #tpu.memory_space<vmem>>, %arg20: memref<1x128xf32, #tpu.memory_space<vmem>>, %arg21: memref<1x128xf32, #tpu.memory_space<vmem>>, %arg22: memref<1x128xf32, #tpu.memory_space<vmem>>, %arg23: memref<1x128xf32, #tpu.memory_space<vmem>>, %arg24: memref<1x128xf32, #tpu.memory_space<vmem>>, %arg25: memref<1x128xf32, #tpu.memory_space<vmem>>, %arg26: memref<1x128xf32, #tpu.memory_space<vmem>>, %arg27: memref<1x512xf32, #tpu.memory_space<vmem>>, %arg28: memref<1x512xf32, #tpu.memory_space<vmem>>, %arg29: memref<1x512xf32, #tpu.memory_space<vmem>>, %arg30: memref<1x512xf32, #tpu.memory_space<vmem>>, %arg31: memref<1x512xf32, #tpu.memory_space<vmem>>, %arg32: memref<1x512xf32, #tpu.memory_space<vmem>>, %arg33: memref<1x512xf32, #tpu.memory_space<vmem>>, %arg34: memref<1x512xf32, #tpu.memory_space<vmem>>, %arg35: memref<1x512xf32, #tpu.memory_space<vmem>>, %arg36: memref<1x256xf32, #tpu.memory_space<vmem>>, %arg37: memref<1x256xf32, #tpu.memory_space<vmem>>, %arg38: memref<1x256xf32, #tpu.memory_space<vmem>>, %arg39: memref<1x256xf32, #tpu.memory_space<vmem>>, %arg40: memref<1x256xf32, #tpu.memory_space<vmem>>, %arg41: memref<1x256xf32, #tpu.memory_space<vmem>>, %arg42: memref<1x640xf32, #tpu.memory_space<vmem>>, %arg43: memref<1x128xf32, #tpu.memory_space<vmem>>, %arg44: memref<8x256xf32, #tpu.memory_space<vmem>>, %arg45: memref<8x128xf32, #tpu.memory_space<vmem>>, %arg46: memref<256x128xbf16, #tpu.memory_space<vmem>>, %arg47: memref<512x128xbf16, #tpu.memory_space<vmem>>, %arg48: memref<128x128xbf16, #tpu.memory_space<vmem>>, %arg49: memref<128x128xbf16, #tpu.memory_space<vmem>>, %arg50: memref<512x512xbf16, #tpu.memory_space<vmem>>, %arg51: memref<512x512xbf16, #tpu.memory_space<vmem>>, %arg52: memref<512x512xbf16, #tpu.memory_space<vmem>>, %arg53: memref<512x256xbf16, #tpu.memory_space<vmem>>, %arg54: memref<256x256xbf16, #tpu.memory_space<vmem>>, %arg55: memref<256x640xbf16, #tpu.memory_space<vmem>>, %arg56: memref<640x128xbf16, #tpu.memory_space<vmem>>, %arg57: memref<11x!tpu.dma_semaphore, #tpu.memory_space<semaphore_mem>>) attributes {dimension_semantics = [], scalar_prefetch = 0 : i64, scratch_operands = 12 : i64, tpu.core_type = #tpu.core_type<tc>} {
    %c0_i32 = arith.constant 0 : i32
    %0 = tpu.memref_slice %arg57[%c0_i32] : memref<11x!tpu.dma_semaphore, #tpu.memory_space<semaphore_mem>> -> memref<1x!tpu.dma_semaphore, #tpu.memory_space<semaphore_mem>>
    %1 = tpu.memref_squeeze %0 : memref<1x!tpu.dma_semaphore, #tpu.memory_space<semaphore_mem>> -> memref<!tpu.dma_semaphore, #tpu.memory_space<semaphore_mem>>
    tpu.enqueue_dma source(%arg4 : memref<256x128xbf16, #tpu.memory_space<any>>) target(%arg46 : memref<256x128xbf16, #tpu.memory_space<vmem>>) target_semaphore(%1 : memref<!tpu.dma_semaphore, #tpu.memory_space<semaphore_mem>>)
    %c1_i32 = arith.constant 1 : i32
    %2 = tpu.memref_slice %arg57[%c1_i32] : memref<11x!tpu.dma_semaphore, #tpu.memory_space<semaphore_mem>> -> memref<1x!tpu.dma_semaphore, #tpu.memory_space<semaphore_mem>>
    %3 = tpu.memref_squeeze %2 : memref<1x!tpu.dma_semaphore, #tpu.memory_space<semaphore_mem>> -> memref<!tpu.dma_semaphore, #tpu.memory_space<semaphore_mem>>
    tpu.enqueue_dma source(%arg5 : memref<512x128xbf16, #tpu.memory_space<any>>) target(%arg47 : memref<512x128xbf16, #tpu.memory_space<vmem>>) target_semaphore(%3 : memref<!tpu.dma_semaphore, #tpu.memory_space<semaphore_mem>>)
    %c2_i32 = arith.constant 2 : i32
    %4 = tpu.memref_slice %arg57[%c2_i32] : memref<11x!tpu.dma_semaphore, #tpu.memory_space<semaphore_mem>> -> memref<1x!tpu.dma_semaphore, #tpu.memory_space<semaphore_mem>>
    %5 = tpu.memref_squeeze %4 : memref<1x!tpu.dma_semaphore, #tpu.memory_space<semaphore_mem>> -> memref<!tpu.dma_semaphore, #tpu.memory_space<semaphore_mem>>
    tpu.enqueue_dma source(%arg6 : memref<128x128xbf16, #tpu.memory_space<any>>) target(%arg48 : memref<128x128xbf16, #tpu.memory_space<vmem>>) target_semaphore(%5 : memref<!tpu.dma_semaphore, #tpu.memory_space<semaphore_mem>>)
    %c3_i32 = arith.constant 3 : i32
    %6 = tpu.memref_slice %arg57[%c3_i32] : memref<11x!tpu.dma_semaphore, #tpu.memory_space<semaphore_mem>> -> memref<1x!tpu.dma_semaphore, #tpu.memory_space<semaphore_mem>>
    %7 = tpu.memref_squeeze %6 : memref<1x!tpu.dma_semaphore, #tpu.memory_space<semaphore_mem>> -> memref<!tpu.dma_semaphore, #tpu.memory_space<semaphore_mem>>
    tpu.enqueue_dma source(%arg7 : memref<128x128xbf16, #tpu.memory_space<any>>) target(%arg49 : memref<128x128xbf16, #tpu.memory_space<vmem>>) target_semaphore(%7 : memref<!tpu.dma_semaphore, #tpu.memory_space<semaphore_mem>>)
    %c4_i32 = arith.constant 4 : i32
    %8 = tpu.memref_slice %arg57[%c4_i32] : memref<11x!tpu.dma_semaphore, #tpu.memory_space<semaphore_mem>> -> memref<1x!tpu.dma_semaphore, #tpu.memory_space<semaphore_mem>>
    %9 = tpu.memref_squeeze %8 : memref<1x!tpu.dma_semaphore, #tpu.memory_space<semaphore_mem>> -> memref<!tpu.dma_semaphore, #tpu.memory_space<semaphore_mem>>
    tpu.enqueue_dma source(%arg8 : memref<512x512xbf16, #tpu.memory_space<any>>) target(%arg50 : memref<512x512xbf16, #tpu.memory_space<vmem>>) target_semaphore(%9 : memref<!tpu.dma_semaphore, #tpu.memory_space<semaphore_mem>>)
    %c5_i32 = arith.constant 5 : i32
    %10 = tpu.memref_slice %arg57[%c5_i32] : memref<11x!tpu.dma_semaphore, #tpu.memory_space<semaphore_mem>> -> memref<1x!tpu.dma_semaphore, #tpu.memory_space<semaphore_mem>>
    %11 = tpu.memref_squeeze %10 : memref<1x!tpu.dma_semaphore, #tpu.memory_space<semaphore_mem>> -> memref<!tpu.dma_semaphore, #tpu.memory_space<semaphore_mem>>
    tpu.enqueue_dma source(%arg9 : memref<512x512xbf16, #tpu.memory_space<any>>) target(%arg51 : memref<512x512xbf16, #tpu.memory_space<vmem>>) target_semaphore(%11 : memref<!tpu.dma_semaphore, #tpu.memory_space<semaphore_mem>>)
    %c6_i32 = arith.constant 6 : i32
    %12 = tpu.memref_slice %arg57[%c6_i32] : memref<11x!tpu.dma_semaphore, #tpu.memory_space<semaphore_mem>> -> memref<1x!tpu.dma_semaphore, #tpu.memory_space<semaphore_mem>>
    %13 = tpu.memref_squeeze %12 : memref<1x!tpu.dma_semaphore, #tpu.memory_space<semaphore_mem>> -> memref<!tpu.dma_semaphore, #tpu.memory_space<semaphore_mem>>
    tpu.enqueue_dma source(%arg10 : memref<512x512xbf16, #tpu.memory_space<any>>) target(%arg52 : memref<512x512xbf16, #tpu.memory_space<vmem>>) target_semaphore(%13 : memref<!tpu.dma_semaphore, #tpu.memory_space<semaphore_mem>>)
    %c7_i32 = arith.constant 7 : i32
    %14 = tpu.memref_slice %arg57[%c7_i32] : memref<11x!tpu.dma_semaphore, #tpu.memory_space<semaphore_mem>> -> memref<1x!tpu.dma_semaphore, #tpu.memory_space<semaphore_mem>>
    %15 = tpu.memref_squeeze %14 : memref<1x!tpu.dma_semaphore, #tpu.memory_space<semaphore_mem>> -> memref<!tpu.dma_semaphore, #tpu.memory_space<semaphore_mem>>
    tpu.enqueue_dma source(%arg11 : memref<512x256xbf16, #tpu.memory_space<any>>) target(%arg53 : memref<512x256xbf16, #tpu.memory_space<vmem>>) target_semaphore(%15 : memref<!tpu.dma_semaphore, #tpu.memory_space<semaphore_mem>>)
    %c8_i32 = arith.constant 8 : i32
    %16 = tpu.memref_slice %arg57[%c8_i32] : memref<11x!tpu.dma_semaphore, #tpu.memory_space<semaphore_mem>> -> memref<1x!tpu.dma_semaphore, #tpu.memory_space<semaphore_mem>>
    %17 = tpu.memref_squeeze %16 : memref<1x!tpu.dma_semaphore, #tpu.memory_space<semaphore_mem>> -> memref<!tpu.dma_semaphore, #tpu.memory_space<semaphore_mem>>
    tpu.enqueue_dma source(%arg12 : memref<256x256xbf16, #tpu.memory_space<any>>) target(%arg54 : memref<256x256xbf16, #tpu.memory_space<vmem>>) target_semaphore(%17 : memref<!tpu.dma_semaphore, #tpu.memory_space<semaphore_mem>>)
    %c9_i32 = arith.constant 9 : i32
    %18 = tpu.memref_slice %arg57[%c9_i32] : memref<11x!tpu.dma_semaphore, #tpu.memory_space<semaphore_mem>> -> memref<1x!tpu.dma_semaphore, #tpu.memory_space<semaphore_mem>>
    %19 = tpu.memref_squeeze %18 : memref<1x!tpu.dma_semaphore, #tpu.memory_space<semaphore_mem>> -> memref<!tpu.dma_semaphore, #tpu.memory_space<semaphore_mem>>
    tpu.enqueue_dma source(%arg13 : memref<256x640xbf16, #tpu.memory_space<any>>) target(%arg55 : memref<256x640xbf16, #tpu.memory_space<vmem>>) target_semaphore(%19 : memref<!tpu.dma_semaphore, #tpu.memory_space<semaphore_mem>>)
    %c10_i32 = arith.constant 10 : i32
    %20 = tpu.memref_slice %arg57[%c10_i32] : memref<11x!tpu.dma_semaphore, #tpu.memory_space<semaphore_mem>> -> memref<1x!tpu.dma_semaphore, #tpu.memory_space<semaphore_mem>>
    %21 = tpu.memref_squeeze %20 : memref<1x!tpu.dma_semaphore, #tpu.memory_space<semaphore_mem>> -> memref<!tpu.dma_semaphore, #tpu.memory_space<semaphore_mem>>
    tpu.enqueue_dma source(%arg14 : memref<640x128xbf16, #tpu.memory_space<any>>) target(%arg56 : memref<640x128xbf16, #tpu.memory_space<vmem>>) target_semaphore(%21 : memref<!tpu.dma_semaphore, #tpu.memory_space<semaphore_mem>>)
    %c0 = arith.constant 0 : index
    %c0_0 = arith.constant 0 : index
    %22 = vector.load %arg0[%c0, %c0_0] : memref<8x256xf32, #tpu.memory_space<vmem>>, vector<8x256xf32>
    %c0_i32_1 = arith.constant 0 : i32
    %23 = tpu.memref_slice %arg57[%c0_i32_1] : memref<11x!tpu.dma_semaphore, #tpu.memory_space<semaphore_mem>> -> memref<1x!tpu.dma_semaphore, #tpu.memory_space<semaphore_mem>>
    %24 = tpu.memref_squeeze %23 : memref<1x!tpu.dma_semaphore, #tpu.memory_space<semaphore_mem>> -> memref<!tpu.dma_semaphore, #tpu.memory_space<semaphore_mem>>
    tpu.wait_dma2 semaphore(%24 : memref<!tpu.dma_semaphore, #tpu.memory_space<semaphore_mem>>) src(%arg4 : memref<256x128xbf16, #tpu.memory_space<any>>) dst(%arg46 : memref<256x128xbf16, #tpu.memory_space<vmem>>)
    %c0_2 = arith.constant 0 : index
    %c0_3 = arith.constant 0 : index
    %25 = vector.load %arg46[%c0_2, %c0_3] : memref<256x128xbf16, #tpu.memory_space<vmem>>, vector<256x128xbf16>
    %26 = arith.truncf %22 : vector<8x256xf32> to vector<8x256xbf16>
    %cst = arith.constant dense<0.000000e+00> : vector<8x128xf32>
    %27 = tpu.matmul %26, %25, %cst {dimension_numbers = #tpu.dot_dimension_numbers<[1], [0], [0], [1], [0, 0, 1, 1], [], []>} : vector<8x256xbf16>, vector<256x128xbf16>, vector<8x128xf32> -> vector<8x128xf32>
    %c0_4 = arith.constant 0 : index
    %c0_5 = arith.constant 0 : index
    %28 = vector.load %arg15[%c0_4, %c0_5] : memref<1x128xf32, #tpu.memory_space<vmem>>, vector<1x128xf32>
    %29 = vector.broadcast %28 : vector<1x128xf32> to vector<8x128xf32>
    %30 = arith.addf %27, %29 : vector<8x128xf32>
    %cst_6 = arith.constant 5.000000e-01 : f32
    %31 = vector.broadcast %cst_6 : f32 to vector<8x128xf32>
    %32 = arith.mulf %31, %30 : vector<8x128xf32>
    %cst_7 = arith.constant 0.707106769 : f32
    %33 = vector.broadcast %cst_7 : f32 to vector<8x128xf32>
    %34 = arith.mulf %30, %33 : vector<8x128xf32>
    %35 = math.erf %34 : vector<8x128xf32>
    %cst_8 = arith.constant 1.000000e+00 : f32
    %36 = vector.broadcast %cst_8 : f32 to vector<8x128xf32>
    %37 = arith.addf %36, %35 : vector<8x128xf32>
    %38 = arith.mulf %32, %37 : vector<8x128xf32>
    %c0_9 = arith.constant 0 : index
    %c0_10 = arith.constant 0 : index
    %39 = vector.load %arg16[%c0_9, %c0_10] : memref<1x128xf32, #tpu.memory_space<vmem>>, vector<1x128xf32>
    %c0_11 = arith.constant 0 : index
    %c0_12 = arith.constant 0 : index
    %40 = vector.load %arg17[%c0_11, %c0_12] : memref<1x128xf32, #tpu.memory_space<vmem>>, vector<1x128xf32>
    %cst_13 = arith.constant dense<0.000000e+00> : vector<8xf32>
    %41 = vector.multi_reduction <add>, %38, %cst_13 [1] : vector<8x128xf32> to vector<8xf32>
    %42 = vector.shape_cast %41 : vector<8xf32> to vector<8x1xf32>
    %cst_14 = arith.constant 1.280000e+02 : f32
    %43 = vector.broadcast %cst_14 : f32 to vector<8x1xf32>
    %44 = arith.divf %42, %43 : vector<8x1xf32>
    %45 = vector.broadcast %44 : vector<8x1xf32> to vector<8x128xf32>
    %46 = arith.subf %38, %45 : vector<8x128xf32>
    %47 = arith.mulf %46, %46 : vector<8x128xf32>
    %cst_15 = arith.constant dense<0.000000e+00> : vector<8xf32>
    %48 = vector.multi_reduction <add>, %47, %cst_15 [1] : vector<8x128xf32> to vector<8xf32>
    %49 = vector.shape_cast %48 : vector<8xf32> to vector<8x1xf32>
    %cst_16 = arith.constant 1.280000e+02 : f32
    %50 = vector.broadcast %cst_16 : f32 to vector<8x1xf32>
    %51 = arith.divf %49, %50 : vector<8x1xf32>
    %cst_17 = arith.constant 9.99999974E-6 : f32
    %52 = vector.broadcast %cst_17 : f32 to vector<8x1xf32>
    %53 = arith.addf %51, %52 : vector<8x1xf32>
    %54 = math.rsqrt %53 : vector<8x1xf32>
    %55 = vector.broadcast %54 : vector<8x1xf32> to vector<8x128xf32>
    %56 = arith.mulf %46, %55 : vector<8x128xf32>
    %57 = vector.broadcast %39 : vector<1x128xf32> to vector<8x128xf32>
    %58 = arith.mulf %56, %57 : vector<8x128xf32>
    %59 = vector.broadcast %40 : vector<1x128xf32> to vector<8x128xf32>
    %60 = arith.addf %58, %59 : vector<8x128xf32>
    %c0_18 = arith.constant 0 : index
    %c0_19 = arith.constant 0 : index
    %61 = vector.load %arg1[%c0_18, %c0_19] : memref<8x512xf32, #tpu.memory_space<vmem>>, vector<8x512xf32>
    %c1_i32_20 = arith.constant 1 : i32
    %62 = tpu.memref_slice %arg57[%c1_i32_20] : memref<11x!tpu.dma_semaphore, #tpu.memory_space<semaphore_mem>> -> memref<1x!tpu.dma_semaphore, #tpu.memory_space<semaphore_mem>>
    %63 = tpu.memref_squeeze %62 : memref<1x!tpu.dma_semaphore, #tpu.memory_space<semaphore_mem>> -> memref<!tpu.dma_semaphore, #tpu.memory_space<semaphore_mem>>
    tpu.wait_dma2 semaphore(%63 : memref<!tpu.dma_semaphore, #tpu.memory_space<semaphore_mem>>) src(%arg5 : memref<512x128xbf16, #tpu.memory_space<any>>) dst(%arg47 : memref<512x128xbf16, #tpu.memory_space<vmem>>)
    %c0_21 = arith.constant 0 : index
    %c0_22 = arith.constant 0 : index
    %64 = vector.load %arg47[%c0_21, %c0_22] : memref<512x128xbf16, #tpu.memory_space<vmem>>, vector<512x128xbf16>
    %65 = arith.truncf %61 : vector<8x512xf32> to vector<8x512xbf16>
    %cst_23 = arith.constant dense<0.000000e+00> : vector<8x128xf32>
    %66 = tpu.matmul %65, %64, %cst_23 {dimension_numbers = #tpu.dot_dimension_numbers<[1], [0], [0], [1], [0, 0, 1, 1], [], []>} : vector<8x512xbf16>, vector<512x128xbf16>, vector<8x128xf32> -> vector<8x128xf32>
    %c0_24 = arith.constant 0 : index
    %c0_25 = arith.constant 0 : index
    %67 = vector.load %arg18[%c0_24, %c0_25] : memref<1x128xf32, #tpu.memory_space<vmem>>, vector<1x128xf32>
    %68 = vector.broadcast %67 : vector<1x128xf32> to vector<8x128xf32>
    %69 = arith.addf %66, %68 : vector<8x128xf32>
    %cst_26 = arith.constant 5.000000e-01 : f32
    %70 = vector.broadcast %cst_26 : f32 to vector<8x128xf32>
    %71 = arith.mulf %70, %69 : vector<8x128xf32>
    %cst_27 = arith.constant 0.707106769 : f32
    %72 = vector.broadcast %cst_27 : f32 to vector<8x128xf32>
    %73 = arith.mulf %69, %72 : vector<8x128xf32>
    %74 = math.erf %73 : vector<8x128xf32>
    %cst_28 = arith.constant 1.000000e+00 : f32
    %75 = vector.broadcast %cst_28 : f32 to vector<8x128xf32>
    %76 = arith.addf %75, %74 : vector<8x128xf32>
    %77 = arith.mulf %71, %76 : vector<8x128xf32>
    %c0_29 = arith.constant 0 : index
    %c0_30 = arith.constant 0 : index
    %78 = vector.load %arg19[%c0_29, %c0_30] : memref<1x128xf32, #tpu.memory_space<vmem>>, vector<1x128xf32>
    %c0_31 = arith.constant 0 : index
    %c0_32 = arith.constant 0 : index
    %79 = vector.load %arg20[%c0_31, %c0_32] : memref<1x128xf32, #tpu.memory_space<vmem>>, vector<1x128xf32>
    %cst_33 = arith.constant dense<0.000000e+00> : vector<8xf32>
    %80 = vector.multi_reduction <add>, %77, %cst_33 [1] : vector<8x128xf32> to vector<8xf32>
    %81 = vector.shape_cast %80 : vector<8xf32> to vector<8x1xf32>
    %cst_34 = arith.constant 1.280000e+02 : f32
    %82 = vector.broadcast %cst_34 : f32 to vector<8x1xf32>
    %83 = arith.divf %81, %82 : vector<8x1xf32>
    %84 = vector.broadcast %83 : vector<8x1xf32> to vector<8x128xf32>
    %85 = arith.subf %77, %84 : vector<8x128xf32>
    %86 = arith.mulf %85, %85 : vector<8x128xf32>
    %cst_35 = arith.constant dense<0.000000e+00> : vector<8xf32>
    %87 = vector.multi_reduction <add>, %86, %cst_35 [1] : vector<8x128xf32> to vector<8xf32>
    %88 = vector.shape_cast %87 : vector<8xf32> to vector<8x1xf32>
    %cst_36 = arith.constant 1.280000e+02 : f32
    %89 = vector.broadcast %cst_36 : f32 to vector<8x1xf32>
    %90 = arith.divf %88, %89 : vector<8x1xf32>
    %cst_37 = arith.constant 9.99999974E-6 : f32
    %91 = vector.broadcast %cst_37 : f32 to vector<8x1xf32>
    %92 = arith.addf %90, %91 : vector<8x1xf32>
    %93 = math.rsqrt %92 : vector<8x1xf32>
    %94 = vector.broadcast %93 : vector<8x1xf32> to vector<8x128xf32>
    %95 = arith.mulf %85, %94 : vector<8x128xf32>
    %96 = vector.broadcast %78 : vector<1x128xf32> to vector<8x128xf32>
    %97 = arith.mulf %95, %96 : vector<8x128xf32>
    %98 = vector.broadcast %79 : vector<1x128xf32> to vector<8x128xf32>
    %99 = arith.addf %97, %98 : vector<8x128xf32>
    %c0_38 = arith.constant 0 : index
    %c0_39 = arith.constant 0 : index
    %100 = vector.load %arg2[%c0_38, %c0_39] : memref<8x128xf32, #tpu.memory_space<vmem>>, vector<8x128xf32>
    %c2_i32_40 = arith.constant 2 : i32
    %101 = tpu.memref_slice %arg57[%c2_i32_40] : memref<11x!tpu.dma_semaphore, #tpu.memory_space<semaphore_mem>> -> memref<1x!tpu.dma_semaphore, #tpu.memory_space<semaphore_mem>>
    %102 = tpu.memref_squeeze %101 : memref<1x!tpu.dma_semaphore, #tpu.memory_space<semaphore_mem>> -> memref<!tpu.dma_semaphore, #tpu.memory_space<semaphore_mem>>
    tpu.wait_dma2 semaphore(%102 : memref<!tpu.dma_semaphore, #tpu.memory_space<semaphore_mem>>) src(%arg6 : memref<128x128xbf16, #tpu.memory_space<any>>) dst(%arg48 : memref<128x128xbf16, #tpu.memory_space<vmem>>)
    %c0_41 = arith.constant 0 : index
    %c0_42 = arith.constant 0 : index
    %103 = vector.load %arg48[%c0_41, %c0_42] : memref<128x128xbf16, #tpu.memory_space<vmem>>, vector<128x128xbf16>
    %104 = arith.truncf %100 : vector<8x128xf32> to vector<8x128xbf16>
    %cst_43 = arith.constant dense<0.000000e+00> : vector<8x128xf32>
    %105 = tpu.matmul %104, %103, %cst_43 {dimension_numbers = #tpu.dot_dimension_numbers<[1], [0], [0], [1], [0, 0, 1, 1], [], []>} : vector<8x128xbf16>, vector<128x128xbf16>, vector<8x128xf32> -> vector<8x128xf32>
    %c0_44 = arith.constant 0 : index
    %c0_45 = arith.constant 0 : index
    %106 = vector.load %arg21[%c0_44, %c0_45] : memref<1x128xf32, #tpu.memory_space<vmem>>, vector<1x128xf32>
    %107 = vector.broadcast %106 : vector<1x128xf32> to vector<8x128xf32>
    %108 = arith.addf %105, %107 : vector<8x128xf32>
    %cst_46 = arith.constant 5.000000e-01 : f32
    %109 = vector.broadcast %cst_46 : f32 to vector<8x128xf32>
    %110 = arith.mulf %109, %108 : vector<8x128xf32>
    %cst_47 = arith.constant 0.707106769 : f32
    %111 = vector.broadcast %cst_47 : f32 to vector<8x128xf32>
    %112 = arith.mulf %108, %111 : vector<8x128xf32>
    %113 = math.erf %112 : vector<8x128xf32>
    %cst_48 = arith.constant 1.000000e+00 : f32
    %114 = vector.broadcast %cst_48 : f32 to vector<8x128xf32>
    %115 = arith.addf %114, %113 : vector<8x128xf32>
    %116 = arith.mulf %110, %115 : vector<8x128xf32>
    %c0_49 = arith.constant 0 : index
    %c0_50 = arith.constant 0 : index
    %117 = vector.load %arg22[%c0_49, %c0_50] : memref<1x128xf32, #tpu.memory_space<vmem>>, vector<1x128xf32>
    %c0_51 = arith.constant 0 : index
    %c0_52 = arith.constant 0 : index
    %118 = vector.load %arg23[%c0_51, %c0_52] : memref<1x128xf32, #tpu.memory_space<vmem>>, vector<1x128xf32>
    %cst_53 = arith.constant dense<0.000000e+00> : vector<8xf32>
    %119 = vector.multi_reduction <add>, %116, %cst_53 [1] : vector<8x128xf32> to vector<8xf32>
    %120 = vector.shape_cast %119 : vector<8xf32> to vector<8x1xf32>
    %cst_54 = arith.constant 1.280000e+02 : f32
    %121 = vector.broadcast %cst_54 : f32 to vector<8x1xf32>
    %122 = arith.divf %120, %121 : vector<8x1xf32>
    %123 = vector.broadcast %122 : vector<8x1xf32> to vector<8x128xf32>
    %124 = arith.subf %116, %123 : vector<8x128xf32>
    %125 = arith.mulf %124, %124 : vector<8x128xf32>
    %cst_55 = arith.constant dense<0.000000e+00> : vector<8xf32>
    %126 = vector.multi_reduction <add>, %125, %cst_55 [1] : vector<8x128xf32> to vector<8xf32>
    %127 = vector.shape_cast %126 : vector<8xf32> to vector<8x1xf32>
    %cst_56 = arith.constant 1.280000e+02 : f32
    %128 = vector.broadcast %cst_56 : f32 to vector<8x1xf32>
    %129 = arith.divf %127, %128 : vector<8x1xf32>
    %cst_57 = arith.constant 9.99999974E-6 : f32
    %130 = vector.broadcast %cst_57 : f32 to vector<8x1xf32>
    %131 = arith.addf %129, %130 : vector<8x1xf32>
    %132 = math.rsqrt %131 : vector<8x1xf32>
    %133 = vector.broadcast %132 : vector<8x1xf32> to vector<8x128xf32>
    %134 = arith.mulf %124, %133 : vector<8x128xf32>
    %135 = vector.broadcast %117 : vector<1x128xf32> to vector<8x128xf32>
    %136 = arith.mulf %134, %135 : vector<8x128xf32>
    %137 = vector.broadcast %118 : vector<1x128xf32> to vector<8x128xf32>
    %138 = arith.addf %136, %137 : vector<8x128xf32>
    %c0_58 = arith.constant 0 : index
    %c0_59 = arith.constant 0 : index
    %139 = vector.load %arg3[%c0_58, %c0_59] : memref<8x128xf32, #tpu.memory_space<vmem>>, vector<8x128xf32>
    %c3_i32_60 = arith.constant 3 : i32
    %140 = tpu.memref_slice %arg57[%c3_i32_60] : memref<11x!tpu.dma_semaphore, #tpu.memory_space<semaphore_mem>> -> memref<1x!tpu.dma_semaphore, #tpu.memory_space<semaphore_mem>>
    %141 = tpu.memref_squeeze %140 : memref<1x!tpu.dma_semaphore, #tpu.memory_space<semaphore_mem>> -> memref<!tpu.dma_semaphore, #tpu.memory_space<semaphore_mem>>
    tpu.wait_dma2 semaphore(%141 : memref<!tpu.dma_semaphore, #tpu.memory_space<semaphore_mem>>) src(%arg7 : memref<128x128xbf16, #tpu.memory_space<any>>) dst(%arg49 : memref<128x128xbf16, #tpu.memory_space<vmem>>)
    %c0_61 = arith.constant 0 : index
    %c0_62 = arith.constant 0 : index
    %142 = vector.load %arg49[%c0_61, %c0_62] : memref<128x128xbf16, #tpu.memory_space<vmem>>, vector<128x128xbf16>
    %143 = arith.truncf %139 : vector<8x128xf32> to vector<8x128xbf16>
    %cst_63 = arith.constant dense<0.000000e+00> : vector<8x128xf32>
    %144 = tpu.matmul %143, %142, %cst_63 {dimension_numbers = #tpu.dot_dimension_numbers<[1], [0], [0], [1], [0, 0, 1, 1], [], []>} : vector<8x128xbf16>, vector<128x128xbf16>, vector<8x128xf32> -> vector<8x128xf32>
    %c0_64 = arith.constant 0 : index
    %c0_65 = arith.constant 0 : index
    %145 = vector.load %arg24[%c0_64, %c0_65] : memref<1x128xf32, #tpu.memory_space<vmem>>, vector<1x128xf32>
    %146 = vector.broadcast %145 : vector<1x128xf32> to vector<8x128xf32>
    %147 = arith.addf %144, %146 : vector<8x128xf32>
    %cst_66 = arith.constant 5.000000e-01 : f32
    %148 = vector.broadcast %cst_66 : f32 to vector<8x128xf32>
    %149 = arith.mulf %148, %147 : vector<8x128xf32>
    %cst_67 = arith.constant 0.707106769 : f32
    %150 = vector.broadcast %cst_67 : f32 to vector<8x128xf32>
    %151 = arith.mulf %147, %150 : vector<8x128xf32>
    %152 = math.erf %151 : vector<8x128xf32>
    %cst_68 = arith.constant 1.000000e+00 : f32
    %153 = vector.broadcast %cst_68 : f32 to vector<8x128xf32>
    %154 = arith.addf %153, %152 : vector<8x128xf32>
    %155 = arith.mulf %149, %154 : vector<8x128xf32>
    %c0_69 = arith.constant 0 : index
    %c0_70 = arith.constant 0 : index
    %156 = vector.load %arg25[%c0_69, %c0_70] : memref<1x128xf32, #tpu.memory_space<vmem>>, vector<1x128xf32>
    %c0_71 = arith.constant 0 : index
    %c0_72 = arith.constant 0 : index
    %157 = vector.load %arg26[%c0_71, %c0_72] : memref<1x128xf32, #tpu.memory_space<vmem>>, vector<1x128xf32>
    %cst_73 = arith.constant dense<0.000000e+00> : vector<8xf32>
    %158 = vector.multi_reduction <add>, %155, %cst_73 [1] : vector<8x128xf32> to vector<8xf32>
    %159 = vector.shape_cast %158 : vector<8xf32> to vector<8x1xf32>
    %cst_74 = arith.constant 1.280000e+02 : f32
    %160 = vector.broadcast %cst_74 : f32 to vector<8x1xf32>
    %161 = arith.divf %159, %160 : vector<8x1xf32>
    %162 = vector.broadcast %161 : vector<8x1xf32> to vector<8x128xf32>
    %163 = arith.subf %155, %162 : vector<8x128xf32>
    %164 = arith.mulf %163, %163 : vector<8x128xf32>
    %cst_75 = arith.constant dense<0.000000e+00> : vector<8xf32>
    %165 = vector.multi_reduction <add>, %164, %cst_75 [1] : vector<8x128xf32> to vector<8xf32>
    %166 = vector.shape_cast %165 : vector<8xf32> to vector<8x1xf32>
    %cst_76 = arith.constant 1.280000e+02 : f32
    %167 = vector.broadcast %cst_76 : f32 to vector<8x1xf32>
    %168 = arith.divf %166, %167 : vector<8x1xf32>
    %cst_77 = arith.constant 9.99999974E-6 : f32
    %169 = vector.broadcast %cst_77 : f32 to vector<8x1xf32>
    %170 = arith.addf %168, %169 : vector<8x1xf32>
    %171 = math.rsqrt %170 : vector<8x1xf32>
    %172 = vector.broadcast %171 : vector<8x1xf32> to vector<8x128xf32>
    %173 = arith.mulf %163, %172 : vector<8x128xf32>
    %174 = vector.broadcast %156 : vector<1x128xf32> to vector<8x128xf32>
    %175 = arith.mulf %173, %174 : vector<8x128xf32>
    %176 = vector.broadcast %157 : vector<1x128xf32> to vector<8x128xf32>
    %177 = arith.addf %175, %176 : vector<8x128xf32>
    %c4_i32_78 = arith.constant 4 : i32
    %178 = tpu.memref_slice %arg57[%c4_i32_78] : memref<11x!tpu.dma_semaphore, #tpu.memory_space<semaphore_mem>> -> memref<1x!tpu.dma_semaphore, #tpu.memory_space<semaphore_mem>>
    %179 = tpu.memref_squeeze %178 : memref<1x!tpu.dma_semaphore, #tpu.memory_space<semaphore_mem>> -> memref<!tpu.dma_semaphore, #tpu.memory_space<semaphore_mem>>
    tpu.wait_dma2 semaphore(%179 : memref<!tpu.dma_semaphore, #tpu.memory_space<semaphore_mem>>) src(%arg8 : memref<512x512xbf16, #tpu.memory_space<any>>) dst(%arg50 : memref<512x512xbf16, #tpu.memory_space<vmem>>)
    %180 = arith.truncf %60 : vector<8x128xf32> to vector<8x128xbf16>
    %c0_79 = arith.constant 0 : index
    %c0_80 = arith.constant 0 : index
    %181 = vector.load %arg50[%c0_79, %c0_80] : memref<512x512xbf16, #tpu.memory_space<vmem>>, vector<128x512xbf16>
    %cst_81 = arith.constant dense<0.000000e+00> : vector<8x512xf32>
    %182 = tpu.matmul %180, %181, %cst_81 {dimension_numbers = #tpu.dot_dimension_numbers<[1], [0], [0], [1], [0, 0, 1, 1], [], []>} : vector<8x128xbf16>, vector<128x512xbf16>, vector<8x512xf32> -> vector<8x512xf32>
    %183 = arith.truncf %99 : vector<8x128xf32> to vector<8x128xbf16>
    %c128 = arith.constant 128 : index
    %c0_82 = arith.constant 0 : index
    %184 = vector.load %arg50[%c128, %c0_82] : memref<512x512xbf16, #tpu.memory_space<vmem>>, vector<128x512xbf16>
    %cst_83 = arith.constant dense<0.000000e+00> : vector<8x512xf32>
    %185 = tpu.matmul %183, %184, %cst_83 {dimension_numbers = #tpu.dot_dimension_numbers<[1], [0], [0], [1], [0, 0, 1, 1], [], []>} : vector<8x128xbf16>, vector<128x512xbf16>, vector<8x512xf32> -> vector<8x512xf32>
    %186 = arith.addf %182, %185 : vector<8x512xf32>
    %187 = arith.truncf %138 : vector<8x128xf32> to vector<8x128xbf16>
    %c256 = arith.constant 256 : index
    %c0_84 = arith.constant 0 : index
    %188 = vector.load %arg50[%c256, %c0_84] : memref<512x512xbf16, #tpu.memory_space<vmem>>, vector<128x512xbf16>
    %cst_85 = arith.constant dense<0.000000e+00> : vector<8x512xf32>
    %189 = tpu.matmul %187, %188, %cst_85 {dimension_numbers = #tpu.dot_dimension_numbers<[1], [0], [0], [1], [0, 0, 1, 1], [], []>} : vector<8x128xbf16>, vector<128x512xbf16>, vector<8x512xf32> -> vector<8x512xf32>
    %190 = arith.addf %186, %189 : vector<8x512xf32>
    %191 = arith.truncf %177 : vector<8x128xf32> to vector<8x128xbf16>
    %c384 = arith.constant 384 : index
    %c0_86 = arith.constant 0 : index
    %192 = vector.load %arg50[%c384, %c0_86] : memref<512x512xbf16, #tpu.memory_space<vmem>>, vector<128x512xbf16>
    %cst_87 = arith.constant dense<0.000000e+00> : vector<8x512xf32>
    %193 = tpu.matmul %191, %192, %cst_87 {dimension_numbers = #tpu.dot_dimension_numbers<[1], [0], [0], [1], [0, 0, 1, 1], [], []>} : vector<8x128xbf16>, vector<128x512xbf16>, vector<8x512xf32> -> vector<8x512xf32>
    %194 = arith.addf %190, %193 : vector<8x512xf32>
    %c0_88 = arith.constant 0 : index
    %c0_89 = arith.constant 0 : index
    %195 = vector.load %arg27[%c0_88, %c0_89] : memref<1x512xf32, #tpu.memory_space<vmem>>, vector<1x512xf32>
    %196 = vector.broadcast %195 : vector<1x512xf32> to vector<8x512xf32>
    %197 = arith.addf %194, %196 : vector<8x512xf32>
    %cst_90 = arith.constant 5.000000e-01 : f32
    %198 = vector.broadcast %cst_90 : f32 to vector<8x512xf32>
    %199 = arith.mulf %198, %197 : vector<8x512xf32>
    %cst_91 = arith.constant 0.707106769 : f32
    %200 = vector.broadcast %cst_91 : f32 to vector<8x512xf32>
    %201 = arith.mulf %197, %200 : vector<8x512xf32>
    %202 = math.erf %201 : vector<8x512xf32>
    %cst_92 = arith.constant 1.000000e+00 : f32
    %203 = vector.broadcast %cst_92 : f32 to vector<8x512xf32>
    %204 = arith.addf %203, %202 : vector<8x512xf32>
    %205 = arith.mulf %199, %204 : vector<8x512xf32>
    %c0_93 = arith.constant 0 : index
    %c0_94 = arith.constant 0 : index
    %206 = vector.load %arg28[%c0_93, %c0_94] : memref<1x512xf32, #tpu.memory_space<vmem>>, vector<1x512xf32>
    %c0_95 = arith.constant 0 : index
    %c0_96 = arith.constant 0 : index
    %207 = vector.load %arg29[%c0_95, %c0_96] : memref<1x512xf32, #tpu.memory_space<vmem>>, vector<1x512xf32>
    %cst_97 = arith.constant dense<0.000000e+00> : vector<8xf32>
    %208 = vector.multi_reduction <add>, %205, %cst_97 [1] : vector<8x512xf32> to vector<8xf32>
    %209 = vector.shape_cast %208 : vector<8xf32> to vector<8x1xf32>
    %cst_98 = arith.constant 5.120000e+02 : f32
    %210 = vector.broadcast %cst_98 : f32 to vector<8x1xf32>
    %211 = arith.divf %209, %210 : vector<8x1xf32>
    %212 = vector.broadcast %211 : vector<8x1xf32> to vector<8x512xf32>
    %213 = arith.subf %205, %212 : vector<8x512xf32>
    %214 = arith.mulf %213, %213 : vector<8x512xf32>
    %cst_99 = arith.constant dense<0.000000e+00> : vector<8xf32>
    %215 = vector.multi_reduction <add>, %214, %cst_99 [1] : vector<8x512xf32> to vector<8xf32>
    %216 = vector.shape_cast %215 : vector<8xf32> to vector<8x1xf32>
    %cst_100 = arith.constant 5.120000e+02 : f32
    %217 = vector.broadcast %cst_100 : f32 to vector<8x1xf32>
    %218 = arith.divf %216, %217 : vector<8x1xf32>
    %cst_101 = arith.constant 9.99999974E-6 : f32
    %219 = vector.broadcast %cst_101 : f32 to vector<8x1xf32>
    %220 = arith.addf %218, %219 : vector<8x1xf32>
    %221 = math.rsqrt %220 : vector<8x1xf32>
    %222 = vector.broadcast %221 : vector<8x1xf32> to vector<8x512xf32>
    %223 = arith.mulf %213, %222 : vector<8x512xf32>
    %224 = vector.broadcast %206 : vector<1x512xf32> to vector<8x512xf32>
    %225 = arith.mulf %223, %224 : vector<8x512xf32>
    %226 = vector.broadcast %207 : vector<1x512xf32> to vector<8x512xf32>
    %227 = arith.addf %225, %226 : vector<8x512xf32>
    %c5_i32_102 = arith.constant 5 : i32
    %228 = tpu.memref_slice %arg57[%c5_i32_102] : memref<11x!tpu.dma_semaphore, #tpu.memory_space<semaphore_mem>> -> memref<1x!tpu.dma_semaphore, #tpu.memory_space<semaphore_mem>>
    %229 = tpu.memref_squeeze %228 : memref<1x!tpu.dma_semaphore, #tpu.memory_space<semaphore_mem>> -> memref<!tpu.dma_semaphore, #tpu.memory_space<semaphore_mem>>
    tpu.wait_dma2 semaphore(%229 : memref<!tpu.dma_semaphore, #tpu.memory_space<semaphore_mem>>) src(%arg9 : memref<512x512xbf16, #tpu.memory_space<any>>) dst(%arg51 : memref<512x512xbf16, #tpu.memory_space<vmem>>)
    %c0_103 = arith.constant 0 : index
    %c0_104 = arith.constant 0 : index
    %230 = vector.load %arg51[%c0_103, %c0_104] : memref<512x512xbf16, #tpu.memory_space<vmem>>, vector<512x512xbf16>
    %231 = arith.truncf %227 : vector<8x512xf32> to vector<8x512xbf16>
    %cst_105 = arith.constant dense<0.000000e+00> : vector<8x512xf32>
    %232 = tpu.matmul %231, %230, %cst_105 {dimension_numbers = #tpu.dot_dimension_numbers<[1], [0], [0], [1], [0, 0, 1, 1], [], []>} : vector<8x512xbf16>, vector<512x512xbf16>, vector<8x512xf32> -> vector<8x512xf32>
    %c0_106 = arith.constant 0 : index
    %c0_107 = arith.constant 0 : index
    %233 = vector.load %arg30[%c0_106, %c0_107] : memref<1x512xf32, #tpu.memory_space<vmem>>, vector<1x512xf32>
    %234 = vector.broadcast %233 : vector<1x512xf32> to vector<8x512xf32>
    %235 = arith.addf %232, %234 : vector<8x512xf32>
    %cst_108 = arith.constant 5.000000e-01 : f32
    %236 = vector.broadcast %cst_108 : f32 to vector<8x512xf32>
    %237 = arith.mulf %236, %235 : vector<8x512xf32>
    %cst_109 = arith.constant 0.707106769 : f32
    %238 = vector.broadcast %cst_109 : f32 to vector<8x512xf32>
    %239 = arith.mulf %235, %238 : vector<8x512xf32>
    %240 = math.erf %239 : vector<8x512xf32>
    %cst_110 = arith.constant 1.000000e+00 : f32
    %241 = vector.broadcast %cst_110 : f32 to vector<8x512xf32>
    %242 = arith.addf %241, %240 : vector<8x512xf32>
    %243 = arith.mulf %237, %242 : vector<8x512xf32>
    %c0_111 = arith.constant 0 : index
    %c0_112 = arith.constant 0 : index
    %244 = vector.load %arg31[%c0_111, %c0_112] : memref<1x512xf32, #tpu.memory_space<vmem>>, vector<1x512xf32>
    %c0_113 = arith.constant 0 : index
    %c0_114 = arith.constant 0 : index
    %245 = vector.load %arg32[%c0_113, %c0_114] : memref<1x512xf32, #tpu.memory_space<vmem>>, vector<1x512xf32>
    %cst_115 = arith.constant dense<0.000000e+00> : vector<8xf32>
    %246 = vector.multi_reduction <add>, %243, %cst_115 [1] : vector<8x512xf32> to vector<8xf32>
    %247 = vector.shape_cast %246 : vector<8xf32> to vector<8x1xf32>
    %cst_116 = arith.constant 5.120000e+02 : f32
    %248 = vector.broadcast %cst_116 : f32 to vector<8x1xf32>
    %249 = arith.divf %247, %248 : vector<8x1xf32>
    %250 = vector.broadcast %249 : vector<8x1xf32> to vector<8x512xf32>
    %251 = arith.subf %243, %250 : vector<8x512xf32>
    %252 = arith.mulf %251, %251 : vector<8x512xf32>
    %cst_117 = arith.constant dense<0.000000e+00> : vector<8xf32>
    %253 = vector.multi_reduction <add>, %252, %cst_117 [1] : vector<8x512xf32> to vector<8xf32>
    %254 = vector.shape_cast %253 : vector<8xf32> to vector<8x1xf32>
    %cst_118 = arith.constant 5.120000e+02 : f32
    %255 = vector.broadcast %cst_118 : f32 to vector<8x1xf32>
    %256 = arith.divf %254, %255 : vector<8x1xf32>
    %cst_119 = arith.constant 9.99999974E-6 : f32
    %257 = vector.broadcast %cst_119 : f32 to vector<8x1xf32>
    %258 = arith.addf %256, %257 : vector<8x1xf32>
    %259 = math.rsqrt %258 : vector<8x1xf32>
    %260 = vector.broadcast %259 : vector<8x1xf32> to vector<8x512xf32>
    %261 = arith.mulf %251, %260 : vector<8x512xf32>
    %262 = vector.broadcast %244 : vector<1x512xf32> to vector<8x512xf32>
    %263 = arith.mulf %261, %262 : vector<8x512xf32>
    %264 = vector.broadcast %245 : vector<1x512xf32> to vector<8x512xf32>
    %265 = arith.addf %263, %264 : vector<8x512xf32>
    %c6_i32_120 = arith.constant 6 : i32
    %266 = tpu.memref_slice %arg57[%c6_i32_120] : memref<11x!tpu.dma_semaphore, #tpu.memory_space<semaphore_mem>> -> memref<1x!tpu.dma_semaphore, #tpu.memory_space<semaphore_mem>>
    %267 = tpu.memref_squeeze %266 : memref<1x!tpu.dma_semaphore, #tpu.memory_space<semaphore_mem>> -> memref<!tpu.dma_semaphore, #tpu.memory_space<semaphore_mem>>
    tpu.wait_dma2 semaphore(%267 : memref<!tpu.dma_semaphore, #tpu.memory_space<semaphore_mem>>) src(%arg10 : memref<512x512xbf16, #tpu.memory_space<any>>) dst(%arg52 : memref<512x512xbf16, #tpu.memory_space<vmem>>)
    %c0_121 = arith.constant 0 : index
    %c0_122 = arith.constant 0 : index
    %268 = vector.load %arg52[%c0_121, %c0_122] : memref<512x512xbf16, #tpu.memory_space<vmem>>, vector<512x512xbf16>
    %269 = arith.truncf %265 : vector<8x512xf32> to vector<8x512xbf16>
    %cst_123 = arith.constant dense<0.000000e+00> : vector<8x512xf32>
    %270 = tpu.matmul %269, %268, %cst_123 {dimension_numbers = #tpu.dot_dimension_numbers<[1], [0], [0], [1], [0, 0, 1, 1], [], []>} : vector<8x512xbf16>, vector<512x512xbf16>, vector<8x512xf32> -> vector<8x512xf32>
    %c0_124 = arith.constant 0 : index
    %c0_125 = arith.constant 0 : index
    %271 = vector.load %arg33[%c0_124, %c0_125] : memref<1x512xf32, #tpu.memory_space<vmem>>, vector<1x512xf32>
    %272 = vector.broadcast %271 : vector<1x512xf32> to vector<8x512xf32>
    %273 = arith.addf %270, %272 : vector<8x512xf32>
    %cst_126 = arith.constant 5.000000e-01 : f32
    %274 = vector.broadcast %cst_126 : f32 to vector<8x512xf32>
    %275 = arith.mulf %274, %273 : vector<8x512xf32>
    %cst_127 = arith.constant 0.707106769 : f32
    %276 = vector.broadcast %cst_127 : f32 to vector<8x512xf32>
    %277 = arith.mulf %273, %276 : vector<8x512xf32>
    %278 = math.erf %277 : vector<8x512xf32>
    %cst_128 = arith.constant 1.000000e+00 : f32
    %279 = vector.broadcast %cst_128 : f32 to vector<8x512xf32>
    %280 = arith.addf %279, %278 : vector<8x512xf32>
    %281 = arith.mulf %275, %280 : vector<8x512xf32>
    %c0_129 = arith.constant 0 : index
    %c0_130 = arith.constant 0 : index
    %282 = vector.load %arg34[%c0_129, %c0_130] : memref<1x512xf32, #tpu.memory_space<vmem>>, vector<1x512xf32>
    %c0_131 = arith.constant 0 : index
    %c0_132 = arith.constant 0 : index
    %283 = vector.load %arg35[%c0_131, %c0_132] : memref<1x512xf32, #tpu.memory_space<vmem>>, vector<1x512xf32>
    %cst_133 = arith.constant dense<0.000000e+00> : vector<8xf32>
    %284 = vector.multi_reduction <add>, %281, %cst_133 [1] : vector<8x512xf32> to vector<8xf32>
    %285 = vector.shape_cast %284 : vector<8xf32> to vector<8x1xf32>
    %cst_134 = arith.constant 5.120000e+02 : f32
    %286 = vector.broadcast %cst_134 : f32 to vector<8x1xf32>
    %287 = arith.divf %285, %286 : vector<8x1xf32>
    %288 = vector.broadcast %287 : vector<8x1xf32> to vector<8x512xf32>
    %289 = arith.subf %281, %288 : vector<8x512xf32>
    %290 = arith.mulf %289, %289 : vector<8x512xf32>
    %cst_135 = arith.constant dense<0.000000e+00> : vector<8xf32>
    %291 = vector.multi_reduction <add>, %290, %cst_135 [1] : vector<8x512xf32> to vector<8xf32>
    %292 = vector.shape_cast %291 : vector<8xf32> to vector<8x1xf32>
    %cst_136 = arith.constant 5.120000e+02 : f32
    %293 = vector.broadcast %cst_136 : f32 to vector<8x1xf32>
    %294 = arith.divf %292, %293 : vector<8x1xf32>
    %cst_137 = arith.constant 9.99999974E-6 : f32
    %295 = vector.broadcast %cst_137 : f32 to vector<8x1xf32>
    %296 = arith.addf %294, %295 : vector<8x1xf32>
    %297 = math.rsqrt %296 : vector<8x1xf32>
    %298 = vector.broadcast %297 : vector<8x1xf32> to vector<8x512xf32>
    %299 = arith.mulf %289, %298 : vector<8x512xf32>
    %300 = vector.broadcast %282 : vector<1x512xf32> to vector<8x512xf32>
    %301 = arith.mulf %299, %300 : vector<8x512xf32>
    %302 = vector.broadcast %283 : vector<1x512xf32> to vector<8x512xf32>
    %303 = arith.addf %301, %302 : vector<8x512xf32>
    %c7_i32_138 = arith.constant 7 : i32
    %304 = tpu.memref_slice %arg57[%c7_i32_138] : memref<11x!tpu.dma_semaphore, #tpu.memory_space<semaphore_mem>> -> memref<1x!tpu.dma_semaphore, #tpu.memory_space<semaphore_mem>>
    %305 = tpu.memref_squeeze %304 : memref<1x!tpu.dma_semaphore, #tpu.memory_space<semaphore_mem>> -> memref<!tpu.dma_semaphore, #tpu.memory_space<semaphore_mem>>
    tpu.wait_dma2 semaphore(%305 : memref<!tpu.dma_semaphore, #tpu.memory_space<semaphore_mem>>) src(%arg11 : memref<512x256xbf16, #tpu.memory_space<any>>) dst(%arg53 : memref<512x256xbf16, #tpu.memory_space<vmem>>)
    %c0_139 = arith.constant 0 : index
    %c0_140 = arith.constant 0 : index
    %306 = vector.load %arg53[%c0_139, %c0_140] : memref<512x256xbf16, #tpu.memory_space<vmem>>, vector<512x256xbf16>
    %307 = arith.truncf %303 : vector<8x512xf32> to vector<8x512xbf16>
    %cst_141 = arith.constant dense<0.000000e+00> : vector<8x256xf32>
    %308 = tpu.matmul %307, %306, %cst_141 {dimension_numbers = #tpu.dot_dimension_numbers<[1], [0], [0], [1], [0, 0, 1, 1], [], []>} : vector<8x512xbf16>, vector<512x256xbf16>, vector<8x256xf32> -> vector<8x256xf32>
    %c0_142 = arith.constant 0 : index
    %c0_143 = arith.constant 0 : index
    %309 = vector.load %arg36[%c0_142, %c0_143] : memref<1x256xf32, #tpu.memory_space<vmem>>, vector<1x256xf32>
    %310 = vector.broadcast %309 : vector<1x256xf32> to vector<8x256xf32>
    %311 = arith.addf %308, %310 : vector<8x256xf32>
    %cst_144 = arith.constant 5.000000e-01 : f32
    %312 = vector.broadcast %cst_144 : f32 to vector<8x256xf32>
    %313 = arith.mulf %312, %311 : vector<8x256xf32>
    %cst_145 = arith.constant 0.707106769 : f32
    %314 = vector.broadcast %cst_145 : f32 to vector<8x256xf32>
    %315 = arith.mulf %311, %314 : vector<8x256xf32>
    %316 = math.erf %315 : vector<8x256xf32>
    %cst_146 = arith.constant 1.000000e+00 : f32
    %317 = vector.broadcast %cst_146 : f32 to vector<8x256xf32>
    %318 = arith.addf %317, %316 : vector<8x256xf32>
    %319 = arith.mulf %313, %318 : vector<8x256xf32>
    %c0_147 = arith.constant 0 : index
    %c0_148 = arith.constant 0 : index
    %320 = vector.load %arg37[%c0_147, %c0_148] : memref<1x256xf32, #tpu.memory_space<vmem>>, vector<1x256xf32>
    %c0_149 = arith.constant 0 : index
    %c0_150 = arith.constant 0 : index
    %321 = vector.load %arg38[%c0_149, %c0_150] : memref<1x256xf32, #tpu.memory_space<vmem>>, vector<1x256xf32>
    %cst_151 = arith.constant dense<0.000000e+00> : vector<8xf32>
    %322 = vector.multi_reduction <add>, %319, %cst_151 [1] : vector<8x256xf32> to vector<8xf32>
    %323 = vector.shape_cast %322 : vector<8xf32> to vector<8x1xf32>
    %cst_152 = arith.constant 2.560000e+02 : f32
    %324 = vector.broadcast %cst_152 : f32 to vector<8x1xf32>
    %325 = arith.divf %323, %324 : vector<8x1xf32>
    %326 = vector.broadcast %325 : vector<8x1xf32> to vector<8x256xf32>
    %327 = arith.subf %319, %326 : vector<8x256xf32>
    %328 = arith.mulf %327, %327 : vector<8x256xf32>
    %cst_153 = arith.constant dense<0.000000e+00> : vector<8xf32>
    %329 = vector.multi_reduction <add>, %328, %cst_153 [1] : vector<8x256xf32> to vector<8xf32>
    %330 = vector.shape_cast %329 : vector<8xf32> to vector<8x1xf32>
    %cst_154 = arith.constant 2.560000e+02 : f32
    %331 = vector.broadcast %cst_154 : f32 to vector<8x1xf32>
    %332 = arith.divf %330, %331 : vector<8x1xf32>
    %cst_155 = arith.constant 9.99999974E-6 : f32
    %333 = vector.broadcast %cst_155 : f32 to vector<8x1xf32>
    %334 = arith.addf %332, %333 : vector<8x1xf32>
    %335 = math.rsqrt %334 : vector<8x1xf32>
    %336 = vector.broadcast %335 : vector<8x1xf32> to vector<8x256xf32>
    %337 = arith.mulf %327, %336 : vector<8x256xf32>
    %338 = vector.broadcast %320 : vector<1x256xf32> to vector<8x256xf32>
    %339 = arith.mulf %337, %338 : vector<8x256xf32>
    %340 = vector.broadcast %321 : vector<1x256xf32> to vector<8x256xf32>
    %341 = arith.addf %339, %340 : vector<8x256xf32>
    %c8_i32_156 = arith.constant 8 : i32
    %342 = tpu.memref_slice %arg57[%c8_i32_156] : memref<11x!tpu.dma_semaphore, #tpu.memory_space<semaphore_mem>> -> memref<1x!tpu.dma_semaphore, #tpu.memory_space<semaphore_mem>>
    %343 = tpu.memref_squeeze %342 : memref<1x!tpu.dma_semaphore, #tpu.memory_space<semaphore_mem>> -> memref<!tpu.dma_semaphore, #tpu.memory_space<semaphore_mem>>
    tpu.wait_dma2 semaphore(%343 : memref<!tpu.dma_semaphore, #tpu.memory_space<semaphore_mem>>) src(%arg12 : memref<256x256xbf16, #tpu.memory_space<any>>) dst(%arg54 : memref<256x256xbf16, #tpu.memory_space<vmem>>)
    %c0_157 = arith.constant 0 : index
    %c0_158 = arith.constant 0 : index
    %344 = vector.load %arg54[%c0_157, %c0_158] : memref<256x256xbf16, #tpu.memory_space<vmem>>, vector<256x256xbf16>
    %345 = arith.truncf %341 : vector<8x256xf32> to vector<8x256xbf16>
    %cst_159 = arith.constant dense<0.000000e+00> : vector<8x256xf32>
    %346 = tpu.matmul %345, %344, %cst_159 {dimension_numbers = #tpu.dot_dimension_numbers<[1], [0], [0], [1], [0, 0, 1, 1], [], []>} : vector<8x256xbf16>, vector<256x256xbf16>, vector<8x256xf32> -> vector<8x256xf32>
    %c0_160 = arith.constant 0 : index
    %c0_161 = arith.constant 0 : index
    %347 = vector.load %arg39[%c0_160, %c0_161] : memref<1x256xf32, #tpu.memory_space<vmem>>, vector<1x256xf32>
    %348 = vector.broadcast %347 : vector<1x256xf32> to vector<8x256xf32>
    %349 = arith.addf %346, %348 : vector<8x256xf32>
    %cst_162 = arith.constant 5.000000e-01 : f32
    %350 = vector.broadcast %cst_162 : f32 to vector<8x256xf32>
    %351 = arith.mulf %350, %349 : vector<8x256xf32>
    %cst_163 = arith.constant 0.707106769 : f32
    %352 = vector.broadcast %cst_163 : f32 to vector<8x256xf32>
    %353 = arith.mulf %349, %352 : vector<8x256xf32>
    %354 = math.erf %353 : vector<8x256xf32>
    %cst_164 = arith.constant 1.000000e+00 : f32
    %355 = vector.broadcast %cst_164 : f32 to vector<8x256xf32>
    %356 = arith.addf %355, %354 : vector<8x256xf32>
    %357 = arith.mulf %351, %356 : vector<8x256xf32>
    %c0_165 = arith.constant 0 : index
    %c0_166 = arith.constant 0 : index
    %358 = vector.load %arg40[%c0_165, %c0_166] : memref<1x256xf32, #tpu.memory_space<vmem>>, vector<1x256xf32>
    %c0_167 = arith.constant 0 : index
    %c0_168 = arith.constant 0 : index
    %359 = vector.load %arg41[%c0_167, %c0_168] : memref<1x256xf32, #tpu.memory_space<vmem>>, vector<1x256xf32>
    %cst_169 = arith.constant dense<0.000000e+00> : vector<8xf32>
    %360 = vector.multi_reduction <add>, %357, %cst_169 [1] : vector<8x256xf32> to vector<8xf32>
    %361 = vector.shape_cast %360 : vector<8xf32> to vector<8x1xf32>
    %cst_170 = arith.constant 2.560000e+02 : f32
    %362 = vector.broadcast %cst_170 : f32 to vector<8x1xf32>
    %363 = arith.divf %361, %362 : vector<8x1xf32>
    %364 = vector.broadcast %363 : vector<8x1xf32> to vector<8x256xf32>
    %365 = arith.subf %357, %364 : vector<8x256xf32>
    %366 = arith.mulf %365, %365 : vector<8x256xf32>
    %cst_171 = arith.constant dense<0.000000e+00> : vector<8xf32>
    %367 = vector.multi_reduction <add>, %366, %cst_171 [1] : vector<8x256xf32> to vector<8xf32>
    %368 = vector.shape_cast %367 : vector<8xf32> to vector<8x1xf32>
    %cst_172 = arith.constant 2.560000e+02 : f32
    %369 = vector.broadcast %cst_172 : f32 to vector<8x1xf32>
    %370 = arith.divf %368, %369 : vector<8x1xf32>
    %cst_173 = arith.constant 9.99999974E-6 : f32
    %371 = vector.broadcast %cst_173 : f32 to vector<8x1xf32>
    %372 = arith.addf %370, %371 : vector<8x1xf32>
    %373 = math.rsqrt %372 : vector<8x1xf32>
    %374 = vector.broadcast %373 : vector<8x1xf32> to vector<8x256xf32>
    %375 = arith.mulf %365, %374 : vector<8x256xf32>
    %376 = vector.broadcast %358 : vector<1x256xf32> to vector<8x256xf32>
    %377 = arith.mulf %375, %376 : vector<8x256xf32>
    %378 = vector.broadcast %359 : vector<1x256xf32> to vector<8x256xf32>
    %379 = arith.addf %377, %378 : vector<8x256xf32>
    %c9_i32_174 = arith.constant 9 : i32
    %380 = tpu.memref_slice %arg57[%c9_i32_174] : memref<11x!tpu.dma_semaphore, #tpu.memory_space<semaphore_mem>> -> memref<1x!tpu.dma_semaphore, #tpu.memory_space<semaphore_mem>>
    %381 = tpu.memref_squeeze %380 : memref<1x!tpu.dma_semaphore, #tpu.memory_space<semaphore_mem>> -> memref<!tpu.dma_semaphore, #tpu.memory_space<semaphore_mem>>
    tpu.wait_dma2 semaphore(%381 : memref<!tpu.dma_semaphore, #tpu.memory_space<semaphore_mem>>) src(%arg13 : memref<256x640xbf16, #tpu.memory_space<any>>) dst(%arg55 : memref<256x640xbf16, #tpu.memory_space<vmem>>)
    %c0_175 = arith.constant 0 : index
    %c0_176 = arith.constant 0 : index
    %382 = vector.load %arg55[%c0_175, %c0_176] : memref<256x640xbf16, #tpu.memory_space<vmem>>, vector<256x640xbf16>
    %383 = arith.truncf %379 : vector<8x256xf32> to vector<8x256xbf16>
    %cst_177 = arith.constant dense<0.000000e+00> : vector<8x640xf32>
    %384 = tpu.matmul %383, %382, %cst_177 {dimension_numbers = #tpu.dot_dimension_numbers<[1], [0], [0], [1], [0, 0, 1, 1], [], []>} : vector<8x256xbf16>, vector<256x640xbf16>, vector<8x640xf32> -> vector<8x640xf32>
    %c0_178 = arith.constant 0 : index
    %c0_179 = arith.constant 0 : index
    %385 = vector.load %arg42[%c0_178, %c0_179] : memref<1x640xf32, #tpu.memory_space<vmem>>, vector<1x640xf32>
    %386 = vector.broadcast %385 : vector<1x640xf32> to vector<8x640xf32>
    %387 = arith.addf %384, %386 : vector<8x640xf32>
    %cst_180 = arith.constant 5.000000e-01 : f32
    %388 = vector.broadcast %cst_180 : f32 to vector<8x640xf32>
    %389 = arith.mulf %388, %387 : vector<8x640xf32>
    %cst_181 = arith.constant 0.707106769 : f32
    %390 = vector.broadcast %cst_181 : f32 to vector<8x640xf32>
    %391 = arith.mulf %387, %390 : vector<8x640xf32>
    %392 = math.erf %391 : vector<8x640xf32>
    %cst_182 = arith.constant 1.000000e+00 : f32
    %393 = vector.broadcast %cst_182 : f32 to vector<8x640xf32>
    %394 = arith.addf %393, %392 : vector<8x640xf32>
    %395 = arith.mulf %389, %394 : vector<8x640xf32>
    %c10_i32_183 = arith.constant 10 : i32
    %396 = tpu.memref_slice %arg57[%c10_i32_183] : memref<11x!tpu.dma_semaphore, #tpu.memory_space<semaphore_mem>> -> memref<1x!tpu.dma_semaphore, #tpu.memory_space<semaphore_mem>>
    %397 = tpu.memref_squeeze %396 : memref<1x!tpu.dma_semaphore, #tpu.memory_space<semaphore_mem>> -> memref<!tpu.dma_semaphore, #tpu.memory_space<semaphore_mem>>
    tpu.wait_dma2 semaphore(%397 : memref<!tpu.dma_semaphore, #tpu.memory_space<semaphore_mem>>) src(%arg14 : memref<640x128xbf16, #tpu.memory_space<any>>) dst(%arg56 : memref<640x128xbf16, #tpu.memory_space<vmem>>)
    %c0_184 = arith.constant 0 : index
    %c0_185 = arith.constant 0 : index
    %398 = vector.load %arg56[%c0_184, %c0_185] : memref<640x128xbf16, #tpu.memory_space<vmem>>, vector<640x128xbf16>
    %399 = arith.truncf %395 : vector<8x640xf32> to vector<8x640xbf16>
    %cst_186 = arith.constant dense<0.000000e+00> : vector<8x128xf32>
    %400 = tpu.matmul %399, %398, %cst_186 {dimension_numbers = #tpu.dot_dimension_numbers<[1], [0], [0], [1], [0, 0, 1, 1], [], []>} : vector<8x640xbf16>, vector<640x128xbf16>, vector<8x128xf32> -> vector<8x128xf32>
    %c0_187 = arith.constant 0 : index
    %c0_188 = arith.constant 0 : index
    %401 = vector.load %arg43[%c0_187, %c0_188] : memref<1x128xf32, #tpu.memory_space<vmem>>, vector<1x128xf32>
    %402 = vector.broadcast %401 : vector<1x128xf32> to vector<8x128xf32>
    %403 = arith.addf %400, %402 : vector<8x128xf32>
    %404 = arith.negf %403 : vector<8x128xf32>
    %405 = math.exp %404 : vector<8x128xf32>
    %cst_189 = arith.constant 1.000000e+00 : f32
    %406 = vector.broadcast %cst_189 : f32 to vector<8x128xf32>
    %407 = arith.addf %406, %405 : vector<8x128xf32>
    %408 = arith.divf %406, %407 : vector<8x128xf32>
    %c0_190 = arith.constant 0 : index
    %c0_191 = arith.constant 0 : index
    %409 = vector.load %arg44[%c0_190, %c0_191] : memref<8x256xf32, #tpu.memory_space<vmem>>, vector<8x256xf32>
    tpu.vector_store %arg44[%c0_190, %c0_191], %379 {strides = array<i32>} : memref<8x256xf32, #tpu.memory_space<vmem>>, vector<8x256xf32>,
    %c0_192 = arith.constant 0 : index
    %c0_193 = arith.constant 0 : index
    %410 = vector.load %arg45[%c0_192, %c0_193] : memref<8x128xf32, #tpu.memory_space<vmem>>, vector<8x128xf32>
    tpu.vector_store %arg45[%c0_192, %c0_193], %408 {strides = array<i32>} : memref<8x128xf32, #tpu.memory_space<vmem>>, vector<8x128xf32>,
    return
  }
}

</mosaic_0001>

<llo_original>
// kernel: forward.1
$region0: #{forward.1}
  #allocation0 [shape = 'u32[]', space=smem, size = 0x4, offset = 0x4, fixed_abs, tag = 'smem constant byte address 0x4 - core index']
  #allocation1 [shape = 'u32[144,128]{1,0:T(1,128)}', space=vmem, size = 0x12000, scoped, tag = 'internal scratch']
  #allocation2 [shape = 'bf16[256,128]{1,0:T(8,128)(2,1)}', space=vmem, size = 0x10000, scoped, tag = 'scratch operand']
  #allocation3 [shape = 'bf16[512,128]{1,0:T(8,128)(2,1)}', space=vmem, size = 0x20000, scoped, tag = 'scratch operand']
  #allocation4 [shape = 'bf16[128,128]{1,0:T(8,128)(2,1)}', space=vmem, size = 0x8000, scoped, tag = 'scratch operand']
  #allocation5 [shape = 'bf16[128,128]{1,0:T(8,128)(2,1)}', space=vmem, size = 0x8000, scoped, tag = 'scratch operand']
  #allocation6 [shape = 'bf16[512,512]{1,0:T(8,128)(2,1)}', space=vmem, size = 0x80000, scoped, tag = 'scratch operand']
  #allocation7 [shape = 'bf16[512,512]{1,0:T(8,128)(2,1)}', space=vmem, size = 0x80000, scoped, tag = 'scratch operand']
  #allocation8 [shape = 'bf16[512,512]{1,0:T(8,128)(2,1)}', space=vmem, size = 0x80000, scoped, tag = 'scratch operand']
  #allocation9 [shape = 'bf16[512,256]{1,0:T(8,128)(2,1)}', space=vmem, size = 0x40000, scoped, tag = 'scratch operand']
  #allocation10 [shape = 'bf16[256,256]{1,0:T(8,128)(2,1)}', space=vmem, size = 0x20000, scoped, tag = 'scratch operand']
  #allocation11 [shape = 'bf16[256,640]{1,0:T(8,128)(2,1)}', space=vmem, size = 0x50000, scoped, tag = 'scratch operand']
  #allocation12 [shape = 'bf16[640,128]{1,0:T(8,128)(2,1)}', space=vmem, size = 0x28000, scoped, tag = 'scratch operand']
  #allocation13 [shape = 's32[11]{0}', space=sflag, size = 0x2c, scoped, tag = 'scratch operand']
  #allocation54 [shape = 's32[]', space=sflag, size = 0x4, offset = 0, fixed_abs, tag = 'sflag constant byte address 0x0 - dummy sync flag']
  #allocation55 [shape = 's32[]', space=sflag, size = 0x4, offset = 0, fixed_abs, tag = 'sflag constant byte address 0x0 - dummy sync flag']
  #allocation56 [shape = 'u32[]', space=smem, size = 0x4, offset = 0x44, fixed_abs, tag = 'smem constant byte address 0x44 - assertion arg 0']
  #allocation57 [shape = 'u32[]', space=smem, size = 0x4, offset = 0x48, fixed_abs, tag = 'smem constant byte address 0x48 - assertion arg 1']
  #allocation58 [shape = 's32[]', space=sflag, size = 0x4, offset = 0, fixed_abs, tag = 'sflag constant byte address 0x0 - dummy sync flag']
  #allocation59 [shape = 's32[]', space=sflag, size = 0x4, offset = 0, fixed_abs, tag = 'sflag constant byte address 0x0 - dummy sync flag']
  #allocation60 [shape = 's32[]', space=sflag, size = 0x4, offset = 0, fixed_abs, tag = 'sflag constant byte address 0x0 - dummy sync flag']
  #allocation61 [shape = 's32[]', space=sflag, size = 0x4, offset = 0, fixed_abs, tag = 'sflag constant byte address 0x0 - dummy sync flag']
  #allocation62 [shape = 's32[]', space=sflag, size = 0x4, offset = 0, fixed_abs, tag = 'sflag constant byte address 0x0 - dummy sync flag']
  #allocation63 [shape = 's32[]', space=sflag, size = 0x4, offset = 0, fixed_abs, tag = 'sflag constant byte address 0x0 - dummy sync flag']
  #allocation64 [shape = 's32[]', space=sflag, size = 0x4, offset = 0, fixed_abs, tag = 'sflag constant byte address 0x0 - dummy sync flag']
  #allocation65 [shape = 's32[]', space=sflag, size = 0x4, offset = 0, fixed_abs, tag = 'sflag constant byte address 0x0 - dummy sync flag']
  #allocation66 [shape = 's32[]', space=sflag, size = 0x4, offset = 0, fixed_abs, tag = 'sflag constant byte address 0x0 - dummy sync flag']
  #allocation67 [shape = 's32[]', space=sflag, size = 0x4, offset = 0, fixed_abs, tag = 'sflag constant byte address 0x0 - dummy sync flag']
  #allocation68 [shape = 's32[]', space=sflag, size = 0x4, offset = 0, fixed_abs, tag = 'sflag constant byte address 0x0 - dummy sync flag']
  #allocation69 [shape = 's32[]', space=sflag, size = 0x4, offset = 0, fixed_abs, tag = 'sflag constant byte address 0x0 - dummy sync flag']
  #allocation70 [shape = 's32[]', space=sflag, size = 0x4, offset = 0, fixed_abs, tag = 'sflag constant byte address 0x0 - dummy sync flag']
  #allocation71 [shape = 's32[]', space=sflag, size = 0x4, offset = 0, fixed_abs, tag = 'sflag constant byte address 0x0 - dummy sync flag']
  #allocation72 [shape = 's32[]', space=sflag, size = 0x4, offset = 0, fixed_abs, tag = 'sflag constant byte address 0x0 - dummy sync flag']
  #allocation73 [shape = 's32[]', space=sflag, size = 0x4, offset = 0, fixed_abs, tag = 'sflag constant byte address 0x0 - dummy sync flag']
  #allocation74 [shape = 's32[]', space=sflag, size = 0x4, offset = 0, fixed_abs, tag = 'sflag constant byte address 0x0 - dummy sync flag']
  #allocation75 [shape = 's32[]', space=sflag, size = 0x4, offset = 0, fixed_abs, tag = 'sflag constant byte address 0x0 - dummy sync flag']
  #allocation76 [shape = 's32[]', space=sflag, size = 0x4, offset = 0, fixed_abs, tag = 'sflag constant byte address 0x0 - dummy sync flag']
  #allocation77 [shape = 's32[]', space=sflag, size = 0x4, offset = 0, fixed_abs, tag = 'sflag constant byte address 0x0 - dummy sync flag']
  %s0 = inlined_call_operand.smem [shape: u32[46], index: -1, kind: input, shape index: {}]
  %s1 = sld [smem:[%s0]]
  %s2 = scalar_lea.smem %s0, 1
  %s3 = sld [smem:[%s2]]
  %s4 = scalar_lea.smem %s0, 2
  %s5 = sld [smem:[%s4]]
  %s6 = scalar_lea.smem %s0, 3
  %s7 = sld [smem:[%s6]]
  %s8 = scalar_lea.smem %s0, 4
  %s9 = sld [smem:[%s8]]
  %s10 = scalar_lea.smem %s0, 5
  %s11 = sld [smem:[%s10]]
  %s12 = scalar_lea.smem %s0, 6
  %s13 = sld [smem:[%s12]]
  %s14 = scalar_lea.smem %s0, 7
  %s15 = sld [smem:[%s14]]
  %s16 = scalar_lea.smem %s0, 8
  %s17 = sld [smem:[%s16]]
  %s18 = scalar_lea.smem %s0, 9
  %s19 = sld [smem:[%s18]]
  %s20 = scalar_lea.smem %s0, 10
  %s21 = sld [smem:[%s20]]
  %s22 = scalar_lea.smem %s0, 11
  %s23 = sld [smem:[%s22]]
  %s24 = scalar_lea.smem %s0, 12
  %s25 = sld [smem:[%s24]]
  %s26 = scalar_lea.smem %s0, 13
  %s27 = sld [smem:[%s26]]
  %s28 = scalar_lea.smem %s0, 14
  %s29 = sld [smem:[%s28]]
  %s30 = scalar_lea.smem %s0, 15
  %s31 = sld [smem:[%s30]]
  %s32 = scalar_lea.smem %s0, 16
  %s33 = sld [smem:[%s32]]
  %s34 = scalar_lea.smem %s0, 17
  %s35 = sld [smem:[%s34]]
  %s36 = scalar_lea.smem %s0, 18
  %s37 = sld [smem:[%s36]]
  %s38 = scalar_lea.smem %s0, 19
  %s39 = sld [smem:[%s38]]
  %s40 = scalar_lea.smem %s0, 20
  %s41 = sld [smem:[%s40]]
  %s42 = scalar_lea.smem %s0, 21
  %s43 = sld [smem:[%s42]]
  %s44 = scalar_lea.smem %s0, 22
  %s45 = sld [smem:[%s44]]
  %s46 = scalar_lea.smem %s0, 23
  %s47 = sld [smem:[%s46]]
  %s48 = scalar_lea.smem %s0, 24
  %s49 = sld [smem:[%s48]]
  %s50 = scalar_lea.smem %s0, 25
  %s51 = sld [smem:[%s50]]
  %s52 = scalar_lea.smem %s0, 26
  %s53 = sld [smem:[%s52]]
  %s54 = scalar_lea.smem %s0, 27
  %s55 = sld [smem:[%s54]]
  %s56 = scalar_lea.smem %s0, 28
  %s57 = sld [smem:[%s56]]
  %s58 = scalar_lea.smem %s0, 29
  %s59 = sld [smem:[%s58]]
  %s60 = scalar_lea.smem %s0, 30
  %s61 = sld [smem:[%s60]]
  %s62 = scalar_lea.smem %s0, 31
  %s63 = sld [smem:[%s62]]
  %s64 = scalar_lea.smem %s0, 32
  %s65 = sld [smem:[%s64]]
  %s66 = scalar_lea.smem %s0, 33
  %s67 = sld [smem:[%s66]]
  %s68 = scalar_lea.smem %s0, 34
  %s69 = sld [smem:[%s68]]
  %s70 = scalar_lea.smem %s0, 35
  %s71 = sld [smem:[%s70]]
  %s72 = scalar_lea.smem %s0, 36
  %s73 = sld [smem:[%s72]]
  %s74 = scalar_lea.smem %s0, 37
  %s75 = sld [smem:[%s74]]
  %s76 = scalar_lea.smem %s0, 38
  %s77 = sld [smem:[%s76]]
  %s78 = scalar_lea.smem %s0, 39
  %s79 = sld [smem:[%s78]]
  %s80 = scalar_lea.smem %s0, 40
  %s81 = sld [smem:[%s80]]
  %s82 = scalar_lea.smem %s0, 41
  %s83 = sld [smem:[%s82]]
  %s84 = scalar_lea.smem %s0, 42
  %s85 = sld [smem:[%s84]]
  %s86 = scalar_lea.smem %s0, 43
  %s87 = sld [smem:[%s86]]
  %s88 = scalar_lea.smem %s0, 44
  %s89 = sld [smem:[%s88]]
  %s90 = scalar_lea.smem %s0, 45
  %s91 = sld [smem:[%s90]]
  %92 = xla_tuple %s89, %s91
  %s93 = sld [smem:[#allocation0]]
  $region294: #{forward.1} parent=0
    _
  %s95 = ssub.s32 1, %s93
  %s96 = scalar_select 0, %s95, %s93
  $region1: #{forward.1} parent=0
    #allocation14 [shape = 'u8[4096]{0}', space=vmem, size = 0x1000, scoped, tag = 'input window, operand 2, single buffered']
    #allocation15 [shape = 's32[1]{0}', space=sflag, size = 0x4, scoped, tag = 'scoped memory for forward.1']
    #allocation16 [shape = 's32[1]{0}', space=sflag, size = 0x4, scoped, tag = 'scoped memory for forward.1']
    #allocation17 [shape = 'u8[512]{0}', space=vmem, size = 0x400, scoped, tag = 'input window, operand 18, single buffered']
    #allocation18 [shape = 's32[1]{0}', space=sflag, size = 0x4, scoped, tag = 'scoped memory for forward.1']
    #allocation19 [shape = 'u8[512]{0}', space=vmem, size = 0x400, scoped, tag = 'input window, operand 19, single buffered']
    #allocation20 [shape = 'u8[512]{0}', space=vmem, size = 0x400, scoped, tag = 'input window, operand 20, single buffered']
    #allocation21 [shape = 's32[1]{0}', space=sflag, size = 0x4, scoped, tag = 'scoped memory for forward.1']
    #allocation22 [shape = 'u8[512]{0}', space=vmem, size = 0x400, scoped, tag = 'input window, operand 21, single buffered']
    #allocation23 [shape = 'u8[512]{0}', space=vmem, size = 0x400, scoped, tag = 'input window, operand 22, single buffered']
    #allocation24 [shape = 's32[1]{0}', space=sflag, size = 0x4, scoped, tag = 'scoped memory for forward.1']
    #allocation25 [shape = 'u8[512]{0}', space=vmem, size = 0x400, scoped, tag = 'input window, operand 23, single buffered']
    #allocation26 [shape = 'u8[512]{0}', space=vmem, size = 0x400, scoped, tag = 'input window, operand 24, single buffered']
    #allocation27 [shape = 's32[1]{0}', space=sflag, size = 0x4, scoped, tag = 'scoped memory for forward.1']
    #allocation28 [shape = 'u8[512]{0}', space=vmem, size = 0x400, scoped, tag = 'input window, operand 25, single buffered']
    #allocation29 [shape = 'u8[512]{0}', space=vmem, size = 0x400, scoped, tag = 'input window, operand 26, single buffered']
    #allocation30 [shape = 's32[1]{0}', space=sflag, size = 0x4, scoped, tag = 'scoped memory for forward.1']
    #allocation31 [shape = 'u8[2048]{0}', space=vmem, size = 0x800, scoped, tag = 'input window, operand 27, single buffered']
    #allocation32 [shape = 'u8[2048]{0}', space=vmem, size = 0x800, scoped, tag = 'input window, operand 28, single buffered']
    #allocation33 [shape = 's32[1]{0}', space=sflag, size = 0x4, scoped, tag = 'scoped memory for forward.1']
    #allocation34 [shape = 'u8[2048]{0}', space=vmem, size = 0x800, scoped, tag = 'input window, operand 29, single buffered']
    #allocation35 [shape = 'u8[2048]{0}', space=vmem, size = 0x800, scoped, tag = 'input window, operand 30, single buffered']
    #allocation36 [shape = 's32[1]{0}', space=sflag, size = 0x4, scoped, tag = 'scoped memory for forward.1']
    #allocation37 [shape = 'u8[2048]{0}', space=vmem, size = 0x800, scoped, tag = 'input window, operand 31, single buffered']
    #allocation38 [shape = 'u8[2048]{0}', space=vmem, size = 0x800, scoped, tag = 'input window, operand 32, single buffered']
    #allocation39 [shape = 's32[1]{0}', space=sflag, size = 0x4, scoped, tag = 'scoped memory for forward.1']
    #allocation40 [shape = 'u8[2048]{0}', space=vmem, size = 0x800, scoped, tag = 'input window, operand 33, single buffered']
    #allocation41 [shape = 'u8[2048]{0}', space=vmem, size = 0x800, scoped, tag = 'input window, operand 34, single buffered']
    #allocation42 [shape = 's32[1]{0}', space=sflag, size = 0x4, scoped, tag = 'scoped memory for forward.1']
    #allocation43 [shape = 'u8[2048]{0}', space=vmem, size = 0x800, scoped, tag = 'input window, operand 35, single buffered']
    #allocation44 [shape = 'u8[1024]{0}', space=vmem, size = 0x400, scoped, tag = 'input window, operand 37, single buffered']
    #allocation45 [shape = 's32[1]{0}', space=sflag, size = 0x4, scoped, tag = 'scoped memory for forward.1']
    #allocation46 [shape = 'u8[1024]{0}', space=vmem, size = 0x400, scoped, tag = 'input window, operand 38, single buffered']
    #allocation47 [shape = 'u8[1024]{0}', space=vmem, size = 0x400, scoped, tag = 'input window, operand 39, single buffered']
    #allocation48 [shape = 's32[1]{0}', space=sflag, size = 0x4, scoped, tag = 'scoped memory for forward.1']
    #allocation49 [shape = 'u8[1024]{0}', space=vmem, size = 0x400, scoped, tag = 'input window, operand 40, single buffered']
    #allocation50 [shape = 'u8[1024]{0}', space=vmem, size = 0x400, scoped, tag = 'input window, operand 41, single buffered']
    #allocation51 [shape = 's32[1]{0}', space=sflag, size = 0x4, scoped, tag = 'scoped memory for forward.1']
    #allocation52 [shape = 'u8[512]{0}', space=vmem, size = 0x400, scoped, tag = 'input window, operand 43, single buffered']
    #allocation53 [shape = 'u8[8192]{0}', space=vmem, size = 0x2000, scoped, tag = 'output window, operand 0, single buffered']
    %97 = vsyncpa [#allocation15], 0
    %98 = vsyncpa [#allocation18], 0
    %99 = vsyncpa [#allocation21], 0
    %100 = vsyncpa [#allocation24], 0
    %101 = vsyncpa [#allocation27], 0
    %102 = vsyncpa [#allocation30], 0
    %103 = vsyncpa [#allocation33], 0
    %104 = vsyncpa [#allocation36], 0
    %105 = vsyncpa [#allocation39], 0
    %106 = vsyncpa [#allocation42], 0
    %107 = vsyncpa [#allocation45], 0
    %108 = vsyncpa [#allocation48], 0
    %109 = vsyncpa [#allocation51], 0
    %110 = vsyncpa [#allocation16], 0
    // Predicated region
    $region2: #{forward.1} parent=1 // pred_check
      _
    $region3: #{forward.1} parent=1 // pred_check_branch
      %112 = sbr.rel (0) target = $region5
    $region4: #{forward.1} parent=1 // pred_region
      _
    $region5: #{forward.1} parent=1 // pred_fallthru
      _
    // Predicated region
    $region6: #{forward.1} parent=1 // pred_check
      _
    $region7: #{forward.1} parent=1 // pred_check_branch
      %114 = sbr.rel (0) target = $region9
    $region8: #{forward.1} parent=1 // pred_region
      _
    $region9: #{forward.1} parent=1 // pred_fallthru
      _
    // Predicated region
    $region10: #{forward.1} parent=1 // pred_check
      _
    $region11: #{forward.1} parent=1 // pred_check_branch
      %116 = sbr.rel (0) target = $region13
    $region12: #{forward.1} parent=1 // pred_region
      %s118 = ssub.s32 128, 128
      %119 = vsyncadd [#allocation15], %s118
      %s121 = sshll.u32 [#allocation14], 4
      %s122 = int_to_ptr.vmem [resolvable:$true] %s121
      %124 = dma.hbm_to_vmem [thread:$0]  %s5, 128, %s122, [#allocation15]
    $region13: #{forward.1} parent=1 // pred_fallthru
      _
    // Predicated region
    $region14: #{forward.1} parent=1 // pred_check
      _
    $region15: #{forward.1} parent=1 // pred_check_branch
      %126 = sbr.rel (0) target = $region17
    $region16: #{forward.1} parent=1 // pred_region
      _
    $region17: #{forward.1} parent=1 // pred_fallthru
      _
    // Predicated region
    $region18: #{forward.1} parent=1 // pred_check
      _
    $region19: #{forward.1} parent=1 // pred_check_branch
      %128 = sbr.rel (0) target = $region21
    $region20: #{forward.1} parent=1 // pred_region
      _
    $region21: #{forward.1} parent=1 // pred_fallthru
      _
    // Predicated region
    $region22: #{forward.1} parent=1 // pred_check
      _
    $region23: #{forward.1} parent=1 // pred_check_branch
      %130 = sbr.rel (0) target = $region25
    $region24: #{forward.1} parent=1 // pred_region
      _
    $region25: #{forward.1} parent=1 // pred_fallthru
      _
    // Predicated region
    $region26: #{forward.1} parent=1 // pred_check
      _
    $region27: #{forward.1} parent=1 // pred_check_branch
      %132 = sbr.rel (0) target = $region29
    $region28: #{forward.1} parent=1 // pred_region
      _
    $region29: #{forward.1} parent=1 // pred_fallthru
      _
    // Predicated region
    $region30: #{forward.1} parent=1 // pred_check
      _
    $region31: #{forward.1} parent=1 // pred_check_branch
      %134 = sbr.rel (0) target = $region33
    $region32: #{forward.1} parent=1 // pred_region
      %s136 = ssub.s32 16, 16
      %137 = vsyncadd [#allocation18], %s136
      %s139 = sshll.u32 [#allocation17], 4
      %s140 = int_to_ptr.vmem [resolvable:$true] %s139
      %142 = dma.hbm_to_vmem [thread:$0]  %s37, 16, %s140, [#allocation18]
    $region33: #{forward.1} parent=1 // pred_fallthru
      _
    // Predicated region
    $region34: #{forward.1} parent=1 // pred_check
      _
    $region35: #{forward.1} parent=1 // pred_check_branch
      %144 = sbr.rel (0) target = $region37
    $region36: #{forward.1} parent=1 // pred_region
      %s146 = ssub.s32 16, 16
      %147 = vsyncadd [#allocation18], %s146
      %s149 = sshll.u32 [#allocation19], 4
      %s150 = int_to_ptr.vmem [resolvable:$true] %s149
      %152 = dma.hbm_to_vmem [thread:$0]  %s39, 16, %s150, [#allocation18]
    $region37: #{forward.1} parent=1 // pred_fallthru
      _
    // Predicated region
    $region38: #{forward.1} parent=1 // pred_check
      _
    $region39: #{forward.1} parent=1 // pred_check_branch
      %154 = sbr.rel (0) target = $region41
    $region40: #{forward.1} parent=1 // pred_region
      %s156 = ssub.s32 16, 16
      %157 = vsyncadd [#allocation21], %s156
      %s159 = sshll.u32 [#allocation20], 4
      %s160 = int_to_ptr.vmem [resolvable:$true] %s159
      %162 = dma.hbm_to_vmem [thread:$0]  %s41, 16, %s160, [#allocation21]
    $region41: #{forward.1} parent=1 // pred_fallthru
      _
    // Predicated region
    $region42: #{forward.1} parent=1 // pred_check
      _
    $region43: #{forward.1} parent=1 // pred_check_branch
      %164 = sbr.rel (0) target = $region45
    $region44: #{forward.1} parent=1 // pred_region
      %s166 = ssub.s32 16, 16
      %167 = vsyncadd [#allocation21], %s166
      %s169 = sshll.u32 [#allocation22], 4
      %s170 = int_to_ptr.vmem [resolvable:$true] %s169
      %172 = dma.hbm_to_vmem [thread:$0]  %s43, 16, %s170, [#allocation21]
    $region45: #{forward.1} parent=1 // pred_fallthru
      _
    // Predicated region
    $region46: #{forward.1} parent=1 // pred_check
      _
    $region47: #{forward.1} parent=1 // pred_check_branch
      %174 = sbr.rel (0) target = $region49
    $region48: #{forward.1} parent=1 // pred_region
      %s176 = ssub.s32 16, 16
      %177 = vsyncadd [#allocation24], %s176
      %s179 = sshll.u32 [#allocation23], 4
      %s180 = int_to_ptr.vmem [resolvable:$true] %s179
      %182 = dma.hbm_to_vmem [thread:$0]  %s45, 16, %s180, [#allocation24]
    $region49: #{forward.1} parent=1 // pred_fallthru
      _
    // Predicated region
    $region50: #{forward.1} parent=1 // pred_check
      _
    $region51: #{forward.1} parent=1 // pred_check_branch
      %184 = sbr.rel (0) target = $region53
    $region52: #{forward.1} parent=1 // pred_region
      %s186 = ssub.s32 16, 16
      %187 = vsyncadd [#allocation24], %s186
      %s189 = sshll.u32 [#allocation25], 4
      %s190 = int_to_ptr.vmem [resolvable:$true] %s189
      %192 = dma.hbm_to_vmem [thread:$0]  %s47, 16, %s190, [#allocation24]
    $region53: #{forward.1} parent=1 // pred_fallthru
      _
    // Predicated region
    $region54: #{forward.1} parent=1 // pred_check
      _
    $region55: #{forward.1} parent=1 // pred_check_branch
      %194 = sbr.rel (0) target = $region57
    $region56: #{forward.1} parent=1 // pred_region
      %s196 = ssub.s32 16, 16
      %197 = vsyncadd [#allocation27], %s196
      %s199 = sshll.u32 [#allocation26], 4
      %s200 = int_to_ptr.vmem [resolvable:$true] %s199
      %202 = dma.hbm_to_vmem [thread:$0]  %s49, 16, %s200, [#allocation27]
    $region57: #{forward.1} parent=1 // pred_fallthru
      _
    // Predicated region
    $region58: #{forward.1} parent=1 // pred_check
      _
    $region59: #{forward.1} parent=1 // pred_check_branch
      %204 = sbr.rel (0) target = $region61
    $region60: #{forward.1} parent=1 // pred_region
      %s206 = ssub.s32 16, 16
      %207 = vsyncadd [#allocation27], %s206
      %s209 = sshll.u32 [#allocation28], 4
      %s210 = int_to_ptr.vmem [resolvable:$true] %s209
      %212 = dma.hbm_to_vmem [thread:$0]  %s51, 16, %s210, [#allocation27]
    $region61: #{forward.1} parent=1 // pred_fallthru
      _
    // Predicated region
    $region62: #{forward.1} parent=1 // pred_check
      _
    $region63: #{forward.1} parent=1 // pred_check_branch
      %214 = sbr.rel (0) target = $region65
    $region64: #{forward.1} parent=1 // pred_region
      %s216 = ssub.s32 16, 16
      %217 = vsyncadd [#allocation30], %s216
      %s219 = sshll.u32 [#allocation29], 4
      %s220 = int_to_ptr.vmem [resolvable:$true] %s219
      %222 = dma.hbm_to_vmem [thread:$0]  %s53, 16, %s220, [#allocation30]
    $region65: #{forward.1} parent=1 // pred_fallthru
      _
    // Predicated region
    $region66: #{forward.1} parent=1 // pred_check
      _
    $region67: #{forward.1} parent=1 // pred_check_branch
      %224 = sbr.rel (0) target = $region69
    $region68: #{forward.1} parent=1 // pred_region
      %s226 = ssub.s32 64, 64
      %227 = vsyncadd [#allocation30], %s226
      %s229 = sshll.u32 [#allocation31], 4
      %s230 = int_to_ptr.vmem [resolvable:$true] %s229
      %232 = dma.hbm_to_vmem [thread:$0]  %s55, 64, %s230, [#allocation30]
    $region69: #{forward.1} parent=1 // pred_fallthru
      _
    // Predicated region
    $region70: #{forward.1} parent=1 // pred_check
      _
    $region71: #{forward.1} parent=1 // pred_check_branch
      %234 = sbr.rel (0) target = $region73
    $region72: #{forward.1} parent=1 // pred_region
      %s236 = ssub.s32 64, 64
      %237 = vsyncadd [#allocation33], %s236
      %s239 = sshll.u32 [#allocation32], 4
      %s240 = int_to_ptr.vmem [resolvable:$true] %s239
      %242 = dma.hbm_to_vmem [thread:$0]  %s57, 64, %s240, [#allocation33]
    $region73: #{forward.1} parent=1 // pred_fallthru
      _
    // Predicated region
    $region74: #{forward.1} parent=1 // pred_check
      _
    $region75: #{forward.1} parent=1 // pred_check_branch
      %244 = sbr.rel (0) target = $region77
    $region76: #{forward.1} parent=1 // pred_region
      %s246 = ssub.s32 64, 64
      %247 = vsyncadd [#allocation33], %s246
      %s249 = sshll.u32 [#allocation34], 4
      %s250 = int_to_ptr.vmem [resolvable:$true] %s249
      %252 = dma.hbm_to_vmem [thread:$0]  %s59, 64, %s250, [#allocation33]
    $region77: #{forward.1} parent=1 // pred_fallthru
      _
    // Predicated region
    $region78: #{forward.1} parent=1 // pred_check
      _
    $region79: #{forward.1} parent=1 // pred_check_branch
      %254 = sbr.rel (0) target = $region81
    $region80: #{forward.1} parent=1 // pred_region
      %s256 = ssub.s32 64, 64
      %257 = vsyncadd [#allocation36], %s256
      %s259 = sshll.u32 [#allocation35], 4
      %s260 = int_to_ptr.vmem [resolvable:$true] %s259
      %262 = dma.hbm_to_vmem [thread:$0]  %s61, 64, %s260, [#allocation36]
    $region81: #{forward.1} parent=1 // pred_fallthru
      _
    // Predicated region
    $region82: #{forward.1} parent=1 // pred_check
      _
    $region83: #{forward.1} parent=1 // pred_check_branch
      %264 = sbr.rel (0) target = $region85
    $region84: #{forward.1} parent=1 // pred_region
      %s266 = ssub.s32 64, 64
      %267 = vsyncadd [#allocation36], %s266
      %s269 = sshll.u32 [#allocation37], 4
      %s270 = int_to_ptr.vmem [resolvable:$true] %s269
      %272 = dma.hbm_to_vmem [thread:$0]  %s63, 64, %s270, [#allocation36]
    $region85: #{forward.1} parent=1 // pred_fallthru
      _
    // Predicated region
    $region86: #{forward.1} parent=1 // pred_check
      _
    $region87: #{forward.1} parent=1 // pred_check_branch
      %274 = sbr.rel (0) target = $region89
    $region88: #{forward.1} parent=1 // pred_region
      %s276 = ssub.s32 64, 64
      %277 = vsyncadd [#allocation39], %s276
      %s279 = sshll.u32 [#allocation38], 4
      %s280 = int_to_ptr.vmem [resolvable:$true] %s279
      %282 = dma.hbm_to_vmem [thread:$0]  %s65, 64, %s280, [#allocation39]
    $region89: #{forward.1} parent=1 // pred_fallthru
      _
    // Predicated region
    $region90: #{forward.1} parent=1 // pred_check
      _
    $region91: #{forward.1} parent=1 // pred_check_branch
      %284 = sbr.rel (0) target = $region93
    $region92: #{forward.1} parent=1 // pred_region
      %s286 = ssub.s32 64, 64
      %287 = vsyncadd [#allocation39], %s286
      %s289 = sshll.u32 [#allocation40], 4
      %s290 = int_to_ptr.vmem [resolvable:$true] %s289
      %292 = dma.hbm_to_vmem [thread:$0]  %s67, 64, %s290, [#allocation39]
    $region93: #{forward.1} parent=1 // pred_fallthru
      _
    // Predicated region
    $region94: #{forward.1} parent=1 // pred_check
      _
    $region95: #{forward.1} parent=1 // pred_check_branch
      %294 = sbr.rel (0) target = $region97
    $region96: #{forward.1} parent=1 // pred_region
      %s296 = ssub.s32 64, 64
      %297 = vsyncadd [#allocation42], %s296
      %s299 = sshll.u32 [#allocation41], 4
      %s300 = int_to_ptr.vmem [resolvable:$true] %s299
      %302 = dma.hbm_to_vmem [thread:$0]  %s69, 64, %s300, [#allocation42]
    $region97: #{forward.1} parent=1 // pred_fallthru
      _
    // Predicated region
    $region98: #{forward.1} parent=1 // pred_check
      _
    $region99: #{forward.1} parent=1 // pred_check_branch
      %304 = sbr.rel (0) target = $region101
    $region100: #{forward.1} parent=1 // pred_region
      %s306 = ssub.s32 64, 64
      %307 = vsyncadd [#allocation42], %s306
      %s309 = sshll.u32 [#allocation43], 4
      %s310 = int_to_ptr.vmem [resolvable:$true] %s309
      %312 = dma.hbm_to_vmem [thread:$0]  %s71, 64, %s310, [#allocation42]
    $region101: #{forward.1} parent=1 // pred_fallthru
      _
    // Predicated region
    $region102: #{forward.1} parent=1 // pred_check
      _
    $region103: #{forward.1} parent=1 // pred_check_branch
      %314 = sbr.rel (0) target = $region105
    $region104: #{forward.1} parent=1 // pred_region
      _
    $region105: #{forward.1} parent=1 // pred_fallthru
      _
    // Predicated region
    $region106: #{forward.1} parent=1 // pred_check
      _
    $region107: #{forward.1} parent=1 // pred_check_branch
      %316 = sbr.rel (0) target = $region109
    $region108: #{forward.1} parent=1 // pred_region
      %s318 = ssub.s32 32, 32
      %319 = vsyncadd [#allocation45], %s318
      %s321 = sshll.u32 [#allocation44], 4
      %s322 = int_to_ptr.vmem [resolvable:$true] %s321
      %324 = dma.hbm_to_vmem [thread:$0]  %s75, 32, %s322, [#allocation45]
    $region109: #{forward.1} parent=1 // pred_fallthru
      _
    // Predicated region
    $region110: #{forward.1} parent=1 // pred_check
      _
    $region111: #{forward.1} parent=1 // pred_check_branch
      %326 = sbr.rel (0) target = $region113
    $region112: #{forward.1} parent=1 // pred_region
      %s328 = ssub.s32 32, 32
      %329 = vsyncadd [#allocation45], %s328
      %s331 = sshll.u32 [#allocation46], 4
      %s332 = int_to_ptr.vmem [resolvable:$true] %s331
      %334 = dma.hbm_to_vmem [thread:$0]  %s77, 32, %s332, [#allocation45]
    $region113: #{forward.1} parent=1 // pred_fallthru
      _
    // Predicated region
    $region114: #{forward.1} parent=1 // pred_check
      _
    $region115: #{forward.1} parent=1 // pred_check_branch
      %336 = sbr.rel (0) target = $region117
    $region116: #{forward.1} parent=1 // pred_region
      %s338 = ssub.s32 32, 32
      %339 = vsyncadd [#allocation48], %s338
      %s341 = sshll.u32 [#allocation47], 4
      %s342 = int_to_ptr.vmem [resolvable:$true] %s341
      %344 = dma.hbm_to_vmem [thread:$0]  %s79, 32, %s342, [#allocation48]
    $region117: #{forward.1} parent=1 // pred_fallthru
      _
    // Predicated region
    $region118: #{forward.1} parent=1 // pred_check
      _
    $region119: #{forward.1} parent=1 // pred_check_branch
      %346 = sbr.rel (0) target = $region121
    $region120: #{forward.1} parent=1 // pred_region
      %s348 = ssub.s32 32, 32
      %349 = vsyncadd [#allocation48], %s348
      %s351 = sshll.u32 [#allocation49], 4
      %s352 = int_to_ptr.vmem [resolvable:$true] %s351
      %354 = dma.hbm_to_vmem [thread:$0]  %s81, 32, %s352, [#allocation48]
    $region121: #{forward.1} parent=1 // pred_fallthru
      _
    // Predicated region
    $region122: #{forward.1} parent=1 // pred_check
      _
    $region123: #{forward.1} parent=1 // pred_check_branch
      %356 = sbr.rel (0) target = $region125
    $region124: #{forward.1} parent=1 // pred_region
      %s358 = ssub.s32 32, 32
      %359 = vsyncadd [#allocation51], %s358
      %s361 = sshll.u32 [#allocation50], 4
      %s362 = int_to_ptr.vmem [resolvable:$true] %s361
      %364 = dma.hbm_to_vmem [thread:$0]  %s83, 32, %s362, [#allocation51]
    $region125: #{forward.1} parent=1 // pred_fallthru
      _
    // Predicated region
    $region126: #{forward.1} parent=1 // pred_check
      _
    $region127: #{forward.1} parent=1 // pred_check_branch
      %366 = sbr.rel (0) target = $region129
    $region128: #{forward.1} parent=1 // pred_region
      _
    $region129: #{forward.1} parent=1 // pred_fallthru
      _
    // Predicated region
    $region130: #{forward.1} parent=1 // pred_check
      _
    $region131: #{forward.1} parent=1 // pred_check_branch
      %368 = sbr.rel (0) target = $region133
    $region132: #{forward.1} parent=1 // pred_region
      %s370 = ssub.s32 16, 16
      %371 = vsyncadd [#allocation51], %s370
      %s373 = sshll.u32 [#allocation52], 4
      %s374 = int_to_ptr.vmem [resolvable:$true] %s373
      %376 = dma.hbm_to_vmem [thread:$0]  %s87, 16, %s374, [#allocation51]
    $region133: #{forward.1} parent=1 // pred_fallthru
      _
    // Predicated region
    $region134: #{forward.1} parent=1 // pred_check
      _
    $region135: #{forward.1} parent=1 // pred_check_branch
      %378 = sbr.rel (0) target = $region137
    $region136: #{forward.1} parent=1 // pred_region
      %379 = dma.done [#allocation15], 128
    $region137: #{forward.1} parent=1 // pred_fallthru
      _
    // Predicated region
    $region138: #{forward.1} parent=1 // pred_check
      _
    $region139: #{forward.1} parent=1 // pred_check_branch
      %381 = sbr.rel (0) target = $region141
    $region140: #{forward.1} parent=1 // pred_region
      %382 = dma.done [#allocation18], 16
    $region141: #{forward.1} parent=1 // pred_fallthru
      _
    // Predicated region
    $region142: #{forward.1} parent=1 // pred_check
      _
    $region143: #{forward.1} parent=1 // pred_check_branch
      %384 = sbr.rel (0) target = $region145
    $region144: #{forward.1} parent=1 // pred_region
      %385 = dma.done [#allocation18], 16
    $region145: #{forward.1} parent=1 // pred_fallthru
      _
    // Predicated region
    $region146: #{forward.1} parent=1 // pred_check
      _
    $region147: #{forward.1} parent=1 // pred_check_branch
      %387 = sbr.rel (0) target = $region149
    $region148: #{forward.1} parent=1 // pred_region
      %388 = dma.done [#allocation21], 16
    $region149: #{forward.1} parent=1 // pred_fallthru
      _
    // Predicated region
    $region150: #{forward.1} parent=1 // pred_check
      _
    $region151: #{forward.1} parent=1 // pred_check_branch
      %390 = sbr.rel (0) target = $region153
    $region152: #{forward.1} parent=1 // pred_region
      %391 = dma.done [#allocation21], 16
    $region153: #{forward.1} parent=1 // pred_fallthru
      _
    // Predicated region
    $region154: #{forward.1} parent=1 // pred_check
      _
    $region155: #{forward.1} parent=1 // pred_check_branch
      %393 = sbr.rel (0) target = $region157
    $region156: #{forward.1} parent=1 // pred_region
      %394 = dma.done [#allocation24], 16
    $region157: #{forward.1} parent=1 // pred_fallthru
      _
    // Predicated region
    $region158: #{forward.1} parent=1 // pred_check
      _
    $region159: #{forward.1} parent=1 // pred_check_branch
      %396 = sbr.rel (0) target = $region161
    $region160: #{forward.1} parent=1 // pred_region
      %397 = dma.done [#allocation24], 16
    $region161: #{forward.1} parent=1 // pred_fallthru
      _
    // Predicated region
    $region162: #{forward.1} parent=1 // pred_check
      _
    $region163: #{forward.1} parent=1 // pred_check_branch
      %399 = sbr.rel (0) target = $region165
    $region164: #{forward.1} parent=1 // pred_region
      %400 = dma.done [#allocation27], 16
    $region165: #{forward.1} parent=1 // pred_fallthru
      _
    // Predicated region
    $region166: #{forward.1} parent=1 // pred_check
      _
    $region167: #{forward.1} parent=1 // pred_check_branch
      %402 = sbr.rel (0) target = $region169
    $region168: #{forward.1} parent=1 // pred_region
      %403 = dma.done [#allocation27], 16
    $region169: #{forward.1} parent=1 // pred_fallthru
      _
    // Predicated region
    $region170: #{forward.1} parent=1 // pred_check
      _
    $region171: #{forward.1} parent=1 // pred_check_branch
      %405 = sbr.rel (0) target = $region173
    $region172: #{forward.1} parent=1 // pred_region
      %406 = dma.done [#allocation30], 16
    $region173: #{forward.1} parent=1 // pred_fallthru
      _
    // Predicated region
    $region174: #{forward.1} parent=1 // pred_check
      _
    $region175: #{forward.1} parent=1 // pred_check_branch
      %408 = sbr.rel (0) target = $region177
    $region176: #{forward.1} parent=1 // pred_region
      %409 = dma.done [#allocation30], 64
    $region177: #{forward.1} parent=1 // pred_fallthru
      _
    // Predicated region
    $region178: #{forward.1} parent=1 // pred_check
      _
    $region179: #{forward.1} parent=1 // pred_check_branch
      %411 = sbr.rel (0) target = $region181
    $region180: #{forward.1} parent=1 // pred_region
      %412 = dma.done [#allocation33], 64
    $region181: #{forward.1} parent=1 // pred_fallthru
      _
    // Predicated region
    $region182: #{forward.1} parent=1 // pred_check
      _
    $region183: #{forward.1} parent=1 // pred_check_branch
      %414 = sbr.rel (0) target = $region185
    $region184: #{forward.1} parent=1 // pred_region
      %415 = dma.done [#allocation33], 64
    $region185: #{forward.1} parent=1 // pred_fallthru
      _
    // Predicated region
    $region186: #{forward.1} parent=1 // pred_check
      _
    $region187: #{forward.1} parent=1 // pred_check_branch
      %417 = sbr.rel (0) target = $region189
    $region188: #{forward.1} parent=1 // pred_region
      %418 = dma.done [#allocation36], 64
    $region189: #{forward.1} parent=1 // pred_fallthru
      _
    // Predicated region
    $region190: #{forward.1} parent=1 // pred_check
      _
    $region191: #{forward.1} parent=1 // pred_check_branch
      %420 = sbr.rel (0) target = $region193
    $region192: #{forward.1} parent=1 // pred_region
      %421 = dma.done [#allocation36], 64
    $region193: #{forward.1} parent=1 // pred_fallthru
      _
    // Predicated region
    $region194: #{forward.1} parent=1 // pred_check
      _
    $region195: #{forward.1} parent=1 // pred_check_branch
      %423 = sbr.rel (0) target = $region197
    $region196: #{forward.1} parent=1 // pred_region
      %424 = dma.done [#allocation39], 64
    $region197: #{forward.1} parent=1 // pred_fallthru
      _
    // Predicated region
    $region198: #{forward.1} parent=1 // pred_check
      _
    $region199: #{forward.1} parent=1 // pred_check_branch
      %426 = sbr.rel (0) target = $region201
    $region200: #{forward.1} parent=1 // pred_region
      %427 = dma.done [#allocation39], 64
    $region201: #{forward.1} parent=1 // pred_fallthru
      _
    // Predicated region
    $region202: #{forward.1} parent=1 // pred_check
      _
    $region203: #{forward.1} parent=1 // pred_check_branch
      %429 = sbr.rel (0) target = $region205
    $region204: #{forward.1} parent=1 // pred_region
      %430 = dma.done [#allocation42], 64
    $region205: #{forward.1} parent=1 // pred_fallthru
      _
    // Predicated region
    $region206: #{forward.1} parent=1 // pred_check
      _
    $region207: #{forward.1} parent=1 // pred_check_branch
      %432 = sbr.rel (0) target = $region209
    $region208: #{forward.1} parent=1 // pred_region
      %433 = dma.done [#allocation42], 64
    $region209: #{forward.1} parent=1 // pred_fallthru
      _
    // Predicated region
    $region210: #{forward.1} parent=1 // pred_check
      _
    $region211: #{forward.1} parent=1 // pred_check_branch
      %435 = sbr.rel (0) target = $region213
    $region212: #{forward.1} parent=1 // pred_region
      %436 = dma.done [#allocation45], 32
    $region213: #{forward.1} parent=1 // pred_fallthru
      _
    // Predicated region
    $region214: #{forward.1} parent=1 // pred_check
      _
    $region215: #{forward.1} parent=1 // pred_check_branch
      %438 = sbr.rel (0) target = $region217
    $region216: #{forward.1} parent=1 // pred_region
      %439 = dma.done [#allocation45], 32
    $region217: #{forward.1} parent=1 // pred_fallthru
      _
    // Predicated region
    $region218: #{forward.1} parent=1 // pred_check
      _
    $region219: #{forward.1} parent=1 // pred_check_branch
      %441 = sbr.rel (0) target = $region221
    $region220: #{forward.1} parent=1 // pred_region
      %442 = dma.done [#allocation48], 32
    $region221: #{forward.1} parent=1 // pred_fallthru
      _
    // Predicated region
    $region222: #{forward.1} parent=1 // pred_check
      _
    $region223: #{forward.1} parent=1 // pred_check_branch
      %444 = sbr.rel (0) target = $region225
    $region224: #{forward.1} parent=1 // pred_region
      %445 = dma.done [#allocation48], 32
    $region225: #{forward.1} parent=1 // pred_fallthru
      _
    // Predicated region
    $region226: #{forward.1} parent=1 // pred_check
      _
    $region227: #{forward.1} parent=1 // pred_check_branch
      %447 = sbr.rel (0) target = $region229
    $region228: #{forward.1} parent=1 // pred_region
      %448 = dma.done [#allocation51], 32
    $region229: #{forward.1} parent=1 // pred_fallthru
      _
    // Predicated region
    $region230: #{forward.1} parent=1 // pred_check
      _
    $region231: #{forward.1} parent=1 // pred_check_branch
      %450 = sbr.rel (0) target = $region233
    $region232: #{forward.1} parent=1 // pred_region
      %451 = dma.done [#allocation51], 16
    $region233: #{forward.1} parent=1 // pred_fallthru
      _
    // Predicated region
    $region234: #{forward.1} parent=1 // pred_check
      _
    $region235: #{forward.1} parent=1 // pred_check_branch
      %454 = sbr.rel target = $region237
    $region236: #{forward.1} parent=1 // pred_region
      %455 = sst [smem:[#allocation56]] [#allocation55]
      %456 = sst [smem:[#allocation57]] [#allocation54]
    $region237: #{forward.1} parent=1 // pred_fallthru
      _
    %458 = shalt.err (0)
    %s460 = sshll.u32 [#allocation2], 4
    %s461 = int_to_ptr.vmem [resolvable:$true] %s460
    %463 = dma.hbm_to_vmem [thread:$0]  %s9, 2048, %s461, [#allocation13]
    %s464 = scalar_lea.sflag [#allocation13], 1
    // Predicated region
    $region238: #{forward.1} parent=1 // pred_check
      _
    $region239: #{forward.1} parent=1 // pred_check_branch
      %466 = sbr.rel target = $region241
    $region240: #{forward.1} parent=1 // pred_region
      %467 = sst [smem:[#allocation56]] [#allocation59]
      %468 = sst [smem:[#allocation57]] [#allocation58]
    $region241: #{forward.1} parent=1 // pred_fallthru
      _
    %470 = shalt.err (0)
    %s472 = sshll.u32 [#allocation3], 4
    %s473 = int_to_ptr.vmem [resolvable:$true] %s472
    %475 = dma.hbm_to_vmem [thread:$0]  %s11, 4096, %s473, %s464
    %s476 = scalar_lea.sflag [#allocation13], 2
    // Predicated region
    $region242: #{forward.1} parent=1 // pred_check
      _
    $region243: #{forward.1} parent=1 // pred_check_branch
      %478 = sbr.rel target = $region245
    $region244: #{forward.1} parent=1 // pred_region
      %479 = sst [smem:[#allocation56]] [#allocation61]
      %480 = sst [smem:[#allocation57]] [#allocation60]
    $region245: #{forward.1} parent=1 // pred_fallthru
      _
    %482 = shalt.err (0)
    %s484 = sshll.u32 [#allocation4], 4
    %s485 = int_to_ptr.vmem [resolvable:$true] %s484
    %487 = dma.hbm_to_vmem [thread:$0]  %s13, 1024, %s485, %s476
    %s488 = scalar_lea.sflag [#allocation13], 3
    // Predicated region
    $region246: #{forward.1} parent=1 // pred_check
      _
    $region247: #{forward.1} parent=1 // pred_check_branch
      %490 = sbr.rel target = $region249
    $region248: #{forward.1} parent=1 // pred_region
      %491 = sst [smem:[#allocation56]] [#allocation63]
      %492 = sst [smem:[#allocation57]] [#allocation62]
    $region249: #{forward.1} parent=1 // pred_fallthru
      _
    %494 = shalt.err (0)
    %s496 = sshll.u32 [#allocation5], 4
    %s497 = int_to_ptr.vmem [resolvable:$true] %s496
    %499 = dma.hbm_to_vmem [thread:$0]  %s15, 1024, %s497, %s488
    %s500 = scalar_lea.sflag [#allocation13], 4
    // Predicated region
    $region250: #{forward.1} parent=1 // pred_check
      _
    $region251: #{forward.1} parent=1 // pred_check_branch
      %502 = sbr.rel target = $region253
    $region252: #{forward.1} parent=1 // pred_region
      %503 = sst [smem:[#allocation56]] [#allocation65]
      %504 = sst [smem:[#allocation57]] [#allocation64]
    $region253: #{forward.1} parent=1 // pred_fallthru
      _
    %506 = shalt.err (0)
    %s508 = sshll.u32 [#allocation6], 4
    %s509 = int_to_ptr.vmem [resolvable:$true] %s508
    %511 = dma.hbm_to_vmem [thread:$0]  %s17, 16384, %s509, %s500
    %s512 = scalar_lea.sflag [#allocation13], 5
    // Predicated region
    $region254: #{forward.1} parent=1 // pred_check
      _
    $region255: #{forward.1} parent=1 // pred_check_branch
      %514 = sbr.rel target = $region257
    $region256: #{forward.1} parent=1 // pred_region
      %515 = sst [smem:[#allocation56]] [#allocation67]
      %516 = sst [smem:[#allocation57]] [#allocation66]
    $region257: #{forward.1} parent=1 // pred_fallthru
      _
    %518 = shalt.err (0)
    %s520 = sshll.u32 [#allocation7], 4
    %s521 = int_to_ptr.vmem [resolvable:$true] %s520
    %523 = dma.hbm_to_vmem [thread:$0]  %s19, 16384, %s521, %s512
    %s524 = scalar_lea.sflag [#allocation13], 6
    // Predicated region
    $region258: #{forward.1} parent=1 // pred_check
      _
    $region259: #{forward.1} parent=1 // pred_check_branch
      %526 = sbr.rel target = $region261
    $region260: #{forward.1} parent=1 // pred_region
      %527 = sst [smem:[#allocation56]] [#allocation69]
      %528 = sst [smem:[#allocation57]] [#allocation68]
    $region261: #{forward.1} parent=1 // pred_fallthru
      _
    %530 = shalt.err (0)
    %s532 = sshll.u32 [#allocation8], 4
    %s533 = int_to_ptr.vmem [resolvable:$true] %s532
    %535 = dma.hbm_to_vmem [thread:$0]  %s21, 16384, %s533, %s524
    %s536 = scalar_lea.sflag [#allocation13], 7
    // Predicated region
    $region262: #{forward.1} parent=1 // pred_check
      _
    $region263: #{forward.1} parent=1 // pred_check_branch
      %538 = sbr.rel target = $region265
    $region264: #{forward.1} parent=1 // pred_region
      %539 = sst [smem:[#allocation56]] [#allocation71]
      %540 = sst [smem:[#allocation57]] [#allocation70]
    $region265: #{forward.1} parent=1 // pred_fallthru
      _
    %542 = shalt.err (0)
    %s544 = sshll.u32 [#allocation9], 4
    %s545 = int_to_ptr.vmem [resolvable:$true] %s544
    %547 = dma.hbm_to_vmem [thread:$0]  %s23, 8192, %s545, %s536
    %s548 = scalar_lea.sflag [#allocation13], 8
    // Predicated region
    $region266: #{forward.1} parent=1 // pred_check
      _
    $region267: #{forward.1} parent=1 // pred_check_branch
      %550 = sbr.rel target = $region269
    $region268: #{forward.1} parent=1 // pred_region
      %551 = sst [smem:[#allocation56]] [#allocation73]
      %552 = sst [smem:[#allocation57]] [#allocation72]
    $region269: #{forward.1} parent=1 // pred_fallthru
      _
    %554 = shalt.err (0)
    %s556 = sshll.u32 [#allocation10], 4
    %s557 = int_to_ptr.vmem [resolvable:$true] %s556
    %559 = dma.hbm_to_vmem [thread:$0]  %s25, 4096, %s557, %s548
    %s560 = scalar_lea.sflag [#allocation13], 9
    // Predicated region
    $region270: #{forward.1} parent=1 // pred_check
      _
    $region271: #{forward.1} parent=1 // pred_check_branch
      %562 = sbr.rel target = $region273
    $region272: #{forward.1} parent=1 // pred_region
      %563 = sst [smem:[#allocation56]] [#allocation75]
      %564 = sst [smem:[#allocation57]] [#allocation74]
    $region273: #{forward.1} parent=1 // pred_fallthru
      _
    %566 = shalt.err (0)
    %s568 = sshll.u32 [#allocation11], 4
    %s569 = int_to_ptr.vmem [resolvable:$true] %s568
    %571 = dma.hbm_to_vmem [thread:$0]  %s27, 10240, %s569, %s560
    %s572 = scalar_lea.sflag [#allocation13], 10
    // Predicated region
    $region274: #{forward.1} parent=1 // pred_check
      _
    $region275: #{forward.1} parent=1 // pred_check_branch
      %574 = sbr.rel target = $region277
    $region276: #{forward.1} parent=1 // pred_region
      %575 = sst [smem:[#allocation56]] [#allocation77]
      %576 = sst [smem:[#allocation57]] [#allocation76]
    $region277: #{forward.1} parent=1 // pred_fallthru
      _
    %578 = shalt.err (0)
    %s580 = sshll.u32 [#allocation12], 4
    %s581 = int_to_ptr.vmem [resolvable:$true] %s580
    %583 = dma.hbm_to_vmem [thread:$0]  %s29, 5120, %s581, %s572
    %v584 = vld [vmem:[%s1] sm:$0xff]
    %v585 = vld [vmem:[%s1 + $0x8] sm:$0xff]
    %s586 = smul.u32 4, 32
    %s587 = smul.u32 %s586, 1
    %s588 = sshll.u32 %s587, 4
    %589 = dma.done [#allocation13], %s588
    %v590 = vld [vmem:[#allocation2] sm:$0xf]
    %v591 = vld [vmem:[#allocation2 + $0x4] sm:$0xf]
    %v592 = vld [vmem:[#allocation2 + $0x8] sm:$0xf]
    %v593 = vld [vmem:[#allocation2 + $0xc] sm:$0xf]
    %v594 = vld [vmem:[#allocation2 + $0x10] sm:$0xf]
    %v595 = vld [vmem:[#allocation2 + $0x14] sm:$0xf]
    %v596 = vld [vmem:[#allocation2 + $0x18] sm:$0xf]
    %v597 = vld [vmem:[#allocation2 + $0x1c] sm:$0xf]
    %v598 = vld [vmem:[#allocation2 + $0x20] sm:$0xf]
    %v599 = vld [vmem:[#allocation2 + $0x24] sm:$0xf]
    %v600 = vld [vmem:[#allocation2 + $0x28] sm:$0xf]
    %v601 = vld [vmem:[#allocation2 + $0x2c] sm:$0xf]
    %v602 = vld [vmem:[#allocation2 + $0x30] sm:$0xf]
    %v603 = vld [vmem:[#allocation2 + $0x34] sm:$0xf]
    %v604 = vld [vmem:[#allocation2 + $0x38] sm:$0xf]
    %v605 = vld [vmem:[#allocation2 + $0x3c] sm:$0xf]
    %v606 = vld [vmem:[#allocation2 + $0x40] sm:$0xf]
    %v607 = vld [vmem:[#allocation2 + $0x44] sm:$0xf]
    %v608 = vld [vmem:[#allocation2 + $0x48] sm:$0xf]
    %v609 = vld [vmem:[#allocation2 + $0x4c] sm:$0xf]
    %v610 = vld [vmem:[#allocation2 + $0x50] sm:$0xf]
    %v611 = vld [vmem:[#allocation2 + $0x54] sm:$0xf]
    %v612 = vld [vmem:[#allocation2 + $0x58] sm:$0xf]
    %v613 = vld [vmem:[#allocation2 + $0x5c] sm:$0xf]
    %v614 = vld [vmem:[#allocation2 + $0x60] sm:$0xf]
    %v615 = vld [vmem:[#allocation2 + $0x64] sm:$0xf]
    %v616 = vld [vmem:[#allocation2 + $0x68] sm:$0xf]
    %v617 = vld [vmem:[#allocation2 + $0x6c] sm:$0xf]
    %v618 = vld [vmem:[#allocation2 + $0x70] sm:$0xf]
    %v619 = vld [vmem:[#allocation2 + $0x74] sm:$0xf]
    %v620 = vld [vmem:[#allocation2 + $0x78] sm:$0xf]
    %v621 = vld [vmem:[#allocation2 + $0x7c] sm:$0xf]
    %v622 = vpack.c.bf16 %v584, %v584
    %v623 = vpack.c.bf16 %v585, %v585
    %v624 = vld [vmem:[%s31] sm:$0x1]
    %v626 = vlaneseq
    %v627 = vshrl.u32 %v626, 7
    %v628 = vsub.s32 0, %v627
    %v629 = vrot.slane %v624, %v628
    %v663 = vunpack.c.l.b16 %v590
    %v664 = vunpack.c.l.b16 %v591
    %v665 = vunpack.c.l.b16 %v592
    %v666 = vunpack.c.l.b16 %v593
    %v667 = vunpack.c.l.b16 %v594
    %v668 = vunpack.c.l.b16 %v595
    %v669 = vunpack.c.l.b16 %v596
    %v670 = vunpack.c.l.b16 %v597
    %v671 = vunpack.c.l.b16 %v598
    %v672 = vunpack.c.l.b16 %v599
    %v673 = vunpack.c.l.b16 %v600
    %v674 = vunpack.c.l.b16 %v601
    %v675 = vunpack.c.l.b16 %v602
    %v676 = vunpack.c.l.b16 %v603
    %v677 = vunpack.c.l.b16 %v604
    %v678 = vunpack.c.l.b16 %v605
    %v679 = vunpack.c.l.b16 %v606
    %v680 = vunpack.c.l.b16 %v607
    %v681 = vunpack.c.l.b16 %v608
    %v682 = vunpack.c.l.b16 %v609
    %v683 = vunpack.c.l.b16 %v610
    %v684 = vunpack.c.l.b16 %v611
    %v685 = vunpack.c.l.b16 %v612
    %v686 = vunpack.c.l.b16 %v613
    %v687 = vunpack.c.l.b16 %v614
    %v688 = vunpack.c.l.b16 %v615
    %v689 = vunpack.c.l.b16 %v616
    %v690 = vunpack.c.l.b16 %v617
    %v691 = vunpack.c.l.b16 %v618
    %v692 = vunpack.c.l.b16 %v619
    %v693 = vunpack.c.l.b16 %v620
    %v694 = vunpack.c.l.b16 %v621
    %v695 = vpack.c.b16 %v664, %v663
    %v696 = vpack.c.b16 %v666, %v665
    %v697 = vpack.c.b16 %v668, %v667
    %v698 = vpack.c.b16 %v670, %v669
    %v699 = vpack.c.b16 %v672, %v671
    %v700 = vpack.c.b16 %v674, %v673
    %v701 = vpack.c.b16 %v676, %v675
    %v702 = vpack.c.b16 %v678, %v677
    %v703 = vpack.c.b16 %v680, %v679
    %v704 = vpack.c.b16 %v682, %v681
    %v705 = vpack.c.b16 %v684, %v683
    %v706 = vpack.c.b16 %v686, %v685
    %v707 = vpack.c.b16 %v688, %v687
    %v708 = vpack.c.b16 %v690, %v689
    %v709 = vpack.c.b16 %v692, %v691
    %v710 = vpack.c.b16 %v694, %v693
    %727 = vmatprep.subr.bf16.mxu0 0
    %728 = vmatpush1.bf16.msra.mxu0 %v702
    %729 = vmatprep.subr.bf16.mxu0 0
    %730 = vmatpush1.bf16.msra.mxu0 %v701
    %731 = vmatprep.subr.bf16.mxu0 0
    %732 = vmatpush1.bf16.msra.mxu0 %v700
    %733 = vmatprep.subr.bf16.mxu0 0
    %734 = vmatpush1.bf16.msra.mxu0 %v699
    %735 = vmatprep.subr.bf16.mxu0 0
    %736 = vmatpush1.bf16.msra.mxu0 %v698
    %737 = vmatprep.subr.bf16.mxu0 0
    %738 = vmatpush1.bf16.msra.mxu0 %v697
    %739 = vmatprep.subr.bf16.mxu0 0
    %740 = vmatpush1.bf16.msra.mxu0 %v696
    %741 = vmatprep.subr.bf16.mxu0 0
    %742 = vmatpush1.bf16.msra.mxu0 %v695
    %743 = vmatprep.subr.bf16.mxu0 0
    %744 = vmatpush2.bf16.msra.mxu0 %v710
    %745 = vmatprep.subr.bf16.mxu0 0
    %746 = vmatpush2.bf16.msra.mxu0 %v709
    %747 = vmatprep.subr.bf16.mxu0 0
    %748 = vmatpush2.bf16.msra.mxu0 %v708
    %749 = vmatprep.subr.bf16.mxu0 0
    %750 = vmatpush2.bf16.msra.mxu0 %v707
    %751 = vmatprep.subr.bf16.mxu0 0
    %752 = vmatpush2.bf16.msra.mxu0 %v706
    %753 = vmatprep.subr.bf16.mxu0 0
    %754 = vmatpush2.bf16.msra.mxu0 %v705
    %755 = vmatprep.subr.bf16.mxu0 0
    %756 = vmatpush2.bf16.msra.mxu0 %v704
    %757 = vmatprep.subr.bf16.mxu0 0
    %758 = vmatpush2.bf16.msra.mxu0 %v703
    %759 = vmatprep.mubr.bf16.mxu0 %v623
    %760 = vmatmul.mubr.bf16.gmra.mxu0 %v622
    %v761 = vpop.f32.mrf.mxu0
    %v762 = vadd.f32 %v629, %v761
    %v763 = vpop.f32.mrf.mxu0
    %v764 = vpop.f32.mrf.mxu0
    %v765 = vpop.f32.mrf.mxu0
    %766 = vdwg.mxu0
    %v767 = vmul.f32 %v762, 0.5
    %v768 = vmul.f32 %v762, 0.70710677
    %v769 = verf.f32.pop %v768
    %v770 = vadd.f32 %v769, 1.0
    %v771 = vmul.f32 %v767, %v770
    %v772 = vld [vmem:[%s33] sm:$0x1]
    %v773 = vld [vmem:[%s35] sm:$0x1]
    %774 = vadd.xlane.f32.xlu0 %v771
    %v775 = vpop.xlane.xlu0 %774
    %v776 = vrcp.pop 128.0
    %v777 = vmul.f32 %v775, %v776
    %v778 = vsub.f32 %v771, %v777
    %v779 = vmul.f32 %v778, %v778
    %780 = vadd.xlane.f32.xlu0 %v779
    %v781 = vpop.xlane.xlu0 %780
    %v782 = vmul.f32 %v781, %v776
    %v783 = vadd.f32 %v782, 1e-05
    %v784 = vrsqrt.pop %v783
    %v785 = vmul.f32 %v778, %v784
    %v787 = vlaneseq
    %v788 = vshrl.u32 %v787, 7
    %v789 = vsub.s32 0, %v788
    %v790 = vrot.slane %v772, %v789
    %v792 = vmul.f32 %v785, %v790
    %v794 = vlaneseq
    %v795 = vshrl.u32 %v794, 7
    %v796 = vsub.s32 0, %v795
    %v797 = vrot.slane %v773, %v796
    %v799 = vadd.f32 %v792, %v797
    %v800 = vld [vmem:[%s3] sm:$0xff]
    %v801 = vld [vmem:[%s3 + $0x8] sm:$0xff]
    %v802 = vld [vmem:[%s3 + $0x10] sm:$0xff]
    %v803 = vld [vmem:[%s3 + $0x18] sm:$0xff]
    %s804 = smul.u32 4, 64
    %s805 = smul.u32 %s804, 1
    %s806 = sshll.u32 %s805, 4
    %807 = dma.done %s464, %s806
    %v808 = vld [vmem:[#allocation3] sm:$0xf]
    %v809 = vld [vmem:[#allocation3 + $0x4] sm:$0xf]
    %v810 = vld [vmem:[#allocation3 + $0x8] sm:$0xf]
    %v811 = vld [vmem:[#allocation3 + $0xc] sm:$0xf]
    %v812 = vld [vmem:[#allocation3 + $0x10] sm:$0xf]
    %v813 = vld [vmem:[#allocation3 + $0x14] sm:$0xf]
    %v814 = vld [vmem:[#allocation3 + $0x18] sm:$0xf]
    %v815 = vld [vmem:[#allocation3 + $0x1c] sm:$0xf]
    %v816 = vld [vmem:[#allocation3 + $0x20] sm:$0xf]
    %v817 = vld [vmem:[#allocation3 + $0x24] sm:$0xf]
    %v818 = vld [vmem:[#allocation3 + $0x28] sm:$0xf]
    %v819 = vld [vmem:[#allocation3 + $0x2c] sm:$0xf]
    %v820 = vld [vmem:[#allocation3 + $0x30] sm:$0xf]
    %v821 = vld [vmem:[#allocation3 + $0x34] sm:$0xf]
    %v822 = vld [vmem:[#allocation3 + $0x38] sm:$0xf]
    %v823 = vld [vmem:[#allocation3 + $0x3c] sm:$0xf]
    %v824 = vld [vmem:[#allocation3 + $0x40] sm:$0xf]
    %v825 = vld [vmem:[#allocation3 + $0x44] sm:$0xf]
    %v826 = vld [vmem:[#allocation3 + $0x48] sm:$0xf]
    %v827 = vld [vmem:[#allocation3 + $0x4c] sm:$0xf]
    %v828 = vld [vmem:[#allocation3 + $0x50] sm:$0xf]
    %v829 = vld [vmem:[#allocation3 + $0x54] sm:$0xf]
    %v830 = vld [vmem:[#allocation3 + $0x58] sm:$0xf]
    %v831 = vld [vmem:[#allocation3 + $0x5c] sm:$0xf]
    %v832 = vld [vmem:[#allocation3 + $0x60] sm:$0xf]
    %v833 = vld [vmem:[#allocation3 + $0x64] sm:$0xf]
    %v834 = vld [vmem:[#allocation3 + $0x68] sm:$0xf]
    %v835 = vld [vmem:[#allocation3 + $0x6c] sm:$0xf]
    %v836 = vld [vmem:[#allocation3 + $0x70] sm:$0xf]
    %v837 = vld [vmem:[#allocation3 + $0x74] sm:$0xf]
    %v838 = vld [vmem:[#allocation3 + $0x78] sm:$0xf]
    %v839 = vld [vmem:[#allocation3 + $0x7c] sm:$0xf]
    %v840 = vld [vmem:[#allocation3 + $0x80] sm:$0xf]
    %v841 = vld [vmem:[#allocation3 + $0x84] sm:$0xf]
    %v842 = vld [vmem:[#allocation3 + $0x88] sm:$0xf]
    %v843 = vld [vmem:[#allocation3 + $0x8c] sm:$0xf]
    %v844 = vld [vmem:[#allocation3 + $0x90] sm:$0xf]
    %v845 = vld [vmem:[#allocation3 + $0x94] sm:$0xf]
    %v846 = vld [vmem:[#allocation3 + $0x98] sm:$0xf]
    %v847 = vld [vmem:[#allocation3 + $0x9c] sm:$0xf]
    %v848 = vld [vmem:[#allocation3 + $0xa0] sm:$0xf]
    %v849 = vld [vmem:[#allocation3 + $0xa4] sm:$0xf]
    %v850 = vld [vmem:[#allocation3 + $0xa8] sm:$0xf]
    %v851 = vld [vmem:[#allocation3 + $0xac] sm:$0xf]
    %v852 = vld [vmem:[#allocation3 + $0xb0] sm:$0xf]
    %v853 = vld [vmem:[#allocation3 + $0xb4] sm:$0xf]
    %v854 = vld [vmem:[#allocation3 + $0xb8] sm:$0xf]
    %v855 = vld [vmem:[#allocation3 + $0xbc] sm:$0xf]
    %v856 = vld [vmem:[#allocation3 + $0xc0] sm:$0xf]
    %v857 = vld [vmem:[#allocation3 + $0xc4] sm:$0xf]
    %v858 = vld [vmem:[#allocation3 + $0xc8] sm:$0xf]
    %v859 = vld [vmem:[#allocation3 + $0xcc] sm:$0xf]
    %v860 = vld [vmem:[#allocation3 + $0xd0] sm:$0xf]
    %v861 = vld [vmem:[#allocation3 + $0xd4] sm:$0xf]
    %v862 = vld [vmem:[#allocation3 + $0xd8] sm:$0xf]
    %v863 = vld [vmem:[#allocation3 + $0xdc] sm:$0xf]
    %v864 = vld [vmem:[#allocation3 + $0xe0] sm:$0xf]
    %v865 = vld [vmem:[#allocation3 + $0xe4] sm:$0xf]
    %v866 = vld [vmem:[#allocation3 + $0xe8] sm:$0xf]
    %v867 = vld [vmem:[#allocation3 + $0xec] sm:$0xf]
    %v868 = vld [vmem:[#allocation3 + $0xf0] sm:$0xf]
    %v869 = vld [vmem:[#allocation3 + $0xf4] sm:$0xf]
    %v870 = vld [vmem:[#allocation3 + $0xf8] sm:$0xf]
    %v871 = vld [vmem:[#allocation3 + $0xfc] sm:$0xf]
    %v872 = vpack.c.bf16 %v800, %v800
    %v873 = vpack.c.bf16 %v801, %v801
    %v874 = vpack.c.bf16 %v802, %v802
    %v875 = vpack.c.bf16 %v803, %v803
    %v876 = vld [vmem:[#allocation17] sm:$0x1]
    %v878 = vlaneseq
    %v879 = vshrl.u32 %v878, 7
    %v880 = vsub.s32 0, %v879
    %v881 = vrot.slane %v876, %v880
    %v947 = vunpack.c.l.b16 %v808
    %v948 = vunpack.c.l.b16 %v809
    %v949 = vunpack.c.l.b16 %v810
    %v950 = vunpack.c.l.b16 %v811
    %v951 = vunpack.c.l.b16 %v812
    %v952 = vunpack.c.l.b16 %v813
    %v953 = vunpack.c.l.b16 %v814
    %v954 = vunpack.c.l.b16 %v815
    %v955 = vunpack.c.l.b16 %v816
    %v956 = vunpack.c.l.b16 %v817
    %v957 = vunpack.c.l.b16 %v818
    %v958 = vunpack.c.l.b16 %v819
    %v959 = vunpack.c.l.b16 %v820
    %v960 = vunpack.c.l.b16 %v821
    %v961 = vunpack.c.l.b16 %v822
    %v962 = vunpack.c.l.b16 %v823
    %v963 = vunpack.c.l.b16 %v824
    %v964 = vunpack.c.l.b16 %v825
    %v965 = vunpack.c.l.b16 %v826
    %v966 = vunpack.c.l.b16 %v827
    %v967 = vunpack.c.l.b16 %v828
    %v968 = vunpack.c.l.b16 %v829
    %v969 = vunpack.c.l.b16 %v830
    %v970 = vunpack.c.l.b16 %v831
    %v971 = vunpack.c.l.b16 %v832
    %v972 = vunpack.c.l.b16 %v833
    %v973 = vunpack.c.l.b16 %v834
    %v974 = vunpack.c.l.b16 %v835
    %v975 = vunpack.c.l.b16 %v836
    %v976 = vunpack.c.l.b16 %v837
    %v977 = vunpack.c.l.b16 %v838
    %v978 = vunpack.c.l.b16 %v839
    %v979 = vunpack.c.l.b16 %v840
    %v980 = vunpack.c.l.b16 %v841
    %v981 = vunpack.c.l.b16 %v842
    %v982 = vunpack.c.l.b16 %v843
    %v983 = vunpack.c.l.b16 %v844
    %v984 = vunpack.c.l.b16 %v845
    %v985 = vunpack.c.l.b16 %v846
    %v986 = vunpack.c.l.b16 %v847
    %v987 = vunpack.c.l.b16 %v848
    %v988 = vunpack.c.l.b16 %v849
    %v989 = vunpack.c.l.b16 %v850
    %v990 = vunpack.c.l.b16 %v851
    %v991 = vunpack.c.l.b16 %v852
    %v992 = vunpack.c.l.b16 %v853
    %v993 = vunpack.c.l.b16 %v854
    %v994 = vunpack.c.l.b16 %v855
    %v995 = vunpack.c.l.b16 %v856
    %v996 = vunpack.c.l.b16 %v857
    %v997 = vunpack.c.l.b16 %v858
    %v998 = vunpack.c.l.b16 %v859
    %v999 = vunpack.c.l.b16 %v860
    %v1000 = vunpack.c.l.b16 %v861
    %v1001 = vunpack.c.l.b16 %v862
    %v1002 = vunpack.c.l.b16 %v863
    %v1003 = vunpack.c.l.b16 %v864
    %v1004 = vunpack.c.l.b16 %v865
    %v1005 = vunpack.c.l.b16 %v866
    %v1006 = vunpack.c.l.b16 %v867
    %v1007 = vunpack.c.l.b16 %v868
    %v1008 = vunpack.c.l.b16 %v869
    %v1009 = vunpack.c.l.b16 %v870
    %v1010 = vunpack.c.l.b16 %v871
    %v1011 = vpack.c.b16 %v948, %v947
    %v1012 = vpack.c.b16 %v950, %v949
    %v1013 = vpack.c.b16 %v952, %v951
    %v1014 = vpack.c.b16 %v954, %v953
    %v1015 = vpack.c.b16 %v956, %v955
    %v1016 = vpack.c.b16 %v958, %v957
    %v1017 = vpack.c.b16 %v960, %v959
    %v1018 = vpack.c.b16 %v962, %v961
    %v1019 = vpack.c.b16 %v964, %v963
    %v1020 = vpack.c.b16 %v966, %v965
    %v1021 = vpack.c.b16 %v968, %v967
    %v1022 = vpack.c.b16 %v970, %v969
    %v1023 = vpack.c.b16 %v972, %v971
    %v1024 = vpack.c.b16 %v974, %v973
    %v1025 = vpack.c.b16 %v976, %v975
    %v1026 = vpack.c.b16 %v978, %v977
    %v1027 = vpack.c.b16 %v980, %v979
    %v1028 = vpack.c.b16 %v982, %v981
    %v1029 = vpack.c.b16 %v984, %v983
    %v1030 = vpack.c.b16 %v986, %v985
    %v1031 = vpack.c.b16 %v988, %v987
    %v1032 = vpack.c.b16 %v990, %v989
    %v1033 = vpack.c.b16 %v992, %v991
    %v1034 = vpack.c.b16 %v994, %v993
    %v1035 = vpack.c.b16 %v996, %v995
    %v1036 = vpack.c.b16 %v998, %v997
    %v1037 = vpack.c.b16 %v1000, %v999
    %v1038 = vpack.c.b16 %v1002, %v1001
    %v1039 = vpack.c.b16 %v1004, %v1003
    %v1040 = vpack.c.b16 %v1006, %v1005
    %v1041 = vpack.c.b16 %v1008, %v1007
    %v1042 = vpack.c.b16 %v1010, %v1009
    %1075 = vmatprep.subr.bf16.mxu0 0
    %1076 = vmatpush1.bf16.msra.mxu0 %v1018
    %1077 = vmatprep.subr.bf16.mxu0 0
    %1078 = vmatpush1.bf16.msra.mxu0 %v1017
    %1079 = vmatprep.subr.bf16.mxu0 0
    %1080 = vmatpush1.bf16.msra.mxu0 %v1016
    %1081 = vmatprep.subr.bf16.mxu0 0
    %1082 = vmatpush1.bf16.msra.mxu0 %v1015
    %1083 = vmatprep.subr.bf16.mxu0 0
    %1084 = vmatpush1.bf16.msra.mxu0 %v1014
    %1085 = vmatprep.subr.bf16.mxu0 0
    %1086 = vmatpush1.bf16.msra.mxu0 %v1013
    %1087 = vmatprep.subr.bf16.mxu0 0
    %1088 = vmatpush1.bf16.msra.mxu0 %v1012
    %1089 = vmatprep.subr.bf16.mxu0 0
    %1090 = vmatpush1.bf16.msra.mxu0 %v1011
    %1091 = vmatprep.subr.bf16.mxu0 0
    %1092 = vmatpush2.bf16.msra.mxu0 %v1026
    %1093 = vmatprep.subr.bf16.mxu0 0
    %1094 = vmatpush2.bf16.msra.mxu0 %v1025
    %1095 = vmatprep.subr.bf16.mxu0 0
    %1096 = vmatpush2.bf16.msra.mxu0 %v1024
    %1097 = vmatprep.subr.bf16.mxu0 0
    %1098 = vmatpush2.bf16.msra.mxu0 %v1023
    %1099 = vmatprep.subr.bf16.mxu0 0
    %1100 = vmatpush2.bf16.msra.mxu0 %v1022
    %1101 = vmatprep.subr.bf16.mxu0 0
    %1102 = vmatpush2.bf16.msra.mxu0 %v1021
    %1103 = vmatprep.subr.bf16.mxu0 0
    %1104 = vmatpush2.bf16.msra.mxu0 %v1020
    %1105 = vmatprep.subr.bf16.mxu0 0
    %1106 = vmatpush2.bf16.msra.mxu0 %v1019
    %1107 = vmatprep.mubr.bf16.mxu0 %v873
    %1108 = vmatmul.mubr.bf16.gmra.mxu0 %v872
    %v1109 = vpop.f32.mrf.mxu0
    %v1110 = vadd.f32 %v881, %v1109
    %v1111 = vpop.f32.mrf.mxu0
    %v1112 = vpop.f32.mrf.mxu0
    %v1113 = vpop.f32.mrf.mxu0
    %1114 = vdwg.mxu0
    %1115 = vmatprep.subr.bf16.mxu0 0
    %1116 = vmatpush1.bf16.msra.mxu0 %v1034
    %1117 = vmatprep.subr.bf16.mxu0 0
    %1118 = vmatpush1.bf16.msra.mxu0 %v1033
    %1119 = vmatprep.subr.bf16.mxu0 0
    %1120 = vmatpush1.bf16.msra.mxu0 %v1032
    %1121 = vmatprep.subr.bf16.mxu0 0
    %1122 = vmatpush1.bf16.msra.mxu0 %v1031
    %1123 = vmatprep.subr.bf16.mxu0 0
    %1124 = vmatpush1.bf16.msra.mxu0 %v1030
    %1125 = vmatprep.subr.bf16.mxu0 0
    %1126 = vmatpush1.bf16.msra.mxu0 %v1029
    %1127 = vmatprep.subr.bf16.mxu0 0
    %1128 = vmatpush1.bf16.msra.mxu0 %v1028
    %1129 = vmatprep.subr.bf16.mxu0 0
    %1130 = vmatpush1.bf16.msra.mxu0 %v1027
    %1131 = vmatprep.subr.bf16.mxu0 0
    %1132 = vmatpush2.bf16.msra.mxu0 %v1042
    %1133 = vmatprep.subr.bf16.mxu0 0
    %1134 = vmatpush2.bf16.msra.mxu0 %v1041
    %1135 = vmatprep.subr.bf16.mxu0 0
    %1136 = vmatpush2.bf16.msra.mxu0 %v1040
    %1137 = vmatprep.subr.bf16.mxu0 0
    %1138 = vmatpush2.bf16.msra.mxu0 %v1039
    %1139 = vmatprep.subr.bf16.mxu0 0
    %1140 = vmatpush2.bf16.msra.mxu0 %v1038
    %1141 = vmatprep.subr.bf16.mxu0 0
    %1142 = vmatpush2.bf16.msra.mxu0 %v1037
    %1143 = vmatprep.subr.bf16.mxu0 0
    %1144 = vmatpush2.bf16.msra.mxu0 %v1036
    %1145 = vmatprep.subr.bf16.mxu0 0
    %1146 = vmatpush2.bf16.msra.mxu0 %v1035
    %1147 = vmatprep.mubr.bf16.mxu0 %v875
    %1148 = vmatmul.mubr.bf16.gmra.mxu0 %v874
    %v1149 = vpop.f32.mrf.mxu0
    %v1150 = vadd.f32 %v1110, %v1149
    %v1151 = vpop.f32.mrf.mxu0
    %v1152 = vpop.f32.mrf.mxu0
    %v1153 = vpop.f32.mrf.mxu0
    %1154 = vdwg.mxu0
    %v1155 = vmul.f32 %v1150, 0.5
    %v1156 = vmul.f32 %v1150, 0.70710677
    %v1157 = verf.f32.pop %v1156
    %v1158 = vadd.f32 %v1157, 1.0
    %v1159 = vmul.f32 %v1155, %v1158
    %v1160 = vld [vmem:[#allocation19] sm:$0x1]
    %v1161 = vld [vmem:[#allocation20] sm:$0x1]
    %1162 = vadd.xlane.f32.xlu0 %v1159
    %v1163 = vpop.xlane.xlu0 %1162
    %v1164 = vmul.f32 %v1163, %v776
    %v1165 = vsub.f32 %v1159, %v1164
    %v1166 = vmul.f32 %v1165, %v1165
    %1167 = vadd.xlane.f32.xlu0 %v1166
    %v1168 = vpop.xlane.xlu0 %1167
    %v1169 = vmul.f32 %v1168, %v776
    %v1170 = vadd.f32 %v1169, 1e-05
    %v1171 = vrsqrt.pop %v1170
    %v1172 = vmul.f32 %v1165, %v1171
    %v1174 = vlaneseq
    %v1175 = vshrl.u32 %v1174, 7
    %v1176 = vsub.s32 0, %v1175
    %v1177 = vrot.slane %v1160, %v1176
    %v1179 = vmul.f32 %v1172, %v1177
    %v1181 = vlaneseq
    %v1182 = vshrl.u32 %v1181, 7
    %v1183 = vsub.s32 0, %v1182
    %v1184 = vrot.slane %v1161, %v1183
    %v1186 = vadd.f32 %v1179, %v1184
    %v1187 = vld [vmem:[#allocation14] sm:$0xff]
    %s1188 = smul.u32 4, 16
    %s1189 = smul.u32 %s1188, 1
    %s1190 = sshll.u32 %s1189, 4
    %1191 = dma.done %s476, %s1190
    %v1192 = vld [vmem:[#allocation4] sm:$0xf]
    %v1193 = vld [vmem:[#allocation4 + $0x4] sm:$0xf]
    %v1194 = vld [vmem:[#allocation4 + $0x8] sm:$0xf]
    %v1195 = vld [vmem:[#allocation4 + $0xc] sm:$0xf]
    %v1196 = vld [vmem:[#allocation4 + $0x10] sm:$0xf]
    %v1197 = vld [vmem:[#allocation4 + $0x14] sm:$0xf]
    %v1198 = vld [vmem:[#allocation4 + $0x18] sm:$0xf]
    %v1199 = vld [vmem:[#allocation4 + $0x1c] sm:$0xf]
    %v1200 = vld [vmem:[#allocation4 + $0x20] sm:$0xf]
    %v1201 = vld [vmem:[#allocation4 + $0x24] sm:$0xf]
    %v1202 = vld [vmem:[#allocation4 + $0x28] sm:$0xf]
    %v1203 = vld [vmem:[#allocation4 + $0x2c] sm:$0xf]
    %v1204 = vld [vmem:[#allocation4 + $0x30] sm:$0xf]
    %v1205 = vld [vmem:[#allocation4 + $0x34] sm:$0xf]
    %v1206 = vld [vmem:[#allocation4 + $0x38] sm:$0xf]
    %v1207 = vld [vmem:[#allocation4 + $0x3c] sm:$0xf]
    %v1208 = vpack.c.bf16 %v1187, %v1187
    %v1209 = vld [vmem:[#allocation22] sm:$0x1]
    %v1211 = vlaneseq
    %v1212 = vshrl.u32 %v1211, 7
    %v1213 = vsub.s32 0, %v1212
    %v1214 = vrot.slane %v1209, %v1213
    %v1232 = vunpack.c.l.b16 %v1192
    %v1233 = vunpack.c.l.b16 %v1193
    %v1234 = vunpack.c.l.b16 %v1194
    %v1235 = vunpack.c.l.b16 %v1195
    %v1236 = vunpack.c.l.b16 %v1196
    %v1237 = vunpack.c.l.b16 %v1197
    %v1238 = vunpack.c.l.b16 %v1198
    %v1239 = vunpack.c.l.b16 %v1199
    %v1240 = vunpack.c.l.b16 %v1200
    %v1241 = vunpack.c.l.b16 %v1201
    %v1242 = vunpack.c.l.b16 %v1202
    %v1243 = vunpack.c.l.b16 %v1203
    %v1244 = vunpack.c.l.b16 %v1204
    %v1245 = vunpack.c.l.b16 %v1205
    %v1246 = vunpack.c.l.b16 %v1206
    %v1247 = vunpack.c.l.b16 %v1207
    %v1248 = vpack.c.b16 %v1233, %v1232
    %v1249 = vpack.c.b16 %v1235, %v1234
    %v1250 = vpack.c.b16 %v1237, %v1236
    %v1251 = vpack.c.b16 %v1239, %v1238
    %v1252 = vpack.c.b16 %v1241, %v1240
    %v1253 = vpack.c.b16 %v1243, %v1242
    %v1254 = vpack.c.b16 %v1245, %v1244
    %v1255 = vpack.c.b16 %v1247, %v1246
    %1264 = vmatprep.subr.bf16.mxu0 0
    %1265 = vmatpush1.bf16.msra.mxu0 %v1255
    %1266 = vmatprep.subr.bf16.mxu0 0
    %1267 = vmatpush1.bf16.msra.mxu0 %v1254
    %1268 = vmatprep.subr.bf16.mxu0 0
    %1269 = vmatpush1.bf16.msra.mxu0 %v1253
    %1270 = vmatprep.subr.bf16.mxu0 0
    %1271 = vmatpush1.bf16.msra.mxu0 %v1252
    %1272 = vmatprep.subr.bf16.mxu0 0
    %1273 = vmatpush1.bf16.msra.mxu0 %v1251
    %1274 = vmatprep.subr.bf16.mxu0 0
    %1275 = vmatpush1.bf16.msra.mxu0 %v1250
    %1276 = vmatprep.subr.bf16.mxu0 0
    %1277 = vmatpush1.bf16.msra.mxu0 %v1249
    %1278 = vmatprep.subr.bf16.mxu0 0
    %1279 = vmatpush1.bf16.msra.mxu0 %v1248
    %1280 = vmatprep.subr.bf16.mxu0 0
    %1281 = vmatpush2.bf16.msra.mxu0 0
    %1282 = vmatprep.subr.bf16.mxu0 0
    %1283 = vmatpush2.bf16.msra.mxu0 0
    %1284 = vmatprep.subr.bf16.mxu0 0
    %1285 = vmatpush2.bf16.msra.mxu0 0
    %1286 = vmatprep.subr.bf16.mxu0 0
    %1287 = vmatpush2.bf16.msra.mxu0 0
    %1288 = vmatprep.subr.bf16.mxu0 0
    %1289 = vmatpush2.bf16.msra.mxu0 0
    %1290 = vmatprep.subr.bf16.mxu0 0
    %1291 = vmatpush2.bf16.msra.mxu0 0
    %1292 = vmatprep.subr.bf16.mxu0 0
    %1293 = vmatpush2.bf16.msra.mxu0 0
    %1294 = vmatprep.subr.bf16.mxu0 0
    %1295 = vmatpush2.bf16.msra.mxu0 0
    %1296 = vmatprep.mubr.bf16.mxu0 0
    %1297 = vmatmul.mubr.bf16.gmra.mxu0 %v1208
    %v1298 = vpop.f32.mrf.mxu0
    %v1299 = vadd.f32 %v1214, %v1298
    %v1300 = vpop.f32.mrf.mxu0
    %v1301 = vpop.f32.mrf.mxu0
    %v1302 = vpop.f32.mrf.mxu0
    %1303 = vdwg.mxu0
    %v1304 = vmul.f32 %v1299, 0.5
    %v1305 = vmul.f32 %v1299, 0.70710677
    %v1306 = verf.f32.pop %v1305
    %v1307 = vadd.f32 %v1306, 1.0
    %v1308 = vmul.f32 %v1304, %v1307
    %v1309 = vld [vmem:[#allocation23] sm:$0x1]
    %v1310 = vld [vmem:[#allocation25] sm:$0x1]
    %1311 = vadd.xlane.f32.xlu0 %v1308
    %v1312 = vpop.xlane.xlu0 %1311
    %v1313 = vmul.f32 %v1312, %v776
    %v1314 = vsub.f32 %v1308, %v1313
    %v1315 = vmul.f32 %v1314, %v1314
    %1316 = vadd.xlane.f32.xlu0 %v1315
    %v1317 = vpop.xlane.xlu0 %1316
    %v1318 = vmul.f32 %v1317, %v776
    %v1319 = vadd.f32 %v1318, 1e-05
    %v1320 = vrsqrt.pop %v1319
    %v1321 = vmul.f32 %v1314, %v1320
    %v1323 = vlaneseq
    %v1324 = vshrl.u32 %v1323, 7
    %v1325 = vsub.s32 0, %v1324
    %v1326 = vrot.slane %v1309, %v1325
    %v1328 = vmul.f32 %v1321, %v1326
    %v1330 = vlaneseq
    %v1331 = vshrl.u32 %v1330, 7
    %v1332 = vsub.s32 0, %v1331
    %v1333 = vrot.slane %v1310, %v1332
    %v1335 = vadd.f32 %v1328, %v1333
    %v1336 = vld [vmem:[%s7] sm:$0xff]
    %s1337 = sshll.u32 %s1189, 4
    %1338 = dma.done %s488, %s1337
    %v1339 = vld [vmem:[#allocation5] sm:$0xf]
    %v1340 = vld [vmem:[#allocation5 + $0x4] sm:$0xf]
    %v1341 = vld [vmem:[#allocation5 + $0x8] sm:$0xf]
    %v1342 = vld [vmem:[#allocation5 + $0xc] sm:$0xf]
    %v1343 = vld [vmem:[#allocation5 + $0x10] sm:$0xf]
    %v1344 = vld [vmem:[#allocation5 + $0x14] sm:$0xf]
    %v1345 = vld [vmem:[#allocation5 + $0x18] sm:$0xf]
    %v1346 = vld [vmem:[#allocation5 + $0x1c] sm:$0xf]
    %v1347 = vld [vmem:[#allocation5 + $0x20] sm:$0xf]
    %v1348 = vld [vmem:[#allocation5 + $0x24] sm:$0xf]
    %v1349 = vld [vmem:[#allocation5 + $0x28] sm:$0xf]
    %v1350 = vld [vmem:[#allocation5 + $0x2c] sm:$0xf]
    %v1351 = vld [vmem:[#allocation5 + $0x30] sm:$0xf]
    %v1352 = vld [vmem:[#allocation5 + $0x34] sm:$0xf]
    %v1353 = vld [vmem:[#allocation5 + $0x38] sm:$0xf]
    %v1354 = vld [vmem:[#allocation5 + $0x3c] sm:$0xf]
    %v1355 = vpack.c.bf16 %v1336, %v1336
    %v1356 = vld [vmem:[#allocation26] sm:$0x1]
    %v1358 = vlaneseq
    %v1359 = vshrl.u32 %v1358, 7
    %v1360 = vsub.s32 0, %v1359
    %v1361 = vrot.slane %v1356, %v1360
    %v1379 = vunpack.c.l.b16 %v1339
    %v1380 = vunpack.c.l.b16 %v1340
    %v1381 = vunpack.c.l.b16 %v1341
    %v1382 = vunpack.c.l.b16 %v1342
    %v1383 = vunpack.c.l.b16 %v1343
    %v1384 = vunpack.c.l.b16 %v1344
    %v1385 = vunpack.c.l.b16 %v1345
    %v1386 = vunpack.c.l.b16 %v1346
    %v1387 = vunpack.c.l.b16 %v1347
    %v1388 = vunpack.c.l.b16 %v1348
    %v1389 = vunpack.c.l.b16 %v1349
    %v1390 = vunpack.c.l.b16 %v1350
    %v1391 = vunpack.c.l.b16 %v1351
    %v1392 = vunpack.c.l.b16 %v1352
    %v1393 = vunpack.c.l.b16 %v1353
    %v1394 = vunpack.c.l.b16 %v1354
    %v1395 = vpack.c.b16 %v1380, %v1379
    %v1396 = vpack.c.b16 %v1382, %v1381
    %v1397 = vpack.c.b16 %v1384, %v1383
    %v1398 = vpack.c.b16 %v1386, %v1385
    %v1399 = vpack.c.b16 %v1388, %v1387
    %v1400 = vpack.c.b16 %v1390, %v1389
    %v1401 = vpack.c.b16 %v1392, %v1391
    %v1402 = vpack.c.b16 %v1394, %v1393
    %1411 = vmatprep.subr.bf16.mxu0 0
    %1412 = vmatpush1.bf16.msra.mxu0 %v1402
    %1413 = vmatprep.subr.bf16.mxu0 0
    %1414 = vmatpush1.bf16.msra.mxu0 %v1401
    %1415 = vmatprep.subr.bf16.mxu0 0
    %1416 = vmatpush1.bf16.msra.mxu0 %v1400
    %1417 = vmatprep.subr.bf16.mxu0 0
    %1418 = vmatpush1.bf16.msra.mxu0 %v1399
    %1419 = vmatprep.subr.bf16.mxu0 0
    %1420 = vmatpush1.bf16.msra.mxu0 %v1398
    %1421 = vmatprep.subr.bf16.mxu0 0
    %1422 = vmatpush1.bf16.msra.mxu0 %v1397
    %1423 = vmatprep.subr.bf16.mxu0 0
    %1424 = vmatpush1.bf16.msra.mxu0 %v1396
    %1425 = vmatprep.subr.bf16.mxu0 0
    %1426 = vmatpush1.bf16.msra.mxu0 %v1395
    %1427 = vmatprep.subr.bf16.mxu0 0
    %1428 = vmatpush2.bf16.msra.mxu0 0
    %1429 = vmatprep.subr.bf16.mxu0 0
    %1430 = vmatpush2.bf16.msra.mxu0 0
    %1431 = vmatprep.subr.bf16.mxu0 0
    %1432 = vmatpush2.bf16.msra.mxu0 0
    %1433 = vmatprep.subr.bf16.mxu0 0
    %1434 = vmatpush2.bf16.msra.mxu0 0
    %1435 = vmatprep.subr.bf16.mxu0 0
    %1436 = vmatpush2.bf16.msra.mxu0 0
    %1437 = vmatprep.subr.bf16.mxu0 0
    %1438 = vmatpush2.bf16.msra.mxu0 0
    %1439 = vmatprep.subr.bf16.mxu0 0
    %1440 = vmatpush2.bf16.msra.mxu0 0
    %1441 = vmatprep.subr.bf16.mxu0 0
    %1442 = vmatpush2.bf16.msra.mxu0 0
    %1443 = vmatprep.mubr.bf16.mxu0 0
    %1444 = vmatmul.mubr.bf16.gmra.mxu0 %v1355
    %v1445 = vpop.f32.mrf.mxu0
    %v1446 = vadd.f32 %v1361, %v1445
    %v1447 = vpop.f32.mrf.mxu0
    %v1448 = vpop.f32.mrf.mxu0
    %v1449 = vpop.f32.mrf.mxu0
    %1450 = vdwg.mxu0
    %v1451 = vmul.f32 %v1446, 0.5
    %v1452 = vmul.f32 %v1446, 0.70710677
    %v1453 = verf.f32.pop %v1452
    %v1454 = vadd.f32 %v1453, 1.0
    %v1455 = vmul.f32 %v1451, %v1454
    %v1456 = vld [vmem:[#allocation28] sm:$0x1]
    %v1457 = vld [vmem:[#allocation29] sm:$0x1]
    %1458 = vadd.xlane.f32.xlu0 %v1455
    %v1459 = vpop.xlane.xlu0 %1458
    %v1460 = vmul.f32 %v1459, %v776
    %v1461 = vsub.f32 %v1455, %v1460
    %v1462 = vmul.f32 %v1461, %v1461
    %1463 = vadd.xlane.f32.xlu0 %v1462
    %v1464 = vpop.xlane.xlu0 %1463
    %v1465 = vmul.f32 %v1464, %v776
    %v1466 = vadd.f32 %v1465, 1e-05
    %v1467 = vrsqrt.pop %v1466
    %v1468 = vmul.f32 %v1461, %v1467
    %v1470 = vlaneseq
    %v1471 = vshrl.u32 %v1470, 7
    %v1472 = vsub.s32 0, %v1471
    %v1473 = vrot.slane %v1456, %v1472
    %v1475 = vmul.f32 %v1468, %v1473
    %v1477 = vlaneseq
    %v1478 = vshrl.u32 %v1477, 7
    %v1479 = vsub.s32 0, %v1478
    %v1480 = vrot.slane %v1457, %v1479
    %v1482 = vadd.f32 %v1475, %v1480
    %s1483 = smul.u32 %s804, 4
    %s1484 = sshll.u32 %s1483, 4
    %1485 = dma.done %s500, %s1484
    %v1486 = vpack.c.bf16 %v799, %v799
    %v1487 = vld [vmem:[#allocation6] sm:$0xff]
    %v1488 = vld [vmem:[#allocation6 + $0x8] sm:$0xff]
    %v1489 = vld [vmem:[#allocation6 + $0x10] sm:$0xff]
    %v1490 = vld [vmem:[#allocation6 + $0x18] sm:$0xff]
    %v1491 = vld [vmem:[#allocation6 + $0x20] sm:$0xff]
    %v1492 = vld [vmem:[#allocation6 + $0x28] sm:$0xff]
    %v1493 = vld [vmem:[#allocation6 + $0x30] sm:$0xff]
    %v1494 = vld [vmem:[#allocation6 + $0x38] sm:$0xff]
    %v1495 = vld [vmem:[#allocation6 + $0x40] sm:$0xff]
    %v1496 = vld [vmem:[#allocation6 + $0x48] sm:$0xff]
    %v1497 = vld [vmem:[#allocation6 + $0x50] sm:$0xff]
    %v1498 = vld [vmem:[#allocation6 + $0x58] sm:$0xff]
    %v1499 = vld [vmem:[#allocation6 + $0x60] sm:$0xff]
    %v1500 = vld [vmem:[#allocation6 + $0x68] sm:$0xff]
    %v1501 = vld [vmem:[#allocation6 + $0x70] sm:$0xff]
    %v1502 = vld [vmem:[#allocation6 + $0x78] sm:$0xff]
    %v1503 = vld [vmem:[#allocation6 + $0x80] sm:$0xff]
    %v1504 = vld [vmem:[#allocation6 + $0x88] sm:$0xff]
    %v1505 = vld [vmem:[#allocation6 + $0x90] sm:$0xff]
    %v1506 = vld [vmem:[#allocation6 + $0x98] sm:$0xff]
    %v1507 = vld [vmem:[#allocation6 + $0xa0] sm:$0xff]
    %v1508 = vld [vmem:[#allocation6 + $0xa8] sm:$0xff]
    %v1509 = vld [vmem:[#allocation6 + $0xb0] sm:$0xff]
    %v1510 = vld [vmem:[#allocation6 + $0xb8] sm:$0xff]
    %v1511 = vld [vmem:[#allocation6 + $0xc0] sm:$0xff]
    %v1512 = vld [vmem:[#allocation6 + $0xc8] sm:$0xff]
    %v1513 = vld [vmem:[#allocation6 + $0xd0] sm:$0xff]
    %v1514 = vld [vmem:[#allocation6 + $0xd8] sm:$0xff]
    %v1515 = vld [vmem:[#allocation6 + $0xe0] sm:$0xff]
    %v1516 = vld [vmem:[#allocation6 + $0xe8] sm:$0xff]
    %v1517 = vld [vmem:[#allocation6 + $0xf0] sm:$0xff]
    %v1518 = vld [vmem:[#allocation6 + $0xf8] sm:$0xff]
    %v1519 = vpack.c.bf16 %v1186, %v1186
    %v1520 = vld [vmem:[#allocation6 + $0x100] sm:$0xff]
    %v1521 = vld [vmem:[#allocation6 + $0x108] sm:$0xff]
    %v1522 = vld [vmem:[#allocation6 + $0x110] sm:$0xff]
    %v1523 = vld [vmem:[#allocation6 + $0x118] sm:$0xff]
    %v1524 = vld [vmem:[#allocation6 + $0x120] sm:$0xff]
    %v1525 = vld [vmem:[#allocation6 + $0x128] sm:$0xff]
    %v1526 = vld [vmem:[#allocation6 + $0x130] sm:$0xff]
    %v1527 = vld [vmem:[#allocation6 + $0x138] sm:$0xff]
    %v1528 = vld [vmem:[#allocation6 + $0x140] sm:$0xff]
    %v1529 = vld [vmem:[#allocation6 + $0x148] sm:$0xff]
    %v1530 = vld [vmem:[#allocation6 + $0x150] sm:$0xff]
    %v1531 = vld [vmem:[#allocation6 + $0x158] sm:$0xff]
    %v1532 = vld [vmem:[#allocation6 + $0x160] sm:$0xff]
    %v1533 = vld [vmem:[#allocation6 + $0x168] sm:$0xff]
    %v1534 = vld [vmem:[#allocation6 + $0x170] sm:$0xff]
    %v1535 = vld [vmem:[#allocation6 + $0x178] sm:$0xff]
    %v1536 = vld [vmem:[#allocation6 + $0x180] sm:$0xff]
    %v1537 = vld [vmem:[#allocation6 + $0x188] sm:$0xff]
    %v1538 = vld [vmem:[#allocation6 + $0x190] sm:$0xff]
    %v1539 = vld [vmem:[#allocation6 + $0x198] sm:$0xff]
    %v1540 = vld [vmem:[#allocation6 + $0x1a0] sm:$0xff]
    %v1541 = vld [vmem:[#allocation6 + $0x1a8] sm:$0xff]
    %v1542 = vld [vmem:[#allocation6 + $0x1b0] sm:$0xff]
    %v1543 = vld [vmem:[#allocation6 + $0x1b8] sm:$0xff]
    %v1544 = vld [vmem:[#allocation6 + $0x1c0] sm:$0xff]
    %v1545 = vld [vmem:[#allocation6 + $0x1c8] sm:$0xff]
    %v1546 = vld [vmem:[#allocation6 + $0x1d0] sm:$0xff]
    %v1547 = vld [vmem:[#allocation6 + $0x1d8] sm:$0xff]
    %v1548 = vld [vmem:[#allocation6 + $0x1e0] sm:$0xff]
    %v1549 = vld [vmem:[#allocation6 + $0x1e8] sm:$0xff]
    %v1550 = vld [vmem:[#allocation6 + $0x1f0] sm:$0xff]
    %v1551 = vld [vmem:[#allocation6 + $0x1f8] sm:$0xff]
    %v1584 = vunpack.c.l.b16 %v1520
    %v1585 = vunpack.c.h.b16 %v1520
    %v1586 = vunpack.c.l.b16 %v1521
    %v1587 = vunpack.c.h.b16 %v1521
    %v1588 = vunpack.c.l.b16 %v1522
    %v1589 = vunpack.c.h.b16 %v1522
    %v1590 = vunpack.c.l.b16 %v1523
    %v1591 = vunpack.c.h.b16 %v1523
    %v1592 = vunpack.c.l.b16 %v1524
    %v1593 = vunpack.c.h.b16 %v1524
    %v1594 = vunpack.c.l.b16 %v1525
    %v1595 = vunpack.c.h.b16 %v1525
    %v1596 = vunpack.c.l.b16 %v1526
    %v1597 = vunpack.c.h.b16 %v1526
    %v1598 = vunpack.c.l.b16 %v1527
    %v1599 = vunpack.c.h.b16 %v1527
    %v1600 = vunpack.c.l.b16 %v1528
    %v1601 = vunpack.c.h.b16 %v1528
    %v1602 = vunpack.c.l.b16 %v1529
    %v1603 = vunpack.c.h.b16 %v1529
    %v1604 = vunpack.c.l.b16 %v1530
    %v1605 = vunpack.c.h.b16 %v1530
    %v1606 = vunpack.c.l.b16 %v1531
    %v1607 = vunpack.c.h.b16 %v1531
    %v1608 = vunpack.c.l.b16 %v1532
    %v1609 = vunpack.c.h.b16 %v1532
    %v1610 = vunpack.c.l.b16 %v1533
    %v1611 = vunpack.c.h.b16 %v1533
    %v1612 = vunpack.c.l.b16 %v1534
    %v1613 = vunpack.c.h.b16 %v1534
    %v1614 = vunpack.c.l.b16 %v1535
    %v1615 = vunpack.c.h.b16 %v1535
    %v1616 = vunpack.c.l.b16 %v1536
    %v1617 = vunpack.c.h.b16 %v1536
    %v1618 = vunpack.c.l.b16 %v1537
    %v1619 = vunpack.c.h.b16 %v1537
    %v1620 = vunpack.c.l.b16 %v1538
    %v1621 = vunpack.c.h.b16 %v1538
    %v1622 = vunpack.c.l.b16 %v1539
    %v1623 = vunpack.c.h.b16 %v1539
    %v1624 = vunpack.c.l.b16 %v1540
    %v1625 = vunpack.c.h.b16 %v1540
    %v1626 = vunpack.c.l.b16 %v1541
    %v1627 = vunpack.c.h.b16 %v1541
    %v1628 = vunpack.c.l.b16 %v1542
    %v1629 = vunpack.c.h.b16 %v1542
    %v1630 = vunpack.c.l.b16 %v1543
    %v1631 = vunpack.c.h.b16 %v1543
    %v1632 = vunpack.c.l.b16 %v1544
    %v1633 = vunpack.c.h.b16 %v1544
    %v1634 = vunpack.c.l.b16 %v1545
    %v1635 = vunpack.c.h.b16 %v1545
    %v1636 = vunpack.c.l.b16 %v1546
    %v1637 = vunpack.c.h.b16 %v1546
    %v1638 = vunpack.c.l.b16 %v1547
    %v1639 = vunpack.c.h.b16 %v1547
    %v1640 = vunpack.c.l.b16 %v1548
    %v1641 = vunpack.c.h.b16 %v1548
    %v1642 = vunpack.c.l.b16 %v1549
    %v1643 = vunpack.c.h.b16 %v1549
    %v1644 = vunpack.c.l.b16 %v1550
    %v1645 = vunpack.c.h.b16 %v1550
    %v1646 = vunpack.c.l.b16 %v1551
    %v1647 = vunpack.c.h.b16 %v1551
    %v1648 = vpack.c.b16 %v1588, %v1584
    %v1649 = vpack.c.b16 %v1589, %v1585
    %v1650 = vpack.c.b16 %v1590, %v1586
    %v1651 = vpack.c.b16 %v1591, %v1587
    %v1652 = vpack.c.b16 %v1596, %v1592
    %v1653 = vpack.c.b16 %v1597, %v1593
    %v1654 = vpack.c.b16 %v1598, %v1594
    %v1655 = vpack.c.b16 %v1599, %v1595
    %v1656 = vpack.c.b16 %v1604, %v1600
    %v1657 = vpack.c.b16 %v1605, %v1601
    %v1658 = vpack.c.b16 %v1606, %v1602
    %v1659 = vpack.c.b16 %v1607, %v1603
    %v1660 = vpack.c.b16 %v1612, %v1608
    %v1661 = vpack.c.b16 %v1613, %v1609
    %v1662 = vpack.c.b16 %v1614, %v1610
    %v1663 = vpack.c.b16 %v1615, %v1611
    %v1664 = vpack.c.b16 %v1620, %v1616
    %v1665 = vpack.c.b16 %v1621, %v1617
    %v1666 = vpack.c.b16 %v1622, %v1618
    %v1667 = vpack.c.b16 %v1623, %v1619
    %v1668 = vpack.c.b16 %v1628, %v1624
    %v1669 = vpack.c.b16 %v1629, %v1625
    %v1670 = vpack.c.b16 %v1630, %v1626
    %v1671 = vpack.c.b16 %v1631, %v1627
    %v1672 = vpack.c.b16 %v1636, %v1632
    %v1673 = vpack.c.b16 %v1637, %v1633
    %v1674 = vpack.c.b16 %v1638, %v1634
    %v1675 = vpack.c.b16 %v1639, %v1635
    %v1676 = vpack.c.b16 %v1644, %v1640
    %v1677 = vpack.c.b16 %v1645, %v1641
    %v1678 = vpack.c.b16 %v1646, %v1642
    %v1679 = vpack.c.b16 %v1647, %v1643
    %1712 = vmatprep.subr.bf16.mxu0 %v1677
    %1713 = vmatpush1.bf16.msra.mxu0 %v1676
    %1714 = vmatprep.subr.bf16.mxu0 %v1673
    %1715 = vmatpush1.bf16.msra.mxu0 %v1672
    %1716 = vmatprep.subr.bf16.mxu0 %v1669
    %1717 = vmatpush1.bf16.msra.mxu0 %v1668
    %1718 = vmatprep.subr.bf16.mxu0 %v1665
    %1719 = vmatpush1.bf16.msra.mxu0 %v1664
    %1720 = vmatprep.subr.bf16.mxu0 %v1661
    %1721 = vmatpush1.bf16.msra.mxu0 %v1660
    %1722 = vmatprep.subr.bf16.mxu0 %v1657
    %1723 = vmatpush1.bf16.msra.mxu0 %v1656
    %1724 = vmatprep.subr.bf16.mxu0 %v1653
    %1725 = vmatpush1.bf16.msra.mxu0 %v1652
    %1726 = vmatprep.subr.bf16.mxu0 %v1649
    %1727 = vmatpush1.bf16.msra.mxu0 %v1648
    %1728 = vmatprep.subr.bf16.mxu0 0
    %1729 = vmatpush2.bf16.msra.mxu0 0
    %1730 = vmatprep.subr.bf16.mxu0 0
    %1731 = vmatpush2.bf16.msra.mxu0 0
    %1732 = vmatprep.subr.bf16.mxu0 0
    %1733 = vmatpush2.bf16.msra.mxu0 0
    %1734 = vmatprep.subr.bf16.mxu0 0
    %1735 = vmatpush2.bf16.msra.mxu0 0
    %1736 = vmatprep.subr.bf16.mxu0 0
    %1737 = vmatpush2.bf16.msra.mxu0 0
    %1738 = vmatprep.subr.bf16.mxu0 0
    %1739 = vmatpush2.bf16.msra.mxu0 0
    %1740 = vmatprep.subr.bf16.mxu0 0
    %1741 = vmatpush2.bf16.msra.mxu0 0
    %1742 = vmatprep.subr.bf16.mxu0 0
    %1743 = vmatpush2.bf16.msra.mxu0 0
    %1744 = vmatprep.mubr.bf16.mxu0 0
    %1745 = vmatmul.mubr.bf16.gmra.mxu0 %v1519
    %v1746 = vpop.f32.mrf.mxu0
    %v1747 = vadd.f32 0.0, %v1746
    %v1748 = vpop.f32.mrf.mxu0
    %v1749 = vadd.f32 0.0, %v1748
    %v1750 = vpop.f32.mrf.mxu0
    %v1751 = vpop.f32.mrf.mxu0
    %1752 = vdwg.mxu0
    %1753 = vmatprep.subr.bf16.mxu0 %v1679
    %1754 = vmatpush1.bf16.msra.mxu0 %v1678
    %1755 = vmatprep.subr.bf16.mxu0 %v1675
    %1756 = vmatpush1.bf16.msra.mxu0 %v1674
    %1757 = vmatprep.subr.bf16.mxu0 %v1671
    %1758 = vmatpush1.bf16.msra.mxu0 %v1670
    %1759 = vmatprep.subr.bf16.mxu0 %v1667
    %1760 = vmatpush1.bf16.msra.mxu0 %v1666
    %1761 = vmatprep.subr.bf16.mxu0 %v1663
    %1762 = vmatpush1.bf16.msra.mxu0 %v1662
    %1763 = vmatprep.subr.bf16.mxu0 %v1659
    %1764 = vmatpush1.bf16.msra.mxu0 %v1658
    %1765 = vmatprep.subr.bf16.mxu0 %v1655
    %1766 = vmatpush1.bf16.msra.mxu0 %v1654
    %1767 = vmatprep.subr.bf16.mxu0 %v1651
    %1768 = vmatpush1.bf16.msra.mxu0 %v1650
    %1769 = vmatprep.subr.bf16.mxu0 0
    %1770 = vmatpush2.bf16.msra.mxu0 0
    %1771 = vmatprep.subr.bf16.mxu0 0
    %1772 = vmatpush2.bf16.msra.mxu0 0
    %1773 = vmatprep.subr.bf16.mxu0 0
    %1774 = vmatpush2.bf16.msra.mxu0 0
    %1775 = vmatprep.subr.bf16.mxu0 0
    %1776 = vmatpush2.bf16.msra.mxu0 0
    %1777 = vmatprep.subr.bf16.mxu0 0
    %1778 = vmatpush2.bf16.msra.mxu0 0
    %1779 = vmatprep.subr.bf16.mxu0 0
    %1780 = vmatpush2.bf16.msra.mxu0 0
    %1781 = vmatprep.subr.bf16.mxu0 0
    %1782 = vmatpush2.bf16.msra.mxu0 0
    %1783 = vmatprep.subr.bf16.mxu0 0
    %1784 = vmatpush2.bf16.msra.mxu0 0
    %1785 = vmatprep.mubr.bf16.mxu0 0
    %1786 = vmatmul.mubr.bf16.gmra.mxu0 %v1519
    %v1787 = vpop.f32.mrf.mxu0
    %v1788 = vadd.f32 0.0, %v1787
    %v1789 = vpop.f32.mrf.mxu0
    %v1790 = vadd.f32 0.0, %v1789
    %v1791 = vpop.f32.mrf.mxu0
    %v1792 = vpop.f32.mrf.mxu0
    %1793 = vdwg.mxu0
    %v1826 = vunpack.c.l.b16 %v1487
    %v1827 = vunpack.c.h.b16 %v1487
    %v1828 = vunpack.c.l.b16 %v1488
    %v1829 = vunpack.c.h.b16 %v1488
    %v1830 = vunpack.c.l.b16 %v1489
    %v1831 = vunpack.c.h.b16 %v1489
    %v1832 = vunpack.c.l.b16 %v1490
    %v1833 = vunpack.c.h.b16 %v1490
    %v1834 = vunpack.c.l.b16 %v1491
    %v1835 = vunpack.c.h.b16 %v1491
    %v1836 = vunpack.c.l.b16 %v1492
    %v1837 = vunpack.c.h.b16 %v1492
    %v1838 = vunpack.c.l.b16 %v1493
    %v1839 = vunpack.c.h.b16 %v1493
    %v1840 = vunpack.c.l.b16 %v1494
    %v1841 = vunpack.c.h.b16 %v1494
    %v1842 = vunpack.c.l.b16 %v1495
    %v1843 = vunpack.c.h.b16 %v1495
    %v1844 = vunpack.c.l.b16 %v1496
    %v1845 = vunpack.c.h.b16 %v1496
    %v1846 = vunpack.c.l.b16 %v1497
    %v1847 = vunpack.c.h.b16 %v1497
    %v1848 = vunpack.c.l.b16 %v1498
    %v1849 = vunpack.c.h.b16 %v1498
    %v1850 = vunpack.c.l.b16 %v1499
    %v1851 = vunpack.c.h.b16 %v1499
    %v1852 = vunpack.c.l.b16 %v1500
    %v1853 = vunpack.c.h.b16 %v1500
    %v1854 = vunpack.c.l.b16 %v1501
    %v1855 = vunpack.c.h.b16 %v1501
    %v1856 = vunpack.c.l.b16 %v1502
    %v1857 = vunpack.c.h.b16 %v1502
    %v1858 = vunpack.c.l.b16 %v1503
    %v1859 = vunpack.c.h.b16 %v1503
    %v1860 = vunpack.c.l.b16 %v1504
    %v1861 = vunpack.c.h.b16 %v1504
    %v1862 = vunpack.c.l.b16 %v1505
    %v1863 = vunpack.c.h.b16 %v1505
    %v1864 = vunpack.c.l.b16 %v1506
    %v1865 = vunpack.c.h.b16 %v1506
    %v1866 = vunpack.c.l.b16 %v1507
    %v1867 = vunpack.c.h.b16 %v1507
    %v1868 = vunpack.c.l.b16 %v1508
    %v1869 = vunpack.c.h.b16 %v1508
    %v1870 = vunpack.c.l.b16 %v1509
    %v1871 = vunpack.c.h.b16 %v1509
    %v1872 = vunpack.c.l.b16 %v1510
    %v1873 = vunpack.c.h.b16 %v1510
    %v1874 = vunpack.c.l.b16 %v1511
    %v1875 = vunpack.c.h.b16 %v1511
    %v1876 = vunpack.c.l.b16 %v1512
    %v1877 = vunpack.c.h.b16 %v1512
    %v1878 = vunpack.c.l.b16 %v1513
    %v1879 = vunpack.c.h.b16 %v1513
    %v1880 = vunpack.c.l.b16 %v1514
    %v1881 = vunpack.c.h.b16 %v1514
    %v1882 = vunpack.c.l.b16 %v1515
    %v1883 = vunpack.c.h.b16 %v1515
    %v1884 = vunpack.c.l.b16 %v1516
    %v1885 = vunpack.c.h.b16 %v1516
    %v1886 = vunpack.c.l.b16 %v1517
    %v1887 = vunpack.c.h.b16 %v1517
    %v1888 = vunpack.c.l.b16 %v1518
    %v1889 = vunpack.c.h.b16 %v1518
    %v1890 = vpack.c.b16 %v1830, %v1826
    %v1891 = vpack.c.b16 %v1831, %v1827
    %v1892 = vpack.c.b16 %v1832, %v1828
    %v1893 = vpack.c.b16 %v1833, %v1829
    %v1894 = vpack.c.b16 %v1838, %v1834
    %v1895 = vpack.c.b16 %v1839, %v1835
    %v1896 = vpack.c.b16 %v1840, %v1836
    %v1897 = vpack.c.b16 %v1841, %v1837
    %v1898 = vpack.c.b16 %v1846, %v1842
    %v1899 = vpack.c.b16 %v1847, %v1843
    %v1900 = vpack.c.b16 %v1848, %v1844
    %v1901 = vpack.c.b16 %v1849, %v1845
    %v1902 = vpack.c.b16 %v1854, %v1850
    %v1903 = vpack.c.b16 %v1855, %v1851
    %v1904 = vpack.c.b16 %v1856, %v1852
    %v1905 = vpack.c.b16 %v1857, %v1853
    %v1906 = vpack.c.b16 %v1862, %v1858
    %v1907 = vpack.c.b16 %v1863, %v1859
    %v1908 = vpack.c.b16 %v1864, %v1860
    %v1909 = vpack.c.b16 %v1865, %v1861
    %v1910 = vpack.c.b16 %v1870, %v1866
    %v1911 = vpack.c.b16 %v1871, %v1867
    %v1912 = vpack.c.b16 %v1872, %v1868
    %v1913 = vpack.c.b16 %v1873, %v1869
    %v1914 = vpack.c.b16 %v1878, %v1874
    %v1915 = vpack.c.b16 %v1879, %v1875
    %v1916 = vpack.c.b16 %v1880, %v1876
    %v1917 = vpack.c.b16 %v1881, %v1877
    %v1918 = vpack.c.b16 %v1886, %v1882
    %v1919 = vpack.c.b16 %v1887, %v1883
    %v1920 = vpack.c.b16 %v1888, %v1884
    %v1921 = vpack.c.b16 %v1889, %v1885
    %1954 = vmatprep.subr.bf16.mxu0 %v1919
    %1955 = vmatpush1.bf16.msra.mxu0 %v1918
    %1956 = vmatprep.subr.bf16.mxu0 %v1915
    %1957 = vmatpush1.bf16.msra.mxu0 %v1914
    %1958 = vmatprep.subr.bf16.mxu0 %v1911
    %1959 = vmatpush1.bf16.msra.mxu0 %v1910
    %1960 = vmatprep.subr.bf16.mxu0 %v1907
    %1961 = vmatpush1.bf16.msra.mxu0 %v1906
    %1962 = vmatprep.subr.bf16.mxu0 %v1903
    %1963 = vmatpush1.bf16.msra.mxu0 %v1902
    %1964 = vmatprep.subr.bf16.mxu0 %v1899
    %1965 = vmatpush1.bf16.msra.mxu0 %v1898
    %1966 = vmatprep.subr.bf16.mxu0 %v1895
    %1967 = vmatpush1.bf16.msra.mxu0 %v1894
    %1968 = vmatprep.subr.bf16.mxu0 %v1891
    %1969 = vmatpush1.bf16.msra.mxu0 %v1890
    %1970 = vmatprep.subr.bf16.mxu0 0
    %1971 = vmatpush2.bf16.msra.mxu0 0
    %1972 = vmatprep.subr.bf16.mxu0 0
    %1973 = vmatpush2.bf16.msra.mxu0 0
    %1974 = vmatprep.subr.bf16.mxu0 0
    %1975 = vmatpush2.bf16.msra.mxu0 0
    %1976 = vmatprep.subr.bf16.mxu0 0
    %1977 = vmatpush2.bf16.msra.mxu0 0
    %1978 = vmatprep.subr.bf16.mxu0 0
    %1979 = vmatpush2.bf16.msra.mxu0 0
    %1980 = vmatprep.subr.bf16.mxu0 0
    %1981 = vmatpush2.bf16.msra.mxu0 0
    %1982 = vmatprep.subr.bf16.mxu0 0
    %1983 = vmatpush2.bf16.msra.mxu0 0
    %1984 = vmatprep.subr.bf16.mxu0 0
    %1985 = vmatpush2.bf16.msra.mxu0 0
    %1986 = vmatprep.mubr.bf16.mxu0 0
    %1987 = vmatmul.mubr.bf16.gmra.mxu0 %v1486
    %v1988 = vpop.f32.mrf.mxu0
    %v1989 = vadd.f32 %v1747, %v1988
    %v1990 = vpop.f32.mrf.mxu0
    %v1991 = vadd.f32 %v1749, %v1990
    %v1992 = vpop.f32.mrf.mxu0
    %v1993 = vpop.f32.mrf.mxu0
    %1994 = vdwg.mxu0
    %1995 = vmatprep.subr.bf16.mxu0 %v1921
    %1996 = vmatpush1.bf16.msra.mxu0 %v1920
    %1997 = vmatprep.subr.bf16.mxu0 %v1917
    %1998 = vmatpush1.bf16.msra.mxu0 %v1916
    %1999 = vmatprep.subr.bf16.mxu0 %v1913
    %2000 = vmatpush1.bf16.msra.mxu0 %v1912
    %2001 = vmatprep.subr.bf16.mxu0 %v1909
    %2002 = vmatpush1.bf16.msra.mxu0 %v1908
    %2003 = vmatprep.subr.bf16.mxu0 %v1905
    %2004 = vmatpush1.bf16.msra.mxu0 %v1904
    %2005 = vmatprep.subr.bf16.mxu0 %v1901
    %2006 = vmatpush1.bf16.msra.mxu0 %v1900
    %2007 = vmatprep.subr.bf16.mxu0 %v1897
    %2008 = vmatpush1.bf16.msra.mxu0 %v1896
    %2009 = vmatprep.subr.bf16.mxu0 %v1893
    %2010 = vmatpush1.bf16.msra.mxu0 %v1892
    %2011 = vmatprep.subr.bf16.mxu0 0
    %2012 = vmatpush2.bf16.msra.mxu0 0
    %2013 = vmatprep.subr.bf16.mxu0 0
    %2014 = vmatpush2.bf16.msra.mxu0 0
    %2015 = vmatprep.subr.bf16.mxu0 0
    %2016 = vmatpush2.bf16.msra.mxu0 0
    %2017 = vmatprep.subr.bf16.mxu0 0
    %2018 = vmatpush2.bf16.msra.mxu0 0
    %2019 = vmatprep.subr.bf16.mxu0 0
    %2020 = vmatpush2.bf16.msra.mxu0 0
    %2021 = vmatprep.subr.bf16.mxu0 0
    %2022 = vmatpush2.bf16.msra.mxu0 0
    %2023 = vmatprep.subr.bf16.mxu0 0
    %2024 = vmatpush2.bf16.msra.mxu0 0
    %2025 = vmatprep.subr.bf16.mxu0 0
    %2026 = vmatpush2.bf16.msra.mxu0 0
    %2027 = vmatprep.mubr.bf16.mxu0 0
    %2028 = vmatmul.mubr.bf16.gmra.mxu0 %v1486
    %v2029 = vpop.f32.mrf.mxu0
    %v2030 = vadd.f32 %v1788, %v2029
    %v2031 = vpop.f32.mrf.mxu0
    %v2032 = vadd.f32 %v1790, %v2031
    %v2033 = vpop.f32.mrf.mxu0
    %v2034 = vpop.f32.mrf.mxu0
    %2035 = vdwg.mxu0
    %v2036 = vpack.c.bf16 %v1335, %v1335
    %v2037 = vld [vmem:[#allocation6 + $0x200] sm:$0xff]
    %v2038 = vld [vmem:[#allocation6 + $0x208] sm:$0xff]
    %v2039 = vld [vmem:[#allocation6 + $0x210] sm:$0xff]
    %v2040 = vld [vmem:[#allocation6 + $0x218] sm:$0xff]
    %v2041 = vld [vmem:[#allocation6 + $0x220] sm:$0xff]
    %v2042 = vld [vmem:[#allocation6 + $0x228] sm:$0xff]
    %v2043 = vld [vmem:[#allocation6 + $0x230] sm:$0xff]
    %v2044 = vld [vmem:[#allocation6 + $0x238] sm:$0xff]
    %v2045 = vld [vmem:[#allocation6 + $0x240] sm:$0xff]
    %v2046 = vld [vmem:[#allocation6 + $0x248] sm:$0xff]
    %v2047 = vld [vmem:[#allocation6 + $0x250] sm:$0xff]
    %v2048 = vld [vmem:[#allocation6 + $0x258] sm:$0xff]
    %v2049 = vld [vmem:[#allocation6 + $0x260] sm:$0xff]
    %v2050 = vld [vmem:[#allocation6 + $0x268] sm:$0xff]
    %v2051 = vld [vmem:[#allocation6 + $0x270] sm:$0xff]
    %v2052 = vld [vmem:[#allocation6 + $0x278] sm:$0xff]
    %v2053 = vld [vmem:[#allocation6 + $0x280] sm:$0xff]
    %v2054 = vld [vmem:[#allocation6 + $0x288] sm:$0xff]
    %v2055 = vld [vmem:[#allocation6 + $0x290] sm:$0xff]
    %v2056 = vld [vmem:[#allocation6 + $0x298] sm:$0xff]
    %v2057 = vld [vmem:[#allocation6 + $0x2a0] sm:$0xff]
    %v2058 = vld [vmem:[#allocation6 + $0x2a8] sm:$0xff]
    %v2059 = vld [vmem:[#allocation6 + $0x2b0] sm:$0xff]
    %v2060 = vld [vmem:[#allocation6 + $0x2b8] sm:$0xff]
    %v2061 = vld [vmem:[#allocation6 + $0x2c0] sm:$0xff]
    %v2062 = vld [vmem:[#allocation6 + $0x2c8] sm:$0xff]
    %v2063 = vld [vmem:[#allocation6 + $0x2d0] sm:$0xff]
    %v2064 = vld [vmem:[#allocation6 + $0x2d8] sm:$0xff]
    %v2065 = vld [vmem:[#allocation6 + $0x2e0] sm:$0xff]
    %v2066 = vld [vmem:[#allocation6 + $0x2e8] sm:$0xff]
    %v2067 = vld [vmem:[#allocation6 + $0x2f0] sm:$0xff]
    %v2068 = vld [vmem:[#allocation6 + $0x2f8] sm:$0xff]
    %v2101 = vunpack.c.l.b16 %v2037
    %v2102 = vunpack.c.h.b16 %v2037
    %v2103 = vunpack.c.l.b16 %v2038
    %v2104 = vunpack.c.h.b16 %v2038
    %v2105 = vunpack.c.l.b16 %v2039
    %v2106 = vunpack.c.h.b16 %v2039
    %v2107 = vunpack.c.l.b16 %v2040
    %v2108 = vunpack.c.h.b16 %v2040
    %v2109 = vunpack.c.l.b16 %v2041
    %v2110 = vunpack.c.h.b16 %v2041
    %v2111 = vunpack.c.l.b16 %v2042
    %v2112 = vunpack.c.h.b16 %v2042
    %v2113 = vunpack.c.l.b16 %v2043
    %v2114 = vunpack.c.h.b16 %v2043
    %v2115 = vunpack.c.l.b16 %v2044
    %v2116 = vunpack.c.h.b16 %v2044
    %v2117 = vunpack.c.l.b16 %v2045
    %v2118 = vunpack.c.h.b16 %v2045
    %v2119 = vunpack.c.l.b16 %v2046
    %v2120 = vunpack.c.h.b16 %v2046
    %v2121 = vunpack.c.l.b16 %v2047
    %v2122 = vunpack.c.h.b16 %v2047
    %v2123 = vunpack.c.l.b16 %v2048
    %v2124 = vunpack.c.h.b16 %v2048
    %v2125 = vunpack.c.l.b16 %v2049
    %v2126 = vunpack.c.h.b16 %v2049
    %v2127 = vunpack.c.l.b16 %v2050
    %v2128 = vunpack.c.h.b16 %v2050
    %v2129 = vunpack.c.l.b16 %v2051
    %v2130 = vunpack.c.h.b16 %v2051
    %v2131 = vunpack.c.l.b16 %v2052
    %v2132 = vunpack.c.h.b16 %v2052
    %v2133 = vunpack.c.l.b16 %v2053
    %v2134 = vunpack.c.h.b16 %v2053
    %v2135 = vunpack.c.l.b16 %v2054
    %v2136 = vunpack.c.h.b16 %v2054
    %v2137 = vunpack.c.l.b16 %v2055
    %v2138 = vunpack.c.h.b16 %v2055
    %v2139 = vunpack.c.l.b16 %v2056
    %v2140 = vunpack.c.h.b16 %v2056
    %v2141 = vunpack.c.l.b16 %v2057
    %v2142 = vunpack.c.h.b16 %v2057
    %v2143 = vunpack.c.l.b16 %v2058
    %v2144 = vunpack.c.h.b16 %v2058
    %v2145 = vunpack.c.l.b16 %v2059
    %v2146 = vunpack.c.h.b16 %v2059
    %v2147 = vunpack.c.l.b16 %v2060
    %v2148 = vunpack.c.h.b16 %v2060
    %v2149 = vunpack.c.l.b16 %v2061
    %v2150 = vunpack.c.h.b16 %v2061
    %v2151 = vunpack.c.l.b16 %v2062
    %v2152 = vunpack.c.h.b16 %v2062
    %v2153 = vunpack.c.l.b16 %v2063
    %v2154 = vunpack.c.h.b16 %v2063
    %v2155 = vunpack.c.l.b16 %v2064
    %v2156 = vunpack.c.h.b16 %v2064
    %v2157 = vunpack.c.l.b16 %v2065
    %v2158 = vunpack.c.h.b16 %v2065
    %v2159 = vunpack.c.l.b16 %v2066
    %v2160 = vunpack.c.h.b16 %v2066
    %v2161 = vunpack.c.l.b16 %v2067
    %v2162 = vunpack.c.h.b16 %v2067
    %v2163 = vunpack.c.l.b16 %v2068
    %v2164 = vunpack.c.h.b16 %v2068
    %v2165 = vpack.c.b16 %v2105, %v2101
    %v2166 = vpack.c.b16 %v2106, %v2102
    %v2167 = vpack.c.b16 %v2107, %v2103
    %v2168 = vpack.c.b16 %v2108, %v2104
    %v2169 = vpack.c.b16 %v2113, %v2109
    %v2170 = vpack.c.b16 %v2114, %v2110
    %v2171 = vpack.c.b16 %v2115, %v2111
    %v2172 = vpack.c.b16 %v2116, %v2112
    %v2173 = vpack.c.b16 %v2121, %v2117
    %v2174 = vpack.c.b16 %v2122, %v2118
    %v2175 = vpack.c.b16 %v2123, %v2119
    %v2176 = vpack.c.b16 %v2124, %v2120
    %v2177 = vpack.c.b16 %v2129, %v2125
    %v2178 = vpack.c.b16 %v2130, %v2126
    %v2179 = vpack.c.b16 %v2131, %v2127
    %v2180 = vpack.c.b16 %v2132, %v2128
    %v2181 = vpack.c.b16 %v2137, %v2133
    %v2182 = vpack.c.b16 %v2138, %v2134
    %v2183 = vpack.c.b16 %v2139, %v2135
    %v2184 = vpack.c.b16 %v2140, %v2136
    %v2185 = vpack.c.b16 %v2145, %v2141
    %v2186 = vpack.c.b16 %v2146, %v2142
    %v2187 = vpack.c.b16 %v2147, %v2143
    %v2188 = vpack.c.b16 %v2148, %v2144
    %v2189 = vpack.c.b16 %v2153, %v2149
    %v2190 = vpack.c.b16 %v2154, %v2150
    %v2191 = vpack.c.b16 %v2155, %v2151
    %v2192 = vpack.c.b16 %v2156, %v2152
    %v2193 = vpack.c.b16 %v2161, %v2157
    %v2194 = vpack.c.b16 %v2162, %v2158
    %v2195 = vpack.c.b16 %v2163, %v2159
    %v2196 = vpack.c.b16 %v2164, %v2160
    %2229 = vmatprep.subr.bf16.mxu0 %v2194
    %2230 = vmatpush1.bf16.msra.mxu0 %v2193
    %2231 = vmatprep.subr.bf16.mxu0 %v2190
    %2232 = vmatpush1.bf16.msra.mxu0 %v2189
    %2233 = vmatprep.subr.bf16.mxu0 %v2186
    %2234 = vmatpush1.bf16.msra.mxu0 %v2185
    %2235 = vmatprep.subr.bf16.mxu0 %v2182
    %2236 = vmatpush1.bf16.msra.mxu0 %v2181
    %2237 = vmatprep.subr.bf16.mxu0 %v2178
    %2238 = vmatpush1.bf16.msra.mxu0 %v2177
    %2239 = vmatprep.subr.bf16.mxu0 %v2174
    %2240 = vmatpush1.bf16.msra.mxu0 %v2173
    %2241 = vmatprep.subr.bf16.mxu0 %v2170
    %2242 = vmatpush1.bf16.msra.mxu0 %v2169
    %2243 = vmatprep.subr.bf16.mxu0 %v2166
    %2244 = vmatpush1.bf16.msra.mxu0 %v2165
    %2245 = vmatprep.subr.bf16.mxu0 0
    %2246 = vmatpush2.bf16.msra.mxu0 0
    %2247 = vmatprep.subr.bf16.mxu0 0
    %2248 = vmatpush2.bf16.msra.mxu0 0
    %2249 = vmatprep.subr.bf16.mxu0 0
    %2250 = vmatpush2.bf16.msra.mxu0 0
    %2251 = vmatprep.subr.bf16.mxu0 0
    %2252 = vmatpush2.bf16.msra.mxu0 0
    %2253 = vmatprep.subr.bf16.mxu0 0
    %2254 = vmatpush2.bf16.msra.mxu0 0
    %2255 = vmatprep.subr.bf16.mxu0 0
    %2256 = vmatpush2.bf16.msra.mxu0 0
    %2257 = vmatprep.subr.bf16.mxu0 0
    %2258 = vmatpush2.bf16.msra.mxu0 0
    %2259 = vmatprep.subr.bf16.mxu0 0
    %2260 = vmatpush2.bf16.msra.mxu0 0
    %2261 = vmatprep.mubr.bf16.mxu0 0
    %2262 = vmatmul.mubr.bf16.gmra.mxu0 %v2036
    %v2263 = vpop.f32.mrf.mxu0
    %v2264 = vadd.f32 0.0, %v2263
    %v2265 = vpop.f32.mrf.mxu0
    %v2266 = vadd.f32 0.0, %v2265
    %v2267 = vpop.f32.mrf.mxu0
    %v2268 = vpop.f32.mrf.mxu0
    %2269 = vdwg.mxu0
    %2270 = vmatprep.subr.bf16.mxu0 %v2196
    %2271 = vmatpush1.bf16.msra.mxu0 %v2195
    %2272 = vmatprep.subr.bf16.mxu0 %v2192
    %2273 = vmatpush1.bf16.msra.mxu0 %v2191
    %2274 = vmatprep.subr.bf16.mxu0 %v2188
    %2275 = vmatpush1.bf16.msra.mxu0 %v2187
    %2276 = vmatprep.subr.bf16.mxu0 %v2184
    %2277 = vmatpush1.bf16.msra.mxu0 %v2183
    %2278 = vmatprep.subr.bf16.mxu0 %v2180
    %2279 = vmatpush1.bf16.msra.mxu0 %v2179
    %2280 = vmatprep.subr.bf16.mxu0 %v2176
    %2281 = vmatpush1.bf16.msra.mxu0 %v2175
    %2282 = vmatprep.subr.bf16.mxu0 %v2172
    %2283 = vmatpush1.bf16.msra.mxu0 %v2171
    %2284 = vmatprep.subr.bf16.mxu0 %v2168
    %2285 = vmatpush1.bf16.msra.mxu0 %v2167
    %2286 = vmatprep.subr.bf16.mxu0 0
    %2287 = vmatpush2.bf16.msra.mxu0 0
    %2288 = vmatprep.subr.bf16.mxu0 0
    %2289 = vmatpush2.bf16.msra.mxu0 0
    %2290 = vmatprep.subr.bf16.mxu0 0
    %2291 = vmatpush2.bf16.msra.mxu0 0
    %2292 = vmatprep.subr.bf16.mxu0 0
    %2293 = vmatpush2.bf16.msra.mxu0 0
    %2294 = vmatprep.subr.bf16.mxu0 0
    %2295 = vmatpush2.bf16.msra.mxu0 0
    %2296 = vmatprep.subr.bf16.mxu0 0
    %2297 = vmatpush2.bf16.msra.mxu0 0
    %2298 = vmatprep.subr.bf16.mxu0 0
    %2299 = vmatpush2.bf16.msra.mxu0 0
    %2300 = vmatprep.subr.bf16.mxu0 0
    %2301 = vmatpush2.bf16.msra.mxu0 0
    %2302 = vmatprep.mubr.bf16.mxu0 0
    %2303 = vmatmul.mubr.bf16.gmra.mxu0 %v2036
    %v2304 = vpop.f32.mrf.mxu0
    %v2305 = vadd.f32 0.0, %v2304
    %v2306 = vpop.f32.mrf.mxu0
    %v2307 = vadd.f32 0.0, %v2306
    %v2308 = vpop.f32.mrf.mxu0
    %v2309 = vpop.f32.mrf.mxu0
    %2310 = vdwg.mxu0
    %v2311 = vadd.f32 %v1989, %v2264
    %v2312 = vadd.f32 %v1991, %v2266
    %v2313 = vadd.f32 %v2030, %v2305
    %v2314 = vadd.f32 %v2032, %v2307
    %v2315 = vpack.c.bf16 %v1482, %v1482
    %v2316 = vld [vmem:[#allocation6 + $0x300] sm:$0xff]
    %v2317 = vld [vmem:[#allocation6 + $0x308] sm:$0xff]
    %v2318 = vld [vmem:[#allocation6 + $0x310] sm:$0xff]
    %v2319 = vld [vmem:[#allocation6 + $0x318] sm:$0xff]
    %v2320 = vld [vmem:[#allocation6 + $0x320] sm:$0xff]
    %v2321 = vld [vmem:[#allocation6 + $0x328] sm:$0xff]
    %v2322 = vld [vmem:[#allocation6 + $0x330] sm:$0xff]
    %v2323 = vld [vmem:[#allocation6 + $0x338] sm:$0xff]
    %v2324 = vld [vmem:[#allocation6 + $0x340] sm:$0xff]
    %v2325 = vld [vmem:[#allocation6 + $0x348] sm:$0xff]
    %v2326 = vld [vmem:[#allocation6 + $0x350] sm:$0xff]
    %v2327 = vld [vmem:[#allocation6 + $0x358] sm:$0xff]
    %v2328 = vld [vmem:[#allocation6 + $0x360] sm:$0xff]
    %v2329 = vld [vmem:[#allocation6 + $0x368] sm:$0xff]
    %v2330 = vld [vmem:[#allocation6 + $0x370] sm:$0xff]
    %v2331 = vld [vmem:[#allocation6 + $0x378] sm:$0xff]
    %v2332 = vld [vmem:[#allocation6 + $0x380] sm:$0xff]
    %v2333 = vld [vmem:[#allocation6 + $0x388] sm:$0xff]
    %v2334 = vld [vmem:[#allocation6 + $0x390] sm:$0xff]
    %v2335 = vld [vmem:[#allocation6 + $0x398] sm:$0xff]
    %v2336 = vld [vmem:[#allocation6 + $0x3a0] sm:$0xff]
    %v2337 = vld [vmem:[#allocation6 + $0x3a8] sm:$0xff]
    %v2338 = vld [vmem:[#allocation6 + $0x3b0] sm:$0xff]
    %v2339 = vld [vmem:[#allocation6 + $0x3b8] sm:$0xff]
    %v2340 = vld [vmem:[#allocation6 + $0x3c0] sm:$0xff]
    %v2341 = vld [vmem:[#allocation6 + $0x3c8] sm:$0xff]
    %v2342 = vld [vmem:[#allocation6 + $0x3d0] sm:$0xff]
    %v2343 = vld [vmem:[#allocation6 + $0x3d8] sm:$0xff]
    %v2344 = vld [vmem:[#allocation6 + $0x3e0] sm:$0xff]
    %v2345 = vld [vmem:[#allocation6 + $0x3e8] sm:$0xff]
    %v2346 = vld [vmem:[#allocation6 + $0x3f0] sm:$0xff]
    %v2347 = vld [vmem:[#allocation6 + $0x3f8] sm:$0xff]
    %v2380 = vunpack.c.l.b16 %v2316
    %v2381 = vunpack.c.h.b16 %v2316
    %v2382 = vunpack.c.l.b16 %v2317
    %v2383 = vunpack.c.h.b16 %v2317
    %v2384 = vunpack.c.l.b16 %v2318
    %v2385 = vunpack.c.h.b16 %v2318
    %v2386 = vunpack.c.l.b16 %v2319
    %v2387 = vunpack.c.h.b16 %v2319
    %v2388 = vunpack.c.l.b16 %v2320
    %v2389 = vunpack.c.h.b16 %v2320
    %v2390 = vunpack.c.l.b16 %v2321
    %v2391 = vunpack.c.h.b16 %v2321
    %v2392 = vunpack.c.l.b16 %v2322
    %v2393 = vunpack.c.h.b16 %v2322
    %v2394 = vunpack.c.l.b16 %v2323
    %v2395 = vunpack.c.h.b16 %v2323
    %v2396 = vunpack.c.l.b16 %v2324
    %v2397 = vunpack.c.h.b16 %v2324
    %v2398 = vunpack.c.l.b16 %v2325
    %v2399 = vunpack.c.h.b16 %v2325
    %v2400 = vunpack.c.l.b16 %v2326
    %v2401 = vunpack.c.h.b16 %v2326
    %v2402 = vunpack.c.l.b16 %v2327
    %v2403 = vunpack.c.h.b16 %v2327
    %v2404 = vunpack.c.l.b16 %v2328
    %v2405 = vunpack.c.h.b16 %v2328
    %v2406 = vunpack.c.l.b16 %v2329
    %v2407 = vunpack.c.h.b16 %v2329
    %v2408 = vunpack.c.l.b16 %v2330
    %v2409 = vunpack.c.h.b16 %v2330
    %v2410 = vunpack.c.l.b16 %v2331
    %v2411 = vunpack.c.h.b16 %v2331
    %v2412 = vunpack.c.l.b16 %v2332
    %v2413 = vunpack.c.h.b16 %v2332
    %v2414 = vunpack.c.l.b16 %v2333
    %v2415 = vunpack.c.h.b16 %v2333
    %v2416 = vunpack.c.l.b16 %v2334
    %v2417 = vunpack.c.h.b16 %v2334
    %v2418 = vunpack.c.l.b16 %v2335
    %v2419 = vunpack.c.h.b16 %v2335
    %v2420 = vunpack.c.l.b16 %v2336
    %v2421 = vunpack.c.h.b16 %v2336
    %v2422 = vunpack.c.l.b16 %v2337
    %v2423 = vunpack.c.h.b16 %v2337
    %v2424 = vunpack.c.l.b16 %v2338
    %v2425 = vunpack.c.h.b16 %v2338
    %v2426 = vunpack.c.l.b16 %v2339
    %v2427 = vunpack.c.h.b16 %v2339
    %v2428 = vunpack.c.l.b16 %v2340
    %v2429 = vunpack.c.h.b16 %v2340
    %v2430 = vunpack.c.l.b16 %v2341
    %v2431 = vunpack.c.h.b16 %v2341
    %v2432 = vunpack.c.l.b16 %v2342
    %v2433 = vunpack.c.h.b16 %v2342
    %v2434 = vunpack.c.l.b16 %v2343
    %v2435 = vunpack.c.h.b16 %v2343
    %v2436 = vunpack.c.l.b16 %v2344
    %v2437 = vunpack.c.h.b16 %v2344
    %v2438 = vunpack.c.l.b16 %v2345
    %v2439 = vunpack.c.h.b16 %v2345
    %v2440 = vunpack.c.l.b16 %v2346
    %v2441 = vunpack.c.h.b16 %v2346
    %v2442 = vunpack.c.l.b16 %v2347
    %v2443 = vunpack.c.h.b16 %v2347
    %v2444 = vpack.c.b16 %v2384, %v2380
    %v2445 = vpack.c.b16 %v2385, %v2381
    %v2446 = vpack.c.b16 %v2386, %v2382
    %v2447 = vpack.c.b16 %v2387, %v2383
    %v2448 = vpack.c.b16 %v2392, %v2388
    %v2449 = vpack.c.b16 %v2393, %v2389
    %v2450 = vpack.c.b16 %v2394, %v2390
    %v2451 = vpack.c.b16 %v2395, %v2391
    %v2452 = vpack.c.b16 %v2400, %v2396
    %v2453 = vpack.c.b16 %v2401, %v2397
    %v2454 = vpack.c.b16 %v2402, %v2398
    %v2455 = vpack.c.b16 %v2403, %v2399
    %v2456 = vpack.c.b16 %v2408, %v2404
    %v2457 = vpack.c.b16 %v2409, %v2405
    %v2458 = vpack.c.b16 %v2410, %v2406
    %v2459 = vpack.c.b16 %v2411, %v2407
    %v2460 = vpack.c.b16 %v2416, %v2412
    %v2461 = vpack.c.b16 %v2417, %v2413
    %v2462 = vpack.c.b16 %v2418, %v2414
    %v2463 = vpack.c.b16 %v2419, %v2415
    %v2464 = vpack.c.b16 %v2424, %v2420
    %v2465 = vpack.c.b16 %v2425, %v2421
    %v2466 = vpack.c.b16 %v2426, %v2422
    %v2467 = vpack.c.b16 %v2427, %v2423
    %v2468 = vpack.c.b16 %v2432, %v2428
    %v2469 = vpack.c.b16 %v2433, %v2429
    %v2470 = vpack.c.b16 %v2434, %v2430
    %v2471 = vpack.c.b16 %v2435, %v2431
    %v2472 = vpack.c.b16 %v2440, %v2436
    %v2473 = vpack.c.b16 %v2441, %v2437
    %v2474 = vpack.c.b16 %v2442, %v2438
    %v2475 = vpack.c.b16 %v2443, %v2439
    %2508 = vmatprep.subr.bf16.mxu0 %v2473
    %2509 = vmatpush1.bf16.msra.mxu0 %v2472
    %2510 = vmatprep.subr.bf16.mxu0 %v2469
    %2511 = vmatpush1.bf16.msra.mxu0 %v2468
    %2512 = vmatprep.subr.bf16.mxu0 %v2465
    %2513 = vmatpush1.bf16.msra.mxu0 %v2464
    %2514 = vmatprep.subr.bf16.mxu0 %v2461
    %2515 = vmatpush1.bf16.msra.mxu0 %v2460
    %2516 = vmatprep.subr.bf16.mxu0 %v2457
    %2517 = vmatpush1.bf16.msra.mxu0 %v2456
    %2518 = vmatprep.subr.bf16.mxu0 %v2453
    %2519 = vmatpush1.bf16.msra.mxu0 %v2452
    %2520 = vmatprep.subr.bf16.mxu0 %v2449
    %2521 = vmatpush1.bf16.msra.mxu0 %v2448
    %2522 = vmatprep.subr.bf16.mxu0 %v2445
    %2523 = vmatpush1.bf16.msra.mxu0 %v2444
    %2524 = vmatprep.subr.bf16.mxu0 0
    %2525 = vmatpush2.bf16.msra.mxu0 0
    %2526 = vmatprep.subr.bf16.mxu0 0
    %2527 = vmatpush2.bf16.msra.mxu0 0
    %2528 = vmatprep.subr.bf16.mxu0 0
    %2529 = vmatpush2.bf16.msra.mxu0 0
    %2530 = vmatprep.subr.bf16.mxu0 0
    %2531 = vmatpush2.bf16.msra.mxu0 0
    %2532 = vmatprep.subr.bf16.mxu0 0
    %2533 = vmatpush2.bf16.msra.mxu0 0
    %2534 = vmatprep.subr.bf16.mxu0 0
    %2535 = vmatpush2.bf16.msra.mxu0 0
    %2536 = vmatprep.subr.bf16.mxu0 0
    %2537 = vmatpush2.bf16.msra.mxu0 0
    %2538 = vmatprep.subr.bf16.mxu0 0
    %2539 = vmatpush2.bf16.msra.mxu0 0
    %2540 = vmatprep.mubr.bf16.mxu0 0
    %2541 = vmatmul.mubr.bf16.gmra.mxu0 %v2315
    %v2542 = vpop.f32.mrf.mxu0
    %v2543 = vadd.f32 0.0, %v2542
    %v2544 = vpop.f32.mrf.mxu0
    %v2545 = vadd.f32 0.0, %v2544
    %v2546 = vpop.f32.mrf.mxu0
    %v2547 = vpop.f32.mrf.mxu0
    %2548 = vdwg.mxu0
    %2549 = vmatprep.subr.bf16.mxu0 %v2475
    %2550 = vmatpush1.bf16.msra.mxu0 %v2474
    %2551 = vmatprep.subr.bf16.mxu0 %v2471
    %2552 = vmatpush1.bf16.msra.mxu0 %v2470
    %2553 = vmatprep.subr.bf16.mxu0 %v2467
    %2554 = vmatpush1.bf16.msra.mxu0 %v2466
    %2555 = vmatprep.subr.bf16.mxu0 %v2463
    %2556 = vmatpush1.bf16.msra.mxu0 %v2462
    %2557 = vmatprep.subr.bf16.mxu0 %v2459
    %2558 = vmatpush1.bf16.msra.mxu0 %v2458
    %2559 = vmatprep.subr.bf16.mxu0 %v2455
    %2560 = vmatpush1.bf16.msra.mxu0 %v2454
    %2561 = vmatprep.subr.bf16.mxu0 %v2451
    %2562 = vmatpush1.bf16.msra.mxu0 %v2450
    %2563 = vmatprep.subr.bf16.mxu0 %v2447
    %2564 = vmatpush1.bf16.msra.mxu0 %v2446
    %2565 = vmatprep.subr.bf16.mxu0 0
    %2566 = vmatpush2.bf16.msra.mxu0 0
    %2567 = vmatprep.subr.bf16.mxu0 0
    %2568 = vmatpush2.bf16.msra.mxu0 0
    %2569 = vmatprep.subr.bf16.mxu0 0
    %2570 = vmatpush2.bf16.msra.mxu0 0
    %2571 = vmatprep.subr.bf16.mxu0 0
    %2572 = vmatpush2.bf16.msra.mxu0 0
    %2573 = vmatprep.subr.bf16.mxu0 0
    %2574 = vmatpush2.bf16.msra.mxu0 0
    %2575 = vmatprep.subr.bf16.mxu0 0
    %2576 = vmatpush2.bf16.msra.mxu0 0
    %2577 = vmatprep.subr.bf16.mxu0 0
    %2578 = vmatpush2.bf16.msra.mxu0 0
    %2579 = vmatprep.subr.bf16.mxu0 0
    %2580 = vmatpush2.bf16.msra.mxu0 0
    %2581 = vmatprep.mubr.bf16.mxu0 0
    %2582 = vmatmul.mubr.bf16.gmra.mxu0 %v2315
    %v2583 = vpop.f32.mrf.mxu0
    %v2584 = vadd.f32 0.0, %v2583
    %v2585 = vpop.f32.mrf.mxu0
    %v2586 = vadd.f32 0.0, %v2585
    %v2587 = vpop.f32.mrf.mxu0
    %v2588 = vpop.f32.mrf.mxu0
    %2589 = vdwg.mxu0
    %v2590 = vadd.f32 %v2311, %v2543
    %v2591 = vadd.f32 %v2312, %v2545
    %v2592 = vadd.f32 %v2313, %v2584
    %v2593 = vadd.f32 %v2314, %v2586
    %v2594 = vld [vmem:[#allocation31] sm:$0xf]
    %v2596 = vlaneseq
    %v2597 = vshrl.u32 %v2596, 7
    %v2598 = vsub.s32 0, %v2597
    %v2599 = vrot.slane %v2594, %v2598
    %v2600 = vlaneseq
    %v2601 = vshrl.u32 %v2600, 7
    %v2602 = vsub.s32 1, %v2601
    %v2603 = vrot.slane %v2594, %v2602
    %v2604 = vlaneseq
    %v2605 = vshrl.u32 %v2604, 7
    %v2606 = vsub.s32 2, %v2605
    %v2607 = vrot.slane %v2594, %v2606
    %v2608 = vlaneseq
    %v2609 = vshrl.u32 %v2608, 7
    %v2610 = vsub.s32 3, %v2609
    %v2611 = vrot.slane %v2594, %v2610
    %v2616 = vadd.f32 %v2590, %v2599
    %v2617 = vadd.f32 %v2591, %v2603
    %v2618 = vadd.f32 %v2592, %v2607
    %v2619 = vadd.f32 %v2593, %v2611
    %v2620 = vmul.f32 %v2616, 0.5
    %v2621 = vmul.f32 %v2617, 0.5
    %v2622 = vmul.f32 %v2618, 0.5
    %v2623 = vmul.f32 %v2619, 0.5
    %v2624 = vmul.f32 %v2616, 0.70710677
    %v2625 = vmul.f32 %v2617, 0.70710677
    %v2626 = vmul.f32 %v2618, 0.70710677
    %v2627 = vmul.f32 %v2619, 0.70710677
    %v2628 = verf.f32.pop %v2624
    %v2629 = verf.f32.pop %v2625
    %v2630 = verf.f32.pop %v2626
    %v2631 = verf.f32.pop %v2627
    %v2632 = vadd.f32 %v2628, 1.0
    %v2633 = vadd.f32 %v2629, 1.0
    %v2634 = vadd.f32 %v2630, 1.0
    %v2635 = vadd.f32 %v2631, 1.0
    %v2636 = vmul.f32 %v2620, %v2632
    %v2637 = vmul.f32 %v2621, %v2633
    %v2638 = vmul.f32 %v2622, %v2634
    %v2639 = vmul.f32 %v2623, %v2635
    %v2640 = vld [vmem:[#allocation32] sm:$0xf]
    %v2641 = vld [vmem:[#allocation34] sm:$0xf]
    %v2642 = vadd.f32 %v2636, %v2637
    %v2643 = vadd.f32 %v2642, %v2638
    %v2644 = vadd.f32 %v2643, %v2639
    %2645 = vadd.xlane.f32.xlu0 %v2644
    %v2646 = vpop.xlane.xlu0 %2645
    %v2647 = vrcp.pop 512.0
    %v2648 = vmul.f32 %v2646, %v2647
    %v2649 = vsub.f32 %v2636, %v2648
    %v2650 = vsub.f32 %v2637, %v2648
    %v2651 = vsub.f32 %v2638, %v2648
    %v2652 = vsub.f32 %v2639, %v2648
    %v2653 = vmul.f32 %v2649, %v2649
    %v2654 = vmul.f32 %v2650, %v2650
    %v2655 = vmul.f32 %v2651, %v2651
    %v2656 = vmul.f32 %v2652, %v2652
    %v2657 = vadd.f32 %v2653, %v2654
    %v2658 = vadd.f32 %v2657, %v2655
    %v2659 = vadd.f32 %v2658, %v2656
    %2660 = vadd.xlane.f32.xlu0 %v2659
    %v2661 = vpop.xlane.xlu0 %2660
    %v2662 = vmul.f32 %v2661, %v2647
    %v2663 = vadd.f32 %v2662, 1e-05
    %v2664 = vrsqrt.pop %v2663
    %v2665 = vmul.f32 %v2649, %v2664
    %v2666 = vmul.f32 %v2650, %v2664
    %v2667 = vmul.f32 %v2651, %v2664
    %v2668 = vmul.f32 %v2652, %v2664
    %v2670 = vlaneseq
    %v2671 = vshrl.u32 %v2670, 7
    %v2672 = vsub.s32 0, %v2671
    %v2673 = vrot.slane %v2640, %v2672
    %v2674 = vlaneseq
    %v2675 = vshrl.u32 %v2674, 7
    %v2676 = vsub.s32 1, %v2675
    %v2677 = vrot.slane %v2640, %v2676
    %v2678 = vlaneseq
    %v2679 = vshrl.u32 %v2678, 7
    %v2680 = vsub.s32 2, %v2679
    %v2681 = vrot.slane %v2640, %v2680
    %v2682 = vlaneseq
    %v2683 = vshrl.u32 %v2682, 7
    %v2684 = vsub.s32 3, %v2683
    %v2685 = vrot.slane %v2640, %v2684
    %v2690 = vmul.f32 %v2665, %v2673
    %v2691 = vmul.f32 %v2666, %v2677
    %v2692 = vmul.f32 %v2667, %v2681
    %v2693 = vmul.f32 %v2668, %v2685
    %v2695 = vlaneseq
    %v2696 = vshrl.u32 %v2695, 7
    %v2697 = vsub.s32 0, %v2696
    %v2698 = vrot.slane %v2641, %v2697
    %v2699 = vlaneseq
    %v2700 = vshrl.u32 %v2699, 7
    %v2701 = vsub.s32 1, %v2700
    %v2702 = vrot.slane %v2641, %v2701
    %v2703 = vlaneseq
    %v2704 = vshrl.u32 %v2703, 7
    %v2705 = vsub.s32 2, %v2704
    %v2706 = vrot.slane %v2641, %v2705
    %v2707 = vlaneseq
    %v2708 = vshrl.u32 %v2707, 7
    %v2709 = vsub.s32 3, %v2708
    %v2710 = vrot.slane %v2641, %v2709
    %v2715 = vadd.f32 %v2690, %v2698
    %v2716 = vadd.f32 %v2691, %v2702
    %v2717 = vadd.f32 %v2692, %v2706
    %v2718 = vadd.f32 %v2693, %v2710
    %s2719 = sshll.u32 %s1483, 4
    %2720 = dma.done %s512, %s2719
    %v2721 = vld [vmem:[#allocation7] sm:$0xff]
    %v2722 = vld [vmem:[#allocation7 + $0x8] sm:$0xff]
    %v2723 = vld [vmem:[#allocation7 + $0x10] sm:$0xff]
    %v2724 = vld [vmem:[#allocation7 + $0x18] sm:$0xff]
    %v2725 = vld [vmem:[#allocation7 + $0x20] sm:$0xff]
    %v2726 = vld [vmem:[#allocation7 + $0x28] sm:$0xff]
    %v2727 = vld [vmem:[#allocation7 + $0x30] sm:$0xff]
    %v2728 = vld [vmem:[#allocation7 + $0x38] sm:$0xff]
    %v2729 = vld [vmem:[#allocation7 + $0x40] sm:$0xff]
    %v2730 = vld [vmem:[#allocation7 + $0x48] sm:$0xff]
    %v2731 = vld [vmem:[#allocation7 + $0x50] sm:$0xff]
    %v2732 = vld [vmem:[#allocation7 + $0x58] sm:$0xff]
    %v2733 = vld [vmem:[#allocation7 + $0x60] sm:$0xff]
    %v2734 = vld [vmem:[#allocation7 + $0x68] sm:$0xff]
    %v2735 = vld [vmem:[#allocation7 + $0x70] sm:$0xff]
    %v2736 = vld [vmem:[#allocation7 + $0x78] sm:$0xff]
    %v2737 = vld [vmem:[#allocation7 + $0x80] sm:$0xff]
    %v2738 = vld [vmem:[#allocation7 + $0x88] sm:$0xff]
    %v2739 = vld [vmem:[#allocation7 + $0x90] sm:$0xff]
    %v2740 = vld [vmem:[#allocation7 + $0x98] sm:$0xff]
    %v2741 = vld [vmem:[#allocation7 + $0xa0] sm:$0xff]
    %v2742 = vld [vmem:[#allocation7 + $0xa8] sm:$0xff]
    %v2743 = vld [vmem:[#allocation7 + $0xb0] sm:$0xff]
    %v2744 = vld [vmem:[#allocation7 + $0xb8] sm:$0xff]
    %v2745 = vld [vmem:[#allocation7 + $0xc0] sm:$0xff]
    %v2746 = vld [vmem:[#allocation7 + $0xc8] sm:$0xff]
    %v2747 = vld [vmem:[#allocation7 + $0xd0] sm:$0xff]
    %v2748 = vld [vmem:[#allocation7 + $0xd8] sm:$0xff]
    %v2749 = vld [vmem:[#allocation7 + $0xe0] sm:$0xff]
    %v2750 = vld [vmem:[#allocation7 + $0xe8] sm:$0xff]
    %v2751 = vld [vmem:[#allocation7 + $0xf0] sm:$0xff]
    %v2752 = vld [vmem:[#allocation7 + $0xf8] sm:$0xff]
    %v2753 = vld [vmem:[#allocation7 + $0x100] sm:$0xff]
    %v2754 = vld [vmem:[#allocation7 + $0x108] sm:$0xff]
    %v2755 = vld [vmem:[#allocation7 + $0x110] sm:$0xff]
    %v2756 = vld [vmem:[#allocation7 + $0x118] sm:$0xff]
    %v2757 = vld [vmem:[#allocation7 + $0x120] sm:$0xff]
    %v2758 = vld [vmem:[#allocation7 + $0x128] sm:$0xff]
    %v2759 = vld [vmem:[#allocation7 + $0x130] sm:$0xff]
    %v2760 = vld [vmem:[#allocation7 + $0x138] sm:$0xff]
    %v2761 = vld [vmem:[#allocation7 + $0x140] sm:$0xff]
    %v2762 = vld [vmem:[#allocation7 + $0x148] sm:$0xff]
    %v2763 = vld [vmem:[#allocation7 + $0x150] sm:$0xff]
    %v2764 = vld [vmem:[#allocation7 + $0x158] sm:$0xff]
    %v2765 = vld [vmem:[#allocation7 + $0x160] sm:$0xff]
    %v2766 = vld [vmem:[#allocation7 + $0x168] sm:$0xff]
    %v2767 = vld [vmem:[#allocation7 + $0x170] sm:$0xff]
    %v2768 = vld [vmem:[#allocation7 + $0x178] sm:$0xff]
    %v2769 = vld [vmem:[#allocation7 + $0x180] sm:$0xff]
    %v2770 = vld [vmem:[#allocation7 + $0x188] sm:$0xff]
    %v2771 = vld [vmem:[#allocation7 + $0x190] sm:$0xff]
    %v2772 = vld [vmem:[#allocation7 + $0x198] sm:$0xff]
    %v2773 = vld [vmem:[#allocation7 + $0x1a0] sm:$0xff]
    %v2774 = vld [vmem:[#allocation7 + $0x1a8] sm:$0xff]
    %v2775 = vld [vmem:[#allocation7 + $0x1b0] sm:$0xff]
    %v2776 = vld [vmem:[#allocation7 + $0x1b8] sm:$0xff]
    %v2777 = vld [vmem:[#allocation7 + $0x1c0] sm:$0xff]
    %v2778 = vld [vmem:[#allocation7 + $0x1c8] sm:$0xff]
    %v2779 = vld [vmem:[#allocation7 + $0x1d0] sm:$0xff]
    %v2780 = vld [vmem:[#allocation7 + $0x1d8] sm:$0xff]
    %v2781 = vld [vmem:[#allocation7 + $0x1e0] sm:$0xff]
    %v2782 = vld [vmem:[#allocation7 + $0x1e8] sm:$0xff]
    %v2783 = vld [vmem:[#allocation7 + $0x1f0] sm:$0xff]
    %v2784 = vld [vmem:[#allocation7 + $0x1f8] sm:$0xff]
    %v2785 = vld [vmem:[#allocation7 + $0x200] sm:$0xff]
    %v2786 = vld [vmem:[#allocation7 + $0x208] sm:$0xff]
    %v2787 = vld [vmem:[#allocation7 + $0x210] sm:$0xff]
    %v2788 = vld [vmem:[#allocation7 + $0x218] sm:$0xff]
    %v2789 = vld [vmem:[#allocation7 + $0x220] sm:$0xff]
    %v2790 = vld [vmem:[#allocation7 + $0x228] sm:$0xff]
    %v2791 = vld [vmem:[#allocation7 + $0x230] sm:$0xff]
    %v2792 = vld [vmem:[#allocation7 + $0x238] sm:$0xff]
    %v2793 = vld [vmem:[#allocation7 + $0x240] sm:$0xff]
    %v2794 = vld [vmem:[#allocation7 + $0x248] sm:$0xff]
    %v2795 = vld [vmem:[#allocation7 + $0x250] sm:$0xff]
    %v2796 = vld [vmem:[#allocation7 + $0x258] sm:$0xff]
    %v2797 = vld [vmem:[#allocation7 + $0x260] sm:$0xff]
    %v2798 = vld [vmem:[#allocation7 + $0x268] sm:$0xff]
    %v2799 = vld [vmem:[#allocation7 + $0x270] sm:$0xff]
    %v2800 = vld [vmem:[#allocation7 + $0x278] sm:$0xff]
    %v2801 = vld [vmem:[#allocation7 + $0x280] sm:$0xff]
    %v2802 = vld [vmem:[#allocation7 + $0x288] sm:$0xff]
    %v2803 = vld [vmem:[#allocation7 + $0x290] sm:$0xff]
    %v2804 = vld [vmem:[#allocation7 + $0x298] sm:$0xff]
    %v2805 = vld [vmem:[#allocation7 + $0x2a0] sm:$0xff]
    %v2806 = vld [vmem:[#allocation7 + $0x2a8] sm:$0xff]
    %v2807 = vld [vmem:[#allocation7 + $0x2b0] sm:$0xff]
    %v2808 = vld [vmem:[#allocation7 + $0x2b8] sm:$0xff]
    %v2809 = vld [vmem:[#allocation7 + $0x2c0] sm:$0xff]
    %v2810 = vld [vmem:[#allocation7 + $0x2c8] sm:$0xff]
    %v2811 = vld [vmem:[#allocation7 + $0x2d0] sm:$0xff]
    %v2812 = vld [vmem:[#allocation7 + $0x2d8] sm:$0xff]
    %v2813 = vld [vmem:[#allocation7 + $0x2e0] sm:$0xff]
    %v2814 = vld [vmem:[#allocation7 + $0x2e8] sm:$0xff]
    %v2815 = vld [vmem:[#allocation7 + $0x2f0] sm:$0xff]
    %v2816 = vld [vmem:[#allocation7 + $0x2f8] sm:$0xff]
    %v2817 = vld [vmem:[#allocation7 + $0x300] sm:$0xff]
    %v2818 = vld [vmem:[#allocation7 + $0x308] sm:$0xff]
    %v2819 = vld [vmem:[#allocation7 + $0x310] sm:$0xff]
    %v2820 = vld [vmem:[#allocation7 + $0x318] sm:$0xff]
    %v2821 = vld [vmem:[#allocation7 + $0x320] sm:$0xff]
    %v2822 = vld [vmem:[#allocation7 + $0x328] sm:$0xff]
    %v2823 = vld [vmem:[#allocation7 + $0x330] sm:$0xff]
    %v2824 = vld [vmem:[#allocation7 + $0x338] sm:$0xff]
    %v2825 = vld [vmem:[#allocation7 + $0x340] sm:$0xff]
    %v2826 = vld [vmem:[#allocation7 + $0x348] sm:$0xff]
    %v2827 = vld [vmem:[#allocation7 + $0x350] sm:$0xff]
    %v2828 = vld [vmem:[#allocation7 + $0x358] sm:$0xff]
    %v2829 = vld [vmem:[#allocation7 + $0x360] sm:$0xff]
    %v2830 = vld [vmem:[#allocation7 + $0x368] sm:$0xff]
    %v2831 = vld [vmem:[#allocation7 + $0x370] sm:$0xff]
    %v2832 = vld [vmem:[#allocation7 + $0x378] sm:$0xff]
    %v2833 = vld [vmem:[#allocation7 + $0x380] sm:$0xff]
    %v2834 = vld [vmem:[#allocation7 + $0x388] sm:$0xff]
    %v2835 = vld [vmem:[#allocation7 + $0x390] sm:$0xff]
    %v2836 = vld [vmem:[#allocation7 + $0x398] sm:$0xff]
    %v2837 = vld [vmem:[#allocation7 + $0x3a0] sm:$0xff]
    %v2838 = vld [vmem:[#allocation7 + $0x3a8] sm:$0xff]
    %v2839 = vld [vmem:[#allocation7 + $0x3b0] sm:$0xff]
    %v2840 = vld [vmem:[#allocation7 + $0x3b8] sm:$0xff]
    %v2841 = vld [vmem:[#allocation7 + $0x3c0] sm:$0xff]
    %v2842 = vld [vmem:[#allocation7 + $0x3c8] sm:$0xff]
    %v2843 = vld [vmem:[#allocation7 + $0x3d0] sm:$0xff]
    %v2844 = vld [vmem:[#allocation7 + $0x3d8] sm:$0xff]
    %v2845 = vld [vmem:[#allocation7 + $0x3e0] sm:$0xff]
    %v2846 = vld [vmem:[#allocation7 + $0x3e8] sm:$0xff]
    %v2847 = vld [vmem:[#allocation7 + $0x3f0] sm:$0xff]
    %v2848 = vld [vmem:[#allocation7 + $0x3f8] sm:$0xff]
    %v2849 = vpack.c.bf16 %v2715, %v2715
    %v2850 = vpack.c.bf16 %v2716, %v2716
    %v2851 = vpack.c.bf16 %v2717, %v2717
    %v2852 = vpack.c.bf16 %v2718, %v2718
    %v2853 = vld [vmem:[#allocation35] sm:$0xf]
    %v2855 = vlaneseq
    %v2856 = vshrl.u32 %v2855, 7
    %v2857 = vsub.s32 0, %v2856
    %v2858 = vrot.slane %v2853, %v2857
    %v2859 = vlaneseq
    %v2860 = vshrl.u32 %v2859, 7
    %v2861 = vsub.s32 1, %v2860
    %v2862 = vrot.slane %v2853, %v2861
    %v2863 = vlaneseq
    %v2864 = vshrl.u32 %v2863, 7
    %v2865 = vsub.s32 2, %v2864
    %v2866 = vrot.slane %v2853, %v2865
    %v2867 = vlaneseq
    %v2868 = vshrl.u32 %v2867, 7
    %v2869 = vsub.s32 3, %v2868
    %v2870 = vrot.slane %v2853, %v2869
    %v3003 = vunpack.c.l.b16 %v2721
    %v3004 = vunpack.c.h.b16 %v2721
    %v3005 = vunpack.c.l.b16 %v2722
    %v3006 = vunpack.c.h.b16 %v2722
    %v3007 = vunpack.c.l.b16 %v2723
    %v3008 = vunpack.c.h.b16 %v2723
    %v3009 = vunpack.c.l.b16 %v2724
    %v3010 = vunpack.c.h.b16 %v2724
    %v3011 = vunpack.c.l.b16 %v2725
    %v3012 = vunpack.c.h.b16 %v2725
    %v3013 = vunpack.c.l.b16 %v2726
    %v3014 = vunpack.c.h.b16 %v2726
    %v3015 = vunpack.c.l.b16 %v2727
    %v3016 = vunpack.c.h.b16 %v2727
    %v3017 = vunpack.c.l.b16 %v2728
    %v3018 = vunpack.c.h.b16 %v2728
    %v3019 = vunpack.c.l.b16 %v2729
    %v3020 = vunpack.c.h.b16 %v2729
    %v3021 = vunpack.c.l.b16 %v2730
    %v3022 = vunpack.c.h.b16 %v2730
    %v3023 = vunpack.c.l.b16 %v2731
    %v3024 = vunpack.c.h.b16 %v2731
    %v3025 = vunpack.c.l.b16 %v2732
    %v3026 = vunpack.c.h.b16 %v2732
    %v3027 = vunpack.c.l.b16 %v2733
    %v3028 = vunpack.c.h.b16 %v2733
    %v3029 = vunpack.c.l.b16 %v2734
    %v3030 = vunpack.c.h.b16 %v2734
    %v3031 = vunpack.c.l.b16 %v2735
    %v3032 = vunpack.c.h.b16 %v2735
    %v3033 = vunpack.c.l.b16 %v2736
    %v3034 = vunpack.c.h.b16 %v2736
    %v3035 = vunpack.c.l.b16 %v2737
    %v3036 = vunpack.c.h.b16 %v2737
    %v3037 = vunpack.c.l.b16 %v2738
    %v3038 = vunpack.c.h.b16 %v2738
    %v3039 = vunpack.c.l.b16 %v2739
    %v3040 = vunpack.c.h.b16 %v2739
    %v3041 = vunpack.c.l.b16 %v2740
    %v3042 = vunpack.c.h.b16 %v2740
    %v3043 = vunpack.c.l.b16 %v2741
    %v3044 = vunpack.c.h.b16 %v2741
    %v3045 = vunpack.c.l.b16 %v2742
    %v3046 = vunpack.c.h.b16 %v2742
    %v3047 = vunpack.c.l.b16 %v2743
    %v3048 = vunpack.c.h.b16 %v2743
    %v3049 = vunpack.c.l.b16 %v2744
    %v3050 = vunpack.c.h.b16 %v2744
    %v3051 = vunpack.c.l.b16 %v2745
    %v3052 = vunpack.c.h.b16 %v2745
    %v3053 = vunpack.c.l.b16 %v2746
    %v3054 = vunpack.c.h.b16 %v2746
    %v3055 = vunpack.c.l.b16 %v2747
    %v3056 = vunpack.c.h.b16 %v2747
    %v3057 = vunpack.c.l.b16 %v2748
    %v3058 = vunpack.c.h.b16 %v2748
    %v3059 = vunpack.c.l.b16 %v2749
    %v3060 = vunpack.c.h.b16 %v2749
    %v3061 = vunpack.c.l.b16 %v2750
    %v3062 = vunpack.c.h.b16 %v2750
    %v3063 = vunpack.c.l.b16 %v2751
    %v3064 = vunpack.c.h.b16 %v2751
    %v3065 = vunpack.c.l.b16 %v2752
    %v3066 = vunpack.c.h.b16 %v2752
    %v3067 = vunpack.c.l.b16 %v2753
    %v3068 = vunpack.c.h.b16 %v2753
    %v3069 = vunpack.c.l.b16 %v2754
    %v3070 = vunpack.c.h.b16 %v2754
    %v3071 = vunpack.c.l.b16 %v2755
    %v3072 = vunpack.c.h.b16 %v2755
    %v3073 = vunpack.c.l.b16 %v2756
    %v3074 = vunpack.c.h.b16 %v2756
    %v3075 = vunpack.c.l.b16 %v2757
    %v3076 = vunpack.c.h.b16 %v2757
    %v3077 = vunpack.c.l.b16 %v2758
    %v3078 = vunpack.c.h.b16 %v2758
    %v3079 = vunpack.c.l.b16 %v2759
    %v3080 = vunpack.c.h.b16 %v2759
    %v3081 = vunpack.c.l.b16 %v2760
    %v3082 = vunpack.c.h.b16 %v2760
    %v3083 = vunpack.c.l.b16 %v2761
    %v3084 = vunpack.c.h.b16 %v2761
    %v3085 = vunpack.c.l.b16 %v2762
    %v3086 = vunpack.c.h.b16 %v2762
    %v3087 = vunpack.c.l.b16 %v2763
    %v3088 = vunpack.c.h.b16 %v2763
    %v3089 = vunpack.c.l.b16 %v2764
    %v3090 = vunpack.c.h.b16 %v2764
    %v3091 = vunpack.c.l.b16 %v2765
    %v3092 = vunpack.c.h.b16 %v2765
    %v3093 = vunpack.c.l.b16 %v2766
    %v3094 = vunpack.c.h.b16 %v2766
    %v3095 = vunpack.c.l.b16 %v2767
    %v3096 = vunpack.c.h.b16 %v2767
    %v3097 = vunpack.c.l.b16 %v2768
    %v3098 = vunpack.c.h.b16 %v2768
    %v3099 = vunpack.c.l.b16 %v2769
    %v3100 = vunpack.c.h.b16 %v2769
    %v3101 = vunpack.c.l.b16 %v2770
    %v3102 = vunpack.c.h.b16 %v2770
    %v3103 = vunpack.c.l.b16 %v2771
    %v3104 = vunpack.c.h.b16 %v2771
    %v3105 = vunpack.c.l.b16 %v2772
    %v3106 = vunpack.c.h.b16 %v2772
    %v3107 = vunpack.c.l.b16 %v2773
    %v3108 = vunpack.c.h.b16 %v2773
    %v3109 = vunpack.c.l.b16 %v2774
    %v3110 = vunpack.c.h.b16 %v2774
    %v3111 = vunpack.c.l.b16 %v2775
    %v3112 = vunpack.c.h.b16 %v2775
    %v3113 = vunpack.c.l.b16 %v2776
    %v3114 = vunpack.c.h.b16 %v2776
    %v3115 = vunpack.c.l.b16 %v2777
    %v3116 = vunpack.c.h.b16 %v2777
    %v3117 = vunpack.c.l.b16 %v2778
    %v3118 = vunpack.c.h.b16 %v2778
    %v3119 = vunpack.c.l.b16 %v2779
    %v3120 = vunpack.c.h.b16 %v2779
    %v3121 = vunpack.c.l.b16 %v2780
    %v3122 = vunpack.c.h.b16 %v2780
    %v3123 = vunpack.c.l.b16 %v2781
    %v3124 = vunpack.c.h.b16 %v2781
    %v3125 = vunpack.c.l.b16 %v2782
    %v3126 = vunpack.c.h.b16 %v2782
    %v3127 = vunpack.c.l.b16 %v2783
    %v3128 = vunpack.c.h.b16 %v2783
    %v3129 = vunpack.c.l.b16 %v2784
    %v3130 = vunpack.c.h.b16 %v2784
    %v3131 = vunpack.c.l.b16 %v2785
    %v3132 = vunpack.c.h.b16 %v2785
    %v3133 = vunpack.c.l.b16 %v2786
    %v3134 = vunpack.c.h.b16 %v2786
    %v3135 = vunpack.c.l.b16 %v2787
    %v3136 = vunpack.c.h.b16 %v2787
    %v3137 = vunpack.c.l.b16 %v2788
    %v3138 = vunpack.c.h.b16 %v2788
    %v3139 = vunpack.c.l.b16 %v2789
    %v3140 = vunpack.c.h.b16 %v2789
    %v3141 = vunpack.c.l.b16 %v2790
    %v3142 = vunpack.c.h.b16 %v2790
    %v3143 = vunpack.c.l.b16 %v2791
    %v3144 = vunpack.c.h.b16 %v2791
    %v3145 = vunpack.c.l.b16 %v2792
    %v3146 = vunpack.c.h.b16 %v2792
    %v3147 = vunpack.c.l.b16 %v2793
    %v3148 = vunpack.c.h.b16 %v2793
    %v3149 = vunpack.c.l.b16 %v2794
    %v3150 = vunpack.c.h.b16 %v2794
    %v3151 = vunpack.c.l.b16 %v2795
    %v3152 = vunpack.c.h.b16 %v2795
    %v3153 = vunpack.c.l.b16 %v2796
    %v3154 = vunpack.c.h.b16 %v2796
    %v3155 = vunpack.c.l.b16 %v2797
    %v3156 = vunpack.c.h.b16 %v2797
    %v3157 = vunpack.c.l.b16 %v2798
    %v3158 = vunpack.c.h.b16 %v2798
    %v3159 = vunpack.c.l.b16 %v2799
    %v3160 = vunpack.c.h.b16 %v2799
    %v3161 = vunpack.c.l.b16 %v2800
    %v3162 = vunpack.c.h.b16 %v2800
    %v3163 = vunpack.c.l.b16 %v2801
    %v3164 = vunpack.c.h.b16 %v2801
    %v3165 = vunpack.c.l.b16 %v2802
    %v3166 = vunpack.c.h.b16 %v2802
    %v3167 = vunpack.c.l.b16 %v2803
    %v3168 = vunpack.c.h.b16 %v2803
    %v3169 = vunpack.c.l.b16 %v2804
    %v3170 = vunpack.c.h.b16 %v2804
    %v3171 = vunpack.c.l.b16 %v2805
    %v3172 = vunpack.c.h.b16 %v2805
    %v3173 = vunpack.c.l.b16 %v2806
    %v3174 = vunpack.c.h.b16 %v2806
    %v3175 = vunpack.c.l.b16 %v2807
    %v3176 = vunpack.c.h.b16 %v2807
    %v3177 = vunpack.c.l.b16 %v2808
    %v3178 = vunpack.c.h.b16 %v2808
    %v3179 = vunpack.c.l.b16 %v2809
    %v3180 = vunpack.c.h.b16 %v2809
    %v3181 = vunpack.c.l.b16 %v2810
    %v3182 = vunpack.c.h.b16 %v2810
    %v3183 = vunpack.c.l.b16 %v2811
    %v3184 = vunpack.c.h.b16 %v2811
    %v3185 = vunpack.c.l.b16 %v2812
    %v3186 = vunpack.c.h.b16 %v2812
    %v3187 = vunpack.c.l.b16 %v2813
    %v3188 = vunpack.c.h.b16 %v2813
    %v3189 = vunpack.c.l.b16 %v2814
    %v3190 = vunpack.c.h.b16 %v2814
    %v3191 = vunpack.c.l.b16 %v2815
    %v3192 = vunpack.c.h.b16 %v2815
    %v3193 = vunpack.c.l.b16 %v2816
    %v3194 = vunpack.c.h.b16 %v2816
    %v3195 = vunpack.c.l.b16 %v2817
    %v3196 = vunpack.c.h.b16 %v2817
    %v3197 = vunpack.c.l.b16 %v2818
    %v3198 = vunpack.c.h.b16 %v2818
    %v3199 = vunpack.c.l.b16 %v2819
    %v3200 = vunpack.c.h.b16 %v2819
    %v3201 = vunpack.c.l.b16 %v2820
    %v3202 = vunpack.c.h.b16 %v2820
    %v3203 = vunpack.c.l.b16 %v2821
    %v3204 = vunpack.c.h.b16 %v2821
    %v3205 = vunpack.c.l.b16 %v2822
    %v3206 = vunpack.c.h.b16 %v2822
    %v3207 = vunpack.c.l.b16 %v2823
    %v3208 = vunpack.c.h.b16 %v2823
    %v3209 = vunpack.c.l.b16 %v2824
    %v3210 = vunpack.c.h.b16 %v2824
    %v3211 = vunpack.c.l.b16 %v2825
    %v3212 = vunpack.c.h.b16 %v2825
    %v3213 = vunpack.c.l.b16 %v2826
    %v3214 = vunpack.c.h.b16 %v2826
    %v3215 = vunpack.c.l.b16 %v2827
    %v3216 = vunpack.c.h.b16 %v2827
    %v3217 = vunpack.c.l.b16 %v2828
    %v3218 = vunpack.c.h.b16 %v2828
    %v3219 = vunpack.c.l.b16 %v2829
    %v3220 = vunpack.c.h.b16 %v2829
    %v3221 = vunpack.c.l.b16 %v2830
    %v3222 = vunpack.c.h.b16 %v2830
    %v3223 = vunpack.c.l.b16 %v2831
    %v3224 = vunpack.c.h.b16 %v2831
    %v3225 = vunpack.c.l.b16 %v2832
    %v3226 = vunpack.c.h.b16 %v2832
    %v3227 = vunpack.c.l.b16 %v2833
    %v3228 = vunpack.c.h.b16 %v2833
    %v3229 = vunpack.c.l.b16 %v2834
    %v3230 = vunpack.c.h.b16 %v2834
    %v3231 = vunpack.c.l.b16 %v2835
    %v3232 = vunpack.c.h.b16 %v2835
    %v3233 = vunpack.c.l.b16 %v2836
    %v3234 = vunpack.c.h.b16 %v2836
    %v3235 = vunpack.c.l.b16 %v2837
    %v3236 = vunpack.c.h.b16 %v2837
    %v3237 = vunpack.c.l.b16 %v2838
    %v3238 = vunpack.c.h.b16 %v2838
    %v3239 = vunpack.c.l.b16 %v2839
    %v3240 = vunpack.c.h.b16 %v2839
    %v3241 = vunpack.c.l.b16 %v2840
    %v3242 = vunpack.c.h.b16 %v2840
    %v3243 = vunpack.c.l.b16 %v2841
    %v3244 = vunpack.c.h.b16 %v2841
    %v3245 = vunpack.c.l.b16 %v2842
    %v3246 = vunpack.c.h.b16 %v2842
    %v3247 = vunpack.c.l.b16 %v2843
    %v3248 = vunpack.c.h.b16 %v2843
    %v3249 = vunpack.c.l.b16 %v2844
    %v3250 = vunpack.c.h.b16 %v2844
    %v3251 = vunpack.c.l.b16 %v2845
    %v3252 = vunpack.c.h.b16 %v2845
    %v3253 = vunpack.c.l.b16 %v2846
    %v3254 = vunpack.c.h.b16 %v2846
    %v3255 = vunpack.c.l.b16 %v2847
    %v3256 = vunpack.c.h.b16 %v2847
    %v3257 = vunpack.c.l.b16 %v2848
    %v3258 = vunpack.c.h.b16 %v2848
    %v3259 = vpack.c.b16 %v3007, %v3003
    %v3260 = vpack.c.b16 %v3008, %v3004
    %v3261 = vpack.c.b16 %v3009, %v3005
    %v3262 = vpack.c.b16 %v3010, %v3006
    %v3263 = vpack.c.b16 %v3015, %v3011
    %v3264 = vpack.c.b16 %v3016, %v3012
    %v3265 = vpack.c.b16 %v3017, %v3013
    %v3266 = vpack.c.b16 %v3018, %v3014
    %v3267 = vpack.c.b16 %v3023, %v3019
    %v3268 = vpack.c.b16 %v3024, %v3020
    %v3269 = vpack.c.b16 %v3025, %v3021
    %v3270 = vpack.c.b16 %v3026, %v3022
    %v3271 = vpack.c.b16 %v3031, %v3027
    %v3272 = vpack.c.b16 %v3032, %v3028
    %v3273 = vpack.c.b16 %v3033, %v3029
    %v3274 = vpack.c.b16 %v3034, %v3030
    %v3275 = vpack.c.b16 %v3039, %v3035
    %v3276 = vpack.c.b16 %v3040, %v3036
    %v3277 = vpack.c.b16 %v3041, %v3037
    %v3278 = vpack.c.b16 %v3042, %v3038
    %v3279 = vpack.c.b16 %v3047, %v3043
    %v3280 = vpack.c.b16 %v3048, %v3044
    %v3281 = vpack.c.b16 %v3049, %v3045
    %v3282 = vpack.c.b16 %v3050, %v3046
    %v3283 = vpack.c.b16 %v3055, %v3051
    %v3284 = vpack.c.b16 %v3056, %v3052
    %v3285 = vpack.c.b16 %v3057, %v3053
    %v3286 = vpack.c.b16 %v3058, %v3054
    %v3287 = vpack.c.b16 %v3063, %v3059
    %v3288 = vpack.c.b16 %v3064, %v3060
    %v3289 = vpack.c.b16 %v3065, %v3061
    %v3290 = vpack.c.b16 %v3066, %v3062
    %v3291 = vpack.c.b16 %v3071, %v3067
    %v3292 = vpack.c.b16 %v3072, %v3068
    %v3293 = vpack.c.b16 %v3073, %v3069
    %v3294 = vpack.c.b16 %v3074, %v3070
    %v3295 = vpack.c.b16 %v3079, %v3075
    %v3296 = vpack.c.b16 %v3080, %v3076
    %v3297 = vpack.c.b16 %v3081, %v3077
    %v3298 = vpack.c.b16 %v3082, %v3078
    %v3299 = vpack.c.b16 %v3087, %v3083
    %v3300 = vpack.c.b16 %v3088, %v3084
    %v3301 = vpack.c.b16 %v3089, %v3085
    %v3302 = vpack.c.b16 %v3090, %v3086
    %v3303 = vpack.c.b16 %v3095, %v3091
    %v3304 = vpack.c.b16 %v3096, %v3092
    %v3305 = vpack.c.b16 %v3097, %v3093
    %v3306 = vpack.c.b16 %v3098, %v3094
    %v3307 = vpack.c.b16 %v3103, %v3099
    %v3308 = vpack.c.b16 %v3104, %v3100
    %v3309 = vpack.c.b16 %v3105, %v3101
    %v3310 = vpack.c.b16 %v3106, %v3102
    %v3311 = vpack.c.b16 %v3111, %v3107
    %v3312 = vpack.c.b16 %v3112, %v3108
    %v3313 = vpack.c.b16 %v3113, %v3109
    %v3314 = vpack.c.b16 %v3114, %v3110
    %v3315 = vpack.c.b16 %v3119, %v3115
    %v3316 = vpack.c.b16 %v3120, %v3116
    %v3317 = vpack.c.b16 %v3121, %v3117
    %v3318 = vpack.c.b16 %v3122, %v3118
    %v3319 = vpack.c.b16 %v3127, %v3123
    %v3320 = vpack.c.b16 %v3128, %v3124
    %v3321 = vpack.c.b16 %v3129, %v3125
    %v3322 = vpack.c.b16 %v3130, %v3126
    %v3323 = vpack.c.b16 %v3135, %v3131
    %v3324 = vpack.c.b16 %v3136, %v3132
    %v3325 = vpack.c.b16 %v3137, %v3133
    %v3326 = vpack.c.b16 %v3138, %v3134
    %v3327 = vpack.c.b16 %v3143, %v3139
    %v3328 = vpack.c.b16 %v3144, %v3140
    %v3329 = vpack.c.b16 %v3145, %v3141
    %v3330 = vpack.c.b16 %v3146, %v3142
    %v3331 = vpack.c.b16 %v3151, %v3147
    %v3332 = vpack.c.b16 %v3152, %v3148
    %v3333 = vpack.c.b16 %v3153, %v3149
    %v3334 = vpack.c.b16 %v3154, %v3150
    %v3335 = vpack.c.b16 %v3159, %v3155
    %v3336 = vpack.c.b16 %v3160, %v3156
    %v3337 = vpack.c.b16 %v3161, %v3157
    %v3338 = vpack.c.b16 %v3162, %v3158
    %v3339 = vpack.c.b16 %v3167, %v3163
    %v3340 = vpack.c.b16 %v3168, %v3164
    %v3341 = vpack.c.b16 %v3169, %v3165
    %v3342 = vpack.c.b16 %v3170, %v3166
    %v3343 = vpack.c.b16 %v3175, %v3171
    %v3344 = vpack.c.b16 %v3176, %v3172
    %v3345 = vpack.c.b16 %v3177, %v3173
    %v3346 = vpack.c.b16 %v3178, %v3174
    %v3347 = vpack.c.b16 %v3183, %v3179
    %v3348 = vpack.c.b16 %v3184, %v3180
    %v3349 = vpack.c.b16 %v3185, %v3181
    %v3350 = vpack.c.b16 %v3186, %v3182
    %v3351 = vpack.c.b16 %v3191, %v3187
    %v3352 = vpack.c.b16 %v3192, %v3188
    %v3353 = vpack.c.b16 %v3193, %v3189
    %v3354 = vpack.c.b16 %v3194, %v3190
    %v3355 = vpack.c.b16 %v3199, %v3195
    %v3356 = vpack.c.b16 %v3200, %v3196
    %v3357 = vpack.c.b16 %v3201, %v3197
    %v3358 = vpack.c.b16 %v3202, %v3198
    %v3359 = vpack.c.b16 %v3207, %v3203
    %v3360 = vpack.c.b16 %v3208, %v3204
    %v3361 = vpack.c.b16 %v3209, %v3205
    %v3362 = vpack.c.b16 %v3210, %v3206
    %v3363 = vpack.c.b16 %v3215, %v3211
    %v3364 = vpack.c.b16 %v3216, %v3212
    %v3365 = vpack.c.b16 %v3217, %v3213
    %v3366 = vpack.c.b16 %v3218, %v3214
    %v3367 = vpack.c.b16 %v3223, %v3219
    %v3368 = vpack.c.b16 %v3224, %v3220
    %v3369 = vpack.c.b16 %v3225, %v3221
    %v3370 = vpack.c.b16 %v3226, %v3222
    %v3371 = vpack.c.b16 %v3231, %v3227
    %v3372 = vpack.c.b16 %v3232, %v3228
    %v3373 = vpack.c.b16 %v3233, %v3229
    %v3374 = vpack.c.b16 %v3234, %v3230
    %v3375 = vpack.c.b16 %v3239, %v3235
    %v3376 = vpack.c.b16 %v3240, %v3236
    %v3377 = vpack.c.b16 %v3241, %v3237
    %v3378 = vpack.c.b16 %v3242, %v3238
    %v3379 = vpack.c.b16 %v3247, %v3243
    %v3380 = vpack.c.b16 %v3248, %v3244
    %v3381 = vpack.c.b16 %v3249, %v3245
    %v3382 = vpack.c.b16 %v3250, %v3246
    %v3383 = vpack.c.b16 %v3255, %v3251
    %v3384 = vpack.c.b16 %v3256, %v3252
    %v3385 = vpack.c.b16 %v3257, %v3253
    %v3386 = vpack.c.b16 %v3258, %v3254
    %3515 = vmatprep.subr.bf16.mxu0 %v3288
    %3516 = vmatpush1.bf16.msra.mxu0 %v3287
    %3517 = vmatprep.subr.bf16.mxu0 %v3284
    %3518 = vmatpush1.bf16.msra.mxu0 %v3283
    %3519 = vmatprep.subr.bf16.mxu0 %v3280
    %3520 = vmatpush1.bf16.msra.mxu0 %v3279
    %3521 = vmatprep.subr.bf16.mxu0 %v3276
    %3522 = vmatpush1.bf16.msra.mxu0 %v3275
    %3523 = vmatprep.subr.bf16.mxu0 %v3272
    %3524 = vmatpush1.bf16.msra.mxu0 %v3271
    %3525 = vmatprep.subr.bf16.mxu0 %v3268
    %3526 = vmatpush1.bf16.msra.mxu0 %v3267
    %3527 = vmatprep.subr.bf16.mxu0 %v3264
    %3528 = vmatpush1.bf16.msra.mxu0 %v3263
    %3529 = vmatprep.subr.bf16.mxu0 %v3260
    %3530 = vmatpush1.bf16.msra.mxu0 %v3259
    %3531 = vmatprep.subr.bf16.mxu0 %v3320
    %3532 = vmatpush2.bf16.msra.mxu0 %v3319
    %3533 = vmatprep.subr.bf16.mxu0 %v3316
    %3534 = vmatpush2.bf16.msra.mxu0 %v3315
    %3535 = vmatprep.subr.bf16.mxu0 %v3312
    %3536 = vmatpush2.bf16.msra.mxu0 %v3311
    %3537 = vmatprep.subr.bf16.mxu0 %v3308
    %3538 = vmatpush2.bf16.msra.mxu0 %v3307
    %3539 = vmatprep.subr.bf16.mxu0 %v3304
    %3540 = vmatpush2.bf16.msra.mxu0 %v3303
    %3541 = vmatprep.subr.bf16.mxu0 %v3300
    %3542 = vmatpush2.bf16.msra.mxu0 %v3299
    %3543 = vmatprep.subr.bf16.mxu0 %v3296
    %3544 = vmatpush2.bf16.msra.mxu0 %v3295
    %3545 = vmatprep.subr.bf16.mxu0 %v3292
    %3546 = vmatpush2.bf16.msra.mxu0 %v3291
    %3547 = vmatprep.mubr.bf16.mxu0 %v2850
    %3548 = vmatmul.mubr.bf16.gmra.mxu0 %v2849
    %v3549 = vpop.f32.mrf.mxu0
    %v3550 = vadd.f32 %v2858, %v3549
    %v3551 = vpop.f32.mrf.mxu0
    %v3552 = vadd.f32 %v2862, %v3551
    %v3553 = vpop.f32.mrf.mxu0
    %v3554 = vpop.f32.mrf.mxu0
    %3555 = vdwg.mxu0
    %3556 = vmatprep.subr.bf16.mxu0 %v3352
    %3557 = vmatpush1.bf16.msra.mxu0 %v3351
    %3558 = vmatprep.subr.bf16.mxu0 %v3348
    %3559 = vmatpush1.bf16.msra.mxu0 %v3347
    %3560 = vmatprep.subr.bf16.mxu0 %v3344
    %3561 = vmatpush1.bf16.msra.mxu0 %v3343
    %3562 = vmatprep.subr.bf16.mxu0 %v3340
    %3563 = vmatpush1.bf16.msra.mxu0 %v3339
    %3564 = vmatprep.subr.bf16.mxu0 %v3336
    %3565 = vmatpush1.bf16.msra.mxu0 %v3335
    %3566 = vmatprep.subr.bf16.mxu0 %v3332
    %3567 = vmatpush1.bf16.msra.mxu0 %v3331
    %3568 = vmatprep.subr.bf16.mxu0 %v3328
    %3569 = vmatpush1.bf16.msra.mxu0 %v3327
    %3570 = vmatprep.subr.bf16.mxu0 %v3324
    %3571 = vmatpush1.bf16.msra.mxu0 %v3323
    %3572 = vmatprep.subr.bf16.mxu0 %v3384
    %3573 = vmatpush2.bf16.msra.mxu0 %v3383
    %3574 = vmatprep.subr.bf16.mxu0 %v3380
    %3575 = vmatpush2.bf16.msra.mxu0 %v3379
    %3576 = vmatprep.subr.bf16.mxu0 %v3376
    %3577 = vmatpush2.bf16.msra.mxu0 %v3375
    %3578 = vmatprep.subr.bf16.mxu0 %v3372
    %3579 = vmatpush2.bf16.msra.mxu0 %v3371
    %3580 = vmatprep.subr.bf16.mxu0 %v3368
    %3581 = vmatpush2.bf16.msra.mxu0 %v3367
    %3582 = vmatprep.subr.bf16.mxu0 %v3364
    %3583 = vmatpush2.bf16.msra.mxu0 %v3363
    %3584 = vmatprep.subr.bf16.mxu0 %v3360
    %3585 = vmatpush2.bf16.msra.mxu0 %v3359
    %3586 = vmatprep.subr.bf16.mxu0 %v3356
    %3587 = vmatpush2.bf16.msra.mxu0 %v3355
    %3588 = vmatprep.mubr.bf16.mxu0 %v2852
    %3589 = vmatmul.mubr.bf16.gmra.mxu0 %v2851
    %v3590 = vpop.f32.mrf.mxu0
    %v3591 = vadd.f32 %v3550, %v3590
    %v3592 = vpop.f32.mrf.mxu0
    %v3593 = vadd.f32 %v3552, %v3592
    %v3594 = vpop.f32.mrf.mxu0
    %v3595 = vpop.f32.mrf.mxu0
    %3596 = vdwg.mxu0
    %3597 = vmatprep.subr.bf16.mxu0 %v3290
    %3598 = vmatpush1.bf16.msra.mxu0 %v3289
    %3599 = vmatprep.subr.bf16.mxu0 %v3286
    %3600 = vmatpush1.bf16.msra.mxu0 %v3285
    %3601 = vmatprep.subr.bf16.mxu0 %v3282
    %3602 = vmatpush1.bf16.msra.mxu0 %v3281
    %3603 = vmatprep.subr.bf16.mxu0 %v3278
    %3604 = vmatpush1.bf16.msra.mxu0 %v3277
    %3605 = vmatprep.subr.bf16.mxu0 %v3274
    %3606 = vmatpush1.bf16.msra.mxu0 %v3273
    %3607 = vmatprep.subr.bf16.mxu0 %v3270
    %3608 = vmatpush1.bf16.msra.mxu0 %v3269
    %3609 = vmatprep.subr.bf16.mxu0 %v3266
    %3610 = vmatpush1.bf16.msra.mxu0 %v3265
    %3611 = vmatprep.subr.bf16.mxu0 %v3262
    %3612 = vmatpush1.bf16.msra.mxu0 %v3261
    %3613 = vmatprep.subr.bf16.mxu0 %v3322
    %3614 = vmatpush2.bf16.msra.mxu0 %v3321
    %3615 = vmatprep.subr.bf16.mxu0 %v3318
    %3616 = vmatpush2.bf16.msra.mxu0 %v3317
    %3617 = vmatprep.subr.bf16.mxu0 %v3314
    %3618 = vmatpush2.bf16.msra.mxu0 %v3313
    %3619 = vmatprep.subr.bf16.mxu0 %v3310
    %3620 = vmatpush2.bf16.msra.mxu0 %v3309
    %3621 = vmatprep.subr.bf16.mxu0 %v3306
    %3622 = vmatpush2.bf16.msra.mxu0 %v3305
    %3623 = vmatprep.subr.bf16.mxu0 %v3302
    %3624 = vmatpush2.bf16.msra.mxu0 %v3301
    %3625 = vmatprep.subr.bf16.mxu0 %v3298
    %3626 = vmatpush2.bf16.msra.mxu0 %v3297
    %3627 = vmatprep.subr.bf16.mxu0 %v3294
    %3628 = vmatpush2.bf16.msra.mxu0 %v3293
    %3629 = vmatprep.mubr.bf16.mxu0 %v2850
    %3630 = vmatmul.mubr.bf16.gmra.mxu0 %v2849
    %v3631 = vpop.f32.mrf.mxu0
    %v3632 = vadd.f32 %v2866, %v3631
    %v3633 = vpop.f32.mrf.mxu0
    %v3634 = vadd.f32 %v2870, %v3633
    %v3635 = vpop.f32.mrf.mxu0
    %v3636 = vpop.f32.mrf.mxu0
    %3637 = vdwg.mxu0
    %3638 = vmatprep.subr.bf16.mxu0 %v3354
    %3639 = vmatpush1.bf16.msra.mxu0 %v3353
    %3640 = vmatprep.subr.bf16.mxu0 %v3350
    %3641 = vmatpush1.bf16.msra.mxu0 %v3349
    %3642 = vmatprep.subr.bf16.mxu0 %v3346
    %3643 = vmatpush1.bf16.msra.mxu0 %v3345
    %3644 = vmatprep.subr.bf16.mxu0 %v3342
    %3645 = vmatpush1.bf16.msra.mxu0 %v3341
    %3646 = vmatprep.subr.bf16.mxu0 %v3338
    %3647 = vmatpush1.bf16.msra.mxu0 %v3337
    %3648 = vmatprep.subr.bf16.mxu0 %v3334
    %3649 = vmatpush1.bf16.msra.mxu0 %v3333
    %3650 = vmatprep.subr.bf16.mxu0 %v3330
    %3651 = vmatpush1.bf16.msra.mxu0 %v3329
    %3652 = vmatprep.subr.bf16.mxu0 %v3326
    %3653 = vmatpush1.bf16.msra.mxu0 %v3325
    %3654 = vmatprep.subr.bf16.mxu0 %v3386
    %3655 = vmatpush2.bf16.msra.mxu0 %v3385
    %3656 = vmatprep.subr.bf16.mxu0 %v3382
    %3657 = vmatpush2.bf16.msra.mxu0 %v3381
    %3658 = vmatprep.subr.bf16.mxu0 %v3378
    %3659 = vmatpush2.bf16.msra.mxu0 %v3377
    %3660 = vmatprep.subr.bf16.mxu0 %v3374
    %3661 = vmatpush2.bf16.msra.mxu0 %v3373
    %3662 = vmatprep.subr.bf16.mxu0 %v3370
    %3663 = vmatpush2.bf16.msra.mxu0 %v3369
    %3664 = vmatprep.subr.bf16.mxu0 %v3366
    %3665 = vmatpush2.bf16.msra.mxu0 %v3365
    %3666 = vmatprep.subr.bf16.mxu0 %v3362
    %3667 = vmatpush2.bf16.msra.mxu0 %v3361
    %3668 = vmatprep.subr.bf16.mxu0 %v3358
    %3669 = vmatpush2.bf16.msra.mxu0 %v3357
    %3670 = vmatprep.mubr.bf16.mxu0 %v2852
    %3671 = vmatmul.mubr.bf16.gmra.mxu0 %v2851
    %v3672 = vpop.f32.mrf.mxu0
    %v3673 = vadd.f32 %v3632, %v3672
    %v3674 = vpop.f32.mrf.mxu0
    %v3675 = vadd.f32 %v3634, %v3674
    %v3676 = vpop.f32.mrf.mxu0
    %v3677 = vpop.f32.mrf.mxu0
    %3678 = vdwg.mxu0
    %v3679 = vmul.f32 %v3591, 0.5
    %v3680 = vmul.f32 %v3593, 0.5
    %v3681 = vmul.f32 %v3673, 0.5
    %v3682 = vmul.f32 %v3675, 0.5
    %v3683 = vmul.f32 %v3591, 0.70710677
    %v3684 = vmul.f32 %v3593, 0.70710677
    %v3685 = vmul.f32 %v3673, 0.70710677
    %v3686 = vmul.f32 %v3675, 0.70710677
    %v3687 = verf.f32.pop %v3683
    %v3688 = verf.f32.pop %v3684
    %v3689 = verf.f32.pop %v3685
    %v3690 = verf.f32.pop %v3686
    %v3691 = vadd.f32 %v3687, 1.0
    %v3692 = vadd.f32 %v3688, 1.0
    %v3693 = vadd.f32 %v3689, 1.0
    %v3694 = vadd.f32 %v3690, 1.0
    %v3695 = vmul.f32 %v3679, %v3691
    %v3696 = vmul.f32 %v3680, %v3692
    %v3697 = vmul.f32 %v3681, %v3693
    %v3698 = vmul.f32 %v3682, %v3694
    %v3699 = vld [vmem:[#allocation37] sm:$0xf]
    %v3700 = vld [vmem:[#allocation38] sm:$0xf]
    %v3701 = vadd.f32 %v3695, %v3696
    %v3702 = vadd.f32 %v3701, %v3697
    %v3703 = vadd.f32 %v3702, %v3698
    %3704 = vadd.xlane.f32.xlu0 %v3703
    %v3705 = vpop.xlane.xlu0 %3704
    %v3706 = vmul.f32 %v3705, %v2647
    %v3707 = vsub.f32 %v3695, %v3706
    %v3708 = vsub.f32 %v3696, %v3706
    %v3709 = vsub.f32 %v3697, %v3706
    %v3710 = vsub.f32 %v3698, %v3706
    %v3711 = vmul.f32 %v3707, %v3707
    %v3712 = vmul.f32 %v3708, %v3708
    %v3713 = vmul.f32 %v3709, %v3709
    %v3714 = vmul.f32 %v3710, %v3710
    %v3715 = vadd.f32 %v3711, %v3712
    %v3716 = vadd.f32 %v3715, %v3713
    %v3717 = vadd.f32 %v3716, %v3714
    %3718 = vadd.xlane.f32.xlu0 %v3717
    %v3719 = vpop.xlane.xlu0 %3718
    %v3720 = vmul.f32 %v3719, %v2647
    %v3721 = vadd.f32 %v3720, 1e-05
    %v3722 = vrsqrt.pop %v3721
    %v3723 = vmul.f32 %v3707, %v3722
    %v3724 = vmul.f32 %v3708, %v3722
    %v3725 = vmul.f32 %v3709, %v3722
    %v3726 = vmul.f32 %v3710, %v3722
    %v3728 = vlaneseq
    %v3729 = vshrl.u32 %v3728, 7
    %v3730 = vsub.s32 0, %v3729
    %v3731 = vrot.slane %v3699, %v3730
    %v3732 = vlaneseq
    %v3733 = vshrl.u32 %v3732, 7
    %v3734 = vsub.s32 1, %v3733
    %v3735 = vrot.slane %v3699, %v3734
    %v3736 = vlaneseq
    %v3737 = vshrl.u32 %v3736, 7
    %v3738 = vsub.s32 2, %v3737
    %v3739 = vrot.slane %v3699, %v3738
    %v3740 = vlaneseq
    %v3741 = vshrl.u32 %v3740, 7
    %v3742 = vsub.s32 3, %v3741
    %v3743 = vrot.slane %v3699, %v3742
    %v3748 = vmul.f32 %v3723, %v3731
    %v3749 = vmul.f32 %v3724, %v3735
    %v3750 = vmul.f32 %v3725, %v3739
    %v3751 = vmul.f32 %v3726, %v3743
    %v3753 = vlaneseq
    %v3754 = vshrl.u32 %v3753, 7
    %v3755 = vsub.s32 0, %v3754
    %v3756 = vrot.slane %v3700, %v3755
    %v3757 = vlaneseq
    %v3758 = vshrl.u32 %v3757, 7
    %v3759 = vsub.s32 1, %v3758
    %v3760 = vrot.slane %v3700, %v3759
    %v3761 = vlaneseq
    %v3762 = vshrl.u32 %v3761, 7
    %v3763 = vsub.s32 2, %v3762
    %v3764 = vrot.slane %v3700, %v3763
    %v3765 = vlaneseq
    %v3766 = vshrl.u32 %v3765, 7
    %v3767 = vsub.s32 3, %v3766
    %v3768 = vrot.slane %v3700, %v3767
    %v3773 = vadd.f32 %v3748, %v3756
    %v3774 = vadd.f32 %v3749, %v3760
    %v3775 = vadd.f32 %v3750, %v3764
    %v3776 = vadd.f32 %v3751, %v3768
    %s3777 = sshll.u32 %s1483, 4
    %3778 = dma.done %s524, %s3777
    %v3779 = vld [vmem:[#allocation8] sm:$0xff]
    %v3780 = vld [vmem:[#allocation8 + $0x8] sm:$0xff]
    %v3781 = vld [vmem:[#allocation8 + $0x10] sm:$0xff]
    %v3782 = vld [vmem:[#allocation8 + $0x18] sm:$0xff]
    %v3783 = vld [vmem:[#allocation8 + $0x20] sm:$0xff]
    %v3784 = vld [vmem:[#allocation8 + $0x28] sm:$0xff]
    %v3785 = vld [vmem:[#allocation8 + $0x30] sm:$0xff]
    %v3786 = vld [vmem:[#allocation8 + $0x38] sm:$0xff]
    %v3787 = vld [vmem:[#allocation8 + $0x40] sm:$0xff]
    %v3788 = vld [vmem:[#allocation8 + $0x48] sm:$0xff]
    %v3789 = vld [vmem:[#allocation8 + $0x50] sm:$0xff]
    %v3790 = vld [vmem:[#allocation8 + $0x58] sm:$0xff]
    %v3791 = vld [vmem:[#allocation8 + $0x60] sm:$0xff]
    %v3792 = vld [vmem:[#allocation8 + $0x68] sm:$0xff]
    %v3793 = vld [vmem:[#allocation8 + $0x70] sm:$0xff]
    %v3794 = vld [vmem:[#allocation8 + $0x78] sm:$0xff]
    %v3795 = vld [vmem:[#allocation8 + $0x80] sm:$0xff]
    %v3796 = vld [vmem:[#allocation8 + $0x88] sm:$0xff]
    %v3797 = vld [vmem:[#allocation8 + $0x90] sm:$0xff]
    %v3798 = vld [vmem:[#allocation8 + $0x98] sm:$0xff]
    %v3799 = vld [vmem:[#allocation8 + $0xa0] sm:$0xff]
    %v3800 = vld [vmem:[#allocation8 + $0xa8] sm:$0xff]
    %v3801 = vld [vmem:[#allocation8 + $0xb0] sm:$0xff]
    %v3802 = vld [vmem:[#allocation8 + $0xb8] sm:$0xff]
    %v3803 = vld [vmem:[#allocation8 + $0xc0] sm:$0xff]
    %v3804 = vld [vmem:[#allocation8 + $0xc8] sm:$0xff]
    %v3805 = vld [vmem:[#allocation8 + $0xd0] sm:$0xff]
    %v3806 = vld [vmem:[#allocation8 + $0xd8] sm:$0xff]
    %v3807 = vld [vmem:[#allocation8 + $0xe0] sm:$0xff]
    %v3808 = vld [vmem:[#allocation8 + $0xe8] sm:$0xff]
    %v3809 = vld [vmem:[#allocation8 + $0xf0] sm:$0xff]
    %v3810 = vld [vmem:[#allocation8 + $0xf8] sm:$0xff]
    %v3811 = vld [vmem:[#allocation8 + $0x100] sm:$0xff]
    %v3812 = vld [vmem:[#allocation8 + $0x108] sm:$0xff]
    %v3813 = vld [vmem:[#allocation8 + $0x110] sm:$0xff]
    %v3814 = vld [vmem:[#allocation8 + $0x118] sm:$0xff]
    %v3815 = vld [vmem:[#allocation8 + $0x120] sm:$0xff]
    %v3816 = vld [vmem:[#allocation8 + $0x128] sm:$0xff]
    %v3817 = vld [vmem:[#allocation8 + $0x130] sm:$0xff]
    %v3818 = vld [vmem:[#allocation8 + $0x138] sm:$0xff]
    %v3819 = vld [vmem:[#allocation8 + $0x140] sm:$0xff]
    %v3820 = vld [vmem:[#allocation8 + $0x148] sm:$0xff]
    %v3821 = vld [vmem:[#allocation8 + $0x150] sm:$0xff]
    %v3822 = vld [vmem:[#allocation8 + $0x158] sm:$0xff]
    %v3823 = vld [vmem:[#allocation8 + $0x160] sm:$0xff]
    %v3824 = vld [vmem:[#allocation8 + $0x168] sm:$0xff]
    %v3825 = vld [vmem:[#allocation8 + $0x170] sm:$0xff]
    %v3826 = vld [vmem:[#allocation8 + $0x178] sm:$0xff]
    %v3827 = vld [vmem:[#allocation8 + $0x180] sm:$0xff]
    %v3828 = vld [vmem:[#allocation8 + $0x188] sm:$0xff]
    %v3829 = vld [vmem:[#allocation8 + $0x190] sm:$0xff]
    %v3830 = vld [vmem:[#allocation8 + $0x198] sm:$0xff]
    %v3831 = vld [vmem:[#allocation8 + $0x1a0] sm:$0xff]
    %v3832 = vld [vmem:[#allocation8 + $0x1a8] sm:$0xff]
    %v3833 = vld [vmem:[#allocation8 + $0x1b0] sm:$0xff]
    %v3834 = vld [vmem:[#allocation8 + $0x1b8] sm:$0xff]
    %v3835 = vld [vmem:[#allocation8 + $0x1c0] sm:$0xff]
    %v3836 = vld [vmem:[#allocation8 + $0x1c8] sm:$0xff]
    %v3837 = vld [vmem:[#allocation8 + $0x1d0] sm:$0xff]
    %v3838 = vld [vmem:[#allocation8 + $0x1d8] sm:$0xff]
    %v3839 = vld [vmem:[#allocation8 + $0x1e0] sm:$0xff]
    %v3840 = vld [vmem:[#allocation8 + $0x1e8] sm:$0xff]
    %v3841 = vld [vmem:[#allocation8 + $0x1f0] sm:$0xff]
    %v3842 = vld [vmem:[#allocation8 + $0x1f8] sm:$0xff]
    %v3843 = vld [vmem:[#allocation8 + $0x200] sm:$0xff]
    %v3844 = vld [vmem:[#allocation8 + $0x208] sm:$0xff]
    %v3845 = vld [vmem:[#allocation8 + $0x210] sm:$0xff]
    %v3846 = vld [vmem:[#allocation8 + $0x218] sm:$0xff]
    %v3847 = vld [vmem:[#allocation8 + $0x220] sm:$0xff]
    %v3848 = vld [vmem:[#allocation8 + $0x228] sm:$0xff]
    %v3849 = vld [vmem:[#allocation8 + $0x230] sm:$0xff]
    %v3850 = vld [vmem:[#allocation8 + $0x238] sm:$0xff]
    %v3851 = vld [vmem:[#allocation8 + $0x240] sm:$0xff]
    %v3852 = vld [vmem:[#allocation8 + $0x248] sm:$0xff]
    %v3853 = vld [vmem:[#allocation8 + $0x250] sm:$0xff]
    %v3854 = vld [vmem:[#allocation8 + $0x258] sm:$0xff]
    %v3855 = vld [vmem:[#allocation8 + $0x260] sm:$0xff]
    %v3856 = vld [vmem:[#allocation8 + $0x268] sm:$0xff]
    %v3857 = vld [vmem:[#allocation8 + $0x270] sm:$0xff]
    %v3858 = vld [vmem:[#allocation8 + $0x278] sm:$0xff]
    %v3859 = vld [vmem:[#allocation8 + $0x280] sm:$0xff]
    %v3860 = vld [vmem:[#allocation8 + $0x288] sm:$0xff]
    %v3861 = vld [vmem:[#allocation8 + $0x290] sm:$0xff]
    %v3862 = vld [vmem:[#allocation8 + $0x298] sm:$0xff]
    %v3863 = vld [vmem:[#allocation8 + $0x2a0] sm:$0xff]
    %v3864 = vld [vmem:[#allocation8 + $0x2a8] sm:$0xff]
    %v3865 = vld [vmem:[#allocation8 + $0x2b0] sm:$0xff]
    %v3866 = vld [vmem:[#allocation8 + $0x2b8] sm:$0xff]
    %v3867 = vld [vmem:[#allocation8 + $0x2c0] sm:$0xff]
    %v3868 = vld [vmem:[#allocation8 + $0x2c8] sm:$0xff]
    %v3869 = vld [vmem:[#allocation8 + $0x2d0] sm:$0xff]
    %v3870 = vld [vmem:[#allocation8 + $0x2d8] sm:$0xff]
    %v3871 = vld [vmem:[#allocation8 + $0x2e0] sm:$0xff]
    %v3872 = vld [vmem:[#allocation8 + $0x2e8] sm:$0xff]
    %v3873 = vld [vmem:[#allocation8 + $0x2f0] sm:$0xff]
    %v3874 = vld [vmem:[#allocation8 + $0x2f8] sm:$0xff]
    %v3875 = vld [vmem:[#allocation8 + $0x300] sm:$0xff]
    %v3876 = vld [vmem:[#allocation8 + $0x308] sm:$0xff]
    %v3877 = vld [vmem:[#allocation8 + $0x310] sm:$0xff]
    %v3878 = vld [vmem:[#allocation8 + $0x318] sm:$0xff]
    %v3879 = vld [vmem:[#allocation8 + $0x320] sm:$0xff]
    %v3880 = vld [vmem:[#allocation8 + $0x328] sm:$0xff]
    %v3881 = vld [vmem:[#allocation8 + $0x330] sm:$0xff]
    %v3882 = vld [vmem:[#allocation8 + $0x338] sm:$0xff]
    %v3883 = vld [vmem:[#allocation8 + $0x340] sm:$0xff]
    %v3884 = vld [vmem:[#allocation8 + $0x348] sm:$0xff]
    %v3885 = vld [vmem:[#allocation8 + $0x350] sm:$0xff]
    %v3886 = vld [vmem:[#allocation8 + $0x358] sm:$0xff]
    %v3887 = vld [vmem:[#allocation8 + $0x360] sm:$0xff]
    %v3888 = vld [vmem:[#allocation8 + $0x368] sm:$0xff]
    %v3889 = vld [vmem:[#allocation8 + $0x370] sm:$0xff]
    %v3890 = vld [vmem:[#allocation8 + $0x378] sm:$0xff]
    %v3891 = vld [vmem:[#allocation8 + $0x380] sm:$0xff]
    %v3892 = vld [vmem:[#allocation8 + $0x388] sm:$0xff]
    %v3893 = vld [vmem:[#allocation8 + $0x390] sm:$0xff]
    %v3894 = vld [vmem:[#allocation8 + $0x398] sm:$0xff]
    %v3895 = vld [vmem:[#allocation8 + $0x3a0] sm:$0xff]
    %v3896 = vld [vmem:[#allocation8 + $0x3a8] sm:$0xff]
    %v3897 = vld [vmem:[#allocation8 + $0x3b0] sm:$0xff]
    %v3898 = vld [vmem:[#allocation8 + $0x3b8] sm:$0xff]
    %v3899 = vld [vmem:[#allocation8 + $0x3c0] sm:$0xff]
    %v3900 = vld [vmem:[#allocation8 + $0x3c8] sm:$0xff]
    %v3901 = vld [vmem:[#allocation8 + $0x3d0] sm:$0xff]
    %v3902 = vld [vmem:[#allocation8 + $0x3d8] sm:$0xff]
    %v3903 = vld [vmem:[#allocation8 + $0x3e0] sm:$0xff]
    %v3904 = vld [vmem:[#allocation8 + $0x3e8] sm:$0xff]
    %v3905 = vld [vmem:[#allocation8 + $0x3f0] sm:$0xff]
    %v3906 = vld [vmem:[#allocation8 + $0x3f8] sm:$0xff]
    %v3907 = vpack.c.bf16 %v3773, %v3773
    %v3908 = vpack.c.bf16 %v3774, %v3774
    %v3909 = vpack.c.bf16 %v3775, %v3775
    %v3910 = vpack.c.bf16 %v3776, %v3776
    %v3911 = vld [vmem:[#allocation40] sm:$0xf]
    %v3913 = vlaneseq
    %v3914 = vshrl.u32 %v3913, 7
    %v3915 = vsub.s32 0, %v3914
    %v3916 = vrot.slane %v3911, %v3915
    %v3917 = vlaneseq
    %v3918 = vshrl.u32 %v3917, 7
    %v3919 = vsub.s32 1, %v3918
    %v3920 = vrot.slane %v3911, %v3919
    %v3921 = vlaneseq
    %v3922 = vshrl.u32 %v3921, 7
    %v3923 = vsub.s32 2, %v3922
    %v3924 = vrot.slane %v3911, %v3923
    %v3925 = vlaneseq
    %v3926 = vshrl.u32 %v3925, 7
    %v3927 = vsub.s32 3, %v3926
    %v3928 = vrot.slane %v3911, %v3927
    %v4061 = vunpack.c.l.b16 %v3779
    %v4062 = vunpack.c.h.b16 %v3779
    %v4063 = vunpack.c.l.b16 %v3780
    %v4064 = vunpack.c.h.b16 %v3780
    %v4065 = vunpack.c.l.b16 %v3781
    %v4066 = vunpack.c.h.b16 %v3781
    %v4067 = vunpack.c.l.b16 %v3782
    %v4068 = vunpack.c.h.b16 %v3782
    %v4069 = vunpack.c.l.b16 %v3783
    %v4070 = vunpack.c.h.b16 %v3783
    %v4071 = vunpack.c.l.b16 %v3784
    %v4072 = vunpack.c.h.b16 %v3784
    %v4073 = vunpack.c.l.b16 %v3785
    %v4074 = vunpack.c.h.b16 %v3785
    %v4075 = vunpack.c.l.b16 %v3786
    %v4076 = vunpack.c.h.b16 %v3786
    %v4077 = vunpack.c.l.b16 %v3787
    %v4078 = vunpack.c.h.b16 %v3787
    %v4079 = vunpack.c.l.b16 %v3788
    %v4080 = vunpack.c.h.b16 %v3788
    %v4081 = vunpack.c.l.b16 %v3789
    %v4082 = vunpack.c.h.b16 %v3789
    %v4083 = vunpack.c.l.b16 %v3790
    %v4084 = vunpack.c.h.b16 %v3790
    %v4085 = vunpack.c.l.b16 %v3791
    %v4086 = vunpack.c.h.b16 %v3791
    %v4087 = vunpack.c.l.b16 %v3792
    %v4088 = vunpack.c.h.b16 %v3792
    %v4089 = vunpack.c.l.b16 %v3793
    %v4090 = vunpack.c.h.b16 %v3793
    %v4091 = vunpack.c.l.b16 %v3794
    %v4092 = vunpack.c.h.b16 %v3794
    %v4093 = vunpack.c.l.b16 %v3795
    %v4094 = vunpack.c.h.b16 %v3795
    %v4095 = vunpack.c.l.b16 %v3796
    %v4096 = vunpack.c.h.b16 %v3796
    %v4097 = vunpack.c.l.b16 %v3797
    %v4098 = vunpack.c.h.b16 %v3797
    %v4099 = vunpack.c.l.b16 %v3798
    %v4100 = vunpack.c.h.b16 %v3798
    %v4101 = vunpack.c.l.b16 %v3799
    %v4102 = vunpack.c.h.b16 %v3799
    %v4103 = vunpack.c.l.b16 %v3800
    %v4104 = vunpack.c.h.b16 %v3800
    %v4105 = vunpack.c.l.b16 %v3801
    %v4106 = vunpack.c.h.b16 %v3801
    %v4107 = vunpack.c.l.b16 %v3802
    %v4108 = vunpack.c.h.b16 %v3802
    %v4109 = vunpack.c.l.b16 %v3803
    %v4110 = vunpack.c.h.b16 %v3803
    %v4111 = vunpack.c.l.b16 %v3804
    %v4112 = vunpack.c.h.b16 %v3804
    %v4113 = vunpack.c.l.b16 %v3805
    %v4114 = vunpack.c.h.b16 %v3805
    %v4115 = vunpack.c.l.b16 %v3806
    %v4116 = vunpack.c.h.b16 %v3806
    %v4117 = vunpack.c.l.b16 %v3807
    %v4118 = vunpack.c.h.b16 %v3807
    %v4119 = vunpack.c.l.b16 %v3808
    %v4120 = vunpack.c.h.b16 %v3808
    %v4121 = vunpack.c.l.b16 %v3809
    %v4122 = vunpack.c.h.b16 %v3809
    %v4123 = vunpack.c.l.b16 %v3810
    %v4124 = vunpack.c.h.b16 %v3810
    %v4125 = vunpack.c.l.b16 %v3811
    %v4126 = vunpack.c.h.b16 %v3811
    %v4127 = vunpack.c.l.b16 %v3812
    %v4128 = vunpack.c.h.b16 %v3812
    %v4129 = vunpack.c.l.b16 %v3813
    %v4130 = vunpack.c.h.b16 %v3813
    %v4131 = vunpack.c.l.b16 %v3814
    %v4132 = vunpack.c.h.b16 %v3814
    %v4133 = vunpack.c.l.b16 %v3815
    %v4134 = vunpack.c.h.b16 %v3815
    %v4135 = vunpack.c.l.b16 %v3816
    %v4136 = vunpack.c.h.b16 %v3816
    %v4137 = vunpack.c.l.b16 %v3817
    %v4138 = vunpack.c.h.b16 %v3817
    %v4139 = vunpack.c.l.b16 %v3818
    %v4140 = vunpack.c.h.b16 %v3818
    %v4141 = vunpack.c.l.b16 %v3819
    %v4142 = vunpack.c.h.b16 %v3819
    %v4143 = vunpack.c.l.b16 %v3820
    %v4144 = vunpack.c.h.b16 %v3820
    %v4145 = vunpack.c.l.b16 %v3821
    %v4146 = vunpack.c.h.b16 %v3821
    %v4147 = vunpack.c.l.b16 %v3822
    %v4148 = vunpack.c.h.b16 %v3822
    %v4149 = vunpack.c.l.b16 %v3823
    %v4150 = vunpack.c.h.b16 %v3823
    %v4151 = vunpack.c.l.b16 %v3824
    %v4152 = vunpack.c.h.b16 %v3824
    %v4153 = vunpack.c.l.b16 %v3825
    %v4154 = vunpack.c.h.b16 %v3825
    %v4155 = vunpack.c.l.b16 %v3826
    %v4156 = vunpack.c.h.b16 %v3826
    %v4157 = vunpack.c.l.b16 %v3827
    %v4158 = vunpack.c.h.b16 %v3827
    %v4159 = vunpack.c.l.b16 %v3828
    %v4160 = vunpack.c.h.b16 %v3828
    %v4161 = vunpack.c.l.b16 %v3829
    %v4162 = vunpack.c.h.b16 %v3829
    %v4163 = vunpack.c.l.b16 %v3830
    %v4164 = vunpack.c.h.b16 %v3830
    %v4165 = vunpack.c.l.b16 %v3831
    %v4166 = vunpack.c.h.b16 %v3831
    %v4167 = vunpack.c.l.b16 %v3832
    %v4168 = vunpack.c.h.b16 %v3832
    %v4169 = vunpack.c.l.b16 %v3833
    %v4170 = vunpack.c.h.b16 %v3833
    %v4171 = vunpack.c.l.b16 %v3834
    %v4172 = vunpack.c.h.b16 %v3834
    %v4173 = vunpack.c.l.b16 %v3835
    %v4174 = vunpack.c.h.b16 %v3835
    %v4175 = vunpack.c.l.b16 %v3836
    %v4176 = vunpack.c.h.b16 %v3836
    %v4177 = vunpack.c.l.b16 %v3837
    %v4178 = vunpack.c.h.b16 %v3837
    %v4179 = vunpack.c.l.b16 %v3838
    %v4180 = vunpack.c.h.b16 %v3838
    %v4181 = vunpack.c.l.b16 %v3839
    %v4182 = vunpack.c.h.b16 %v3839
    %v4183 = vunpack.c.l.b16 %v3840
    %v4184 = vunpack.c.h.b16 %v3840
    %v4185 = vunpack.c.l.b16 %v3841
    %v4186 = vunpack.c.h.b16 %v3841
    %v4187 = vunpack.c.l.b16 %v3842
    %v4188 = vunpack.c.h.b16 %v3842
    %v4189 = vunpack.c.l.b16 %v3843
    %v4190 = vunpack.c.h.b16 %v3843
    %v4191 = vunpack.c.l.b16 %v3844
    %v4192 = vunpack.c.h.b16 %v3844
    %v4193 = vunpack.c.l.b16 %v3845
    %v4194 = vunpack.c.h.b16 %v3845
    %v4195 = vunpack.c.l.b16 %v3846
    %v4196 = vunpack.c.h.b16 %v3846
    %v4197 = vunpack.c.l.b16 %v3847
    %v4198 = vunpack.c.h.b16 %v3847
    %v4199 = vunpack.c.l.b16 %v3848
    %v4200 = vunpack.c.h.b16 %v3848
    %v4201 = vunpack.c.l.b16 %v3849
    %v4202 = vunpack.c.h.b16 %v3849
    %v4203 = vunpack.c.l.b16 %v3850
    %v4204 = vunpack.c.h.b16 %v3850
    %v4205 = vunpack.c.l.b16 %v3851
    %v4206 = vunpack.c.h.b16 %v3851
    %v4207 = vunpack.c.l.b16 %v3852
    %v4208 = vunpack.c.h.b16 %v3852
    %v4209 = vunpack.c.l.b16 %v3853
    %v4210 = vunpack.c.h.b16 %v3853
    %v4211 = vunpack.c.l.b16 %v3854
    %v4212 = vunpack.c.h.b16 %v3854
    %v4213 = vunpack.c.l.b16 %v3855
    %v4214 = vunpack.c.h.b16 %v3855
    %v4215 = vunpack.c.l.b16 %v3856
    %v4216 = vunpack.c.h.b16 %v3856
    %v4217 = vunpack.c.l.b16 %v3857
    %v4218 = vunpack.c.h.b16 %v3857
    %v4219 = vunpack.c.l.b16 %v3858
    %v4220 = vunpack.c.h.b16 %v3858
    %v4221 = vunpack.c.l.b16 %v3859
    %v4222 = vunpack.c.h.b16 %v3859
    %v4223 = vunpack.c.l.b16 %v3860
    %v4224 = vunpack.c.h.b16 %v3860
    %v4225 = vunpack.c.l.b16 %v3861
    %v4226 = vunpack.c.h.b16 %v3861
    %v4227 = vunpack.c.l.b16 %v3862
    %v4228 = vunpack.c.h.b16 %v3862
    %v4229 = vunpack.c.l.b16 %v3863
    %v4230 = vunpack.c.h.b16 %v3863
    %v4231 = vunpack.c.l.b16 %v3864
    %v4232 = vunpack.c.h.b16 %v3864
    %v4233 = vunpack.c.l.b16 %v3865
    %v4234 = vunpack.c.h.b16 %v3865
    %v4235 = vunpack.c.l.b16 %v3866
    %v4236 = vunpack.c.h.b16 %v3866
    %v4237 = vunpack.c.l.b16 %v3867
    %v4238 = vunpack.c.h.b16 %v3867
    %v4239 = vunpack.c.l.b16 %v3868
    %v4240 = vunpack.c.h.b16 %v3868
    %v4241 = vunpack.c.l.b16 %v3869
    %v4242 = vunpack.c.h.b16 %v3869
    %v4243 = vunpack.c.l.b16 %v3870
    %v4244 = vunpack.c.h.b16 %v3870
    %v4245 = vunpack.c.l.b16 %v3871
    %v4246 = vunpack.c.h.b16 %v3871
    %v4247 = vunpack.c.l.b16 %v3872
    %v4248 = vunpack.c.h.b16 %v3872
    %v4249 = vunpack.c.l.b16 %v3873
    %v4250 = vunpack.c.h.b16 %v3873
    %v4251 = vunpack.c.l.b16 %v3874
    %v4252 = vunpack.c.h.b16 %v3874
    %v4253 = vunpack.c.l.b16 %v3875
    %v4254 = vunpack.c.h.b16 %v3875
    %v4255 = vunpack.c.l.b16 %v3876
    %v4256 = vunpack.c.h.b16 %v3876
    %v4257 = vunpack.c.l.b16 %v3877
    %v4258 = vunpack.c.h.b16 %v3877
    %v4259 = vunpack.c.l.b16 %v3878
    %v4260 = vunpack.c.h.b16 %v3878
    %v4261 = vunpack.c.l.b16 %v3879
    %v4262 = vunpack.c.h.b16 %v3879
    %v4263 = vunpack.c.l.b16 %v3880
    %v4264 = vunpack.c.h.b16 %v3880
    %v4265 = vunpack.c.l.b16 %v3881
    %v4266 = vunpack.c.h.b16 %v3881
    %v4267 = vunpack.c.l.b16 %v3882
    %v4268 = vunpack.c.h.b16 %v3882
    %v4269 = vunpack.c.l.b16 %v3883
    %v4270 = vunpack.c.h.b16 %v3883
    %v4271 = vunpack.c.l.b16 %v3884
    %v4272 = vunpack.c.h.b16 %v3884
    %v4273 = vunpack.c.l.b16 %v3885
    %v4274 = vunpack.c.h.b16 %v3885
    %v4275 = vunpack.c.l.b16 %v3886
    %v4276 = vunpack.c.h.b16 %v3886
    %v4277 = vunpack.c.l.b16 %v3887
    %v4278 = vunpack.c.h.b16 %v3887
    %v4279 = vunpack.c.l.b16 %v3888
    %v4280 = vunpack.c.h.b16 %v3888
    %v4281 = vunpack.c.l.b16 %v3889
    %v4282 = vunpack.c.h.b16 %v3889
    %v4283 = vunpack.c.l.b16 %v3890
    %v4284 = vunpack.c.h.b16 %v3890
    %v4285 = vunpack.c.l.b16 %v3891
    %v4286 = vunpack.c.h.b16 %v3891
    %v4287 = vunpack.c.l.b16 %v3892
    %v4288 = vunpack.c.h.b16 %v3892
    %v4289 = vunpack.c.l.b16 %v3893
    %v4290 = vunpack.c.h.b16 %v3893
    %v4291 = vunpack.c.l.b16 %v3894
    %v4292 = vunpack.c.h.b16 %v3894
    %v4293 = vunpack.c.l.b16 %v3895
    %v4294 = vunpack.c.h.b16 %v3895
    %v4295 = vunpack.c.l.b16 %v3896
    %v4296 = vunpack.c.h.b16 %v3896
    %v4297 = vunpack.c.l.b16 %v3897
    %v4298 = vunpack.c.h.b16 %v3897
    %v4299 = vunpack.c.l.b16 %v3898
    %v4300 = vunpack.c.h.b16 %v3898
    %v4301 = vunpack.c.l.b16 %v3899
    %v4302 = vunpack.c.h.b16 %v3899
    %v4303 = vunpack.c.l.b16 %v3900
    %v4304 = vunpack.c.h.b16 %v3900
    %v4305 = vunpack.c.l.b16 %v3901
    %v4306 = vunpack.c.h.b16 %v3901
    %v4307 = vunpack.c.l.b16 %v3902
    %v4308 = vunpack.c.h.b16 %v3902
    %v4309 = vunpack.c.l.b16 %v3903
    %v4310 = vunpack.c.h.b16 %v3903
    %v4311 = vunpack.c.l.b16 %v3904
    %v4312 = vunpack.c.h.b16 %v3904
    %v4313 = vunpack.c.l.b16 %v3905
    %v4314 = vunpack.c.h.b16 %v3905
    %v4315 = vunpack.c.l.b16 %v3906
    %v4316 = vunpack.c.h.b16 %v3906
    %v4317 = vpack.c.b16 %v4065, %v4061
    %v4318 = vpack.c.b16 %v4066, %v4062
    %v4319 = vpack.c.b16 %v4067, %v4063
    %v4320 = vpack.c.b16 %v4068, %v4064
    %v4321 = vpack.c.b16 %v4073, %v4069
    %v4322 = vpack.c.b16 %v4074, %v4070
    %v4323 = vpack.c.b16 %v4075, %v4071
    %v4324 = vpack.c.b16 %v4076, %v4072
    %v4325 = vpack.c.b16 %v4081, %v4077
    %v4326 = vpack.c.b16 %v4082, %v4078
    %v4327 = vpack.c.b16 %v4083, %v4079
    %v4328 = vpack.c.b16 %v4084, %v4080
    %v4329 = vpack.c.b16 %v4089, %v4085
    %v4330 = vpack.c.b16 %v4090, %v4086
    %v4331 = vpack.c.b16 %v4091, %v4087
    %v4332 = vpack.c.b16 %v4092, %v4088
    %v4333 = vpack.c.b16 %v4097, %v4093
    %v4334 = vpack.c.b16 %v4098, %v4094
    %v4335 = vpack.c.b16 %v4099, %v4095
    %v4336 = vpack.c.b16 %v4100, %v4096
    %v4337 = vpack.c.b16 %v4105, %v4101
    %v4338 = vpack.c.b16 %v4106, %v4102
    %v4339 = vpack.c.b16 %v4107, %v4103
    %v4340 = vpack.c.b16 %v4108, %v4104
    %v4341 = vpack.c.b16 %v4113, %v4109
    %v4342 = vpack.c.b16 %v4114, %v4110
    %v4343 = vpack.c.b16 %v4115, %v4111
    %v4344 = vpack.c.b16 %v4116, %v4112
    %v4345 = vpack.c.b16 %v4121, %v4117
    %v4346 = vpack.c.b16 %v4122, %v4118
    %v4347 = vpack.c.b16 %v4123, %v4119
    %v4348 = vpack.c.b16 %v4124, %v4120
    %v4349 = vpack.c.b16 %v4129, %v4125
    %v4350 = vpack.c.b16 %v4130, %v4126
    %v4351 = vpack.c.b16 %v4131, %v4127
    %v4352 = vpack.c.b16 %v4132, %v4128
    %v4353 = vpack.c.b16 %v4137, %v4133
    %v4354 = vpack.c.b16 %v4138, %v4134
    %v4355 = vpack.c.b16 %v4139, %v4135
    %v4356 = vpack.c.b16 %v4140, %v4136
    %v4357 = vpack.c.b16 %v4145, %v4141
    %v4358 = vpack.c.b16 %v4146, %v4142
    %v4359 = vpack.c.b16 %v4147, %v4143
    %v4360 = vpack.c.b16 %v4148, %v4144
    %v4361 = vpack.c.b16 %v4153, %v4149
    %v4362 = vpack.c.b16 %v4154, %v4150
    %v4363 = vpack.c.b16 %v4155, %v4151
    %v4364 = vpack.c.b16 %v4156, %v4152
    %v4365 = vpack.c.b16 %v4161, %v4157
    %v4366 = vpack.c.b16 %v4162, %v4158
    %v4367 = vpack.c.b16 %v4163, %v4159
    %v4368 = vpack.c.b16 %v4164, %v4160
    %v4369 = vpack.c.b16 %v4169, %v4165
    %v4370 = vpack.c.b16 %v4170, %v4166
    %v4371 = vpack.c.b16 %v4171, %v4167
    %v4372 = vpack.c.b16 %v4172, %v4168
    %v4373 = vpack.c.b16 %v4177, %v4173
    %v4374 = vpack.c.b16 %v4178, %v4174
    %v4375 = vpack.c.b16 %v4179, %v4175
    %v4376 = vpack.c.b16 %v4180, %v4176
    %v4377 = vpack.c.b16 %v4185, %v4181
    %v4378 = vpack.c.b16 %v4186, %v4182
    %v4379 = vpack.c.b16 %v4187, %v4183
    %v4380 = vpack.c.b16 %v4188, %v4184
    %v4381 = vpack.c.b16 %v4193, %v4189
    %v4382 = vpack.c.b16 %v4194, %v4190
    %v4383 = vpack.c.b16 %v4195, %v4191
    %v4384 = vpack.c.b16 %v4196, %v4192
    %v4385 = vpack.c.b16 %v4201, %v4197
    %v4386 = vpack.c.b16 %v4202, %v4198
    %v4387 = vpack.c.b16 %v4203, %v4199
    %v4388 = vpack.c.b16 %v4204, %v4200
    %v4389 = vpack.c.b16 %v4209, %v4205
    %v4390 = vpack.c.b16 %v4210, %v4206
    %v4391 = vpack.c.b16 %v4211, %v4207
    %v4392 = vpack.c.b16 %v4212, %v4208
    %v4393 = vpack.c.b16 %v4217, %v4213
    %v4394 = vpack.c.b16 %v4218, %v4214
    %v4395 = vpack.c.b16 %v4219, %v4215
    %v4396 = vpack.c.b16 %v4220, %v4216
    %v4397 = vpack.c.b16 %v4225, %v4221
    %v4398 = vpack.c.b16 %v4226, %v4222
    %v4399 = vpack.c.b16 %v4227, %v4223
    %v4400 = vpack.c.b16 %v4228, %v4224
    %v4401 = vpack.c.b16 %v4233, %v4229
    %v4402 = vpack.c.b16 %v4234, %v4230
    %v4403 = vpack.c.b16 %v4235, %v4231
    %v4404 = vpack.c.b16 %v4236, %v4232
    %v4405 = vpack.c.b16 %v4241, %v4237
    %v4406 = vpack.c.b16 %v4242, %v4238
    %v4407 = vpack.c.b16 %v4243, %v4239
    %v4408 = vpack.c.b16 %v4244, %v4240
    %v4409 = vpack.c.b16 %v4249, %v4245
    %v4410 = vpack.c.b16 %v4250, %v4246
    %v4411 = vpack.c.b16 %v4251, %v4247
    %v4412 = vpack.c.b16 %v4252, %v4248
    %v4413 = vpack.c.b16 %v4257, %v4253
    %v4414 = vpack.c.b16 %v4258, %v4254
    %v4415 = vpack.c.b16 %v4259, %v4255
    %v4416 = vpack.c.b16 %v4260, %v4256
    %v4417 = vpack.c.b16 %v4265, %v4261
    %v4418 = vpack.c.b16 %v4266, %v4262
    %v4419 = vpack.c.b16 %v4267, %v4263
    %v4420 = vpack.c.b16 %v4268, %v4264
    %v4421 = vpack.c.b16 %v4273, %v4269
    %v4422 = vpack.c.b16 %v4274, %v4270
    %v4423 = vpack.c.b16 %v4275, %v4271
    %v4424 = vpack.c.b16 %v4276, %v4272
    %v4425 = vpack.c.b16 %v4281, %v4277
    %v4426 = vpack.c.b16 %v4282, %v4278
    %v4427 = vpack.c.b16 %v4283, %v4279
    %v4428 = vpack.c.b16 %v4284, %v4280
    %v4429 = vpack.c.b16 %v4289, %v4285
    %v4430 = vpack.c.b16 %v4290, %v4286
    %v4431 = vpack.c.b16 %v4291, %v4287
    %v4432 = vpack.c.b16 %v4292, %v4288
    %v4433 = vpack.c.b16 %v4297, %v4293
    %v4434 = vpack.c.b16 %v4298, %v4294
    %v4435 = vpack.c.b16 %v4299, %v4295
    %v4436 = vpack.c.b16 %v4300, %v4296
    %v4437 = vpack.c.b16 %v4305, %v4301
    %v4438 = vpack.c.b16 %v4306, %v4302
    %v4439 = vpack.c.b16 %v4307, %v4303
    %v4440 = vpack.c.b16 %v4308, %v4304
    %v4441 = vpack.c.b16 %v4313, %v4309
    %v4442 = vpack.c.b16 %v4314, %v4310
    %v4443 = vpack.c.b16 %v4315, %v4311
    %v4444 = vpack.c.b16 %v4316, %v4312
    %4573 = vmatprep.subr.bf16.mxu0 %v4346
    %4574 = vmatpush1.bf16.msra.mxu0 %v4345
    %4575 = vmatprep.subr.bf16.mxu0 %v4342
    %4576 = vmatpush1.bf16.msra.mxu0 %v4341
    %4577 = vmatprep.subr.bf16.mxu0 %v4338
    %4578 = vmatpush1.bf16.msra.mxu0 %v4337
    %4579 = vmatprep.subr.bf16.mxu0 %v4334
    %4580 = vmatpush1.bf16.msra.mxu0 %v4333
    %4581 = vmatprep.subr.bf16.mxu0 %v4330
    %4582 = vmatpush1.bf16.msra.mxu0 %v4329
    %4583 = vmatprep.subr.bf16.mxu0 %v4326
    %4584 = vmatpush1.bf16.msra.mxu0 %v4325
    %4585 = vmatprep.subr.bf16.mxu0 %v4322
    %4586 = vmatpush1.bf16.msra.mxu0 %v4321
    %4587 = vmatprep.subr.bf16.mxu0 %v4318
    %4588 = vmatpush1.bf16.msra.mxu0 %v4317
    %4589 = vmatprep.subr.bf16.mxu0 %v4378
    %4590 = vmatpush2.bf16.msra.mxu0 %v4377
    %4591 = vmatprep.subr.bf16.mxu0 %v4374
    %4592 = vmatpush2.bf16.msra.mxu0 %v4373
    %4593 = vmatprep.subr.bf16.mxu0 %v4370
    %4594 = vmatpush2.bf16.msra.mxu0 %v4369
    %4595 = vmatprep.subr.bf16.mxu0 %v4366
    %4596 = vmatpush2.bf16.msra.mxu0 %v4365
    %4597 = vmatprep.subr.bf16.mxu0 %v4362
    %4598 = vmatpush2.bf16.msra.mxu0 %v4361
    %4599 = vmatprep.subr.bf16.mxu0 %v4358
    %4600 = vmatpush2.bf16.msra.mxu0 %v4357
    %4601 = vmatprep.subr.bf16.mxu0 %v4354
    %4602 = vmatpush2.bf16.msra.mxu0 %v4353
    %4603 = vmatprep.subr.bf16.mxu0 %v4350
    %4604 = vmatpush2.bf16.msra.mxu0 %v4349
    %4605 = vmatprep.mubr.bf16.mxu0 %v3908
    %4606 = vmatmul.mubr.bf16.gmra.mxu0 %v3907
    %v4607 = vpop.f32.mrf.mxu0
    %v4608 = vadd.f32 %v3916, %v4607
    %v4609 = vpop.f32.mrf.mxu0
    %v4610 = vadd.f32 %v3920, %v4609
    %v4611 = vpop.f32.mrf.mxu0
    %v4612 = vpop.f32.mrf.mxu0
    %4613 = vdwg.mxu0
    %4614 = vmatprep.subr.bf16.mxu0 %v4410
    %4615 = vmatpush1.bf16.msra.mxu0 %v4409
    %4616 = vmatprep.subr.bf16.mxu0 %v4406
    %4617 = vmatpush1.bf16.msra.mxu0 %v4405
    %4618 = vmatprep.subr.bf16.mxu0 %v4402
    %4619 = vmatpush1.bf16.msra.mxu0 %v4401
    %4620 = vmatprep.subr.bf16.mxu0 %v4398
    %4621 = vmatpush1.bf16.msra.mxu0 %v4397
    %4622 = vmatprep.subr.bf16.mxu0 %v4394
    %4623 = vmatpush1.bf16.msra.mxu0 %v4393
    %4624 = vmatprep.subr.bf16.mxu0 %v4390
    %4625 = vmatpush1.bf16.msra.mxu0 %v4389
    %4626 = vmatprep.subr.bf16.mxu0 %v4386
    %4627 = vmatpush1.bf16.msra.mxu0 %v4385
    %4628 = vmatprep.subr.bf16.mxu0 %v4382
    %4629 = vmatpush1.bf16.msra.mxu0 %v4381
    %4630 = vmatprep.subr.bf16.mxu0 %v4442
    %4631 = vmatpush2.bf16.msra.mxu0 %v4441
    %4632 = vmatprep.subr.bf16.mxu0 %v4438
    %4633 = vmatpush2.bf16.msra.mxu0 %v4437
    %4634 = vmatprep.subr.bf16.mxu0 %v4434
    %4635 = vmatpush2.bf16.msra.mxu0 %v4433
    %4636 = vmatprep.subr.bf16.mxu0 %v4430
    %4637 = vmatpush2.bf16.msra.mxu0 %v4429
    %4638 = vmatprep.subr.bf16.mxu0 %v4426
    %4639 = vmatpush2.bf16.msra.mxu0 %v4425
    %4640 = vmatprep.subr.bf16.mxu0 %v4422
    %4641 = vmatpush2.bf16.msra.mxu0 %v4421
    %4642 = vmatprep.subr.bf16.mxu0 %v4418
    %4643 = vmatpush2.bf16.msra.mxu0 %v4417
    %4644 = vmatprep.subr.bf16.mxu0 %v4414
    %4645 = vmatpush2.bf16.msra.mxu0 %v4413
    %4646 = vmatprep.mubr.bf16.mxu0 %v3910
    %4647 = vmatmul.mubr.bf16.gmra.mxu0 %v3909
    %v4648 = vpop.f32.mrf.mxu0
    %v4649 = vadd.f32 %v4608, %v4648
    %v4650 = vpop.f32.mrf.mxu0
    %v4651 = vadd.f32 %v4610, %v4650
    %v4652 = vpop.f32.mrf.mxu0
    %v4653 = vpop.f32.mrf.mxu0
    %4654 = vdwg.mxu0
    %4655 = vmatprep.subr.bf16.mxu0 %v4348
    %4656 = vmatpush1.bf16.msra.mxu0 %v4347
    %4657 = vmatprep.subr.bf16.mxu0 %v4344
    %4658 = vmatpush1.bf16.msra.mxu0 %v4343
    %4659 = vmatprep.subr.bf16.mxu0 %v4340
    %4660 = vmatpush1.bf16.msra.mxu0 %v4339
    %4661 = vmatprep.subr.bf16.mxu0 %v4336
    %4662 = vmatpush1.bf16.msra.mxu0 %v4335
    %4663 = vmatprep.subr.bf16.mxu0 %v4332
    %4664 = vmatpush1.bf16.msra.mxu0 %v4331
    %4665 = vmatprep.subr.bf16.mxu0 %v4328
    %4666 = vmatpush1.bf16.msra.mxu0 %v4327
    %4667 = vmatprep.subr.bf16.mxu0 %v4324
    %4668 = vmatpush1.bf16.msra.mxu0 %v4323
    %4669 = vmatprep.subr.bf16.mxu0 %v4320
    %4670 = vmatpush1.bf16.msra.mxu0 %v4319
    %4671 = vmatprep.subr.bf16.mxu0 %v4380
    %4672 = vmatpush2.bf16.msra.mxu0 %v4379
    %4673 = vmatprep.subr.bf16.mxu0 %v4376
    %4674 = vmatpush2.bf16.msra.mxu0 %v4375
    %4675 = vmatprep.subr.bf16.mxu0 %v4372
    %4676 = vmatpush2.bf16.msra.mxu0 %v4371
    %4677 = vmatprep.subr.bf16.mxu0 %v4368
    %4678 = vmatpush2.bf16.msra.mxu0 %v4367
    %4679 = vmatprep.subr.bf16.mxu0 %v4364
    %4680 = vmatpush2.bf16.msra.mxu0 %v4363
    %4681 = vmatprep.subr.bf16.mxu0 %v4360
    %4682 = vmatpush2.bf16.msra.mxu0 %v4359
    %4683 = vmatprep.subr.bf16.mxu0 %v4356
    %4684 = vmatpush2.bf16.msra.mxu0 %v4355
    %4685 = vmatprep.subr.bf16.mxu0 %v4352
    %4686 = vmatpush2.bf16.msra.mxu0 %v4351
    %4687 = vmatprep.mubr.bf16.mxu0 %v3908
    %4688 = vmatmul.mubr.bf16.gmra.mxu0 %v3907
    %v4689 = vpop.f32.mrf.mxu0
    %v4690 = vadd.f32 %v3924, %v4689
    %v4691 = vpop.f32.mrf.mxu0
    %v4692 = vadd.f32 %v3928, %v4691
    %v4693 = vpop.f32.mrf.mxu0
    %v4694 = vpop.f32.mrf.mxu0
    %4695 = vdwg.mxu0
    %4696 = vmatprep.subr.bf16.mxu0 %v4412
    %4697 = vmatpush1.bf16.msra.mxu0 %v4411
    %4698 = vmatprep.subr.bf16.mxu0 %v4408
    %4699 = vmatpush1.bf16.msra.mxu0 %v4407
    %4700 = vmatprep.subr.bf16.mxu0 %v4404
    %4701 = vmatpush1.bf16.msra.mxu0 %v4403
    %4702 = vmatprep.subr.bf16.mxu0 %v4400
    %4703 = vmatpush1.bf16.msra.mxu0 %v4399
    %4704 = vmatprep.subr.bf16.mxu0 %v4396
    %4705 = vmatpush1.bf16.msra.mxu0 %v4395
    %4706 = vmatprep.subr.bf16.mxu0 %v4392
    %4707 = vmatpush1.bf16.msra.mxu0 %v4391
    %4708 = vmatprep.subr.bf16.mxu0 %v4388
    %4709 = vmatpush1.bf16.msra.mxu0 %v4387
    %4710 = vmatprep.subr.bf16.mxu0 %v4384
    %4711 = vmatpush1.bf16.msra.mxu0 %v4383
    %4712 = vmatprep.subr.bf16.mxu0 %v4444
    %4713 = vmatpush2.bf16.msra.mxu0 %v4443
    %4714 = vmatprep.subr.bf16.mxu0 %v4440
    %4715 = vmatpush2.bf16.msra.mxu0 %v4439
    %4716 = vmatprep.subr.bf16.mxu0 %v4436
    %4717 = vmatpush2.bf16.msra.mxu0 %v4435
    %4718 = vmatprep.subr.bf16.mxu0 %v4432
    %4719 = vmatpush2.bf16.msra.mxu0 %v4431
    %4720 = vmatprep.subr.bf16.mxu0 %v4428
    %4721 = vmatpush2.bf16.msra.mxu0 %v4427
    %4722 = vmatprep.subr.bf16.mxu0 %v4424
    %4723 = vmatpush2.bf16.msra.mxu0 %v4423
    %4724 = vmatprep.subr.bf16.mxu0 %v4420
    %4725 = vmatpush2.bf16.msra.mxu0 %v4419
    %4726 = vmatprep.subr.bf16.mxu0 %v4416
    %4727 = vmatpush2.bf16.msra.mxu0 %v4415
    %4728 = vmatprep.mubr.bf16.mxu0 %v3910
    %4729 = vmatmul.mubr.bf16.gmra.mxu0 %v3909
    %v4730 = vpop.f32.mrf.mxu0
    %v4731 = vadd.f32 %v4690, %v4730
    %v4732 = vpop.f32.mrf.mxu0
    %v4733 = vadd.f32 %v4692, %v4732
    %v4734 = vpop.f32.mrf.mxu0
    %v4735 = vpop.f32.mrf.mxu0
    %4736 = vdwg.mxu0
    %v4737 = vmul.f32 %v4649, 0.5
    %v4738 = vmul.f32 %v4651, 0.5
    %v4739 = vmul.f32 %v4731, 0.5
    %v4740 = vmul.f32 %v4733, 0.5
    %v4741 = vmul.f32 %v4649, 0.70710677
    %v4742 = vmul.f32 %v4651, 0.70710677
    %v4743 = vmul.f32 %v4731, 0.70710677
    %v4744 = vmul.f32 %v4733, 0.70710677
    %v4745 = verf.f32.pop %v4741
    %v4746 = verf.f32.pop %v4742
    %v4747 = verf.f32.pop %v4743
    %v4748 = verf.f32.pop %v4744
    %v4749 = vadd.f32 %v4745, 1.0
    %v4750 = vadd.f32 %v4746, 1.0
    %v4751 = vadd.f32 %v4747, 1.0
    %v4752 = vadd.f32 %v4748, 1.0
    %v4753 = vmul.f32 %v4737, %v4749
    %v4754 = vmul.f32 %v4738, %v4750
    %v4755 = vmul.f32 %v4739, %v4751
    %v4756 = vmul.f32 %v4740, %v4752
    %v4757 = vld [vmem:[#allocation41] sm:$0xf]
    %v4758 = vld [vmem:[#allocation43] sm:$0xf]
    %v4759 = vadd.f32 %v4753, %v4754
    %v4760 = vadd.f32 %v4759, %v4755
    %v4761 = vadd.f32 %v4760, %v4756
    %4762 = vadd.xlane.f32.xlu0 %v4761
    %v4763 = vpop.xlane.xlu0 %4762
    %v4764 = vmul.f32 %v4763, %v2647
    %v4765 = vsub.f32 %v4753, %v4764
    %v4766 = vsub.f32 %v4754, %v4764
    %v4767 = vsub.f32 %v4755, %v4764
    %v4768 = vsub.f32 %v4756, %v4764
    %v4769 = vmul.f32 %v4765, %v4765
    %v4770 = vmul.f32 %v4766, %v4766
    %v4771 = vmul.f32 %v4767, %v4767
    %v4772 = vmul.f32 %v4768, %v4768
    %v4773 = vadd.f32 %v4769, %v4770
    %v4774 = vadd.f32 %v4773, %v4771
    %v4775 = vadd.f32 %v4774, %v4772
    %4776 = vadd.xlane.f32.xlu0 %v4775
    %v4777 = vpop.xlane.xlu0 %4776
    %v4778 = vmul.f32 %v4777, %v2647
    %v4779 = vadd.f32 %v4778, 1e-05
    %v4780 = vrsqrt.pop %v4779
    %v4781 = vmul.f32 %v4765, %v4780
    %v4782 = vmul.f32 %v4766, %v4780
    %v4783 = vmul.f32 %v4767, %v4780
    %v4784 = vmul.f32 %v4768, %v4780
    %v4786 = vlaneseq
    %v4787 = vshrl.u32 %v4786, 7
    %v4788 = vsub.s32 0, %v4787
    %v4789 = vrot.slane %v4757, %v4788
    %v4790 = vlaneseq
    %v4791 = vshrl.u32 %v4790, 7
    %v4792 = vsub.s32 1, %v4791
    %v4793 = vrot.slane %v4757, %v4792
    %v4794 = vlaneseq
    %v4795 = vshrl.u32 %v4794, 7
    %v4796 = vsub.s32 2, %v4795
    %v4797 = vrot.slane %v4757, %v4796
    %v4798 = vlaneseq
    %v4799 = vshrl.u32 %v4798, 7
    %v4800 = vsub.s32 3, %v4799
    %v4801 = vrot.slane %v4757, %v4800
    %v4806 = vmul.f32 %v4781, %v4789
    %v4807 = vmul.f32 %v4782, %v4793
    %v4808 = vmul.f32 %v4783, %v4797
    %v4809 = vmul.f32 %v4784, %v4801
    %v4811 = vlaneseq
    %v4812 = vshrl.u32 %v4811, 7
    %v4813 = vsub.s32 0, %v4812
    %v4814 = vrot.slane %v4758, %v4813
    %v4815 = vlaneseq
    %v4816 = vshrl.u32 %v4815, 7
    %v4817 = vsub.s32 1, %v4816
    %v4818 = vrot.slane %v4758, %v4817
    %v4819 = vlaneseq
    %v4820 = vshrl.u32 %v4819, 7
    %v4821 = vsub.s32 2, %v4820
    %v4822 = vrot.slane %v4758, %v4821
    %v4823 = vlaneseq
    %v4824 = vshrl.u32 %v4823, 7
    %v4825 = vsub.s32 3, %v4824
    %v4826 = vrot.slane %v4758, %v4825
    %v4831 = vadd.f32 %v4806, %v4814
    %v4832 = vadd.f32 %v4807, %v4818
    %v4833 = vadd.f32 %v4808, %v4822
    %v4834 = vadd.f32 %v4809, %v4826
    %s4835 = smul.u32 %s804, 2
    %s4836 = sshll.u32 %s4835, 4
    %4837 = dma.done %s536, %s4836
    %v4838 = vld [vmem:[#allocation9] sm:$0xff]
    %v4839 = vld [vmem:[#allocation9 + $0x8] sm:$0xff]
    %v4840 = vld [vmem:[#allocation9 + $0x10] sm:$0xff]
    %v4841 = vld [vmem:[#allocation9 + $0x18] sm:$0xff]
    %v4842 = vld [vmem:[#allocation9 + $0x20] sm:$0xff]
    %v4843 = vld [vmem:[#allocation9 + $0x28] sm:$0xff]
    %v4844 = vld [vmem:[#allocation9 + $0x30] sm:$0xff]
    %v4845 = vld [vmem:[#allocation9 + $0x38] sm:$0xff]
    %v4846 = vld [vmem:[#allocation9 + $0x40] sm:$0xff]
    %v4847 = vld [vmem:[#allocation9 + $0x48] sm:$0xff]
    %v4848 = vld [vmem:[#allocation9 + $0x50] sm:$0xff]
    %v4849 = vld [vmem:[#allocation9 + $0x58] sm:$0xff]
    %v4850 = vld [vmem:[#allocation9 + $0x60] sm:$0xff]
    %v4851 = vld [vmem:[#allocation9 + $0x68] sm:$0xff]
    %v4852 = vld [vmem:[#allocation9 + $0x70] sm:$0xff]
    %v4853 = vld [vmem:[#allocation9 + $0x78] sm:$0xff]
    %v4854 = vld [vmem:[#allocation9 + $0x80] sm:$0xff]
    %v4855 = vld [vmem:[#allocation9 + $0x88] sm:$0xff]
    %v4856 = vld [vmem:[#allocation9 + $0x90] sm:$0xff]
    %v4857 = vld [vmem:[#allocation9 + $0x98] sm:$0xff]
    %v4858 = vld [vmem:[#allocation9 + $0xa0] sm:$0xff]
    %v4859 = vld [vmem:[#allocation9 + $0xa8] sm:$0xff]
    %v4860 = vld [vmem:[#allocation9 + $0xb0] sm:$0xff]
    %v4861 = vld [vmem:[#allocation9 + $0xb8] sm:$0xff]
    %v4862 = vld [vmem:[#allocation9 + $0xc0] sm:$0xff]
    %v4863 = vld [vmem:[#allocation9 + $0xc8] sm:$0xff]
    %v4864 = vld [vmem:[#allocation9 + $0xd0] sm:$0xff]
    %v4865 = vld [vmem:[#allocation9 + $0xd8] sm:$0xff]
    %v4866 = vld [vmem:[#allocation9 + $0xe0] sm:$0xff]
    %v4867 = vld [vmem:[#allocation9 + $0xe8] sm:$0xff]
    %v4868 = vld [vmem:[#allocation9 + $0xf0] sm:$0xff]
    %v4869 = vld [vmem:[#allocation9 + $0xf8] sm:$0xff]
    %v4870 = vld [vmem:[#allocation9 + $0x100] sm:$0xff]
    %v4871 = vld [vmem:[#allocation9 + $0x108] sm:$0xff]
    %v4872 = vld [vmem:[#allocation9 + $0x110] sm:$0xff]
    %v4873 = vld [vmem:[#allocation9 + $0x118] sm:$0xff]
    %v4874 = vld [vmem:[#allocation9 + $0x120] sm:$0xff]
    %v4875 = vld [vmem:[#allocation9 + $0x128] sm:$0xff]
    %v4876 = vld [vmem:[#allocation9 + $0x130] sm:$0xff]
    %v4877 = vld [vmem:[#allocation9 + $0x138] sm:$0xff]
    %v4878 = vld [vmem:[#allocation9 + $0x140] sm:$0xff]
    %v4879 = vld [vmem:[#allocation9 + $0x148] sm:$0xff]
    %v4880 = vld [vmem:[#allocation9 + $0x150] sm:$0xff]
    %v4881 = vld [vmem:[#allocation9 + $0x158] sm:$0xff]
    %v4882 = vld [vmem:[#allocation9 + $0x160] sm:$0xff]
    %v4883 = vld [vmem:[#allocation9 + $0x168] sm:$0xff]
    %v4884 = vld [vmem:[#allocation9 + $0x170] sm:$0xff]
    %v4885 = vld [vmem:[#allocation9 + $0x178] sm:$0xff]
    %v4886 = vld [vmem:[#allocation9 + $0x180] sm:$0xff]
    %v4887 = vld [vmem:[#allocation9 + $0x188] sm:$0xff]
    %v4888 = vld [vmem:[#allocation9 + $0x190] sm:$0xff]
    %v4889 = vld [vmem:[#allocation9 + $0x198] sm:$0xff]
    %v4890 = vld [vmem:[#allocation9 + $0x1a0] sm:$0xff]
    %v4891 = vld [vmem:[#allocation9 + $0x1a8] sm:$0xff]
    %v4892 = vld [vmem:[#allocation9 + $0x1b0] sm:$0xff]
    %v4893 = vld [vmem:[#allocation9 + $0x1b8] sm:$0xff]
    %v4894 = vld [vmem:[#allocation9 + $0x1c0] sm:$0xff]
    %v4895 = vld [vmem:[#allocation9 + $0x1c8] sm:$0xff]
    %v4896 = vld [vmem:[#allocation9 + $0x1d0] sm:$0xff]
    %v4897 = vld [vmem:[#allocation9 + $0x1d8] sm:$0xff]
    %v4898 = vld [vmem:[#allocation9 + $0x1e0] sm:$0xff]
    %v4899 = vld [vmem:[#allocation9 + $0x1e8] sm:$0xff]
    %v4900 = vld [vmem:[#allocation9 + $0x1f0] sm:$0xff]
    %v4901 = vld [vmem:[#allocation9 + $0x1f8] sm:$0xff]
    %v4902 = vpack.c.bf16 %v4831, %v4831
    %v4903 = vpack.c.bf16 %v4832, %v4832
    %v4904 = vpack.c.bf16 %v4833, %v4833
    %v4905 = vpack.c.bf16 %v4834, %v4834
    %v4906 = vld [vmem:[%s73] sm:$0x3]
    %v4908 = vlaneseq
    %v4909 = vshrl.u32 %v4908, 7
    %v4910 = vsub.s32 0, %v4909
    %v4911 = vrot.slane %v4906, %v4910
    %v4912 = vlaneseq
    %v4913 = vshrl.u32 %v4912, 7
    %v4914 = vsub.s32 1, %v4913
    %v4915 = vrot.slane %v4906, %v4914
    %v4982 = vunpack.c.l.b16 %v4838
    %v4983 = vunpack.c.h.b16 %v4838
    %v4984 = vunpack.c.l.b16 %v4839
    %v4985 = vunpack.c.h.b16 %v4839
    %v4986 = vunpack.c.l.b16 %v4840
    %v4987 = vunpack.c.h.b16 %v4840
    %v4988 = vunpack.c.l.b16 %v4841
    %v4989 = vunpack.c.h.b16 %v4841
    %v4990 = vunpack.c.l.b16 %v4842
    %v4991 = vunpack.c.h.b16 %v4842
    %v4992 = vunpack.c.l.b16 %v4843
    %v4993 = vunpack.c.h.b16 %v4843
    %v4994 = vunpack.c.l.b16 %v4844
    %v4995 = vunpack.c.h.b16 %v4844
    %v4996 = vunpack.c.l.b16 %v4845
    %v4997 = vunpack.c.h.b16 %v4845
    %v4998 = vunpack.c.l.b16 %v4846
    %v4999 = vunpack.c.h.b16 %v4846
    %v5000 = vunpack.c.l.b16 %v4847
    %v5001 = vunpack.c.h.b16 %v4847
    %v5002 = vunpack.c.l.b16 %v4848
    %v5003 = vunpack.c.h.b16 %v4848
    %v5004 = vunpack.c.l.b16 %v4849
    %v5005 = vunpack.c.h.b16 %v4849
    %v5006 = vunpack.c.l.b16 %v4850
    %v5007 = vunpack.c.h.b16 %v4850
    %v5008 = vunpack.c.l.b16 %v4851
    %v5009 = vunpack.c.h.b16 %v4851
    %v5010 = vunpack.c.l.b16 %v4852
    %v5011 = vunpack.c.h.b16 %v4852
    %v5012 = vunpack.c.l.b16 %v4853
    %v5013 = vunpack.c.h.b16 %v4853
    %v5014 = vunpack.c.l.b16 %v4854
    %v5015 = vunpack.c.h.b16 %v4854
    %v5016 = vunpack.c.l.b16 %v4855
    %v5017 = vunpack.c.h.b16 %v4855
    %v5018 = vunpack.c.l.b16 %v4856
    %v5019 = vunpack.c.h.b16 %v4856
    %v5020 = vunpack.c.l.b16 %v4857
    %v5021 = vunpack.c.h.b16 %v4857
    %v5022 = vunpack.c.l.b16 %v4858
    %v5023 = vunpack.c.h.b16 %v4858
    %v5024 = vunpack.c.l.b16 %v4859
    %v5025 = vunpack.c.h.b16 %v4859
    %v5026 = vunpack.c.l.b16 %v4860
    %v5027 = vunpack.c.h.b16 %v4860
    %v5028 = vunpack.c.l.b16 %v4861
    %v5029 = vunpack.c.h.b16 %v4861
    %v5030 = vunpack.c.l.b16 %v4862
    %v5031 = vunpack.c.h.b16 %v4862
    %v5032 = vunpack.c.l.b16 %v4863
    %v5033 = vunpack.c.h.b16 %v4863
    %v5034 = vunpack.c.l.b16 %v4864
    %v5035 = vunpack.c.h.b16 %v4864
    %v5036 = vunpack.c.l.b16 %v4865
    %v5037 = vunpack.c.h.b16 %v4865
    %v5038 = vunpack.c.l.b16 %v4866
    %v5039 = vunpack.c.h.b16 %v4866
    %v5040 = vunpack.c.l.b16 %v4867
    %v5041 = vunpack.c.h.b16 %v4867
    %v5042 = vunpack.c.l.b16 %v4868
    %v5043 = vunpack.c.h.b16 %v4868
    %v5044 = vunpack.c.l.b16 %v4869
    %v5045 = vunpack.c.h.b16 %v4869
    %v5046 = vunpack.c.l.b16 %v4870
    %v5047 = vunpack.c.h.b16 %v4870
    %v5048 = vunpack.c.l.b16 %v4871
    %v5049 = vunpack.c.h.b16 %v4871
    %v5050 = vunpack.c.l.b16 %v4872
    %v5051 = vunpack.c.h.b16 %v4872
    %v5052 = vunpack.c.l.b16 %v4873
    %v5053 = vunpack.c.h.b16 %v4873
    %v5054 = vunpack.c.l.b16 %v4874
    %v5055 = vunpack.c.h.b16 %v4874
    %v5056 = vunpack.c.l.b16 %v4875
    %v5057 = vunpack.c.h.b16 %v4875
    %v5058 = vunpack.c.l.b16 %v4876
    %v5059 = vunpack.c.h.b16 %v4876
    %v5060 = vunpack.c.l.b16 %v4877
    %v5061 = vunpack.c.h.b16 %v4877
    %v5062 = vunpack.c.l.b16 %v4878
    %v5063 = vunpack.c.h.b16 %v4878
    %v5064 = vunpack.c.l.b16 %v4879
    %v5065 = vunpack.c.h.b16 %v4879
    %v5066 = vunpack.c.l.b16 %v4880
    %v5067 = vunpack.c.h.b16 %v4880
    %v5068 = vunpack.c.l.b16 %v4881
    %v5069 = vunpack.c.h.b16 %v4881
    %v5070 = vunpack.c.l.b16 %v4882
    %v5071 = vunpack.c.h.b16 %v4882
    %v5072 = vunpack.c.l.b16 %v4883
    %v5073 = vunpack.c.h.b16 %v4883
    %v5074 = vunpack.c.l.b16 %v4884
    %v5075 = vunpack.c.h.b16 %v4884
    %v5076 = vunpack.c.l.b16 %v4885
    %v5077 = vunpack.c.h.b16 %v4885
    %v5078 = vunpack.c.l.b16 %v4886
    %v5079 = vunpack.c.h.b16 %v4886
    %v5080 = vunpack.c.l.b16 %v4887
    %v5081 = vunpack.c.h.b16 %v4887
    %v5082 = vunpack.c.l.b16 %v4888
    %v5083 = vunpack.c.h.b16 %v4888
    %v5084 = vunpack.c.l.b16 %v4889
    %v5085 = vunpack.c.h.b16 %v4889
    %v5086 = vunpack.c.l.b16 %v4890
    %v5087 = vunpack.c.h.b16 %v4890
    %v5088 = vunpack.c.l.b16 %v4891
    %v5089 = vunpack.c.h.b16 %v4891
    %v5090 = vunpack.c.l.b16 %v4892
    %v5091 = vunpack.c.h.b16 %v4892
    %v5092 = vunpack.c.l.b16 %v4893
    %v5093 = vunpack.c.h.b16 %v4893
    %v5094 = vunpack.c.l.b16 %v4894
    %v5095 = vunpack.c.h.b16 %v4894
    %v5096 = vunpack.c.l.b16 %v4895
    %v5097 = vunpack.c.h.b16 %v4895
    %v5098 = vunpack.c.l.b16 %v4896
    %v5099 = vunpack.c.h.b16 %v4896
    %v5100 = vunpack.c.l.b16 %v4897
    %v5101 = vunpack.c.h.b16 %v4897
    %v5102 = vunpack.c.l.b16 %v4898
    %v5103 = vunpack.c.h.b16 %v4898
    %v5104 = vunpack.c.l.b16 %v4899
    %v5105 = vunpack.c.h.b16 %v4899
    %v5106 = vunpack.c.l.b16 %v4900
    %v5107 = vunpack.c.h.b16 %v4900
    %v5108 = vunpack.c.l.b16 %v4901
    %v5109 = vunpack.c.h.b16 %v4901
    %v5110 = vpack.c.b16 %v4984, %v4982
    %v5111 = vpack.c.b16 %v4985, %v4983
    %v5112 = vpack.c.b16 %v4988, %v4986
    %v5113 = vpack.c.b16 %v4989, %v4987
    %v5114 = vpack.c.b16 %v4992, %v4990
    %v5115 = vpack.c.b16 %v4993, %v4991
    %v5116 = vpack.c.b16 %v4996, %v4994
    %v5117 = vpack.c.b16 %v4997, %v4995
    %v5118 = vpack.c.b16 %v5000, %v4998
    %v5119 = vpack.c.b16 %v5001, %v4999
    %v5120 = vpack.c.b16 %v5004, %v5002
    %v5121 = vpack.c.b16 %v5005, %v5003
    %v5122 = vpack.c.b16 %v5008, %v5006
    %v5123 = vpack.c.b16 %v5009, %v5007
    %v5124 = vpack.c.b16 %v5012, %v5010
    %v5125 = vpack.c.b16 %v5013, %v5011
    %v5126 = vpack.c.b16 %v5016, %v5014
    %v5127 = vpack.c.b16 %v5017, %v5015
    %v5128 = vpack.c.b16 %v5020, %v5018
    %v5129 = vpack.c.b16 %v5021, %v5019
    %v5130 = vpack.c.b16 %v5024, %v5022
    %v5131 = vpack.c.b16 %v5025, %v5023
    %v5132 = vpack.c.b16 %v5028, %v5026
    %v5133 = vpack.c.b16 %v5029, %v5027
    %v5134 = vpack.c.b16 %v5032, %v5030
    %v5135 = vpack.c.b16 %v5033, %v5031
    %v5136 = vpack.c.b16 %v5036, %v5034
    %v5137 = vpack.c.b16 %v5037, %v5035
    %v5138 = vpack.c.b16 %v5040, %v5038
    %v5139 = vpack.c.b16 %v5041, %v5039
    %v5140 = vpack.c.b16 %v5044, %v5042
    %v5141 = vpack.c.b16 %v5045, %v5043
    %v5142 = vpack.c.b16 %v5048, %v5046
    %v5143 = vpack.c.b16 %v5049, %v5047
    %v5144 = vpack.c.b16 %v5052, %v5050
    %v5145 = vpack.c.b16 %v5053, %v5051
    %v5146 = vpack.c.b16 %v5056, %v5054
    %v5147 = vpack.c.b16 %v5057, %v5055
    %v5148 = vpack.c.b16 %v5060, %v5058
    %v5149 = vpack.c.b16 %v5061, %v5059
    %v5150 = vpack.c.b16 %v5064, %v5062
    %v5151 = vpack.c.b16 %v5065, %v5063
    %v5152 = vpack.c.b16 %v5068, %v5066
    %v5153 = vpack.c.b16 %v5069, %v5067
    %v5154 = vpack.c.b16 %v5072, %v5070
    %v5155 = vpack.c.b16 %v5073, %v5071
    %v5156 = vpack.c.b16 %v5076, %v5074
    %v5157 = vpack.c.b16 %v5077, %v5075
    %v5158 = vpack.c.b16 %v5080, %v5078
    %v5159 = vpack.c.b16 %v5081, %v5079
    %v5160 = vpack.c.b16 %v5084, %v5082
    %v5161 = vpack.c.b16 %v5085, %v5083
    %v5162 = vpack.c.b16 %v5088, %v5086
    %v5163 = vpack.c.b16 %v5089, %v5087
    %v5164 = vpack.c.b16 %v5092, %v5090
    %v5165 = vpack.c.b16 %v5093, %v5091
    %v5166 = vpack.c.b16 %v5096, %v5094
    %v5167 = vpack.c.b16 %v5097, %v5095
    %v5168 = vpack.c.b16 %v5100, %v5098
    %v5169 = vpack.c.b16 %v5101, %v5099
    %v5170 = vpack.c.b16 %v5104, %v5102
    %v5171 = vpack.c.b16 %v5105, %v5103
    %v5172 = vpack.c.b16 %v5108, %v5106
    %v5173 = vpack.c.b16 %v5109, %v5107
    %5238 = vmatprep.subr.bf16.mxu0 %v5125
    %5239 = vmatpush1.bf16.msra.mxu0 %v5124
    %5240 = vmatprep.subr.bf16.mxu0 %v5123
    %5241 = vmatpush1.bf16.msra.mxu0 %v5122
    %5242 = vmatprep.subr.bf16.mxu0 %v5121
    %5243 = vmatpush1.bf16.msra.mxu0 %v5120
    %5244 = vmatprep.subr.bf16.mxu0 %v5119
    %5245 = vmatpush1.bf16.msra.mxu0 %v5118
    %5246 = vmatprep.subr.bf16.mxu0 %v5117
    %5247 = vmatpush1.bf16.msra.mxu0 %v5116
    %5248 = vmatprep.subr.bf16.mxu0 %v5115
    %5249 = vmatpush1.bf16.msra.mxu0 %v5114
    %5250 = vmatprep.subr.bf16.mxu0 %v5113
    %5251 = vmatpush1.bf16.msra.mxu0 %v5112
    %5252 = vmatprep.subr.bf16.mxu0 %v5111
    %5253 = vmatpush1.bf16.msra.mxu0 %v5110
    %5254 = vmatprep.subr.bf16.mxu0 %v5141
    %5255 = vmatpush2.bf16.msra.mxu0 %v5140
    %5256 = vmatprep.subr.bf16.mxu0 %v5139
    %5257 = vmatpush2.bf16.msra.mxu0 %v5138
    %5258 = vmatprep.subr.bf16.mxu0 %v5137
    %5259 = vmatpush2.bf16.msra.mxu0 %v5136
    %5260 = vmatprep.subr.bf16.mxu0 %v5135
    %5261 = vmatpush2.bf16.msra.mxu0 %v5134
    %5262 = vmatprep.subr.bf16.mxu0 %v5133
    %5263 = vmatpush2.bf16.msra.mxu0 %v5132
    %5264 = vmatprep.subr.bf16.mxu0 %v5131
    %5265 = vmatpush2.bf16.msra.mxu0 %v5130
    %5266 = vmatprep.subr.bf16.mxu0 %v5129
    %5267 = vmatpush2.bf16.msra.mxu0 %v5128
    %5268 = vmatprep.subr.bf16.mxu0 %v5127
    %5269 = vmatpush2.bf16.msra.mxu0 %v5126
    %5270 = vmatprep.mubr.bf16.mxu0 %v4903
    %5271 = vmatmul.mubr.bf16.gmra.mxu0 %v4902
    %v5272 = vpop.f32.mrf.mxu0
    %v5273 = vadd.f32 %v4911, %v5272
    %v5274 = vpop.f32.mrf.mxu0
    %v5275 = vadd.f32 %v4915, %v5274
    %v5276 = vpop.f32.mrf.mxu0
    %v5277 = vpop.f32.mrf.mxu0
    %5278 = vdwg.mxu0
    %5279 = vmatprep.subr.bf16.mxu0 %v5157
    %5280 = vmatpush1.bf16.msra.mxu0 %v5156
    %5281 = vmatprep.subr.bf16.mxu0 %v5155
    %5282 = vmatpush1.bf16.msra.mxu0 %v5154
    %5283 = vmatprep.subr.bf16.mxu0 %v5153
    %5284 = vmatpush1.bf16.msra.mxu0 %v5152
    %5285 = vmatprep.subr.bf16.mxu0 %v5151
    %5286 = vmatpush1.bf16.msra.mxu0 %v5150
    %5287 = vmatprep.subr.bf16.mxu0 %v5149
    %5288 = vmatpush1.bf16.msra.mxu0 %v5148
    %5289 = vmatprep.subr.bf16.mxu0 %v5147
    %5290 = vmatpush1.bf16.msra.mxu0 %v5146
    %5291 = vmatprep.subr.bf16.mxu0 %v5145
    %5292 = vmatpush1.bf16.msra.mxu0 %v5144
    %5293 = vmatprep.subr.bf16.mxu0 %v5143
    %5294 = vmatpush1.bf16.msra.mxu0 %v5142
    %5295 = vmatprep.subr.bf16.mxu0 %v5173
    %5296 = vmatpush2.bf16.msra.mxu0 %v5172
    %5297 = vmatprep.subr.bf16.mxu0 %v5171
    %5298 = vmatpush2.bf16.msra.mxu0 %v5170
    %5299 = vmatprep.subr.bf16.mxu0 %v5169
    %5300 = vmatpush2.bf16.msra.mxu0 %v5168
    %5301 = vmatprep.subr.bf16.mxu0 %v5167
    %5302 = vmatpush2.bf16.msra.mxu0 %v5166
    %5303 = vmatprep.subr.bf16.mxu0 %v5165
    %5304 = vmatpush2.bf16.msra.mxu0 %v5164
    %5305 = vmatprep.subr.bf16.mxu0 %v5163
    %5306 = vmatpush2.bf16.msra.mxu0 %v5162
    %5307 = vmatprep.subr.bf16.mxu0 %v5161
    %5308 = vmatpush2.bf16.msra.mxu0 %v5160
    %5309 = vmatprep.subr.bf16.mxu0 %v5159
    %5310 = vmatpush2.bf16.msra.mxu0 %v5158
    %5311 = vmatprep.mubr.bf16.mxu0 %v4905
    %5312 = vmatmul.mubr.bf16.gmra.mxu0 %v4904
    %v5313 = vpop.f32.mrf.mxu0
    %v5314 = vadd.f32 %v5273, %v5313
    %v5315 = vpop.f32.mrf.mxu0
    %v5316 = vadd.f32 %v5275, %v5315
    %v5317 = vpop.f32.mrf.mxu0
    %v5318 = vpop.f32.mrf.mxu0
    %5319 = vdwg.mxu0
    %v5320 = vmul.f32 %v5314, 0.5
    %v5321 = vmul.f32 %v5316, 0.5
    %v5322 = vmul.f32 %v5314, 0.70710677
    %v5323 = vmul.f32 %v5316, 0.70710677
    %v5324 = verf.f32.pop %v5322
    %v5325 = verf.f32.pop %v5323
    %v5326 = vadd.f32 %v5324, 1.0
    %v5327 = vadd.f32 %v5325, 1.0
    %v5328 = vmul.f32 %v5320, %v5326
    %v5329 = vmul.f32 %v5321, %v5327
    %v5330 = vld [vmem:[#allocation44] sm:$0x3]
    %v5331 = vld [vmem:[#allocation46] sm:$0x3]
    %v5332 = vadd.f32 %v5328, %v5329
    %5333 = vadd.xlane.f32.xlu0 %v5332
    %v5334 = vpop.xlane.xlu0 %5333
    %v5335 = vrcp.pop 256.0
    %v5336 = vmul.f32 %v5334, %v5335
    %v5337 = vsub.f32 %v5328, %v5336
    %v5338 = vsub.f32 %v5329, %v5336
    %v5339 = vmul.f32 %v5337, %v5337
    %v5340 = vmul.f32 %v5338, %v5338
    %v5341 = vadd.f32 %v5339, %v5340
    %5342 = vadd.xlane.f32.xlu0 %v5341
    %v5343 = vpop.xlane.xlu0 %5342
    %v5344 = vmul.f32 %v5343, %v5335
    %v5345 = vadd.f32 %v5344, 1e-05
    %v5346 = vrsqrt.pop %v5345
    %v5347 = vmul.f32 %v5337, %v5346
    %v5348 = vmul.f32 %v5338, %v5346
    %v5350 = vlaneseq
    %v5351 = vshrl.u32 %v5350, 7
    %v5352 = vsub.s32 0, %v5351
    %v5353 = vrot.slane %v5330, %v5352
    %v5354 = vlaneseq
    %v5355 = vshrl.u32 %v5354, 7
    %v5356 = vsub.s32 1, %v5355
    %v5357 = vrot.slane %v5330, %v5356
    %v5360 = vmul.f32 %v5347, %v5353
    %v5361 = vmul.f32 %v5348, %v5357
    %v5363 = vlaneseq
    %v5364 = vshrl.u32 %v5363, 7
    %v5365 = vsub.s32 0, %v5364
    %v5366 = vrot.slane %v5331, %v5365
    %v5367 = vlaneseq
    %v5368 = vshrl.u32 %v5367, 7
    %v5369 = vsub.s32 1, %v5368
    %v5370 = vrot.slane %v5331, %v5369
    %v5373 = vadd.f32 %v5360, %v5366
    %v5374 = vadd.f32 %v5361, %v5370
    %s5375 = smul.u32 %s586, 2
    %s5376 = sshll.u32 %s5375, 4
    %5377 = dma.done %s548, %s5376
    %v5378 = vld [vmem:[#allocation10] sm:$0xff]
    %v5379 = vld [vmem:[#allocation10 + $0x8] sm:$0xff]
    %v5380 = vld [vmem:[#allocation10 + $0x10] sm:$0xff]
    %v5381 = vld [vmem:[#allocation10 + $0x18] sm:$0xff]
    %v5382 = vld [vmem:[#allocation10 + $0x20] sm:$0xff]
    %v5383 = vld [vmem:[#allocation10 + $0x28] sm:$0xff]
    %v5384 = vld [vmem:[#allocation10 + $0x30] sm:$0xff]
    %v5385 = vld [vmem:[#allocation10 + $0x38] sm:$0xff]
    %v5386 = vld [vmem:[#allocation10 + $0x40] sm:$0xff]
    %v5387 = vld [vmem:[#allocation10 + $0x48] sm:$0xff]
    %v5388 = vld [vmem:[#allocation10 + $0x50] sm:$0xff]
    %v5389 = vld [vmem:[#allocation10 + $0x58] sm:$0xff]
    %v5390 = vld [vmem:[#allocation10 + $0x60] sm:$0xff]
    %v5391 = vld [vmem:[#allocation10 + $0x68] sm:$0xff]
    %v5392 = vld [vmem:[#allocation10 + $0x70] sm:$0xff]
    %v5393 = vld [vmem:[#allocation10 + $0x78] sm:$0xff]
    %v5394 = vld [vmem:[#allocation10 + $0x80] sm:$0xff]
    %v5395 = vld [vmem:[#allocation10 + $0x88] sm:$0xff]
    %v5396 = vld [vmem:[#allocation10 + $0x90] sm:$0xff]
    %v5397 = vld [vmem:[#allocation10 + $0x98] sm:$0xff]
    %v5398 = vld [vmem:[#allocation10 + $0xa0] sm:$0xff]
    %v5399 = vld [vmem:[#allocation10 + $0xa8] sm:$0xff]
    %v5400 = vld [vmem:[#allocation10 + $0xb0] sm:$0xff]
    %v5401 = vld [vmem:[#allocation10 + $0xb8] sm:$0xff]
    %v5402 = vld [vmem:[#allocation10 + $0xc0] sm:$0xff]
    %v5403 = vld [vmem:[#allocation10 + $0xc8] sm:$0xff]
    %v5404 = vld [vmem:[#allocation10 + $0xd0] sm:$0xff]
    %v5405 = vld [vmem:[#allocation10 + $0xd8] sm:$0xff]
    %v5406 = vld [vmem:[#allocation10 + $0xe0] sm:$0xff]
    %v5407 = vld [vmem:[#allocation10 + $0xe8] sm:$0xff]
    %v5408 = vld [vmem:[#allocation10 + $0xf0] sm:$0xff]
    %v5409 = vld [vmem:[#allocation10 + $0xf8] sm:$0xff]
    %v5410 = vpack.c.bf16 %v5373, %v5373
    %v5411 = vpack.c.bf16 %v5374, %v5374
    %v5412 = vld [vmem:[#allocation47] sm:$0x3]
    %v5414 = vlaneseq
    %v5415 = vshrl.u32 %v5414, 7
    %v5416 = vsub.s32 0, %v5415
    %v5417 = vrot.slane %v5412, %v5416
    %v5418 = vlaneseq
    %v5419 = vshrl.u32 %v5418, 7
    %v5420 = vsub.s32 1, %v5419
    %v5421 = vrot.slane %v5412, %v5420
    %v5456 = vunpack.c.l.b16 %v5378
    %v5457 = vunpack.c.h.b16 %v5378
    %v5458 = vunpack.c.l.b16 %v5379
    %v5459 = vunpack.c.h.b16 %v5379
    %v5460 = vunpack.c.l.b16 %v5380
    %v5461 = vunpack.c.h.b16 %v5380
    %v5462 = vunpack.c.l.b16 %v5381
    %v5463 = vunpack.c.h.b16 %v5381
    %v5464 = vunpack.c.l.b16 %v5382
    %v5465 = vunpack.c.h.b16 %v5382
    %v5466 = vunpack.c.l.b16 %v5383
    %v5467 = vunpack.c.h.b16 %v5383
    %v5468 = vunpack.c.l.b16 %v5384
    %v5469 = vunpack.c.h.b16 %v5384
    %v5470 = vunpack.c.l.b16 %v5385
    %v5471 = vunpack.c.h.b16 %v5385
    %v5472 = vunpack.c.l.b16 %v5386
    %v5473 = vunpack.c.h.b16 %v5386
    %v5474 = vunpack.c.l.b16 %v5387
    %v5475 = vunpack.c.h.b16 %v5387
    %v5476 = vunpack.c.l.b16 %v5388
    %v5477 = vunpack.c.h.b16 %v5388
    %v5478 = vunpack.c.l.b16 %v5389
    %v5479 = vunpack.c.h.b16 %v5389
    %v5480 = vunpack.c.l.b16 %v5390
    %v5481 = vunpack.c.h.b16 %v5390
    %v5482 = vunpack.c.l.b16 %v5391
    %v5483 = vunpack.c.h.b16 %v5391
    %v5484 = vunpack.c.l.b16 %v5392
    %v5485 = vunpack.c.h.b16 %v5392
    %v5486 = vunpack.c.l.b16 %v5393
    %v5487 = vunpack.c.h.b16 %v5393
    %v5488 = vunpack.c.l.b16 %v5394
    %v5489 = vunpack.c.h.b16 %v5394
    %v5490 = vunpack.c.l.b16 %v5395
    %v5491 = vunpack.c.h.b16 %v5395
    %v5492 = vunpack.c.l.b16 %v5396
    %v5493 = vunpack.c.h.b16 %v5396
    %v5494 = vunpack.c.l.b16 %v5397
    %v5495 = vunpack.c.h.b16 %v5397
    %v5496 = vunpack.c.l.b16 %v5398
    %v5497 = vunpack.c.h.b16 %v5398
    %v5498 = vunpack.c.l.b16 %v5399
    %v5499 = vunpack.c.h.b16 %v5399
    %v5500 = vunpack.c.l.b16 %v5400
    %v5501 = vunpack.c.h.b16 %v5400
    %v5502 = vunpack.c.l.b16 %v5401
    %v5503 = vunpack.c.h.b16 %v5401
    %v5504 = vunpack.c.l.b16 %v5402
    %v5505 = vunpack.c.h.b16 %v5402
    %v5506 = vunpack.c.l.b16 %v5403
    %v5507 = vunpack.c.h.b16 %v5403
    %v5508 = vunpack.c.l.b16 %v5404
    %v5509 = vunpack.c.h.b16 %v5404
    %v5510 = vunpack.c.l.b16 %v5405
    %v5511 = vunpack.c.h.b16 %v5405
    %v5512 = vunpack.c.l.b16 %v5406
    %v5513 = vunpack.c.h.b16 %v5406
    %v5514 = vunpack.c.l.b16 %v5407
    %v5515 = vunpack.c.h.b16 %v5407
    %v5516 = vunpack.c.l.b16 %v5408
    %v5517 = vunpack.c.h.b16 %v5408
    %v5518 = vunpack.c.l.b16 %v5409
    %v5519 = vunpack.c.h.b16 %v5409
    %v5520 = vpack.c.b16 %v5458, %v5456
    %v5521 = vpack.c.b16 %v5459, %v5457
    %v5522 = vpack.c.b16 %v5462, %v5460
    %v5523 = vpack.c.b16 %v5463, %v5461
    %v5524 = vpack.c.b16 %v5466, %v5464
    %v5525 = vpack.c.b16 %v5467, %v5465
    %v5526 = vpack.c.b16 %v5470, %v5468
    %v5527 = vpack.c.b16 %v5471, %v5469
    %v5528 = vpack.c.b16 %v5474, %v5472
    %v5529 = vpack.c.b16 %v5475, %v5473
    %v5530 = vpack.c.b16 %v5478, %v5476
    %v5531 = vpack.c.b16 %v5479, %v5477
    %v5532 = vpack.c.b16 %v5482, %v5480
    %v5533 = vpack.c.b16 %v5483, %v5481
    %v5534 = vpack.c.b16 %v5486, %v5484
    %v5535 = vpack.c.b16 %v5487, %v5485
    %v5536 = vpack.c.b16 %v5490, %v5488
    %v5537 = vpack.c.b16 %v5491, %v5489
    %v5538 = vpack.c.b16 %v5494, %v5492
    %v5539 = vpack.c.b16 %v5495, %v5493
    %v5540 = vpack.c.b16 %v5498, %v5496
    %v5541 = vpack.c.b16 %v5499, %v5497
    %v5542 = vpack.c.b16 %v5502, %v5500
    %v5543 = vpack.c.b16 %v5503, %v5501
    %v5544 = vpack.c.b16 %v5506, %v5504
    %v5545 = vpack.c.b16 %v5507, %v5505
    %v5546 = vpack.c.b16 %v5510, %v5508
    %v5547 = vpack.c.b16 %v5511, %v5509
    %v5548 = vpack.c.b16 %v5514, %v5512
    %v5549 = vpack.c.b16 %v5515, %v5513
    %v5550 = vpack.c.b16 %v5518, %v5516
    %v5551 = vpack.c.b16 %v5519, %v5517
    %5584 = vmatprep.subr.bf16.mxu0 %v5535
    %5585 = vmatpush1.bf16.msra.mxu0 %v5534
    %5586 = vmatprep.subr.bf16.mxu0 %v5533
    %5587 = vmatpush1.bf16.msra.mxu0 %v5532
    %5588 = vmatprep.subr.bf16.mxu0 %v5531
    %5589 = vmatpush1.bf16.msra.mxu0 %v5530
    %5590 = vmatprep.subr.bf16.mxu0 %v5529
    %5591 = vmatpush1.bf16.msra.mxu0 %v5528
    %5592 = vmatprep.subr.bf16.mxu0 %v5527
    %5593 = vmatpush1.bf16.msra.mxu0 %v5526
    %5594 = vmatprep.subr.bf16.mxu0 %v5525
    %5595 = vmatpush1.bf16.msra.mxu0 %v5524
    %5596 = vmatprep.subr.bf16.mxu0 %v5523
    %5597 = vmatpush1.bf16.msra.mxu0 %v5522
    %5598 = vmatprep.subr.bf16.mxu0 %v5521
    %5599 = vmatpush1.bf16.msra.mxu0 %v5520
    %5600 = vmatprep.subr.bf16.mxu0 %v5551
    %5601 = vmatpush2.bf16.msra.mxu0 %v5550
    %5602 = vmatprep.subr.bf16.mxu0 %v5549
    %5603 = vmatpush2.bf16.msra.mxu0 %v5548
    %5604 = vmatprep.subr.bf16.mxu0 %v5547
    %5605 = vmatpush2.bf16.msra.mxu0 %v5546
    %5606 = vmatprep.subr.bf16.mxu0 %v5545
    %5607 = vmatpush2.bf16.msra.mxu0 %v5544
    %5608 = vmatprep.subr.bf16.mxu0 %v5543
    %5609 = vmatpush2.bf16.msra.mxu0 %v5542
    %5610 = vmatprep.subr.bf16.mxu0 %v5541
    %5611 = vmatpush2.bf16.msra.mxu0 %v5540
    %5612 = vmatprep.subr.bf16.mxu0 %v5539
    %5613 = vmatpush2.bf16.msra.mxu0 %v5538
    %5614 = vmatprep.subr.bf16.mxu0 %v5537
    %5615 = vmatpush2.bf16.msra.mxu0 %v5536
    %5616 = vmatprep.mubr.bf16.mxu0 %v5411
    %5617 = vmatmul.mubr.bf16.gmra.mxu0 %v5410
    %v5618 = vpop.f32.mrf.mxu0
    %v5619 = vadd.f32 %v5417, %v5618
    %v5620 = vpop.f32.mrf.mxu0
    %v5621 = vadd.f32 %v5421, %v5620
    %v5622 = vpop.f32.mrf.mxu0
    %v5623 = vpop.f32.mrf.mxu0
    %5624 = vdwg.mxu0
    %v5625 = vmul.f32 %v5619, 0.5
    %v5626 = vmul.f32 %v5621, 0.5
    %v5627 = vmul.f32 %v5619, 0.70710677
    %v5628 = vmul.f32 %v5621, 0.70710677
    %v5629 = verf.f32.pop %v5627
    %v5630 = verf.f32.pop %v5628
    %v5631 = vadd.f32 %v5629, 1.0
    %v5632 = vadd.f32 %v5630, 1.0
    %v5633 = vmul.f32 %v5625, %v5631
    %v5634 = vmul.f32 %v5626, %v5632
    %v5635 = vld [vmem:[#allocation49] sm:$0x3]
    %v5636 = vld [vmem:[#allocation50] sm:$0x3]
    %v5637 = vadd.f32 %v5633, %v5634
    %5638 = vadd.xlane.f32.xlu0 %v5637
    %v5639 = vpop.xlane.xlu0 %5638
    %v5640 = vmul.f32 %v5639, %v5335
    %v5641 = vsub.f32 %v5633, %v5640
    %v5642 = vsub.f32 %v5634, %v5640
    %v5643 = vmul.f32 %v5641, %v5641
    %v5644 = vmul.f32 %v5642, %v5642
    %v5645 = vadd.f32 %v5643, %v5644
    %5646 = vadd.xlane.f32.xlu0 %v5645
    %v5647 = vpop.xlane.xlu0 %5646
    %v5648 = vmul.f32 %v5647, %v5335
    %v5649 = vadd.f32 %v5648, 1e-05
    %v5650 = vrsqrt.pop %v5649
    %v5651 = vmul.f32 %v5641, %v5650
    %v5652 = vmul.f32 %v5642, %v5650
    %v5654 = vlaneseq
    %v5655 = vshrl.u32 %v5654, 7
    %v5656 = vsub.s32 0, %v5655
    %v5657 = vrot.slane %v5635, %v5656
    %v5658 = vlaneseq
    %v5659 = vshrl.u32 %v5658, 7
    %v5660 = vsub.s32 1, %v5659
    %v5661 = vrot.slane %v5635, %v5660
    %v5664 = vmul.f32 %v5651, %v5657
    %v5665 = vmul.f32 %v5652, %v5661
    %v5667 = vlaneseq
    %v5668 = vshrl.u32 %v5667, 7
    %v5669 = vsub.s32 0, %v5668
    %v5670 = vrot.slane %v5636, %v5669
    %v5671 = vlaneseq
    %v5672 = vshrl.u32 %v5671, 7
    %v5673 = vsub.s32 1, %v5672
    %v5674 = vrot.slane %v5636, %v5673
    %v5677 = vadd.f32 %v5664, %v5670
    %v5678 = vadd.f32 %v5665, %v5674
    %s5679 = smul.u32 %s586, 5
    %s5680 = sshll.u32 %s5679, 4
    %5681 = dma.done %s560, %s5680
    %v5682 = vld [vmem:[#allocation11] sm:$0xff]
    %v5683 = vld [vmem:[#allocation11 + $0x8] sm:$0xff]
    %v5684 = vld [vmem:[#allocation11 + $0x10] sm:$0xf]
    %v5685 = vld [vmem:[#allocation11 + $0x14] sm:$0xff]
    %v5686 = vld [vmem:[#allocation11 + $0x1c] sm:$0xff]
    %v5687 = vld [vmem:[#allocation11 + $0x24] sm:$0xf]
    %v5688 = vld [vmem:[#allocation11 + $0x28] sm:$0xff]
    %v5689 = vld [vmem:[#allocation11 + $0x30] sm:$0xff]
    %v5690 = vld [vmem:[#allocation11 + $0x38] sm:$0xf]
    %v5691 = vld [vmem:[#allocation11 + $0x3c] sm:$0xff]
    %v5692 = vld [vmem:[#allocation11 + $0x44] sm:$0xff]
    %v5693 = vld [vmem:[#allocation11 + $0x4c] sm:$0xf]
    %v5694 = vld [vmem:[#allocation11 + $0x50] sm:$0xff]
    %v5695 = vld [vmem:[#allocation11 + $0x58] sm:$0xff]
    %v5696 = vld [vmem:[#allocation11 + $0x60] sm:$0xf]
    %v5697 = vld [vmem:[#allocation11 + $0x64] sm:$0xff]
    %v5698 = vld [vmem:[#allocation11 + $0x6c] sm:$0xff]
    %v5699 = vld [vmem:[#allocation11 + $0x74] sm:$0xf]
    %v5700 = vld [vmem:[#allocation11 + $0x78] sm:$0xff]
    %v5701 = vld [vmem:[#allocation11 + $0x80] sm:$0xff]
    %v5702 = vld [vmem:[#allocation11 + $0x88] sm:$0xf]
    %v5703 = vld [vmem:[#allocation11 + $0x8c] sm:$0xff]
    %v5704 = vld [vmem:[#allocation11 + $0x94] sm:$0xff]
    %v5705 = vld [vmem:[#allocation11 + $0x9c] sm:$0xf]
    %v5706 = vld [vmem:[#allocation11 + $0xa0] sm:$0xff]
    %v5707 = vld [vmem:[#allocation11 + $0xa8] sm:$0xff]
    %v5708 = vld [vmem:[#allocation11 + $0xb0] sm:$0xf]
    %v5709 = vld [vmem:[#allocation11 + $0xb4] sm:$0xff]
    %v5710 = vld [vmem:[#allocation11 + $0xbc] sm:$0xff]
    %v5711 = vld [vmem:[#allocation11 + $0xc4] sm:$0xf]
    %v5712 = vld [vmem:[#allocation11 + $0xc8] sm:$0xff]
    %v5713 = vld [vmem:[#allocation11 + $0xd0] sm:$0xff]
    %v5714 = vld [vmem:[#allocation11 + $0xd8] sm:$0xf]
    %v5715 = vld [vmem:[#allocation11 + $0xdc] sm:$0xff]
    %v5716 = vld [vmem:[#allocation11 + $0xe4] sm:$0xff]
    %v5717 = vld [vmem:[#allocation11 + $0xec] sm:$0xf]
    %v5718 = vld [vmem:[#allocation11 + $0xf0] sm:$0xff]
    %v5719 = vld [vmem:[#allocation11 + $0xf8] sm:$0xff]
    %v5720 = vld [vmem:[#allocation11 + $0x100] sm:$0xf]
    %v5721 = vld [vmem:[#allocation11 + $0x104] sm:$0xff]
    %v5722 = vld [vmem:[#allocation11 + $0x10c] sm:$0xff]
    %v5723 = vld [vmem:[#allocation11 + $0x114] sm:$0xf]
    %v5724 = vld [vmem:[#allocation11 + $0x118] sm:$0xff]
    %v5725 = vld [vmem:[#allocation11 + $0x120] sm:$0xff]
    %v5726 = vld [vmem:[#allocation11 + $0x128] sm:$0xf]
    %v5727 = vld [vmem:[#allocation11 + $0x12c] sm:$0xff]
    %v5728 = vld [vmem:[#allocation11 + $0x134] sm:$0xff]
    %v5729 = vld [vmem:[#allocation11 + $0x13c] sm:$0xf]
    %v5730 = vld [vmem:[#allocation11 + $0x140] sm:$0xff]
    %v5731 = vld [vmem:[#allocation11 + $0x148] sm:$0xff]
    %v5732 = vld [vmem:[#allocation11 + $0x150] sm:$0xf]
    %v5733 = vld [vmem:[#allocation11 + $0x154] sm:$0xff]
    %v5734 = vld [vmem:[#allocation11 + $0x15c] sm:$0xff]
    %v5735 = vld [vmem:[#allocation11 + $0x164] sm:$0xf]
    %v5736 = vld [vmem:[#allocation11 + $0x168] sm:$0xff]
    %v5737 = vld [vmem:[#allocation11 + $0x170] sm:$0xff]
    %v5738 = vld [vmem:[#allocation11 + $0x178] sm:$0xf]
    %v5739 = vld [vmem:[#allocation11 + $0x17c] sm:$0xff]
    %v5740 = vld [vmem:[#allocation11 + $0x184] sm:$0xff]
    %v5741 = vld [vmem:[#allocation11 + $0x18c] sm:$0xf]
    %v5742 = vld [vmem:[#allocation11 + $0x190] sm:$0xff]
    %v5743 = vld [vmem:[#allocation11 + $0x198] sm:$0xff]
    %v5744 = vld [vmem:[#allocation11 + $0x1a0] sm:$0xf]
    %v5745 = vld [vmem:[#allocation11 + $0x1a4] sm:$0xff]
    %v5746 = vld [vmem:[#allocation11 + $0x1ac] sm:$0xff]
    %v5747 = vld [vmem:[#allocation11 + $0x1b4] sm:$0xf]
    %v5748 = vld [vmem:[#allocation11 + $0x1b8] sm:$0xff]
    %v5749 = vld [vmem:[#allocation11 + $0x1c0] sm:$0xff]
    %v5750 = vld [vmem:[#allocation11 + $0x1c8] sm:$0xf]
    %v5751 = vld [vmem:[#allocation11 + $0x1cc] sm:$0xff]
    %v5752 = vld [vmem:[#allocation11 + $0x1d4] sm:$0xff]
    %v5753 = vld [vmem:[#allocation11 + $0x1dc] sm:$0xf]
    %v5754 = vld [vmem:[#allocation11 + $0x1e0] sm:$0xff]
    %v5755 = vld [vmem:[#allocation11 + $0x1e8] sm:$0xff]
    %v5756 = vld [vmem:[#allocation11 + $0x1f0] sm:$0xf]
    %v5757 = vld [vmem:[#allocation11 + $0x1f4] sm:$0xff]
    %v5758 = vld [vmem:[#allocation11 + $0x1fc] sm:$0xff]
    %v5759 = vld [vmem:[#allocation11 + $0x204] sm:$0xf]
    %v5760 = vld [vmem:[#allocation11 + $0x208] sm:$0xff]
    %v5761 = vld [vmem:[#allocation11 + $0x210] sm:$0xff]
    %v5762 = vld [vmem:[#allocation11 + $0x218] sm:$0xf]
    %v5763 = vld [vmem:[#allocation11 + $0x21c] sm:$0xff]
    %v5764 = vld [vmem:[#allocation11 + $0x224] sm:$0xff]
    %v5765 = vld [vmem:[#allocation11 + $0x22c] sm:$0xf]
    %v5766 = vld [vmem:[#allocation11 + $0x230] sm:$0xff]
    %v5767 = vld [vmem:[#allocation11 + $0x238] sm:$0xff]
    %v5768 = vld [vmem:[#allocation11 + $0x240] sm:$0xf]
    %v5769 = vld [vmem:[#allocation11 + $0x244] sm:$0xff]
    %v5770 = vld [vmem:[#allocation11 + $0x24c] sm:$0xff]
    %v5771 = vld [vmem:[#allocation11 + $0x254] sm:$0xf]
    %v5772 = vld [vmem:[#allocation11 + $0x258] sm:$0xff]
    %v5773 = vld [vmem:[#allocation11 + $0x260] sm:$0xff]
    %v5774 = vld [vmem:[#allocation11 + $0x268] sm:$0xf]
    %v5775 = vld [vmem:[#allocation11 + $0x26c] sm:$0xff]
    %v5776 = vld [vmem:[#allocation11 + $0x274] sm:$0xff]
    %v5777 = vld [vmem:[#allocation11 + $0x27c] sm:$0xf]
    %v5778 = vpack.c.bf16 %v5677, %v5677
    %v5779 = vpack.c.bf16 %v5678, %v5678
    %v5780 = vld [vmem:[%s85] sm:$0x1f]
    %v5782 = vlaneseq
    %v5783 = vshrl.u32 %v5782, 7
    %v5784 = vsub.s32 0, %v5783
    %v5785 = vrot.slane %v5780, %v5784
    %v5786 = vlaneseq
    %v5787 = vshrl.u32 %v5786, 7
    %v5788 = vsub.s32 1, %v5787
    %v5789 = vrot.slane %v5780, %v5788
    %v5790 = vlaneseq
    %v5791 = vshrl.u32 %v5790, 7
    %v5792 = vsub.s32 2, %v5791
    %v5793 = vrot.slane %v5780, %v5792
    %v5794 = vlaneseq
    %v5795 = vshrl.u32 %v5794, 7
    %v5796 = vsub.s32 3, %v5795
    %v5797 = vrot.slane %v5780, %v5796
    %v5798 = vlaneseq
    %v5799 = vshrl.u32 %v5798, 7
    %v5800 = vsub.s32 4, %v5799
    %v5801 = vrot.slane %v5780, %v5800
    %v5903 = vunpack.c.l.b16 %v5682
    %v5904 = vunpack.c.h.b16 %v5682
    %v5905 = vunpack.c.l.b16 %v5683
    %v5906 = vunpack.c.h.b16 %v5683
    %v5907 = vunpack.c.l.b16 %v5684
    %v5908 = vunpack.c.l.b16 %v5685
    %v5909 = vunpack.c.h.b16 %v5685
    %v5910 = vunpack.c.l.b16 %v5686
    %v5911 = vunpack.c.h.b16 %v5686
    %v5912 = vunpack.c.l.b16 %v5687
    %v5913 = vunpack.c.l.b16 %v5688
    %v5914 = vunpack.c.h.b16 %v5688
    %v5915 = vunpack.c.l.b16 %v5689
    %v5916 = vunpack.c.h.b16 %v5689
    %v5917 = vunpack.c.l.b16 %v5690
    %v5918 = vunpack.c.l.b16 %v5691
    %v5919 = vunpack.c.h.b16 %v5691
    %v5920 = vunpack.c.l.b16 %v5692
    %v5921 = vunpack.c.h.b16 %v5692
    %v5922 = vunpack.c.l.b16 %v5693
    %v5923 = vunpack.c.l.b16 %v5694
    %v5924 = vunpack.c.h.b16 %v5694
    %v5925 = vunpack.c.l.b16 %v5695
    %v5926 = vunpack.c.h.b16 %v5695
    %v5927 = vunpack.c.l.b16 %v5696
    %v5928 = vunpack.c.l.b16 %v5697
    %v5929 = vunpack.c.h.b16 %v5697
    %v5930 = vunpack.c.l.b16 %v5698
    %v5931 = vunpack.c.h.b16 %v5698
    %v5932 = vunpack.c.l.b16 %v5699
    %v5933 = vunpack.c.l.b16 %v5700
    %v5934 = vunpack.c.h.b16 %v5700
    %v5935 = vunpack.c.l.b16 %v5701
    %v5936 = vunpack.c.h.b16 %v5701
    %v5937 = vunpack.c.l.b16 %v5702
    %v5938 = vunpack.c.l.b16 %v5703
    %v5939 = vunpack.c.h.b16 %v5703
    %v5940 = vunpack.c.l.b16 %v5704
    %v5941 = vunpack.c.h.b16 %v5704
    %v5942 = vunpack.c.l.b16 %v5705
    %v5943 = vunpack.c.l.b16 %v5706
    %v5944 = vunpack.c.h.b16 %v5706
    %v5945 = vunpack.c.l.b16 %v5707
    %v5946 = vunpack.c.h.b16 %v5707
    %v5947 = vunpack.c.l.b16 %v5708
    %v5948 = vunpack.c.l.b16 %v5709
    %v5949 = vunpack.c.h.b16 %v5709
    %v5950 = vunpack.c.l.b16 %v5710
    %v5951 = vunpack.c.h.b16 %v5710
    %v5952 = vunpack.c.l.b16 %v5711
    %v5953 = vunpack.c.l.b16 %v5712
    %v5954 = vunpack.c.h.b16 %v5712
    %v5955 = vunpack.c.l.b16 %v5713
    %v5956 = vunpack.c.h.b16 %v5713
    %v5957 = vunpack.c.l.b16 %v5714
    %v5958 = vunpack.c.l.b16 %v5715
    %v5959 = vunpack.c.h.b16 %v5715
    %v5960 = vunpack.c.l.b16 %v5716
    %v5961 = vunpack.c.h.b16 %v5716
    %v5962 = vunpack.c.l.b16 %v5717
    %v5963 = vunpack.c.l.b16 %v5718
    %v5964 = vunpack.c.h.b16 %v5718
    %v5965 = vunpack.c.l.b16 %v5719
    %v5966 = vunpack.c.h.b16 %v5719
    %v5967 = vunpack.c.l.b16 %v5720
    %v5968 = vunpack.c.l.b16 %v5721
    %v5969 = vunpack.c.h.b16 %v5721
    %v5970 = vunpack.c.l.b16 %v5722
    %v5971 = vunpack.c.h.b16 %v5722
    %v5972 = vunpack.c.l.b16 %v5723
    %v5973 = vunpack.c.l.b16 %v5724
    %v5974 = vunpack.c.h.b16 %v5724
    %v5975 = vunpack.c.l.b16 %v5725
    %v5976 = vunpack.c.h.b16 %v5725
    %v5977 = vunpack.c.l.b16 %v5726
    %v5978 = vunpack.c.l.b16 %v5727
    %v5979 = vunpack.c.h.b16 %v5727
    %v5980 = vunpack.c.l.b16 %v5728
    %v5981 = vunpack.c.h.b16 %v5728
    %v5982 = vunpack.c.l.b16 %v5729
    %v5983 = vunpack.c.l.b16 %v5730
    %v5984 = vunpack.c.h.b16 %v5730
    %v5985 = vunpack.c.l.b16 %v5731
    %v5986 = vunpack.c.h.b16 %v5731
    %v5987 = vunpack.c.l.b16 %v5732
    %v5988 = vunpack.c.l.b16 %v5733
    %v5989 = vunpack.c.h.b16 %v5733
    %v5990 = vunpack.c.l.b16 %v5734
    %v5991 = vunpack.c.h.b16 %v5734
    %v5992 = vunpack.c.l.b16 %v5735
    %v5993 = vunpack.c.l.b16 %v5736
    %v5994 = vunpack.c.h.b16 %v5736
    %v5995 = vunpack.c.l.b16 %v5737
    %v5996 = vunpack.c.h.b16 %v5737
    %v5997 = vunpack.c.l.b16 %v5738
    %v5998 = vunpack.c.l.b16 %v5739
    %v5999 = vunpack.c.h.b16 %v5739
    %v6000 = vunpack.c.l.b16 %v5740
    %v6001 = vunpack.c.h.b16 %v5740
    %v6002 = vunpack.c.l.b16 %v5741
    %v6003 = vunpack.c.l.b16 %v5742
    %v6004 = vunpack.c.h.b16 %v5742
    %v6005 = vunpack.c.l.b16 %v5743
    %v6006 = vunpack.c.h.b16 %v5743
    %v6007 = vunpack.c.l.b16 %v5744
    %v6008 = vunpack.c.l.b16 %v5745
    %v6009 = vunpack.c.h.b16 %v5745
    %v6010 = vunpack.c.l.b16 %v5746
    %v6011 = vunpack.c.h.b16 %v5746
    %v6012 = vunpack.c.l.b16 %v5747
    %v6013 = vunpack.c.l.b16 %v5748
    %v6014 = vunpack.c.h.b16 %v5748
    %v6015 = vunpack.c.l.b16 %v5749
    %v6016 = vunpack.c.h.b16 %v5749
    %v6017 = vunpack.c.l.b16 %v5750
    %v6018 = vunpack.c.l.b16 %v5751
    %v6019 = vunpack.c.h.b16 %v5751
    %v6020 = vunpack.c.l.b16 %v5752
    %v6021 = vunpack.c.h.b16 %v5752
    %v6022 = vunpack.c.l.b16 %v5753
    %v6023 = vunpack.c.l.b16 %v5754
    %v6024 = vunpack.c.h.b16 %v5754
    %v6025 = vunpack.c.l.b16 %v5755
    %v6026 = vunpack.c.h.b16 %v5755
    %v6027 = vunpack.c.l.b16 %v5756
    %v6028 = vunpack.c.l.b16 %v5757
    %v6029 = vunpack.c.h.b16 %v5757
    %v6030 = vunpack.c.l.b16 %v5758
    %v6031 = vunpack.c.h.b16 %v5758
    %v6032 = vunpack.c.l.b16 %v5759
    %v6033 = vunpack.c.l.b16 %v5760
    %v6034 = vunpack.c.h.b16 %v5760
    %v6035 = vunpack.c.l.b16 %v5761
    %v6036 = vunpack.c.h.b16 %v5761
    %v6037 = vunpack.c.l.b16 %v5762
    %v6038 = vunpack.c.l.b16 %v5763
    %v6039 = vunpack.c.h.b16 %v5763
    %v6040 = vunpack.c.l.b16 %v5764
    %v6041 = vunpack.c.h.b16 %v5764
    %v6042 = vunpack.c.l.b16 %v5765
    %v6043 = vunpack.c.l.b16 %v5766
    %v6044 = vunpack.c.h.b16 %v5766
    %v6045 = vunpack.c.l.b16 %v5767
    %v6046 = vunpack.c.h.b16 %v5767
    %v6047 = vunpack.c.l.b16 %v5768
    %v6048 = vunpack.c.l.b16 %v5769
    %v6049 = vunpack.c.h.b16 %v5769
    %v6050 = vunpack.c.l.b16 %v5770
    %v6051 = vunpack.c.h.b16 %v5770
    %v6052 = vunpack.c.l.b16 %v5771
    %v6053 = vunpack.c.l.b16 %v5772
    %v6054 = vunpack.c.h.b16 %v5772
    %v6055 = vunpack.c.l.b16 %v5773
    %v6056 = vunpack.c.h.b16 %v5773
    %v6057 = vunpack.c.l.b16 %v5774
    %v6058 = vunpack.c.l.b16 %v5775
    %v6059 = vunpack.c.h.b16 %v5775
    %v6060 = vunpack.c.l.b16 %v5776
    %v6061 = vunpack.c.h.b16 %v5776
    %v6062 = vunpack.c.l.b16 %v5777
    %v6063 = vpack.c.b16 %v5908, %v5903
    %v6064 = vpack.c.b16 %v5909, %v5904
    %v6065 = vpack.c.b16 %v5910, %v5905
    %v6066 = vpack.c.b16 %v5911, %v5906
    %v6067 = vpack.c.b16 %v5912, %v5907
    %v6068 = vpack.c.b16 %v5918, %v5913
    %v6069 = vpack.c.b16 %v5919, %v5914
    %v6070 = vpack.c.b16 %v5920, %v5915
    %v6071 = vpack.c.b16 %v5921, %v5916
    %v6072 = vpack.c.b16 %v5922, %v5917
    %v6073 = vpack.c.b16 %v5928, %v5923
    %v6074 = vpack.c.b16 %v5929, %v5924
    %v6075 = vpack.c.b16 %v5930, %v5925
    %v6076 = vpack.c.b16 %v5931, %v5926
    %v6077 = vpack.c.b16 %v5932, %v5927
    %v6078 = vpack.c.b16 %v5938, %v5933
    %v6079 = vpack.c.b16 %v5939, %v5934
    %v6080 = vpack.c.b16 %v5940, %v5935
    %v6081 = vpack.c.b16 %v5941, %v5936
    %v6082 = vpack.c.b16 %v5942, %v5937
    %v6083 = vpack.c.b16 %v5948, %v5943
    %v6084 = vpack.c.b16 %v5949, %v5944
    %v6085 = vpack.c.b16 %v5950, %v5945
    %v6086 = vpack.c.b16 %v5951, %v5946
    %v6087 = vpack.c.b16 %v5952, %v5947
    %v6088 = vpack.c.b16 %v5958, %v5953
    %v6089 = vpack.c.b16 %v5959, %v5954
    %v6090 = vpack.c.b16 %v5960, %v5955
    %v6091 = vpack.c.b16 %v5961, %v5956
    %v6092 = vpack.c.b16 %v5962, %v5957
    %v6093 = vpack.c.b16 %v5968, %v5963
    %v6094 = vpack.c.b16 %v5969, %v5964
    %v6095 = vpack.c.b16 %v5970, %v5965
    %v6096 = vpack.c.b16 %v5971, %v5966
    %v6097 = vpack.c.b16 %v5972, %v5967
    %v6098 = vpack.c.b16 %v5978, %v5973
    %v6099 = vpack.c.b16 %v5979, %v5974
    %v6100 = vpack.c.b16 %v5980, %v5975
    %v6101 = vpack.c.b16 %v5981, %v5976
    %v6102 = vpack.c.b16 %v5982, %v5977
    %v6103 = vpack.c.b16 %v5988, %v5983
    %v6104 = vpack.c.b16 %v5989, %v5984
    %v6105 = vpack.c.b16 %v5990, %v5985
    %v6106 = vpack.c.b16 %v5991, %v5986
    %v6107 = vpack.c.b16 %v5992, %v5987
    %v6108 = vpack.c.b16 %v5998, %v5993
    %v6109 = vpack.c.b16 %v5999, %v5994
    %v6110 = vpack.c.b16 %v6000, %v5995
    %v6111 = vpack.c.b16 %v6001, %v5996
    %v6112 = vpack.c.b16 %v6002, %v5997
    %v6113 = vpack.c.b16 %v6008, %v6003
    %v6114 = vpack.c.b16 %v6009, %v6004
    %v6115 = vpack.c.b16 %v6010, %v6005
    %v6116 = vpack.c.b16 %v6011, %v6006
    %v6117 = vpack.c.b16 %v6012, %v6007
    %v6118 = vpack.c.b16 %v6018, %v6013
    %v6119 = vpack.c.b16 %v6019, %v6014
    %v6120 = vpack.c.b16 %v6020, %v6015
    %v6121 = vpack.c.b16 %v6021, %v6016
    %v6122 = vpack.c.b16 %v6022, %v6017
    %v6123 = vpack.c.b16 %v6028, %v6023
    %v6124 = vpack.c.b16 %v6029, %v6024
    %v6125 = vpack.c.b16 %v6030, %v6025
    %v6126 = vpack.c.b16 %v6031, %v6026
    %v6127 = vpack.c.b16 %v6032, %v6027
    %v6128 = vpack.c.b16 %v6038, %v6033
    %v6129 = vpack.c.b16 %v6039, %v6034
    %v6130 = vpack.c.b16 %v6040, %v6035
    %v6131 = vpack.c.b16 %v6041, %v6036
    %v6132 = vpack.c.b16 %v6042, %v6037
    %v6133 = vpack.c.b16 %v6048, %v6043
    %v6134 = vpack.c.b16 %v6049, %v6044
    %v6135 = vpack.c.b16 %v6050, %v6045
    %v6136 = vpack.c.b16 %v6051, %v6046
    %v6137 = vpack.c.b16 %v6052, %v6047
    %v6138 = vpack.c.b16 %v6058, %v6053
    %v6139 = vpack.c.b16 %v6059, %v6054
    %v6140 = vpack.c.b16 %v6060, %v6055
    %v6141 = vpack.c.b16 %v6061, %v6056
    %v6142 = vpack.c.b16 %v6062, %v6057
    %6223 = vmatprep.subr.bf16.mxu0 %v6099
    %6224 = vmatpush1.bf16.msra.mxu0 %v6098
    %6225 = vmatprep.subr.bf16.mxu0 %v6094
    %6226 = vmatpush1.bf16.msra.mxu0 %v6093
    %6227 = vmatprep.subr.bf16.mxu0 %v6089
    %6228 = vmatpush1.bf16.msra.mxu0 %v6088
    %6229 = vmatprep.subr.bf16.mxu0 %v6084
    %6230 = vmatpush1.bf16.msra.mxu0 %v6083
    %6231 = vmatprep.subr.bf16.mxu0 %v6079
    %6232 = vmatpush1.bf16.msra.mxu0 %v6078
    %6233 = vmatprep.subr.bf16.mxu0 %v6074
    %6234 = vmatpush1.bf16.msra.mxu0 %v6073
    %6235 = vmatprep.subr.bf16.mxu0 %v6069
    %6236 = vmatpush1.bf16.msra.mxu0 %v6068
    %6237 = vmatprep.subr.bf16.mxu0 %v6064
    %6238 = vmatpush1.bf16.msra.mxu0 %v6063
    %6239 = vmatprep.subr.bf16.mxu0 %v6139
    %6240 = vmatpush2.bf16.msra.mxu0 %v6138
    %6241 = vmatprep.subr.bf16.mxu0 %v6134
    %6242 = vmatpush2.bf16.msra.mxu0 %v6133
    %6243 = vmatprep.subr.bf16.mxu0 %v6129
    %6244 = vmatpush2.bf16.msra.mxu0 %v6128
    %6245 = vmatprep.subr.bf16.mxu0 %v6124
    %6246 = vmatpush2.bf16.msra.mxu0 %v6123
    %6247 = vmatprep.subr.bf16.mxu0 %v6119
    %6248 = vmatpush2.bf16.msra.mxu0 %v6118
    %6249 = vmatprep.subr.bf16.mxu0 %v6114
    %6250 = vmatpush2.bf16.msra.mxu0 %v6113
    %6251 = vmatprep.subr.bf16.mxu0 %v6109
    %6252 = vmatpush2.bf16.msra.mxu0 %v6108
    %6253 = vmatprep.subr.bf16.mxu0 %v6104
    %6254 = vmatpush2.bf16.msra.mxu0 %v6103
    %6255 = vmatprep.mubr.bf16.mxu0 %v5779
    %6256 = vmatmul.mubr.bf16.gmra.mxu0 %v5778
    %v6257 = vpop.f32.mrf.mxu0
    %v6258 = vadd.f32 %v5785, %v6257
    %v6259 = vpop.f32.mrf.mxu0
    %v6260 = vadd.f32 %v5789, %v6259
    %v6261 = vpop.f32.mrf.mxu0
    %v6262 = vpop.f32.mrf.mxu0
    %6263 = vdwg.mxu0
    %6264 = vmatprep.subr.bf16.mxu0 %v6101
    %6265 = vmatpush1.bf16.msra.mxu0 %v6100
    %6266 = vmatprep.subr.bf16.mxu0 %v6096
    %6267 = vmatpush1.bf16.msra.mxu0 %v6095
    %6268 = vmatprep.subr.bf16.mxu0 %v6091
    %6269 = vmatpush1.bf16.msra.mxu0 %v6090
    %6270 = vmatprep.subr.bf16.mxu0 %v6086
    %6271 = vmatpush1.bf16.msra.mxu0 %v6085
    %6272 = vmatprep.subr.bf16.mxu0 %v6081
    %6273 = vmatpush1.bf16.msra.mxu0 %v6080
    %6274 = vmatprep.subr.bf16.mxu0 %v6076
    %6275 = vmatpush1.bf16.msra.mxu0 %v6075
    %6276 = vmatprep.subr.bf16.mxu0 %v6071
    %6277 = vmatpush1.bf16.msra.mxu0 %v6070
    %6278 = vmatprep.subr.bf16.mxu0 %v6066
    %6279 = vmatpush1.bf16.msra.mxu0 %v6065
    %6280 = vmatprep.subr.bf16.mxu0 %v6141
    %6281 = vmatpush2.bf16.msra.mxu0 %v6140
    %6282 = vmatprep.subr.bf16.mxu0 %v6136
    %6283 = vmatpush2.bf16.msra.mxu0 %v6135
    %6284 = vmatprep.subr.bf16.mxu0 %v6131
    %6285 = vmatpush2.bf16.msra.mxu0 %v6130
    %6286 = vmatprep.subr.bf16.mxu0 %v6126
    %6287 = vmatpush2.bf16.msra.mxu0 %v6125
    %6288 = vmatprep.subr.bf16.mxu0 %v6121
    %6289 = vmatpush2.bf16.msra.mxu0 %v6120
    %6290 = vmatprep.subr.bf16.mxu0 %v6116
    %6291 = vmatpush2.bf16.msra.mxu0 %v6115
    %6292 = vmatprep.subr.bf16.mxu0 %v6111
    %6293 = vmatpush2.bf16.msra.mxu0 %v6110
    %6294 = vmatprep.subr.bf16.mxu0 %v6106
    %6295 = vmatpush2.bf16.msra.mxu0 %v6105
    %6296 = vmatprep.mubr.bf16.mxu0 %v5779
    %6297 = vmatmul.mubr.bf16.gmra.mxu0 %v5778
    %v6298 = vpop.f32.mrf.mxu0
    %v6299 = vadd.f32 %v5793, %v6298
    %v6300 = vpop.f32.mrf.mxu0
    %v6301 = vadd.f32 %v5797, %v6300
    %v6302 = vpop.f32.mrf.mxu0
    %v6303 = vpop.f32.mrf.mxu0
    %6304 = vdwg.mxu0
    %6305 = vmatprep.subr.bf16.mxu0 0
    %6306 = vmatpush1.bf16.msra.mxu0 %v6102
    %6307 = vmatprep.subr.bf16.mxu0 0
    %6308 = vmatpush1.bf16.msra.mxu0 %v6097
    %6309 = vmatprep.subr.bf16.mxu0 0
    %6310 = vmatpush1.bf16.msra.mxu0 %v6092
    %6311 = vmatprep.subr.bf16.mxu0 0
    %6312 = vmatpush1.bf16.msra.mxu0 %v6087
    %6313 = vmatprep.subr.bf16.mxu0 0
    %6314 = vmatpush1.bf16.msra.mxu0 %v6082
    %6315 = vmatprep.subr.bf16.mxu0 0
    %6316 = vmatpush1.bf16.msra.mxu0 %v6077
    %6317 = vmatprep.subr.bf16.mxu0 0
    %6318 = vmatpush1.bf16.msra.mxu0 %v6072
    %6319 = vmatprep.subr.bf16.mxu0 0
    %6320 = vmatpush1.bf16.msra.mxu0 %v6067
    %6321 = vmatprep.subr.bf16.mxu0 0
    %6322 = vmatpush2.bf16.msra.mxu0 %v6142
    %6323 = vmatprep.subr.bf16.mxu0 0
    %6324 = vmatpush2.bf16.msra.mxu0 %v6137
    %6325 = vmatprep.subr.bf16.mxu0 0
    %6326 = vmatpush2.bf16.msra.mxu0 %v6132
    %6327 = vmatprep.subr.bf16.mxu0 0
    %6328 = vmatpush2.bf16.msra.mxu0 %v6127
    %6329 = vmatprep.subr.bf16.mxu0 0
    %6330 = vmatpush2.bf16.msra.mxu0 %v6122
    %6331 = vmatprep.subr.bf16.mxu0 0
    %6332 = vmatpush2.bf16.msra.mxu0 %v6117
    %6333 = vmatprep.subr.bf16.mxu0 0
    %6334 = vmatpush2.bf16.msra.mxu0 %v6112
    %6335 = vmatprep.subr.bf16.mxu0 0
    %6336 = vmatpush2.bf16.msra.mxu0 %v6107
    %6337 = vmatprep.mubr.bf16.mxu0 %v5779
    %6338 = vmatmul.mubr.bf16.gmra.mxu0 %v5778
    %v6339 = vpop.f32.mrf.mxu0
    %v6340 = vadd.f32 %v5801, %v6339
    %v6341 = vpop.f32.mrf.mxu0
    %v6342 = vpop.f32.mrf.mxu0
    %v6343 = vpop.f32.mrf.mxu0
    %6344 = vdwg.mxu0
    %v6345 = vmul.f32 %v6258, 0.5
    %v6346 = vmul.f32 %v6260, 0.5
    %v6347 = vmul.f32 %v6299, 0.5
    %v6348 = vmul.f32 %v6301, 0.5
    %v6349 = vmul.f32 %v6340, 0.5
    %v6350 = vmul.f32 %v6258, 0.70710677
    %v6351 = vmul.f32 %v6260, 0.70710677
    %v6352 = vmul.f32 %v6299, 0.70710677
    %v6353 = vmul.f32 %v6301, 0.70710677
    %v6354 = vmul.f32 %v6340, 0.70710677
    %v6355 = verf.f32.pop %v6350
    %v6356 = verf.f32.pop %v6351
    %v6357 = verf.f32.pop %v6352
    %v6358 = verf.f32.pop %v6353
    %v6359 = verf.f32.pop %v6354
    %v6360 = vadd.f32 %v6355, 1.0
    %v6361 = vadd.f32 %v6356, 1.0
    %v6362 = vadd.f32 %v6357, 1.0
    %v6363 = vadd.f32 %v6358, 1.0
    %v6364 = vadd.f32 %v6359, 1.0
    %v6365 = vmul.f32 %v6345, %v6360
    %v6366 = vmul.f32 %v6346, %v6361
    %v6367 = vmul.f32 %v6347, %v6362
    %v6368 = vmul.f32 %v6348, %v6363
    %v6369 = vmul.f32 %v6349, %v6364
    %s6370 = smul.u32 4, 80
    %s6371 = smul.u32 %s6370, 1
    %s6372 = sshll.u32 %s6371, 4
    %6373 = dma.done %s572, %s6372
    %v6374 = vld [vmem:[#allocation12] sm:$0xf]
    %v6375 = vld [vmem:[#allocation12 + $0x4] sm:$0xf]
    %v6376 = vld [vmem:[#allocation12 + $0x8] sm:$0xf]
    %v6377 = vld [vmem:[#allocation12 + $0xc] sm:$0xf]
    %v6378 = vld [vmem:[#allocation12 + $0x10] sm:$0xf]
    %v6379 = vld [vmem:[#allocation12 + $0x14] sm:$0xf]
    %v6380 = vld [vmem:[#allocation12 + $0x18] sm:$0xf]
    %v6381 = vld [vmem:[#allocation12 + $0x1c] sm:$0xf]
    %v6382 = vld [vmem:[#allocation12 + $0x20] sm:$0xf]
    %v6383 = vld [vmem:[#allocation12 + $0x24] sm:$0xf]
    %v6384 = vld [vmem:[#allocation12 + $0x28] sm:$0xf]
    %v6385 = vld [vmem:[#allocation12 + $0x2c] sm:$0xf]
    %v6386 = vld [vmem:[#allocation12 + $0x30] sm:$0xf]
    %v6387 = vld [vmem:[#allocation12 + $0x34] sm:$0xf]
    %v6388 = vld [vmem:[#allocation12 + $0x38] sm:$0xf]
    %v6389 = vld [vmem:[#allocation12 + $0x3c] sm:$0xf]
    %v6390 = vld [vmem:[#allocation12 + $0x40] sm:$0xf]
    %v6391 = vld [vmem:[#allocation12 + $0x44] sm:$0xf]
    %v6392 = vld [vmem:[#allocation12 + $0x48] sm:$0xf]
    %v6393 = vld [vmem:[#allocation12 + $0x4c] sm:$0xf]
    %v6394 = vld [vmem:[#allocation12 + $0x50] sm:$0xf]
    %v6395 = vld [vmem:[#allocation12 + $0x54] sm:$0xf]
    %v6396 = vld [vmem:[#allocation12 + $0x58] sm:$0xf]
    %v6397 = vld [vmem:[#allocation12 + $0x5c] sm:$0xf]
    %v6398 = vld [vmem:[#allocation12 + $0x60] sm:$0xf]
    %v6399 = vld [vmem:[#allocation12 + $0x64] sm:$0xf]
    %v6400 = vld [vmem:[#allocation12 + $0x68] sm:$0xf]
    %v6401 = vld [vmem:[#allocation12 + $0x6c] sm:$0xf]
    %v6402 = vld [vmem:[#allocation12 + $0x70] sm:$0xf]
    %v6403 = vld [vmem:[#allocation12 + $0x74] sm:$0xf]
    %v6404 = vld [vmem:[#allocation12 + $0x78] sm:$0xf]
    %v6405 = vld [vmem:[#allocation12 + $0x7c] sm:$0xf]
    %v6406 = vld [vmem:[#allocation12 + $0x80] sm:$0xf]
    %v6407 = vld [vmem:[#allocation12 + $0x84] sm:$0xf]
    %v6408 = vld [vmem:[#allocation12 + $0x88] sm:$0xf]
    %v6409 = vld [vmem:[#allocation12 + $0x8c] sm:$0xf]
    %v6410 = vld [vmem:[#allocation12 + $0x90] sm:$0xf]
    %v6411 = vld [vmem:[#allocation12 + $0x94] sm:$0xf]
    %v6412 = vld [vmem:[#allocation12 + $0x98] sm:$0xf]
    %v6413 = vld [vmem:[#allocation12 + $0x9c] sm:$0xf]
    %v6414 = vld [vmem:[#allocation12 + $0xa0] sm:$0xf]
    %v6415 = vld [vmem:[#allocation12 + $0xa4] sm:$0xf]
    %v6416 = vld [vmem:[#allocation12 + $0xa8] sm:$0xf]
    %v6417 = vld [vmem:[#allocation12 + $0xac] sm:$0xf]
    %v6418 = vld [vmem:[#allocation12 + $0xb0] sm:$0xf]
    %v6419 = vld [vmem:[#allocation12 + $0xb4] sm:$0xf]
    %v6420 = vld [vmem:[#allocation12 + $0xb8] sm:$0xf]
    %v6421 = vld [vmem:[#allocation12 + $0xbc] sm:$0xf]
    %v6422 = vld [vmem:[#allocation12 + $0xc0] sm:$0xf]
    %v6423 = vld [vmem:[#allocation12 + $0xc4] sm:$0xf]
    %v6424 = vld [vmem:[#allocation12 + $0xc8] sm:$0xf]
    %v6425 = vld [vmem:[#allocation12 + $0xcc] sm:$0xf]
    %v6426 = vld [vmem:[#allocation12 + $0xd0] sm:$0xf]
    %v6427 = vld [vmem:[#allocation12 + $0xd4] sm:$0xf]
    %v6428 = vld [vmem:[#allocation12 + $0xd8] sm:$0xf]
    %v6429 = vld [vmem:[#allocation12 + $0xdc] sm:$0xf]
    %v6430 = vld [vmem:[#allocation12 + $0xe0] sm:$0xf]
    %v6431 = vld [vmem:[#allocation12 + $0xe4] sm:$0xf]
    %v6432 = vld [vmem:[#allocation12 + $0xe8] sm:$0xf]
    %v6433 = vld [vmem:[#allocation12 + $0xec] sm:$0xf]
    %v6434 = vld [vmem:[#allocation12 + $0xf0] sm:$0xf]
    %v6435 = vld [vmem:[#allocation12 + $0xf4] sm:$0xf]
    %v6436 = vld [vmem:[#allocation12 + $0xf8] sm:$0xf]
    %v6437 = vld [vmem:[#allocation12 + $0xfc] sm:$0xf]
    %v6438 = vld [vmem:[#allocation12 + $0x100] sm:$0xf]
    %v6439 = vld [vmem:[#allocation12 + $0x104] sm:$0xf]
    %v6440 = vld [vmem:[#allocation12 + $0x108] sm:$0xf]
    %v6441 = vld [vmem:[#allocation12 + $0x10c] sm:$0xf]
    %v6442 = vld [vmem:[#allocation12 + $0x110] sm:$0xf]
    %v6443 = vld [vmem:[#allocation12 + $0x114] sm:$0xf]
    %v6444 = vld [vmem:[#allocation12 + $0x118] sm:$0xf]
    %v6445 = vld [vmem:[#allocation12 + $0x11c] sm:$0xf]
    %v6446 = vld [vmem:[#allocation12 + $0x120] sm:$0xf]
    %v6447 = vld [vmem:[#allocation12 + $0x124] sm:$0xf]
    %v6448 = vld [vmem:[#allocation12 + $0x128] sm:$0xf]
    %v6449 = vld [vmem:[#allocation12 + $0x12c] sm:$0xf]
    %v6450 = vld [vmem:[#allocation12 + $0x130] sm:$0xf]
    %v6451 = vld [vmem:[#allocation12 + $0x134] sm:$0xf]
    %v6452 = vld [vmem:[#allocation12 + $0x138] sm:$0xf]
    %v6453 = vld [vmem:[#allocation12 + $0x13c] sm:$0xf]
    %v6454 = vpack.c.bf16 %v6365, %v6365
    %v6455 = vpack.c.bf16 %v6366, %v6366
    %v6456 = vpack.c.bf16 %v6367, %v6367
    %v6457 = vpack.c.bf16 %v6368, %v6368
    %v6458 = vpack.c.bf16 %v6369, %v6369
    %v6459 = vld [vmem:[#allocation52] sm:$0x1]
    %v6461 = vlaneseq
    %v6462 = vshrl.u32 %v6461, 7
    %v6463 = vsub.s32 0, %v6462
    %v6464 = vrot.slane %v6459, %v6463
    %v6546 = vunpack.c.l.b16 %v6374
    %v6547 = vunpack.c.l.b16 %v6375
    %v6548 = vunpack.c.l.b16 %v6376
    %v6549 = vunpack.c.l.b16 %v6377
    %v6550 = vunpack.c.l.b16 %v6378
    %v6551 = vunpack.c.l.b16 %v6379
    %v6552 = vunpack.c.l.b16 %v6380
    %v6553 = vunpack.c.l.b16 %v6381
    %v6554 = vunpack.c.l.b16 %v6382
    %v6555 = vunpack.c.l.b16 %v6383
    %v6556 = vunpack.c.l.b16 %v6384
    %v6557 = vunpack.c.l.b16 %v6385
    %v6558 = vunpack.c.l.b16 %v6386
    %v6559 = vunpack.c.l.b16 %v6387
    %v6560 = vunpack.c.l.b16 %v6388
    %v6561 = vunpack.c.l.b16 %v6389
    %v6562 = vunpack.c.l.b16 %v6390
    %v6563 = vunpack.c.l.b16 %v6391
    %v6564 = vunpack.c.l.b16 %v6392
    %v6565 = vunpack.c.l.b16 %v6393
    %v6566 = vunpack.c.l.b16 %v6394
    %v6567 = vunpack.c.l.b16 %v6395
    %v6568 = vunpack.c.l.b16 %v6396
    %v6569 = vunpack.c.l.b16 %v6397
    %v6570 = vunpack.c.l.b16 %v6398
    %v6571 = vunpack.c.l.b16 %v6399
    %v6572 = vunpack.c.l.b16 %v6400
    %v6573 = vunpack.c.l.b16 %v6401
    %v6574 = vunpack.c.l.b16 %v6402
    %v6575 = vunpack.c.l.b16 %v6403
    %v6576 = vunpack.c.l.b16 %v6404
    %v6577 = vunpack.c.l.b16 %v6405
    %v6578 = vunpack.c.l.b16 %v6406
    %v6579 = vunpack.c.l.b16 %v6407
    %v6580 = vunpack.c.l.b16 %v6408
    %v6581 = vunpack.c.l.b16 %v6409
    %v6582 = vunpack.c.l.b16 %v6410
    %v6583 = vunpack.c.l.b16 %v6411
    %v6584 = vunpack.c.l.b16 %v6412
    %v6585 = vunpack.c.l.b16 %v6413
    %v6586 = vunpack.c.l.b16 %v6414
    %v6587 = vunpack.c.l.b16 %v6415
    %v6588 = vunpack.c.l.b16 %v6416
    %v6589 = vunpack.c.l.b16 %v6417
    %v6590 = vunpack.c.l.b16 %v6418
    %v6591 = vunpack.c.l.b16 %v6419
    %v6592 = vunpack.c.l.b16 %v6420
    %v6593 = vunpack.c.l.b16 %v6421
    %v6594 = vunpack.c.l.b16 %v6422
    %v6595 = vunpack.c.l.b16 %v6423
    %v6596 = vunpack.c.l.b16 %v6424
    %v6597 = vunpack.c.l.b16 %v6425
    %v6598 = vunpack.c.l.b16 %v6426
    %v6599 = vunpack.c.l.b16 %v6427
    %v6600 = vunpack.c.l.b16 %v6428
    %v6601 = vunpack.c.l.b16 %v6429
    %v6602 = vunpack.c.l.b16 %v6430
    %v6603 = vunpack.c.l.b16 %v6431
    %v6604 = vunpack.c.l.b16 %v6432
    %v6605 = vunpack.c.l.b16 %v6433
    %v6606 = vunpack.c.l.b16 %v6434
    %v6607 = vunpack.c.l.b16 %v6435
    %v6608 = vunpack.c.l.b16 %v6436
    %v6609 = vunpack.c.l.b16 %v6437
    %v6610 = vunpack.c.l.b16 %v6438
    %v6611 = vunpack.c.l.b16 %v6439
    %v6612 = vunpack.c.l.b16 %v6440
    %v6613 = vunpack.c.l.b16 %v6441
    %v6614 = vunpack.c.l.b16 %v6442
    %v6615 = vunpack.c.l.b16 %v6443
    %v6616 = vunpack.c.l.b16 %v6444
    %v6617 = vunpack.c.l.b16 %v6445
    %v6618 = vunpack.c.l.b16 %v6446
    %v6619 = vunpack.c.l.b16 %v6447
    %v6620 = vunpack.c.l.b16 %v6448
    %v6621 = vunpack.c.l.b16 %v6449
    %v6622 = vunpack.c.l.b16 %v6450
    %v6623 = vunpack.c.l.b16 %v6451
    %v6624 = vunpack.c.l.b16 %v6452
    %v6625 = vunpack.c.l.b16 %v6453
    %v6626 = vpack.c.b16 %v6547, %v6546
    %v6627 = vpack.c.b16 %v6549, %v6548
    %v6628 = vpack.c.b16 %v6551, %v6550
    %v6629 = vpack.c.b16 %v6553, %v6552
    %v6630 = vpack.c.b16 %v6555, %v6554
    %v6631 = vpack.c.b16 %v6557, %v6556
    %v6632 = vpack.c.b16 %v6559, %v6558
    %v6633 = vpack.c.b16 %v6561, %v6560
    %v6634 = vpack.c.b16 %v6563, %v6562
    %v6635 = vpack.c.b16 %v6565, %v6564
    %v6636 = vpack.c.b16 %v6567, %v6566
    %v6637 = vpack.c.b16 %v6569, %v6568
    %v6638 = vpack.c.b16 %v6571, %v6570
    %v6639 = vpack.c.b16 %v6573, %v6572
    %v6640 = vpack.c.b16 %v6575, %v6574
    %v6641 = vpack.c.b16 %v6577, %v6576
    %v6642 = vpack.c.b16 %v6579, %v6578
    %v6643 = vpack.c.b16 %v6581, %v6580
    %v6644 = vpack.c.b16 %v6583, %v6582
    %v6645 = vpack.c.b16 %v6585, %v6584
    %v6646 = vpack.c.b16 %v6587, %v6586
    %v6647 = vpack.c.b16 %v6589, %v6588
    %v6648 = vpack.c.b16 %v6591, %v6590
    %v6649 = vpack.c.b16 %v6593, %v6592
    %v6650 = vpack.c.b16 %v6595, %v6594
    %v6651 = vpack.c.b16 %v6597, %v6596
    %v6652 = vpack.c.b16 %v6599, %v6598
    %v6653 = vpack.c.b16 %v6601, %v6600
    %v6654 = vpack.c.b16 %v6603, %v6602
    %v6655 = vpack.c.b16 %v6605, %v6604
    %v6656 = vpack.c.b16 %v6607, %v6606
    %v6657 = vpack.c.b16 %v6609, %v6608
    %v6658 = vpack.c.b16 %v6611, %v6610
    %v6659 = vpack.c.b16 %v6613, %v6612
    %v6660 = vpack.c.b16 %v6615, %v6614
    %v6661 = vpack.c.b16 %v6617, %v6616
    %v6662 = vpack.c.b16 %v6619, %v6618
    %v6663 = vpack.c.b16 %v6621, %v6620
    %v6664 = vpack.c.b16 %v6623, %v6622
    %v6665 = vpack.c.b16 %v6625, %v6624
    %6706 = vmatprep.subr.bf16.mxu0 0
    %6707 = vmatpush1.bf16.msra.mxu0 %v6633
    %6708 = vmatprep.subr.bf16.mxu0 0
    %6709 = vmatpush1.bf16.msra.mxu0 %v6632
    %6710 = vmatprep.subr.bf16.mxu0 0
    %6711 = vmatpush1.bf16.msra.mxu0 %v6631
    %6712 = vmatprep.subr.bf16.mxu0 0
    %6713 = vmatpush1.bf16.msra.mxu0 %v6630
    %6714 = vmatprep.subr.bf16.mxu0 0
    %6715 = vmatpush1.bf16.msra.mxu0 %v6629
    %6716 = vmatprep.subr.bf16.mxu0 0
    %6717 = vmatpush1.bf16.msra.mxu0 %v6628
    %6718 = vmatprep.subr.bf16.mxu0 0
    %6719 = vmatpush1.bf16.msra.mxu0 %v6627
    %6720 = vmatprep.subr.bf16.mxu0 0
    %6721 = vmatpush1.bf16.msra.mxu0 %v6626
    %6722 = vmatprep.subr.bf16.mxu0 0
    %6723 = vmatpush2.bf16.msra.mxu0 %v6641
    %6724 = vmatprep.subr.bf16.mxu0 0
    %6725 = vmatpush2.bf16.msra.mxu0 %v6640
    %6726 = vmatprep.subr.bf16.mxu0 0
    %6727 = vmatpush2.bf16.msra.mxu0 %v6639
    %6728 = vmatprep.subr.bf16.mxu0 0
    %6729 = vmatpush2.bf16.msra.mxu0 %v6638
    %6730 = vmatprep.subr.bf16.mxu0 0
    %6731 = vmatpush2.bf16.msra.mxu0 %v6637
    %6732 = vmatprep.subr.bf16.mxu0 0
    %6733 = vmatpush2.bf16.msra.mxu0 %v6636
    %6734 = vmatprep.subr.bf16.mxu0 0
    %6735 = vmatpush2.bf16.msra.mxu0 %v6635
    %6736 = vmatprep.subr.bf16.mxu0 0
    %6737 = vmatpush2.bf16.msra.mxu0 %v6634
    %6738 = vmatprep.mubr.bf16.mxu0 %v6455
    %6739 = vmatmul.mubr.bf16.gmra.mxu0 %v6454
    %v6740 = vpop.f32.mrf.mxu0
    %v6741 = vadd.f32 %v6464, %v6740
    %v6742 = vpop.f32.mrf.mxu0
    %v6743 = vpop.f32.mrf.mxu0
    %v6744 = vpop.f32.mrf.mxu0
    %6745 = vdwg.mxu0
    %6746 = vmatprep.subr.bf16.mxu0 0
    %6747 = vmatpush1.bf16.msra.mxu0 %v6649
    %6748 = vmatprep.subr.bf16.mxu0 0
    %6749 = vmatpush1.bf16.msra.mxu0 %v6648
    %6750 = vmatprep.subr.bf16.mxu0 0
    %6751 = vmatpush1.bf16.msra.mxu0 %v6647
    %6752 = vmatprep.subr.bf16.mxu0 0
    %6753 = vmatpush1.bf16.msra.mxu0 %v6646
    %6754 = vmatprep.subr.bf16.mxu0 0
    %6755 = vmatpush1.bf16.msra.mxu0 %v6645
    %6756 = vmatprep.subr.bf16.mxu0 0
    %6757 = vmatpush1.bf16.msra.mxu0 %v6644
    %6758 = vmatprep.subr.bf16.mxu0 0
    %6759 = vmatpush1.bf16.msra.mxu0 %v6643
    %6760 = vmatprep.subr.bf16.mxu0 0
    %6761 = vmatpush1.bf16.msra.mxu0 %v6642
    %6762 = vmatprep.subr.bf16.mxu0 0
    %6763 = vmatpush2.bf16.msra.mxu0 %v6657
    %6764 = vmatprep.subr.bf16.mxu0 0
    %6765 = vmatpush2.bf16.msra.mxu0 %v6656
    %6766 = vmatprep.subr.bf16.mxu0 0
    %6767 = vmatpush2.bf16.msra.mxu0 %v6655
    %6768 = vmatprep.subr.bf16.mxu0 0
    %6769 = vmatpush2.bf16.msra.mxu0 %v6654
    %6770 = vmatprep.subr.bf16.mxu0 0
    %6771 = vmatpush2.bf16.msra.mxu0 %v6653
    %6772 = vmatprep.subr.bf16.mxu0 0
    %6773 = vmatpush2.bf16.msra.mxu0 %v6652
    %6774 = vmatprep.subr.bf16.mxu0 0
    %6775 = vmatpush2.bf16.msra.mxu0 %v6651
    %6776 = vmatprep.subr.bf16.mxu0 0
    %6777 = vmatpush2.bf16.msra.mxu0 %v6650
    %6778 = vmatprep.mubr.bf16.mxu0 %v6457
    %6779 = vmatmul.mubr.bf16.gmra.mxu0 %v6456
    %v6780 = vpop.f32.mrf.mxu0
    %v6781 = vadd.f32 %v6741, %v6780
    %v6782 = vpop.f32.mrf.mxu0
    %v6783 = vpop.f32.mrf.mxu0
    %v6784 = vpop.f32.mrf.mxu0
    %6785 = vdwg.mxu0
    %6786 = vmatprep.subr.bf16.mxu0 0
    %6787 = vmatpush1.bf16.msra.mxu0 %v6665
    %6788 = vmatprep.subr.bf16.mxu0 0
    %6789 = vmatpush1.bf16.msra.mxu0 %v6664
    %6790 = vmatprep.subr.bf16.mxu0 0
    %6791 = vmatpush1.bf16.msra.mxu0 %v6663
    %6792 = vmatprep.subr.bf16.mxu0 0
    %6793 = vmatpush1.bf16.msra.mxu0 %v6662
    %6794 = vmatprep.subr.bf16.mxu0 0
    %6795 = vmatpush1.bf16.msra.mxu0 %v6661
    %6796 = vmatprep.subr.bf16.mxu0 0
    %6797 = vmatpush1.bf16.msra.mxu0 %v6660
    %6798 = vmatprep.subr.bf16.mxu0 0
    %6799 = vmatpush1.bf16.msra.mxu0 %v6659
    %6800 = vmatprep.subr.bf16.mxu0 0
    %6801 = vmatpush1.bf16.msra.mxu0 %v6658
    %6802 = vmatprep.subr.bf16.mxu0 0
    %6803 = vmatpush2.bf16.msra.mxu0 0
    %6804 = vmatprep.subr.bf16.mxu0 0
    %6805 = vmatpush2.bf16.msra.mxu0 0
    %6806 = vmatprep.subr.bf16.mxu0 0
    %6807 = vmatpush2.bf16.msra.mxu0 0
    %6808 = vmatprep.subr.bf16.mxu0 0
    %6809 = vmatpush2.bf16.msra.mxu0 0
    %6810 = vmatprep.subr.bf16.mxu0 0
    %6811 = vmatpush2.bf16.msra.mxu0 0
    %6812 = vmatprep.subr.bf16.mxu0 0
    %6813 = vmatpush2.bf16.msra.mxu0 0
    %6814 = vmatprep.subr.bf16.mxu0 0
    %6815 = vmatpush2.bf16.msra.mxu0 0
    %6816 = vmatprep.subr.bf16.mxu0 0
    %6817 = vmatpush2.bf16.msra.mxu0 0
    %6818 = vmatprep.mubr.bf16.mxu0 0
    %6819 = vmatmul.mubr.bf16.gmra.mxu0 %v6458
    %v6820 = vpop.f32.mrf.mxu0
    %v6821 = vadd.f32 %v6781, %v6820
    %v6822 = vpop.f32.mrf.mxu0
    %v6823 = vpop.f32.mrf.mxu0
    %v6824 = vpop.f32.mrf.mxu0
    %6825 = vdwg.mxu0
    %v6826 = vxor.u32 %v6821, 2147483648
    %v6827 = vmul.f32 %v6826, 1.442695
    %v6828 = vpow.pop %v6827
    %v6829 = vadd.f32 %v6828, 1.0
    %v6830 = vrcp.pop %v6829
    %v6831 = vmul.f32 1.0, %v6830
    %6832 = vst [vmem:[#allocation53] sm:$0xff] %v5677
    %6833 = vst [vmem:[#allocation53 + $0x8] sm:$0xff] %v5678
    %6834 = vst [vmem:[%s91] sm:$0xff] %v6831
    // Predicated region
    $region278: #{forward.1} parent=1 // pred_check
      _
    $region279: #{forward.1} parent=1 // pred_check_branch
      %6836 = sbr.rel (0) target = $region281
    $region280: #{forward.1} parent=1 // pred_region
      %s6838 = ssub.s32 256, 256
      %6839 = vsyncadd [#allocation16], %s6838
      %s6841 = sshll.u32 [#allocation53], 4
      %s6842 = int_to_ptr.vmem [resolvable:$true] %s6841
      %6844 = dma.vmem_to_hbm [thread:$0]  %s6842, 256, %s89, [#allocation16]
    $region281: #{forward.1} parent=1 // pred_fallthru
      _
    // Predicated region
    $region282: #{forward.1} parent=1 // pred_check
      _
    $region283: #{forward.1} parent=1 // pred_check_branch
      %6846 = sbr.rel (0) target = $region285
    $region284: #{forward.1} parent=1 // pred_region
      _
    $region285: #{forward.1} parent=1 // pred_fallthru
      _
    // Predicated region
    $region286: #{forward.1} parent=1 // pred_check
      _
    $region287: #{forward.1} parent=1 // pred_check_branch
      %6848 = sbr.rel (0) target = $region289
    $region288: #{forward.1} parent=1 // pred_region
      %6849 = dma.done [#allocation16], 256
    $region289: #{forward.1} parent=1 // pred_fallthru
      _
    // Predicated region
    $region290: #{forward.1} parent=1 // pred_check
      _
    $region291: #{forward.1} parent=1 // pred_check_branch
      %6851 = sbr.rel (0) target = $region293
    $region292: #{forward.1} parent=1 // pred_region
      _
    $region293: #{forward.1} parent=1 // pred_fallthru
      _
    %6852 = vsyncpa [#allocation15], 1
    %6853 = vsyncpa [#allocation18], 1
    %6854 = vsyncpa [#allocation21], 1
    %6855 = vsyncpa [#allocation24], 1
    %6856 = vsyncpa [#allocation27], 1
    %6857 = vsyncpa [#allocation30], 1
    %6858 = vsyncpa [#allocation33], 1
    %6859 = vsyncpa [#allocation36], 1
    %6860 = vsyncpa [#allocation39], 1
    %6861 = vsyncpa [#allocation42], 1
    %6862 = vsyncpa [#allocation45], 1
    %6863 = vsyncpa [#allocation48], 1
    %6864 = vsyncpa [#allocation51], 1
    %6865 = vsyncpa [#allocation16], 1
  %6866 = vsyncmov [#allocation13]
  %s6867 = vpop.sfrf %6866
  %p6868 = scmp.eq.s32.totalorder %s6867, 0
  %p6869 = pneg %p6868
  %6871 = shalt.err (%p6869)
  %s6872 = scalar_lea.sflag [#allocation13], 1
  %6873 = vsyncmov %s6872
  %s6874 = vpop.sfrf %6873
  %p6875 = scmp.eq.s32.totalorder %s6874, 0
  %p6876 = pneg %p6875
  %6878 = shalt.err (%p6876)
  %s6879 = scalar_lea.sflag [#allocation13], 2
  %6880 = vsyncmov %s6879
  %s6881 = vpop.sfrf %6880
  %p6882 = scmp.eq.s32.totalorder %s6881, 0
  %p6883 = pneg %p6882
  %6885 = shalt.err (%p6883)
  %s6886 = scalar_lea.sflag [#allocation13], 3
  %6887 = vsyncmov %s6886
  %s6888 = vpop.sfrf %6887
  %p6889 = scmp.eq.s32.totalorder %s6888, 0
  %p6890 = pneg %p6889
  %6892 = shalt.err (%p6890)
  %s6893 = scalar_lea.sflag [#allocation13], 4
  %6894 = vsyncmov %s6893
  %s6895 = vpop.sfrf %6894
  %p6896 = scmp.eq.s32.totalorder %s6895, 0
  %p6897 = pneg %p6896
  %6899 = shalt.err (%p6897)
  %s6900 = scalar_lea.sflag [#allocation13], 5
  %6901 = vsyncmov %s6900
  %s6902 = vpop.sfrf %6901
  %p6903 = scmp.eq.s32.totalorder %s6902, 0
  %p6904 = pneg %p6903
  %6906 = shalt.err (%p6904)
  %s6907 = scalar_lea.sflag [#allocation13], 6
  %6908 = vsyncmov %s6907
  %s6909 = vpop.sfrf %6908
  %p6910 = scmp.eq.s32.totalorder %s6909, 0
  %p6911 = pneg %p6910
  %6913 = shalt.err (%p6911)
  %s6914 = scalar_lea.sflag [#allocation13], 7
  %6915 = vsyncmov %s6914
  %s6916 = vpop.sfrf %6915
  %p6917 = scmp.eq.s32.totalorder %s6916, 0
  %p6918 = pneg %p6917
  %6920 = shalt.err (%p6918)
  %s6921 = scalar_lea.sflag [#allocation13], 8
  %6922 = vsyncmov %s6921
  %s6923 = vpop.sfrf %6922
  %p6924 = scmp.eq.s32.totalorder %s6923, 0
  %p6925 = pneg %p6924
  %6927 = shalt.err (%p6925)
  %s6928 = scalar_lea.sflag [#allocation13], 9
  %6929 = vsyncmov %s6928
  %s6930 = vpop.sfrf %6929
  %p6931 = scmp.eq.s32.totalorder %s6930, 0
  %p6932 = pneg %p6931
  %6934 = shalt.err (%p6932)
  %s6935 = scalar_lea.sflag [#allocation13], 10
  %6936 = vsyncmov %s6935
  %s6937 = vpop.sfrf %6936
  %p6938 = scmp.eq.s32.totalorder %s6937, 0
  %p6939 = pneg %p6938
  %6941 = shalt.err (%p6939)

</llo_original>
